<compile_context>
chip_gen: v5e
topology: v5e:2x2
jax: 0.10.0
libtpu: 0.0.40
codegen_flags: <defaults>
</compile_context>

<pallas_src>
import math
import numpy as np
import jax
import jax.numpy as jnp
from jax import lax
from jax.experimental import pallas as pl
from jax.experimental.pallas import tpu as pltpu

_LANE = 128  # lane-tile width; fused x_proj [B|C] segment is padded to this


# ----------------------------- small helpers --------------------------------

def _softplus(x):
    return jnp.maximum(x, 0.0) + jnp.log1p(jnp.exp(-jnp.abs(x)))


def _round_up(x, m):
    return -(-x // m) * m


def pixel_unshuffle(x, r):
    B, C, H, W = x.shape
    x = x.reshape(B, C, H // r, r, W // r, r)
    x = jnp.transpose(x, (0, 1, 3, 5, 2, 4))
    return x.reshape(B, C * r * r, H // r, W // r)


def pixel_shuffle(x, r):
    B, Crr, H, W = x.shape
    C = Crr // (r * r)
    x = x.reshape(B, C, r, r, H, W)
    x = jnp.transpose(x, (0, 1, 4, 2, 5, 3))
    return x.reshape(B, C, H * r, W * r)


# ------------------------------ Pallas kernel --------------------------------

def make_ssm_kernel(Bt, L, d_model, d_inner, d_state, d_conv, time_chunk,
                    eps=1e-5):
    M = Bt * L                      # rows processed per grid step
    CH = time_chunk                 # scan steps unrolled per chunk
    n_chunks = L // CH
    P = _round_up(d_inner, _LANE)   # lane offset of the packed [B|C] segment
    f32 = jnp.float32
    bf16 = jnp.bfloat16

    def kernel(x_ref, mask_ref, gamma_ref, beta_ref, w_in_ref, w_conv_ref,
               b_conv_ref, w_xp_ref, b_dt_ref, a_ref, d_ref, w_out_ref,
               o_ref,
               u_ref, delta_ref, w_ref, bc_ref, gate_ref, ys_ref):
        # ------------- batched dense phase over M = Bt*L rows ---------------
        x = x_ref[...]                                          # (M, d_model)

        # LayerNorm over d_model
        mu = jnp.mean(x, axis=-1, keepdims=True)
        var = jnp.mean((x - mu) ** 2, axis=-1, keepdims=True)
        xn = (x - mu) * lax.rsqrt(var + eps)
        xn = xn * gamma_ref[...] + beta_ref[...]

        # fused in_proj: single (M, D) @ (D, 2*d_inner) bf16 matmul, f32 acc
        proj = jnp.dot(xn.astype(bf16), w_in_ref[...],
                       preferred_element_type=f32)              # (M, 2*d_inner)
        xin = proj[:, :d_inner]
        res = proj[:, d_inner:]
        gate_ref[...] = res * jax.nn.sigmoid(res)               # silu(res) gate

        # causal depthwise conv1d: shifted taps via pltpu.roll (sublane rotate
        # on the XLU, no pad buffer).  Batch tiles are flattened, so a per-
        # shift 0/1 mask zeroes rows that would otherwise wrap across a batch
        # (sequence) boundary -- exactly the rows the roll wraps.
        wc = w_conv_ref[...]                                    # (d_conv, d_inner)
        acc = xin * wc[d_conv - 1:d_conv, :]
        for k in range(d_conv - 1):                             # static unroll
            s = d_conv - 1 - k
            acc = acc + (pltpu.roll(xin, shift=s, axis=0)
                         * wc[k:k + 1, :]) * mask_ref[k]
        conv = acc + b_conv_ref[...]
        u = conv * jax.nn.sigmoid(conv)                         # SiLU
        u_ref[...] = u

        # fused x_proj with dt_proj folded in offline:
        #   columns [0, d_inner)        -> delta (pre-softplus, pre-bias)
        #   columns [P, P+2*d_state)    -> packed [B | C] (lane-dense 128 seg)
        xp = jnp.dot(u.astype(bf16), w_xp_ref[...],
                     preferred_element_type=f32)                # (M, P+128)
        delta = _softplus(xp[:, :d_inner] + b_dt_ref[...])      # (M, d_inner)
        delta_ref[...] = delta
        w_ref[...] = delta * u          # hoisted (delta * u) for the scan
        bc_ref[...] = xp[:, P:P + _LANE]                        # (M, 128) [B|C]

        # ----------------------- selective scan -----------------------------
        # All Bt sequence states are carried through ONE fori_loop (tuple of
        # register-resident (d_state, d_inner) arrays): the serial chain is L
        # steps, and per step the Bt sequences' exp / outer product / FMA are
        # independent work the scheduler interleaves.  A = -exp(A_log) is
        # precomputed offline.
        row_ids = lax.broadcasted_iota(jnp.int32, (CH, d_inner), 0)

        def chunk_body(c, states):
            a_t = a_ref[...]                                    # (d_state, d_inner)
            new_states = []
            for b in range(Bt):                                 # independent sequences
                t0 = pl.multiple_of(b * L + c * CH, CH)
                d_ch = delta_ref[pl.ds(t0, CH), :]              # aligned (CH, d_inner)
                w_ch = w_ref[pl.ds(t0, CH), :]
                bc_ch = bc_ref[pl.ds(t0, CH), :]                # (CH, 128) = [B|C]
                st = states[b]
                ys_chunk = jnp.zeros((CH, d_inner), f32)
                for j in range(CH):                             # static unroll
                    dA = jnp.exp(d_ch[j:j + 1, :] * a_t)        # (d_state, d_inner)
                    dbu = lax.dot_general(                      # outer(B_t, delta_t*u_t)
                        bc_ch[j:j + 1, :d_state], w_ch[j:j + 1, :],
                        (((0,), (0,)), ((), ())),
                        preferred_element_type=f32)             # (d_state, d_inner)
                    st = dA * st + dbu
                    y_j = jnp.dot(bc_ch[j:j + 1, d_state:2 * d_state], st,
                                  preferred_element_type=f32)   # (1, d_inner)
                    ys_chunk = jnp.where(row_ids == j, y_j, ys_chunk)
                # one aligned (CH, d_inner) store per chunk (no masked vst)
                ys_ref[pl.ds(t0, CH), :] = ys_chunk
                new_states.append(st)
            return tuple(new_states)

        lax.fori_loop(0, n_chunks, chunk_body,
                      tuple(jnp.zeros((d_state, d_inner), f32)
                            for _ in range(Bt)))

        # --------------- D skip, silu(res) gate, out_proj --------------------
        y = ys_ref[...] + u_ref[...] * d_ref[...]
        y = y * gate_ref[...]
        o_ref[...] = jnp.dot(y.astype(bf16), w_out_ref[...],
                             preferred_element_type=f32)        # (M, d_model)

    return kernel


def _conv_mask(Bt, L, d_conv):
    """0/1 masks (one per conv shift s=d_conv-1..1) zeroing cross-batch rows."""
    pos = np.tile(np.arange(L), Bt)
    masks = [(pos >= (d_conv - 1 - k)).astype(np.float32)
             for k in range(d_conv - 1)]
    return jnp.asarray(np.stack(masks, axis=0)[:, :, None])     # (d_conv-1, M, 1)


def _num_tensorcores_hint():
    """Best-effort hint for TensorCores per chip (v7x has 2)."""
    try:
        kind = jax.devices()[0].device_kind.lower()
    except Exception:
        return 1
    return 2 if "v7" in kind else 1


def ssm_pallas(x_seq, pp, *, d_state, d_conv, batch_tile=None):
    B, L, D = x_seq.shape
    d_inner = pp['d_param'].shape[1]
    assert 2 * d_state <= _LANE, "packed [B|C] scratch needs 2*d_state <= 128"
    if batch_tile is None:
        n_tc = _num_tensorcores_hint()
        cap_cores = max(1, B // n_tc)        # >= n_tc grid steps on multi-TC parts
        cap_state = 2                        # scan states carried in registers
        cap_rows = max(1, -(-256 // L))      # target >=256 matmul rows per tile
        batch_tile = max(1, min(B, cap_cores, cap_state, cap_rows))
    while B % batch_tile:
        batch_tile -= 1
    Bt = batch_tile
    M = Bt * L
    CH = math.gcd(L, 8)

    kernel = make_ssm_kernel(Bt, L, D, d_inner, d_state, d_conv, CH)
    mask = _conv_mask(Bt, L, d_conv)
    x2 = x_seq.reshape(B * L, D)            # flatten outside the kernel (free)

    def full(shape):
        return pl.BlockSpec(shape, lambda b, _n=len(shape): (0,) * _n)

    grid_spec = pltpu.PrefetchScalarGridSpec(
        num_scalar_prefetch=0,
        grid=(B // Bt,),
        in_specs=[
            pl.BlockSpec((M, D), lambda b: (b, 0)),     # Bt flattened sequences
            full(mask.shape),                           # conv batch-boundary masks
            full((1, D)), full((1, D)),                 # LN gamma / beta
            full(pp['w_in'].shape),                     # fused in_proj     (bf16)
            full(pp['w_conv'].shape), full((1, d_inner)),  # conv weight / bias
            full(pp['w_xp'].shape),                     # fused x_proj+dt   (bf16)
            full((1, d_inner)),                         # dt bias
            full((d_state, d_inner)),                   # A = -exp(A_log)
            full((1, d_inner)),                         # D
            full(pp['w_out'].shape),                    # out_proj          (bf16)
        ],
        out_specs=pl.BlockSpec((M, D), lambda b: (b, 0)),
        scratch_shapes=[
            pltpu.VMEM((M, d_inner), jnp.float32),      # u = silu(conv)
            pltpu.VMEM((M, d_inner), jnp.float32),      # delta
            pltpu.VMEM((M, d_inner), jnp.float32),      # delta * u
            pltpu.VMEM((M, _LANE), jnp.float32),        # packed [B | C]
            pltpu.VMEM((M, d_inner), jnp.float32),      # silu(res) gate
            pltpu.VMEM((M, d_inner), jnp.float32),      # ys
        ],
    )
    out2 = pl.pallas_call(
        kernel,
        out_shape=jax.ShapeDtypeStruct((B * L, D), jnp.float32),
        grid_spec=grid_spec,
        compiler_params=pltpu.CompilerParams(
            dimension_semantics=("parallel",)),         # batch tiles independent
    )(x2, mask, pp['gamma'], pp['beta'], pp['w_in'], pp['w_conv'],
      pp['b_conv'], pp['w_xp'], pp['b_dt'], pp['A'], pp['d_param'],
      pp['w_out'])
    return out2.reshape(B, L, D)


# ------------------------- pure-JAX reference (check) ------------------------

def ssm_ref(x_seq, pp, *, d_state, d_conv, eps=1e-5):
    B, L, D = x_seq.shape
    d_inner = pp['d_param'].shape[1]
    P = _round_up(d_inner, _LANE)
    f32, bf16 = jnp.float32, jnp.bfloat16
    mu = jnp.mean(x_seq, -1, keepdims=True)
    var = jnp.mean((x_seq - mu) ** 2, -1, keepdims=True)
    xn = (x_seq - mu) * lax.rsqrt(var + eps) * pp['gamma'][0] + pp['beta'][0]
    proj = jnp.dot(xn.astype(bf16), pp['w_in'], preferred_element_type=f32)
    xin, res = proj[..., :d_inner], proj[..., d_inner:]
    xpad = jnp.pad(xin, ((0, 0), (d_conv - 1, 0), (0, 0)))
    conv = pp['b_conv'][0]
    for k in range(d_conv):
        conv = conv + xpad[:, k:k + L, :] * pp['w_conv'][k][None, None, :]
    u = conv * jax.nn.sigmoid(conv)
    xp = jnp.dot(u.astype(bf16), pp['w_xp'], preferred_element_type=f32)
    delta = _softplus(xp[..., :d_inner] + pp['b_dt'][0])
    Bm = xp[..., P:P + d_state]
    Cm = xp[..., P + d_state:P + 2 * d_state]
    A = pp['A']                                                 # (d_state, d_inner)

    def step(state, inp):
        d_t, u_t, b_t, c_t = inp
        dA = jnp.exp(d_t[:, None, :] * A[None])
        dbu = b_t[:, :, None] * (d_t * u_t)[:, None, :]
        state = dA * state + dbu
        y = jnp.einsum('bn,bnd->bd', c_t, state)
        return state, y

    xs = (jnp.swapaxes(delta, 0, 1), jnp.swapaxes(u, 0, 1),
          jnp.swapaxes(Bm, 0, 1), jnp.swapaxes(Cm, 0, 1))
    _, ys = lax.scan(step, jnp.zeros((B, d_state, d_inner), f32), xs)
    ys = jnp.swapaxes(ys, 0, 1)
    y = (ys + u * pp['d_param'][0]) * (res * jax.nn.sigmoid(res))
    return jnp.dot(y.astype(bf16), pp['w_out'], preferred_element_type=f32)


# --------------------------- full ShuffledSSM forward ------------------------

def shuffled_ssm_forward(x, pp, *, shuffle_factor, d_state, d_conv,
                         use_pallas=True):
    B, C, H, W = x.shape
    r = shuffle_factor
    xu = pixel_unshuffle(x, r)                                  # (B, C*r^2, H/r, W/r)
    _, Cp, Hp, Wp = xu.shape
    L = Hp * Wp
    x_seq = jnp.transpose(xu, (0, 2, 3, 1)).reshape(B, L, Cp)   # b (h w) c
    fn = ssm_pallas if use_pallas else ssm_ref
    y_seq = fn(x_seq, pp, d_state=d_state, d_conv=d_conv)
    y = jnp.transpose(y_seq.reshape(B, Hp, Wp, Cp), (0, 3, 1, 2))
    return pixel_shuffle(y, r) + x


# ---------------------------- deterministic params ---------------------------

def init_params(key, in_channels, shuffle_factor, d_state, d_conv=4, expand=2):
    d_model = in_channels * shuffle_factor ** 2
    d_inner = expand * d_model
    dt_rank = -(-d_model // 16)                                 # ceil(d_model / 16)
    ks = jax.random.split(key, 9)

    def nrm(k, shape, fan_in):
        return jax.random.normal(k, shape, jnp.float32) / jnp.sqrt(float(fan_in))

    a_log_T = jnp.log(jnp.tile(
        jnp.arange(1, d_state + 1, dtype=jnp.float32)[:, None], (1, d_inner)))
    return dict(
        gamma=jnp.ones((1, d_model), jnp.float32),
        beta=jnp.zeros((1, d_model), jnp.float32),
        w_in_x=nrm(ks[0], (d_model, d_inner), d_model),
        w_in_res=nrm(ks[1], (d_model, d_inner), d_model),
        w_conv=nrm(ks[2], (d_conv, d_inner), d_conv),
        b_conv=0.1 * jax.random.normal(ks[3], (1, d_inner), jnp.float32),
        w_xp_dt=nrm(ks[4], (d_inner, dt_rank), d_inner),
        w_xp_B=nrm(ks[5], (d_inner, d_state), d_inner),
        w_xp_C=nrm(ks[6], (d_inner, d_state), d_inner),
        w_dt=nrm(ks[7], (dt_rank, d_inner), dt_rank),
        b_dt=jnp.full((1, d_inner), 0.1, jnp.float32),
        a_log_T=a_log_T,
        d_param=jnp.ones((1, d_inner), jnp.float32),
        w_out=nrm(ks[8], (d_inner, d_model), d_inner),
    )


def prepare_params(p):
    """Fuse in_proj halves, fold dt_proj into x_proj, precompute A, cast bf16."""
    d_state = p['w_xp_B'].shape[1]
    d_inner = p['w_in_x'].shape[1]
    assert 2 * d_state <= _LANE, "packed [B|C] layout needs 2*d_state <= 128"
    P = _round_up(d_inner, _LANE)
    bf16 = jnp.bfloat16
    w_in = jnp.concatenate([p['w_in_x'], p['w_in_res']], axis=1)
    # fold dt_proj: (u @ w_xp_dt) @ w_dt == u @ (w_xp_dt @ w_dt)   (f32 fold)
    w_dt_full = jnp.dot(p['w_xp_dt'], p['w_dt'])                # (d_inner, d_inner)
    # fused x_proj layout: [dt_full(d_inner) | pad to P | B(d_state) | C(d_state) | pad]
    w_xp = jnp.zeros((d_inner, P + _LANE), jnp.float32)
    w_xp = w_xp.at[:, :d_inner].set(w_dt_full)
    w_xp = w_xp.at[:, P:P + d_state].set(p['w_xp_B'])
    w_xp = w_xp.at[:, P + d_state:P + 2 * d_state].set(p['w_xp_C'])
    return dict(
        gamma=p['gamma'], beta=p['beta'],
        w_in=w_in.astype(bf16),
        w_conv=p['w_conv'], b_conv=p['b_conv'],
        w_xp=w_xp.astype(bf16),
        b_dt=p['b_dt'],
        A=-jnp.exp(p['a_log_T']),       # precomputed offline (no in-kernel exp)
        d_param=p['d_param'],
        w_out=p['w_out'].astype(bf16),
    )


# ----------------------------------- main ------------------------------------

if __name__ == "__main__":
    B, C, H, W = 2, 8, 16, 16
    shuffle_factor = 4
    d_state = 64          # module default
    d_conv = 4

    key = jax.random.PRNGKey(0)
    kx, kp = jax.random.split(key)
    x = jax.random.normal(kx, (B, C, H, W), jnp.float32)
    raw = init_params(kp, C, shuffle_factor, d_state, d_conv)
    pp = prepare_params(raw)

    out = jax.block_until_ready(
        shuffled_ssm_forward(x, pp, shuffle_factor=shuffle_factor,
                             d_state=d_state, d_conv=d_conv, use_pallas=True))
    ref = jax.block_until_ready(
        shuffled_ssm_forward(x, pp, shuffle_factor=shuffle_factor,
                             d_state=d_state, d_conv=d_conv, use_pallas=False))

    assert out.shape == x.shape and out.dtype == x.dtype
    np.testing.assert_allclose(np.asarray(out), np.asarray(ref),
                               rtol=1e-2, atol=1e-2)
    print("KERNEL_OK")
</pallas_src>

<mosaic_0001>
module attributes {stable_mosaic.version = 11 : i64} {
  func.func @kernel(%arg0: i32, %arg1: memref<32x128xf32, #tpu.memory_space<vmem>>, %arg2: memref<3x32x1xf32, #tpu.memory_space<vmem>>, %arg3: memref<1x128xf32, #tpu.memory_space<vmem>>, %arg4: memref<1x128xf32, #tpu.memory_space<vmem>>, %arg5: memref<128x512xbf16, #tpu.memory_space<vmem>>, %arg6: memref<4x256xf32, #tpu.memory_space<vmem>>, %arg7: memref<1x256xf32, #tpu.memory_space<vmem>>, %arg8: memref<256x384xbf16, #tpu.memory_space<vmem>>, %arg9: memref<1x256xf32, #tpu.memory_space<vmem>>, %arg10: memref<64x256xf32, #tpu.memory_space<vmem>>, %arg11: memref<1x256xf32, #tpu.memory_space<vmem>>, %arg12: memref<256x128xbf16, #tpu.memory_space<vmem>>, %arg13: memref<32x128xf32, #tpu.memory_space<vmem>>, %arg14: memref<32x256xf32, #tpu.memory_space<vmem>>, %arg15: memref<32x256xf32, #tpu.memory_space<vmem>>, %arg16: memref<32x256xf32, #tpu.memory_space<vmem>>, %arg17: memref<32x128xf32, #tpu.memory_space<vmem>>, %arg18: memref<32x256xf32, #tpu.memory_space<vmem>>, %arg19: memref<32x256xf32, #tpu.memory_space<vmem>>) attributes {dimension_semantics = [#tpu.dimension_semantics<parallel>], iteration_bounds = array<i64: 1>, scalar_prefetch = 0 : i64, scratch_operands = 6 : i64, tpu.core_type = #tpu.core_type<tc>, window_params = [{transform_indices = @transform_0, window_bounds = array<i64: 32, 128>}, {pipeline_mode = #tpu.pipeline_mode<synchronous>, transform_indices = @transform_1, window_bounds = array<i64: 3, 32, 1>}, {pipeline_mode = #tpu.pipeline_mode<synchronous>, transform_indices = @transform_2, window_bounds = array<i64: 1, 128>}, {pipeline_mode = #tpu.pipeline_mode<synchronous>, transform_indices = @transform_3, window_bounds = array<i64: 1, 128>}, {pipeline_mode = #tpu.pipeline_mode<synchronous>, transform_indices = @transform_4, window_bounds = array<i64: 128, 512>}, {pipeline_mode = #tpu.pipeline_mode<synchronous>, transform_indices = @transform_5, window_bounds = array<i64: 4, 256>}, {pipeline_mode = #tpu.pipeline_mode<synchronous>, transform_indices = @transform_6, window_bounds = array<i64: 1, 256>}, {pipeline_mode = #tpu.pipeline_mode<synchronous>, transform_indices = @transform_7, window_bounds = array<i64: 256, 384>}, {pipeline_mode = #tpu.pipeline_mode<synchronous>, transform_indices = @transform_8, window_bounds = array<i64: 1, 256>}, {pipeline_mode = #tpu.pipeline_mode<synchronous>, transform_indices = @transform_9, window_bounds = array<i64: 64, 256>}, {pipeline_mode = #tpu.pipeline_mode<synchronous>, transform_indices = @transform_10, window_bounds = array<i64: 1, 256>}, {pipeline_mode = #tpu.pipeline_mode<synchronous>, transform_indices = @transform_11, window_bounds = array<i64: 256, 128>}, {transform_indices = @transform_12, window_bounds = array<i64: 32, 128>}]} {
    %c0 = arith.constant 0 : index
    %c0_0 = arith.constant 0 : index
    %0 = vector.load %arg1[%c0, %c0_0] : memref<32x128xf32, #tpu.memory_space<vmem>>, vector<32x128xf32>
    %cst = arith.constant dense<0.000000e+00> : vector<32xf32>
    %1 = vector.multi_reduction <add>, %0, %cst [1] : vector<32x128xf32> to vector<32xf32>
    %2 = vector.shape_cast %1 : vector<32xf32> to vector<32x1xf32>
    %cst_1 = arith.constant 1.280000e+02 : f32
    %3 = vector.broadcast %cst_1 : f32 to vector<32x1xf32>
    %4 = arith.divf %2, %3 : vector<32x1xf32>
    %5 = vector.broadcast %4 : vector<32x1xf32> to vector<32x128xf32>
    %6 = arith.subf %0, %5 : vector<32x128xf32>
    %7 = arith.mulf %6, %6 : vector<32x128xf32>
    %cst_2 = arith.constant dense<0.000000e+00> : vector<32xf32>
    %8 = vector.multi_reduction <add>, %7, %cst_2 [1] : vector<32x128xf32> to vector<32xf32>
    %9 = vector.shape_cast %8 : vector<32xf32> to vector<32x1xf32>
    %cst_3 = arith.constant 1.280000e+02 : f32
    %10 = vector.broadcast %cst_3 : f32 to vector<32x1xf32>
    %11 = arith.divf %9, %10 : vector<32x1xf32>
    %12 = vector.broadcast %4 : vector<32x1xf32> to vector<32x128xf32>
    %13 = arith.subf %0, %12 : vector<32x128xf32>
    %cst_4 = arith.constant 9.99999974E-6 : f32
    %14 = vector.broadcast %cst_4 : f32 to vector<32x1xf32>
    %15 = arith.addf %11, %14 : vector<32x1xf32>
    %16 = math.rsqrt %15 : vector<32x1xf32>
    %17 = vector.broadcast %16 : vector<32x1xf32> to vector<32x128xf32>
    %18 = arith.mulf %13, %17 : vector<32x128xf32>
    %c0_5 = arith.constant 0 : index
    %c0_6 = arith.constant 0 : index
    %19 = vector.load %arg3[%c0_5, %c0_6] : memref<1x128xf32, #tpu.memory_space<vmem>>, vector<1x128xf32>
    %20 = vector.broadcast %19 : vector<1x128xf32> to vector<32x128xf32>
    %21 = arith.mulf %18, %20 : vector<32x128xf32>
    %c0_7 = arith.constant 0 : index
    %c0_8 = arith.constant 0 : index
    %22 = vector.load %arg4[%c0_7, %c0_8] : memref<1x128xf32, #tpu.memory_space<vmem>>, vector<1x128xf32>
    %23 = vector.broadcast %22 : vector<1x128xf32> to vector<32x128xf32>
    %24 = arith.addf %21, %23 : vector<32x128xf32>
    %25 = arith.truncf %24 : vector<32x128xf32> to vector<32x128xbf16>
    %c0_9 = arith.constant 0 : index
    %c0_10 = arith.constant 0 : index
    %26 = vector.load %arg5[%c0_9, %c0_10] : memref<128x512xbf16, #tpu.memory_space<vmem>>, vector<128x512xbf16>
    %cst_11 = arith.constant dense<0.000000e+00> : vector<32x512xf32>
    %27 = tpu.matmul %25, %26, %cst_11 {dimension_numbers = #tpu.dot_dimension_numbers<[1], [0], [0], [1], [0, 0, 1, 1], [], []>} : vector<32x128xbf16>, vector<128x512xbf16>, vector<32x512xf32> -> vector<32x512xf32>
    %28 = vector.extract_strided_slice %27 {offsets = [0, 0], sizes = [32, 256], strides = [1, 1]} : vector<32x512xf32> to vector<32x256xf32>
    %29 = vector.extract_strided_slice %27 {offsets = [0, 256], sizes = [32, 256], strides = [1, 1]} : vector<32x512xf32> to vector<32x256xf32>
    %30 = arith.negf %29 : vector<32x256xf32>
    %31 = math.exp %30 : vector<32x256xf32>
    %cst_12 = arith.constant 1.000000e+00 : f32
    %32 = vector.broadcast %cst_12 : f32 to vector<32x256xf32>
    %33 = arith.addf %32, %31 : vector<32x256xf32>
    %34 = arith.divf %32, %33 : vector<32x256xf32>
    %35 = arith.mulf %29, %34 : vector<32x256xf32>
    %c0_13 = arith.constant 0 : index
    %c0_14 = arith.constant 0 : index
    %36 = vector.load %arg18[%c0_13, %c0_14] : memref<32x256xf32, #tpu.memory_space<vmem>>, vector<32x256xf32>
    tpu.vector_store %arg18[%c0_13, %c0_14], %35 {strides = array<i32>} : memref<32x256xf32, #tpu.memory_space<vmem>>, vector<32x256xf32>,
    %c0_15 = arith.constant 0 : index
    %c0_16 = arith.constant 0 : index
    %37 = vector.load %arg6[%c0_15, %c0_16] : memref<4x256xf32, #tpu.memory_space<vmem>>, vector<4x256xf32>
    %38 = vector.extract_strided_slice %37 {offsets = [3, 0], sizes = [1, 256], strides = [1, 1]} : vector<4x256xf32> to vector<1x256xf32>
    %39 = vector.broadcast %38 : vector<1x256xf32> to vector<32x256xf32>
    %40 = arith.mulf %28, %39 : vector<32x256xf32>
    %c3_i32 = arith.constant 3 : i32
    %41 = tpu.dynamic_rotate %28 by %c3_i32 dim 0 : vector<32x256xf32>, i32 -> vector<32x256xf32>
    %42 = vector.extract_strided_slice %37 {offsets = [0, 0], sizes = [1, 256], strides = [1, 1]} : vector<4x256xf32> to vector<1x256xf32>
    %43 = vector.broadcast %42 : vector<1x256xf32> to vector<32x256xf32>
    %44 = arith.mulf %41, %43 : vector<32x256xf32>
    %c0_17 = arith.constant 0 : index
    %c0_18 = arith.constant 0 : index
    %c0_19 = arith.constant 0 : index
    %45 = vector.load %arg2[%c0_17, %c0_18, %c0_19] : memref<3x32x1xf32, #tpu.memory_space<vmem>>, vector<1x32x1xf32>
    %46 = vector.shape_cast %45 : vector<1x32x1xf32> to vector<32x1xf32>
    %47 = vector.broadcast %46 : vector<32x1xf32> to vector<32x256xf32>
    %48 = arith.mulf %44, %47 : vector<32x256xf32>
    %49 = arith.addf %40, %48 : vector<32x256xf32>
    %c2_i32 = arith.constant 2 : i32
    %50 = tpu.dynamic_rotate %28 by %c2_i32 dim 0 : vector<32x256xf32>, i32 -> vector<32x256xf32>
    %51 = vector.extract_strided_slice %37 {offsets = [1, 0], sizes = [1, 256], strides = [1, 1]} : vector<4x256xf32> to vector<1x256xf32>
    %52 = vector.broadcast %51 : vector<1x256xf32> to vector<32x256xf32>
    %53 = arith.mulf %50, %52 : vector<32x256xf32>
    %c1 = arith.constant 1 : index
    %c0_20 = arith.constant 0 : index
    %c0_21 = arith.constant 0 : index
    %54 = vector.load %arg2[%c1, %c0_20, %c0_21] : memref<3x32x1xf32, #tpu.memory_space<vmem>>, vector<1x32x1xf32>
    %55 = vector.shape_cast %54 : vector<1x32x1xf32> to vector<32x1xf32>
    %56 = vector.broadcast %55 : vector<32x1xf32> to vector<32x256xf32>
    %57 = arith.mulf %53, %56 : vector<32x256xf32>
    %58 = arith.addf %49, %57 : vector<32x256xf32>
    %c1_i32 = arith.constant 1 : i32
    %59 = tpu.dynamic_rotate %28 by %c1_i32 dim 0 : vector<32x256xf32>, i32 -> vector<32x256xf32>
    %60 = vector.extract_strided_slice %37 {offsets = [2, 0], sizes = [1, 256], strides = [1, 1]} : vector<4x256xf32> to vector<1x256xf32>
    %61 = vector.broadcast %60 : vector<1x256xf32> to vector<32x256xf32>
    %62 = arith.mulf %59, %61 : vector<32x256xf32>
    %c2 = arith.constant 2 : index
    %c0_22 = arith.constant 0 : index
    %c0_23 = arith.constant 0 : index
    %63 = vector.load %arg2[%c2, %c0_22, %c0_23] : memref<3x32x1xf32, #tpu.memory_space<vmem>>, vector<1x32x1xf32>
    %64 = vector.shape_cast %63 : vector<1x32x1xf32> to vector<32x1xf32>
    %65 = vector.broadcast %64 : vector<32x1xf32> to vector<32x256xf32>
    %66 = arith.mulf %62, %65 : vector<32x256xf32>
    %67 = arith.addf %58, %66 : vector<32x256xf32>
    %c0_24 = arith.constant 0 : index
    %c0_25 = arith.constant 0 : index
    %68 = vector.load %arg7[%c0_24, %c0_25] : memref<1x256xf32, #tpu.memory_space<vmem>>, vector<1x256xf32>
    %69 = vector.broadcast %68 : vector<1x256xf32> to vector<32x256xf32>
    %70 = arith.addf %67, %69 : vector<32x256xf32>
    %71 = arith.negf %70 : vector<32x256xf32>
    %72 = math.exp %71 : vector<32x256xf32>
    %cst_26 = arith.constant 1.000000e+00 : f32
    %73 = vector.broadcast %cst_26 : f32 to vector<32x256xf32>
    %74 = arith.addf %73, %72 : vector<32x256xf32>
    %75 = arith.divf %73, %74 : vector<32x256xf32>
    %76 = arith.mulf %70, %75 : vector<32x256xf32>
    %c0_27 = arith.constant 0 : index
    %c0_28 = arith.constant 0 : index
    %77 = vector.load %arg14[%c0_27, %c0_28] : memref<32x256xf32, #tpu.memory_space<vmem>>, vector<32x256xf32>
    tpu.vector_store %arg14[%c0_27, %c0_28], %76 {strides = array<i32>} : memref<32x256xf32, #tpu.memory_space<vmem>>, vector<32x256xf32>,
    %78 = arith.truncf %76 : vector<32x256xf32> to vector<32x256xbf16>
    %c0_29 = arith.constant 0 : index
    %c0_30 = arith.constant 0 : index
    %79 = vector.load %arg8[%c0_29, %c0_30] : memref<256x384xbf16, #tpu.memory_space<vmem>>, vector<256x384xbf16>
    %cst_31 = arith.constant dense<0.000000e+00> : vector<32x384xf32>
    %80 = tpu.matmul %78, %79, %cst_31 {dimension_numbers = #tpu.dot_dimension_numbers<[1], [0], [0], [1], [0, 0, 1, 1], [], []>} : vector<32x256xbf16>, vector<256x384xbf16>, vector<32x384xf32> -> vector<32x384xf32>
    %81 = vector.extract_strided_slice %80 {offsets = [0, 0], sizes = [32, 256], strides = [1, 1]} : vector<32x384xf32> to vector<32x256xf32>
    %c0_32 = arith.constant 0 : index
    %c0_33 = arith.constant 0 : index
    %82 = vector.load %arg9[%c0_32, %c0_33] : memref<1x256xf32, #tpu.memory_space<vmem>>, vector<1x256xf32>
    %83 = vector.broadcast %82 : vector<1x256xf32> to vector<32x256xf32>
    %84 = arith.addf %81, %83 : vector<32x256xf32>
    %cst_34 = arith.constant 0.000000e+00 : f32
    %85 = vector.broadcast %cst_34 : f32 to vector<32x256xf32>
    %86 = arith.maximumf %84, %85 : vector<32x256xf32>
    %87 = math.absf %84 : vector<32x256xf32>
    %cst_35 = arith.constant 0.000000e+00 : f32
    %88 = vector.broadcast %cst_35 : f32 to vector<32x256xf32>
    %89 = arith.subf %88, %87 : vector<32x256xf32>
    %90 = math.exp %89 : vector<32x256xf32>
    %91 = math.log1p %90 : vector<32x256xf32>
    %92 = arith.addf %86, %91 : vector<32x256xf32>
    %c0_36 = arith.constant 0 : index
    %c0_37 = arith.constant 0 : index
    %93 = vector.load %arg15[%c0_36, %c0_37] : memref<32x256xf32, #tpu.memory_space<vmem>>, vector<32x256xf32>
    tpu.vector_store %arg15[%c0_36, %c0_37], %92 {strides = array<i32>} : memref<32x256xf32, #tpu.memory_space<vmem>>, vector<32x256xf32>,
    %94 = arith.mulf %92, %76 : vector<32x256xf32>
    %c0_38 = arith.constant 0 : index
    %c0_39 = arith.constant 0 : index
    %95 = vector.load %arg16[%c0_38, %c0_39] : memref<32x256xf32, #tpu.memory_space<vmem>>, vector<32x256xf32>
    tpu.vector_store %arg16[%c0_38, %c0_39], %94 {strides = array<i32>} : memref<32x256xf32, #tpu.memory_space<vmem>>, vector<32x256xf32>,
    %96 = vector.extract_strided_slice %80 {offsets = [0, 256], sizes = [32, 128], strides = [1, 1]} : vector<32x384xf32> to vector<32x128xf32>
    %c0_40 = arith.constant 0 : index
    %c0_41 = arith.constant 0 : index
    %97 = vector.load %arg17[%c0_40, %c0_41] : memref<32x128xf32, #tpu.memory_space<vmem>>, vector<32x128xf32>
    tpu.vector_store %arg17[%c0_40, %c0_41], %96 {strides = array<i32>} : memref<32x128xf32, #tpu.memory_space<vmem>>, vector<32x128xf32>,
    %98 = tpu.iota {dimensions = array<i32: 0>} : vector<8x256xi32>
    %cst_42 = arith.constant 0.000000e+00 : f32
    %99 = vector.broadcast %cst_42 : f32 to vector<64x256xf32>
    %cst_43 = arith.constant 0.000000e+00 : f32
    %100 = vector.broadcast %cst_43 : f32 to vector<64x256xf32>
    %c0_i32 = arith.constant 0 : i32
    %c2_i32_44 = arith.constant 2 : i32
    %101 = arith.addi %c0_i32, %c2_i32_44 : i32
    %c1_i32_45 = arith.constant 1 : i32
    %102:2 = scf.for %arg20 = %c0_i32 to %101 step %c1_i32_45 iter_args(%arg21 = %99, %arg22 = %100) -> (vector<64x256xf32>, vector<64x256xf32>)  : i32 {
      %c0_60 = arith.constant 0 : index
      %c0_61 = arith.constant 0 : index
      %115 = vector.load %arg10[%c0_60, %c0_61] : memref<64x256xf32, #tpu.memory_space<vmem>>, vector<64x256xf32>
      %c8_i32 = arith.constant 8 : i32
      %116 = arith.muli %arg20, %c8_i32 : i32
      %c0_i32_62 = arith.constant 0 : i32
      %117 = arith.addi %c0_i32_62, %116 : i32
      %118 = tpu.assume_multiple %117, 8 : i32
      %119 = arith.index_cast %118 : i32 to index
      %c0_63 = arith.constant 0 : index
      %120 = vector.load %arg15[%119, %c0_63] : memref<32x256xf32, #tpu.memory_space<vmem>>, vector<8x256xf32>
      %121 = arith.index_cast %118 : i32 to index
      %c0_64 = arith.constant 0 : index
      %122 = vector.load %arg16[%121, %c0_64] : memref<32x256xf32, #tpu.memory_space<vmem>>, vector<8x256xf32>
      %123 = arith.index_cast %118 : i32 to index
      %c0_65 = arith.constant 0 : index
      %124 = vector.load %arg17[%123, %c0_65] : memref<32x128xf32, #tpu.memory_space<vmem>>, vector<8x128xf32>
      %cst_66 = arith.constant 0.000000e+00 : f32
      %125 = vector.broadcast %cst_66 : f32 to vector<8x256xf32>
      %126 = vector.extract_strided_slice %120 {offsets = [0, 0], sizes = [1, 256], strides = [1, 1]} : vector<8x256xf32> to vector<1x256xf32>
      %127 = vector.broadcast %126 : vector<1x256xf32> to vector<64x256xf32>
      %128 = arith.mulf %127, %115 : vector<64x256xf32>
      %129 = math.exp %128 : vector<64x256xf32>
      %130 = vector.extract_strided_slice %124 {offsets = [0, 0], sizes = [1, 64], strides = [1, 1]} : vector<8x128xf32> to vector<1x64xf32>
      %131 = vector.extract_strided_slice %122 {offsets = [0, 0], sizes = [1, 256], strides = [1, 1]} : vector<8x256xf32> to vector<1x256xf32>
      %cst_67 = arith.constant dense<0.000000e+00> : vector<64x256xf32>
      %132 = tpu.matmul %130, %131, %cst_67 {dimension_numbers = #tpu.dot_dimension_numbers<[0], [0], [1], [1], [0, 1, 1, 1], [], []>} : vector<1x64xf32>, vector<1x256xf32>, vector<64x256xf32> -> vector<64x256xf32>
      %133 = arith.mulf %129, %arg21 : vector<64x256xf32>
      %134 = arith.addf %133, %132 : vector<64x256xf32>
      %135 = vector.extract_strided_slice %124 {offsets = [0, 64], sizes = [1, 64], strides = [1, 1]} : vector<8x128xf32> to vector<1x64xf32>
      %cst_68 = arith.constant dense<0.000000e+00> : vector<1x256xf32>
      %136 = tpu.matmul %135, %134, %cst_68 {dimension_numbers = #tpu.dot_dimension_numbers<[1], [0], [0], [1], [0, 0, 1, 1], [], []>} : vector<1x64xf32>, vector<64x256xf32>, vector<1x256xf32> -> vector<1x256xf32>
      %c0_i32_69 = arith.constant 0 : i32
      %137 = vector.broadcast %c0_i32_69 : i32 to vector<8x256xi32>
      %138 = arith.cmpi eq, %98, %137 : vector<8x256xi32>
      %139 = vector.shape_cast %136 : vector<1x256xf32> to vector<1x256xf32>
      %140 = vector.broadcast %139 : vector<1x256xf32> to vector<8x256xf32>
      %141 = arith.select %138, %140, %125 : vector<8x256xi1>, vector<8x256xf32>
      %142 = vector.extract_strided_slice %120 {offsets = [1, 0], sizes = [1, 256], strides = [1, 1]} : vector<8x256xf32> to vector<1x256xf32>
      %143 = vector.broadcast %142 : vector<1x256xf32> to vector<64x256xf32>
      %144 = arith.mulf %143, %115 : vector<64x256xf32>
      %145 = math.exp %144 : vector<64x256xf32>
      %146 = vector.extract_strided_slice %124 {offsets = [1, 0], sizes = [1, 64], strides = [1, 1]} : vector<8x128xf32> to vector<1x64xf32>
      %147 = vector.extract_strided_slice %122 {offsets = [1, 0], sizes = [1, 256], strides = [1, 1]} : vector<8x256xf32> to vector<1x256xf32>
      %cst_70 = arith.constant dense<0.000000e+00> : vector<64x256xf32>
      %148 = tpu.matmul %146, %147, %cst_70 {dimension_numbers = #tpu.dot_dimension_numbers<[0], [0], [1], [1], [0, 1, 1, 1], [], []>} : vector<1x64xf32>, vector<1x256xf32>, vector<64x256xf32> -> vector<64x256xf32>
      %149 = arith.mulf %145, %134 : vector<64x256xf32>
      %150 = arith.addf %149, %148 : vector<64x256xf32>
      %151 = vector.extract_strided_slice %124 {offsets = [1, 64], sizes = [1, 64], strides = [1, 1]} : vector<8x128xf32> to vector<1x64xf32>
      %cst_71 = arith.constant dense<0.000000e+00> : vector<1x256xf32>
      %152 = tpu.matmul %151, %150, %cst_71 {dimension_numbers = #tpu.dot_dimension_numbers<[1], [0], [0], [1], [0, 0, 1, 1], [], []>} : vector<1x64xf32>, vector<64x256xf32>, vector<1x256xf32> -> vector<1x256xf32>
      %c1_i32_72 = arith.constant 1 : i32
      %153 = vector.broadcast %c1_i32_72 : i32 to vector<8x256xi32>
      %154 = arith.cmpi eq, %98, %153 : vector<8x256xi32>
      %155 = vector.shape_cast %152 : vector<1x256xf32> to vector<1x256xf32>
      %156 = vector.broadcast %155 : vector<1x256xf32> to vector<8x256xf32>
      %157 = arith.select %154, %156, %141 : vector<8x256xi1>, vector<8x256xf32>
      %158 = vector.extract_strided_slice %120 {offsets = [2, 0], sizes = [1, 256], strides = [1, 1]} : vector<8x256xf32> to vector<1x256xf32>
      %159 = vector.broadcast %158 : vector<1x256xf32> to vector<64x256xf32>
      %160 = arith.mulf %159, %115 : vector<64x256xf32>
      %161 = math.exp %160 : vector<64x256xf32>
      %162 = vector.extract_strided_slice %124 {offsets = [2, 0], sizes = [1, 64], strides = [1, 1]} : vector<8x128xf32> to vector<1x64xf32>
      %163 = vector.extract_strided_slice %122 {offsets = [2, 0], sizes = [1, 256], strides = [1, 1]} : vector<8x256xf32> to vector<1x256xf32>
      %cst_73 = arith.constant dense<0.000000e+00> : vector<64x256xf32>
      %164 = tpu.matmul %162, %163, %cst_73 {dimension_numbers = #tpu.dot_dimension_numbers<[0], [0], [1], [1], [0, 1, 1, 1], [], []>} : vector<1x64xf32>, vector<1x256xf32>, vector<64x256xf32> -> vector<64x256xf32>
      %165 = arith.mulf %161, %150 : vector<64x256xf32>
      %166 = arith.addf %165, %164 : vector<64x256xf32>
      %167 = vector.extract_strided_slice %124 {offsets = [2, 64], sizes = [1, 64], strides = [1, 1]} : vector<8x128xf32> to vector<1x64xf32>
      %cst_74 = arith.constant dense<0.000000e+00> : vector<1x256xf32>
      %168 = tpu.matmul %167, %166, %cst_74 {dimension_numbers = #tpu.dot_dimension_numbers<[1], [0], [0], [1], [0, 0, 1, 1], [], []>} : vector<1x64xf32>, vector<64x256xf32>, vector<1x256xf32> -> vector<1x256xf32>
      %c2_i32_75 = arith.constant 2 : i32
      %169 = vector.broadcast %c2_i32_75 : i32 to vector<8x256xi32>
      %170 = arith.cmpi eq, %98, %169 : vector<8x256xi32>
      %171 = vector.shape_cast %168 : vector<1x256xf32> to vector<1x256xf32>
      %172 = vector.broadcast %171 : vector<1x256xf32> to vector<8x256xf32>
      %173 = arith.select %170, %172, %157 : vector<8x256xi1>, vector<8x256xf32>
      %174 = vector.extract_strided_slice %120 {offsets = [3, 0], sizes = [1, 256], strides = [1, 1]} : vector<8x256xf32> to vector<1x256xf32>
      %175 = vector.broadcast %174 : vector<1x256xf32> to vector<64x256xf32>
      %176 = arith.mulf %175, %115 : vector<64x256xf32>
      %177 = math.exp %176 : vector<64x256xf32>
      %178 = vector.extract_strided_slice %124 {offsets = [3, 0], sizes = [1, 64], strides = [1, 1]} : vector<8x128xf32> to vector<1x64xf32>
      %179 = vector.extract_strided_slice %122 {offsets = [3, 0], sizes = [1, 256], strides = [1, 1]} : vector<8x256xf32> to vector<1x256xf32>
      %cst_76 = arith.constant dense<0.000000e+00> : vector<64x256xf32>
      %180 = tpu.matmul %178, %179, %cst_76 {dimension_numbers = #tpu.dot_dimension_numbers<[0], [0], [1], [1], [0, 1, 1, 1], [], []>} : vector<1x64xf32>, vector<1x256xf32>, vector<64x256xf32> -> vector<64x256xf32>
      %181 = arith.mulf %177, %166 : vector<64x256xf32>
      %182 = arith.addf %181, %180 : vector<64x256xf32>
      %183 = vector.extract_strided_slice %124 {offsets = [3, 64], sizes = [1, 64], strides = [1, 1]} : vector<8x128xf32> to vector<1x64xf32>
      %cst_77 = arith.constant dense<0.000000e+00> : vector<1x256xf32>
      %184 = tpu.matmul %183, %182, %cst_77 {dimension_numbers = #tpu.dot_dimension_numbers<[1], [0], [0], [1], [0, 0, 1, 1], [], []>} : vector<1x64xf32>, vector<64x256xf32>, vector<1x256xf32> -> vector<1x256xf32>
      %c3_i32_78 = arith.constant 3 : i32
      %185 = vector.broadcast %c3_i32_78 : i32 to vector<8x256xi32>
      %186 = arith.cmpi eq, %98, %185 : vector<8x256xi32>
      %187 = vector.shape_cast %184 : vector<1x256xf32> to vector<1x256xf32>
      %188 = vector.broadcast %187 : vector<1x256xf32> to vector<8x256xf32>
      %189 = arith.select %186, %188, %173 : vector<8x256xi1>, vector<8x256xf32>
      %190 = vector.extract_strided_slice %120 {offsets = [4, 0], sizes = [1, 256], strides = [1, 1]} : vector<8x256xf32> to vector<1x256xf32>
      %191 = vector.broadcast %190 : vector<1x256xf32> to vector<64x256xf32>
      %192 = arith.mulf %191, %115 : vector<64x256xf32>
      %193 = math.exp %192 : vector<64x256xf32>
      %194 = vector.extract_strided_slice %124 {offsets = [4, 0], sizes = [1, 64], strides = [1, 1]} : vector<8x128xf32> to vector<1x64xf32>
      %195 = vector.extract_strided_slice %122 {offsets = [4, 0], sizes = [1, 256], strides = [1, 1]} : vector<8x256xf32> to vector<1x256xf32>
      %cst_79 = arith.constant dense<0.000000e+00> : vector<64x256xf32>
      %196 = tpu.matmul %194, %195, %cst_79 {dimension_numbers = #tpu.dot_dimension_numbers<[0], [0], [1], [1], [0, 1, 1, 1], [], []>} : vector<1x64xf32>, vector<1x256xf32>, vector<64x256xf32> -> vector<64x256xf32>
      %197 = arith.mulf %193, %182 : vector<64x256xf32>
      %198 = arith.addf %197, %196 : vector<64x256xf32>
      %199 = vector.extract_strided_slice %124 {offsets = [4, 64], sizes = [1, 64], strides = [1, 1]} : vector<8x128xf32> to vector<1x64xf32>
      %cst_80 = arith.constant dense<0.000000e+00> : vector<1x256xf32>
      %200 = tpu.matmul %199, %198, %cst_80 {dimension_numbers = #tpu.dot_dimension_numbers<[1], [0], [0], [1], [0, 0, 1, 1], [], []>} : vector<1x64xf32>, vector<64x256xf32>, vector<1x256xf32> -> vector<1x256xf32>
      %c4_i32 = arith.constant 4 : i32
      %201 = vector.broadcast %c4_i32 : i32 to vector<8x256xi32>
      %202 = arith.cmpi eq, %98, %201 : vector<8x256xi32>
      %203 = vector.shape_cast %200 : vector<1x256xf32> to vector<1x256xf32>
      %204 = vector.broadcast %203 : vector<1x256xf32> to vector<8x256xf32>
      %205 = arith.select %202, %204, %189 : vector<8x256xi1>, vector<8x256xf32>
      %206 = vector.extract_strided_slice %120 {offsets = [5, 0], sizes = [1, 256], strides = [1, 1]} : vector<8x256xf32> to vector<1x256xf32>
      %207 = vector.broadcast %206 : vector<1x256xf32> to vector<64x256xf32>
      %208 = arith.mulf %207, %115 : vector<64x256xf32>
      %209 = math.exp %208 : vector<64x256xf32>
      %210 = vector.extract_strided_slice %124 {offsets = [5, 0], sizes = [1, 64], strides = [1, 1]} : vector<8x128xf32> to vector<1x64xf32>
      %211 = vector.extract_strided_slice %122 {offsets = [5, 0], sizes = [1, 256], strides = [1, 1]} : vector<8x256xf32> to vector<1x256xf32>
      %cst_81 = arith.constant dense<0.000000e+00> : vector<64x256xf32>
      %212 = tpu.matmul %210, %211, %cst_81 {dimension_numbers = #tpu.dot_dimension_numbers<[0], [0], [1], [1], [0, 1, 1, 1], [], []>} : vector<1x64xf32>, vector<1x256xf32>, vector<64x256xf32> -> vector<64x256xf32>
      %213 = arith.mulf %209, %198 : vector<64x256xf32>
      %214 = arith.addf %213, %212 : vector<64x256xf32>
      %215 = vector.extract_strided_slice %124 {offsets = [5, 64], sizes = [1, 64], strides = [1, 1]} : vector<8x128xf32> to vector<1x64xf32>
      %cst_82 = arith.constant dense<0.000000e+00> : vector<1x256xf32>
      %216 = tpu.matmul %215, %214, %cst_82 {dimension_numbers = #tpu.dot_dimension_numbers<[1], [0], [0], [1], [0, 0, 1, 1], [], []>} : vector<1x64xf32>, vector<64x256xf32>, vector<1x256xf32> -> vector<1x256xf32>
      %c5_i32 = arith.constant 5 : i32
      %217 = vector.broadcast %c5_i32 : i32 to vector<8x256xi32>
      %218 = arith.cmpi eq, %98, %217 : vector<8x256xi32>
      %219 = vector.shape_cast %216 : vector<1x256xf32> to vector<1x256xf32>
      %220 = vector.broadcast %219 : vector<1x256xf32> to vector<8x256xf32>
      %221 = arith.select %218, %220, %205 : vector<8x256xi1>, vector<8x256xf32>
      %222 = vector.extract_strided_slice %120 {offsets = [6, 0], sizes = [1, 256], strides = [1, 1]} : vector<8x256xf32> to vector<1x256xf32>
      %223 = vector.broadcast %222 : vector<1x256xf32> to vector<64x256xf32>
      %224 = arith.mulf %223, %115 : vector<64x256xf32>
      %225 = math.exp %224 : vector<64x256xf32>
      %226 = vector.extract_strided_slice %124 {offsets = [6, 0], sizes = [1, 64], strides = [1, 1]} : vector<8x128xf32> to vector<1x64xf32>
      %227 = vector.extract_strided_slice %122 {offsets = [6, 0], sizes = [1, 256], strides = [1, 1]} : vector<8x256xf32> to vector<1x256xf32>
      %cst_83 = arith.constant dense<0.000000e+00> : vector<64x256xf32>
      %228 = tpu.matmul %226, %227, %cst_83 {dimension_numbers = #tpu.dot_dimension_numbers<[0], [0], [1], [1], [0, 1, 1, 1], [], []>} : vector<1x64xf32>, vector<1x256xf32>, vector<64x256xf32> -> vector<64x256xf32>
      %229 = arith.mulf %225, %214 : vector<64x256xf32>
      %230 = arith.addf %229, %228 : vector<64x256xf32>
      %231 = vector.extract_strided_slice %124 {offsets = [6, 64], sizes = [1, 64], strides = [1, 1]} : vector<8x128xf32> to vector<1x64xf32>
      %cst_84 = arith.constant dense<0.000000e+00> : vector<1x256xf32>
      %232 = tpu.matmul %231, %230, %cst_84 {dimension_numbers = #tpu.dot_dimension_numbers<[1], [0], [0], [1], [0, 0, 1, 1], [], []>} : vector<1x64xf32>, vector<64x256xf32>, vector<1x256xf32> -> vector<1x256xf32>
      %c6_i32 = arith.constant 6 : i32
      %233 = vector.broadcast %c6_i32 : i32 to vector<8x256xi32>
      %234 = arith.cmpi eq, %98, %233 : vector<8x256xi32>
      %235 = vector.shape_cast %232 : vector<1x256xf32> to vector<1x256xf32>
      %236 = vector.broadcast %235 : vector<1x256xf32> to vector<8x256xf32>
      %237 = arith.select %234, %236, %221 : vector<8x256xi1>, vector<8x256xf32>
      %238 = vector.extract_strided_slice %120 {offsets = [7, 0], sizes = [1, 256], strides = [1, 1]} : vector<8x256xf32> to vector<1x256xf32>
      %239 = vector.broadcast %238 : vector<1x256xf32> to vector<64x256xf32>
      %240 = arith.mulf %239, %115 : vector<64x256xf32>
      %241 = math.exp %240 : vector<64x256xf32>
      %242 = vector.extract_strided_slice %124 {offsets = [7, 0], sizes = [1, 64], strides = [1, 1]} : vector<8x128xf32> to vector<1x64xf32>
      %243 = vector.extract_strided_slice %122 {offsets = [7, 0], sizes = [1, 256], strides = [1, 1]} : vector<8x256xf32> to vector<1x256xf32>
      %cst_85 = arith.constant dense<0.000000e+00> : vector<64x256xf32>
      %244 = tpu.matmul %242, %243, %cst_85 {dimension_numbers = #tpu.dot_dimension_numbers<[0], [0], [1], [1], [0, 1, 1, 1], [], []>} : vector<1x64xf32>, vector<1x256xf32>, vector<64x256xf32> -> vector<64x256xf32>
      %245 = arith.mulf %241, %230 : vector<64x256xf32>
      %246 = arith.addf %245, %244 : vector<64x256xf32>
      %247 = vector.extract_strided_slice %124 {offsets = [7, 64], sizes = [1, 64], strides = [1, 1]} : vector<8x128xf32> to vector<1x64xf32>
      %cst_86 = arith.constant dense<0.000000e+00> : vector<1x256xf32>
      %248 = tpu.matmul %247, %246, %cst_86 {dimension_numbers = #tpu.dot_dimension_numbers<[1], [0], [0], [1], [0, 0, 1, 1], [], []>} : vector<1x64xf32>, vector<64x256xf32>, vector<1x256xf32> -> vector<1x256xf32>
      %c7_i32 = arith.constant 7 : i32
      %249 = vector.broadcast %c7_i32 : i32 to vector<8x256xi32>
      %250 = arith.cmpi eq, %98, %249 : vector<8x256xi32>
      %251 = vector.shape_cast %248 : vector<1x256xf32> to vector<1x256xf32>
      %252 = vector.broadcast %251 : vector<1x256xf32> to vector<8x256xf32>
      %253 = arith.select %250, %252, %237 : vector<8x256xi1>, vector<8x256xf32>
      %254 = arith.index_cast %118 : i32 to index
      %c0_87 = arith.constant 0 : index
      %255 = vector.load %arg19[%254, %c0_87] : memref<32x256xf32, #tpu.memory_space<vmem>>, vector<8x256xf32>
      tpu.vector_store %arg19[%254, %c0_87], %253 {strides = array<i32>} : memref<32x256xf32, #tpu.memory_space<vmem>>, vector<8x256xf32>,
      %c8_i32_88 = arith.constant 8 : i32
      %256 = arith.muli %arg20, %c8_i32_88 : i32
      %c16_i32 = arith.constant 16 : i32
      %257 = arith.addi %c16_i32, %256 : i32
      %258 = tpu.assume_multiple %257, 8 : i32
      %259 = arith.index_cast %258 : i32 to index
      %c0_89 = arith.constant 0 : index
      %260 = vector.load %arg15[%259, %c0_89] : memref<32x256xf32, #tpu.memory_space<vmem>>, vector<8x256xf32>
      %261 = arith.index_cast %258 : i32 to index
      %c0_90 = arith.constant 0 : index
      %262 = vector.load %arg16[%261, %c0_90] : memref<32x256xf32, #tpu.memory_space<vmem>>, vector<8x256xf32>
      %263 = arith.index_cast %258 : i32 to index
      %c0_91 = arith.constant 0 : index
      %264 = vector.load %arg17[%263, %c0_91] : memref<32x128xf32, #tpu.memory_space<vmem>>, vector<8x128xf32>
      %cst_92 = arith.constant 0.000000e+00 : f32
      %265 = vector.broadcast %cst_92 : f32 to vector<8x256xf32>
      %266 = vector.extract_strided_slice %260 {offsets = [0, 0], sizes = [1, 256], strides = [1, 1]} : vector<8x256xf32> to vector<1x256xf32>
      %267 = vector.broadcast %266 : vector<1x256xf32> to vector<64x256xf32>
      %268 = arith.mulf %267, %115 : vector<64x256xf32>
      %269 = math.exp %268 : vector<64x256xf32>
      %270 = vector.extract_strided_slice %264 {offsets = [0, 0], sizes = [1, 64], strides = [1, 1]} : vector<8x128xf32> to vector<1x64xf32>
      %271 = vector.extract_strided_slice %262 {offsets = [0, 0], sizes = [1, 256], strides = [1, 1]} : vector<8x256xf32> to vector<1x256xf32>
      %cst_93 = arith.constant dense<0.000000e+00> : vector<64x256xf32>
      %272 = tpu.matmul %270, %271, %cst_93 {dimension_numbers = #tpu.dot_dimension_numbers<[0], [0], [1], [1], [0, 1, 1, 1], [], []>} : vector<1x64xf32>, vector<1x256xf32>, vector<64x256xf32> -> vector<64x256xf32>
      %273 = arith.mulf %269, %arg22 : vector<64x256xf32>
      %274 = arith.addf %273, %272 : vector<64x256xf32>
      %275 = vector.extract_strided_slice %264 {offsets = [0, 64], sizes = [1, 64], strides = [1, 1]} : vector<8x128xf32> to vector<1x64xf32>
      %cst_94 = arith.constant dense<0.000000e+00> : vector<1x256xf32>
      %276 = tpu.matmul %275, %274, %cst_94 {dimension_numbers = #tpu.dot_dimension_numbers<[1], [0], [0], [1], [0, 0, 1, 1], [], []>} : vector<1x64xf32>, vector<64x256xf32>, vector<1x256xf32> -> vector<1x256xf32>
      %c0_i32_95 = arith.constant 0 : i32
      %277 = vector.broadcast %c0_i32_95 : i32 to vector<8x256xi32>
      %278 = arith.cmpi eq, %98, %277 : vector<8x256xi32>
      %279 = vector.shape_cast %276 : vector<1x256xf32> to vector<1x256xf32>
      %280 = vector.broadcast %279 : vector<1x256xf32> to vector<8x256xf32>
      %281 = arith.select %278, %280, %265 : vector<8x256xi1>, vector<8x256xf32>
      %282 = vector.extract_strided_slice %260 {offsets = [1, 0], sizes = [1, 256], strides = [1, 1]} : vector<8x256xf32> to vector<1x256xf32>
      %283 = vector.broadcast %282 : vector<1x256xf32> to vector<64x256xf32>
      %284 = arith.mulf %283, %115 : vector<64x256xf32>
      %285 = math.exp %284 : vector<64x256xf32>
      %286 = vector.extract_strided_slice %264 {offsets = [1, 0], sizes = [1, 64], strides = [1, 1]} : vector<8x128xf32> to vector<1x64xf32>
      %287 = vector.extract_strided_slice %262 {offsets = [1, 0], sizes = [1, 256], strides = [1, 1]} : vector<8x256xf32> to vector<1x256xf32>
      %cst_96 = arith.constant dense<0.000000e+00> : vector<64x256xf32>
      %288 = tpu.matmul %286, %287, %cst_96 {dimension_numbers = #tpu.dot_dimension_numbers<[0], [0], [1], [1], [0, 1, 1, 1], [], []>} : vector<1x64xf32>, vector<1x256xf32>, vector<64x256xf32> -> vector<64x256xf32>
      %289 = arith.mulf %285, %274 : vector<64x256xf32>
      %290 = arith.addf %289, %288 : vector<64x256xf32>
      %291 = vector.extract_strided_slice %264 {offsets = [1, 64], sizes = [1, 64], strides = [1, 1]} : vector<8x128xf32> to vector<1x64xf32>
      %cst_97 = arith.constant dense<0.000000e+00> : vector<1x256xf32>
      %292 = tpu.matmul %291, %290, %cst_97 {dimension_numbers = #tpu.dot_dimension_numbers<[1], [0], [0], [1], [0, 0, 1, 1], [], []>} : vector<1x64xf32>, vector<64x256xf32>, vector<1x256xf32> -> vector<1x256xf32>
      %c1_i32_98 = arith.constant 1 : i32
      %293 = vector.broadcast %c1_i32_98 : i32 to vector<8x256xi32>
      %294 = arith.cmpi eq, %98, %293 : vector<8x256xi32>
      %295 = vector.shape_cast %292 : vector<1x256xf32> to vector<1x256xf32>
      %296 = vector.broadcast %295 : vector<1x256xf32> to vector<8x256xf32>
      %297 = arith.select %294, %296, %281 : vector<8x256xi1>, vector<8x256xf32>
      %298 = vector.extract_strided_slice %260 {offsets = [2, 0], sizes = [1, 256], strides = [1, 1]} : vector<8x256xf32> to vector<1x256xf32>
      %299 = vector.broadcast %298 : vector<1x256xf32> to vector<64x256xf32>
      %300 = arith.mulf %299, %115 : vector<64x256xf32>
      %301 = math.exp %300 : vector<64x256xf32>
      %302 = vector.extract_strided_slice %264 {offsets = [2, 0], sizes = [1, 64], strides = [1, 1]} : vector<8x128xf32> to vector<1x64xf32>
      %303 = vector.extract_strided_slice %262 {offsets = [2, 0], sizes = [1, 256], strides = [1, 1]} : vector<8x256xf32> to vector<1x256xf32>
      %cst_99 = arith.constant dense<0.000000e+00> : vector<64x256xf32>
      %304 = tpu.matmul %302, %303, %cst_99 {dimension_numbers = #tpu.dot_dimension_numbers<[0], [0], [1], [1], [0, 1, 1, 1], [], []>} : vector<1x64xf32>, vector<1x256xf32>, vector<64x256xf32> -> vector<64x256xf32>
      %305 = arith.mulf %301, %290 : vector<64x256xf32>
      %306 = arith.addf %305, %304 : vector<64x256xf32>
      %307 = vector.extract_strided_slice %264 {offsets = [2, 64], sizes = [1, 64], strides = [1, 1]} : vector<8x128xf32> to vector<1x64xf32>
      %cst_100 = arith.constant dense<0.000000e+00> : vector<1x256xf32>
      %308 = tpu.matmul %307, %306, %cst_100 {dimension_numbers = #tpu.dot_dimension_numbers<[1], [0], [0], [1], [0, 0, 1, 1], [], []>} : vector<1x64xf32>, vector<64x256xf32>, vector<1x256xf32> -> vector<1x256xf32>
      %c2_i32_101 = arith.constant 2 : i32
      %309 = vector.broadcast %c2_i32_101 : i32 to vector<8x256xi32>
      %310 = arith.cmpi eq, %98, %309 : vector<8x256xi32>
      %311 = vector.shape_cast %308 : vector<1x256xf32> to vector<1x256xf32>
      %312 = vector.broadcast %311 : vector<1x256xf32> to vector<8x256xf32>
      %313 = arith.select %310, %312, %297 : vector<8x256xi1>, vector<8x256xf32>
      %314 = vector.extract_strided_slice %260 {offsets = [3, 0], sizes = [1, 256], strides = [1, 1]} : vector<8x256xf32> to vector<1x256xf32>
      %315 = vector.broadcast %314 : vector<1x256xf32> to vector<64x256xf32>
      %316 = arith.mulf %315, %115 : vector<64x256xf32>
      %317 = math.exp %316 : vector<64x256xf32>
      %318 = vector.extract_strided_slice %264 {offsets = [3, 0], sizes = [1, 64], strides = [1, 1]} : vector<8x128xf32> to vector<1x64xf32>
      %319 = vector.extract_strided_slice %262 {offsets = [3, 0], sizes = [1, 256], strides = [1, 1]} : vector<8x256xf32> to vector<1x256xf32>
      %cst_102 = arith.constant dense<0.000000e+00> : vector<64x256xf32>
      %320 = tpu.matmul %318, %319, %cst_102 {dimension_numbers = #tpu.dot_dimension_numbers<[0], [0], [1], [1], [0, 1, 1, 1], [], []>} : vector<1x64xf32>, vector<1x256xf32>, vector<64x256xf32> -> vector<64x256xf32>
      %321 = arith.mulf %317, %306 : vector<64x256xf32>
      %322 = arith.addf %321, %320 : vector<64x256xf32>
      %323 = vector.extract_strided_slice %264 {offsets = [3, 64], sizes = [1, 64], strides = [1, 1]} : vector<8x128xf32> to vector<1x64xf32>
      %cst_103 = arith.constant dense<0.000000e+00> : vector<1x256xf32>
      %324 = tpu.matmul %323, %322, %cst_103 {dimension_numbers = #tpu.dot_dimension_numbers<[1], [0], [0], [1], [0, 0, 1, 1], [], []>} : vector<1x64xf32>, vector<64x256xf32>, vector<1x256xf32> -> vector<1x256xf32>
      %c3_i32_104 = arith.constant 3 : i32
      %325 = vector.broadcast %c3_i32_104 : i32 to vector<8x256xi32>
      %326 = arith.cmpi eq, %98, %325 : vector<8x256xi32>
      %327 = vector.shape_cast %324 : vector<1x256xf32> to vector<1x256xf32>
      %328 = vector.broadcast %327 : vector<1x256xf32> to vector<8x256xf32>
      %329 = arith.select %326, %328, %313 : vector<8x256xi1>, vector<8x256xf32>
      %330 = vector.extract_strided_slice %260 {offsets = [4, 0], sizes = [1, 256], strides = [1, 1]} : vector<8x256xf32> to vector<1x256xf32>
      %331 = vector.broadcast %330 : vector<1x256xf32> to vector<64x256xf32>
      %332 = arith.mulf %331, %115 : vector<64x256xf32>
      %333 = math.exp %332 : vector<64x256xf32>
      %334 = vector.extract_strided_slice %264 {offsets = [4, 0], sizes = [1, 64], strides = [1, 1]} : vector<8x128xf32> to vector<1x64xf32>
      %335 = vector.extract_strided_slice %262 {offsets = [4, 0], sizes = [1, 256], strides = [1, 1]} : vector<8x256xf32> to vector<1x256xf32>
      %cst_105 = arith.constant dense<0.000000e+00> : vector<64x256xf32>
      %336 = tpu.matmul %334, %335, %cst_105 {dimension_numbers = #tpu.dot_dimension_numbers<[0], [0], [1], [1], [0, 1, 1, 1], [], []>} : vector<1x64xf32>, vector<1x256xf32>, vector<64x256xf32> -> vector<64x256xf32>
      %337 = arith.mulf %333, %322 : vector<64x256xf32>
      %338 = arith.addf %337, %336 : vector<64x256xf32>
      %339 = vector.extract_strided_slice %264 {offsets = [4, 64], sizes = [1, 64], strides = [1, 1]} : vector<8x128xf32> to vector<1x64xf32>
      %cst_106 = arith.constant dense<0.000000e+00> : vector<1x256xf32>
      %340 = tpu.matmul %339, %338, %cst_106 {dimension_numbers = #tpu.dot_dimension_numbers<[1], [0], [0], [1], [0, 0, 1, 1], [], []>} : vector<1x64xf32>, vector<64x256xf32>, vector<1x256xf32> -> vector<1x256xf32>
      %c4_i32_107 = arith.constant 4 : i32
      %341 = vector.broadcast %c4_i32_107 : i32 to vector<8x256xi32>
      %342 = arith.cmpi eq, %98, %341 : vector<8x256xi32>
      %343 = vector.shape_cast %340 : vector<1x256xf32> to vector<1x256xf32>
      %344 = vector.broadcast %343 : vector<1x256xf32> to vector<8x256xf32>
      %345 = arith.select %342, %344, %329 : vector<8x256xi1>, vector<8x256xf32>
      %346 = vector.extract_strided_slice %260 {offsets = [5, 0], sizes = [1, 256], strides = [1, 1]} : vector<8x256xf32> to vector<1x256xf32>
      %347 = vector.broadcast %346 : vector<1x256xf32> to vector<64x256xf32>
      %348 = arith.mulf %347, %115 : vector<64x256xf32>
      %349 = math.exp %348 : vector<64x256xf32>
      %350 = vector.extract_strided_slice %264 {offsets = [5, 0], sizes = [1, 64], strides = [1, 1]} : vector<8x128xf32> to vector<1x64xf32>
      %351 = vector.extract_strided_slice %262 {offsets = [5, 0], sizes = [1, 256], strides = [1, 1]} : vector<8x256xf32> to vector<1x256xf32>
      %cst_108 = arith.constant dense<0.000000e+00> : vector<64x256xf32>
      %352 = tpu.matmul %350, %351, %cst_108 {dimension_numbers = #tpu.dot_dimension_numbers<[0], [0], [1], [1], [0, 1, 1, 1], [], []>} : vector<1x64xf32>, vector<1x256xf32>, vector<64x256xf32> -> vector<64x256xf32>
      %353 = arith.mulf %349, %338 : vector<64x256xf32>
      %354 = arith.addf %353, %352 : vector<64x256xf32>
      %355 = vector.extract_strided_slice %264 {offsets = [5, 64], sizes = [1, 64], strides = [1, 1]} : vector<8x128xf32> to vector<1x64xf32>
      %cst_109 = arith.constant dense<0.000000e+00> : vector<1x256xf32>
      %356 = tpu.matmul %355, %354, %cst_109 {dimension_numbers = #tpu.dot_dimension_numbers<[1], [0], [0], [1], [0, 0, 1, 1], [], []>} : vector<1x64xf32>, vector<64x256xf32>, vector<1x256xf32> -> vector<1x256xf32>
      %c5_i32_110 = arith.constant 5 : i32
      %357 = vector.broadcast %c5_i32_110 : i32 to vector<8x256xi32>
      %358 = arith.cmpi eq, %98, %357 : vector<8x256xi32>
      %359 = vector.shape_cast %356 : vector<1x256xf32> to vector<1x256xf32>
      %360 = vector.broadcast %359 : vector<1x256xf32> to vector<8x256xf32>
      %361 = arith.select %358, %360, %345 : vector<8x256xi1>, vector<8x256xf32>
      %362 = vector.extract_strided_slice %260 {offsets = [6, 0], sizes = [1, 256], strides = [1, 1]} : vector<8x256xf32> to vector<1x256xf32>
      %363 = vector.broadcast %362 : vector<1x256xf32> to vector<64x256xf32>
      %364 = arith.mulf %363, %115 : vector<64x256xf32>
      %365 = math.exp %364 : vector<64x256xf32>
      %366 = vector.extract_strided_slice %264 {offsets = [6, 0], sizes = [1, 64], strides = [1, 1]} : vector<8x128xf32> to vector<1x64xf32>
      %367 = vector.extract_strided_slice %262 {offsets = [6, 0], sizes = [1, 256], strides = [1, 1]} : vector<8x256xf32> to vector<1x256xf32>
      %cst_111 = arith.constant dense<0.000000e+00> : vector<64x256xf32>
      %368 = tpu.matmul %366, %367, %cst_111 {dimension_numbers = #tpu.dot_dimension_numbers<[0], [0], [1], [1], [0, 1, 1, 1], [], []>} : vector<1x64xf32>, vector<1x256xf32>, vector<64x256xf32> -> vector<64x256xf32>
      %369 = arith.mulf %365, %354 : vector<64x256xf32>
      %370 = arith.addf %369, %368 : vector<64x256xf32>
      %371 = vector.extract_strided_slice %264 {offsets = [6, 64], sizes = [1, 64], strides = [1, 1]} : vector<8x128xf32> to vector<1x64xf32>
      %cst_112 = arith.constant dense<0.000000e+00> : vector<1x256xf32>
      %372 = tpu.matmul %371, %370, %cst_112 {dimension_numbers = #tpu.dot_dimension_numbers<[1], [0], [0], [1], [0, 0, 1, 1], [], []>} : vector<1x64xf32>, vector<64x256xf32>, vector<1x256xf32> -> vector<1x256xf32>
      %c6_i32_113 = arith.constant 6 : i32
      %373 = vector.broadcast %c6_i32_113 : i32 to vector<8x256xi32>
      %374 = arith.cmpi eq, %98, %373 : vector<8x256xi32>
      %375 = vector.shape_cast %372 : vector<1x256xf32> to vector<1x256xf32>
      %376 = vector.broadcast %375 : vector<1x256xf32> to vector<8x256xf32>
      %377 = arith.select %374, %376, %361 : vector<8x256xi1>, vector<8x256xf32>
      %378 = vector.extract_strided_slice %260 {offsets = [7, 0], sizes = [1, 256], strides = [1, 1]} : vector<8x256xf32> to vector<1x256xf32>
      %379 = vector.broadcast %378 : vector<1x256xf32> to vector<64x256xf32>
      %380 = arith.mulf %379, %115 : vector<64x256xf32>
      %381 = math.exp %380 : vector<64x256xf32>
      %382 = vector.extract_strided_slice %264 {offsets = [7, 0], sizes = [1, 64], strides = [1, 1]} : vector<8x128xf32> to vector<1x64xf32>
      %383 = vector.extract_strided_slice %262 {offsets = [7, 0], sizes = [1, 256], strides = [1, 1]} : vector<8x256xf32> to vector<1x256xf32>
      %cst_114 = arith.constant dense<0.000000e+00> : vector<64x256xf32>
      %384 = tpu.matmul %382, %383, %cst_114 {dimension_numbers = #tpu.dot_dimension_numbers<[0], [0], [1], [1], [0, 1, 1, 1], [], []>} : vector<1x64xf32>, vector<1x256xf32>, vector<64x256xf32> -> vector<64x256xf32>
      %385 = arith.mulf %381, %370 : vector<64x256xf32>
      %386 = arith.addf %385, %384 : vector<64x256xf32>
      %387 = vector.extract_strided_slice %264 {offsets = [7, 64], sizes = [1, 64], strides = [1, 1]} : vector<8x128xf32> to vector<1x64xf32>
      %cst_115 = arith.constant dense<0.000000e+00> : vector<1x256xf32>
      %388 = tpu.matmul %387, %386, %cst_115 {dimension_numbers = #tpu.dot_dimension_numbers<[1], [0], [0], [1], [0, 0, 1, 1], [], []>} : vector<1x64xf32>, vector<64x256xf32>, vector<1x256xf32> -> vector<1x256xf32>
      %c7_i32_116 = arith.constant 7 : i32
      %389 = vector.broadcast %c7_i32_116 : i32 to vector<8x256xi32>
      %390 = arith.cmpi eq, %98, %389 : vector<8x256xi32>
      %391 = vector.shape_cast %388 : vector<1x256xf32> to vector<1x256xf32>
      %392 = vector.broadcast %391 : vector<1x256xf32> to vector<8x256xf32>
      %393 = arith.select %390, %392, %377 : vector<8x256xi1>, vector<8x256xf32>
      %394 = arith.index_cast %258 : i32 to index
      %c0_117 = arith.constant 0 : index
      %395 = vector.load %arg19[%394, %c0_117] : memref<32x256xf32, #tpu.memory_space<vmem>>, vector<8x256xf32>
      tpu.vector_store %arg19[%394, %c0_117], %393 {strides = array<i32>} : memref<32x256xf32, #tpu.memory_space<vmem>>, vector<8x256xf32>,
      scf.yield %246, %386 : vector<64x256xf32>, vector<64x256xf32>
    }
    %c2_i32_46 = arith.constant 2 : i32
    %c0_47 = arith.constant 0 : index
    %c0_48 = arith.constant 0 : index
    %103 = vector.load %arg19[%c0_47, %c0_48] : memref<32x256xf32, #tpu.memory_space<vmem>>, vector<32x256xf32>
    %c0_49 = arith.constant 0 : index
    %c0_50 = arith.constant 0 : index
    %104 = vector.load %arg14[%c0_49, %c0_50] : memref<32x256xf32, #tpu.memory_space<vmem>>, vector<32x256xf32>
    %c0_51 = arith.constant 0 : index
    %c0_52 = arith.constant 0 : index
    %105 = vector.load %arg11[%c0_51, %c0_52] : memref<1x256xf32, #tpu.memory_space<vmem>>, vector<1x256xf32>
    %106 = vector.broadcast %105 : vector<1x256xf32> to vector<32x256xf32>
    %107 = arith.mulf %104, %106 : vector<32x256xf32>
    %108 = arith.addf %103, %107 : vector<32x256xf32>
    %c0_53 = arith.constant 0 : index
    %c0_54 = arith.constant 0 : index
    %109 = vector.load %arg18[%c0_53, %c0_54] : memref<32x256xf32, #tpu.memory_space<vmem>>, vector<32x256xf32>
    %110 = arith.mulf %108, %109 : vector<32x256xf32>
    %111 = arith.truncf %110 : vector<32x256xf32> to vector<32x256xbf16>
    %c0_55 = arith.constant 0 : index
    %c0_56 = arith.constant 0 : index
    %112 = vector.load %arg12[%c0_55, %c0_56] : memref<256x128xbf16, #tpu.memory_space<vmem>>, vector<256x128xbf16>
    %cst_57 = arith.constant dense<0.000000e+00> : vector<32x128xf32>
    %113 = tpu.matmul %111, %112, %cst_57 {dimension_numbers = #tpu.dot_dimension_numbers<[1], [0], [0], [1], [0, 0, 1, 1], [], []>} : vector<32x256xbf16>, vector<256x128xbf16>, vector<32x128xf32> -> vector<32x128xf32>
    %c0_58 = arith.constant 0 : index
    %c0_59 = arith.constant 0 : index
    %114 = vector.load %arg13[%c0_58, %c0_59] : memref<32x128xf32, #tpu.memory_space<vmem>>, vector<32x128xf32>
    tpu.vector_store %arg13[%c0_58, %c0_59], %113 {strides = array<i32>} : memref<32x128xf32, #tpu.memory_space<vmem>>, vector<32x128xf32>,
    return
  }
  func.func @transform_0(%arg0: i32) -> (i32, i32) {
    %c0_i32 = arith.constant 0 : i32
    %c0_i32_0 = arith.constant 0 : i32
    return %arg0, %c0_i32 : i32, i32
  }
  func.func @transform_1(%arg0: i32) -> (i32, i32, i32) {
    %c0_i32 = arith.constant 0 : i32
    %c0_i32_0 = arith.constant 0 : i32
    %c0_i32_1 = arith.constant 0 : i32
    %c0_i32_2 = arith.constant 0 : i32
    return %c0_i32, %c0_i32_0, %c0_i32_1 : i32, i32, i32
  }
  func.func @transform_2(%arg0: i32) -> (i32, i32) {
    %c0_i32 = arith.constant 0 : i32
    %c0_i32_0 = arith.constant 0 : i32
    %c0_i32_1 = arith.constant 0 : i32
    return %c0_i32, %c0_i32_0 : i32, i32
  }
  func.func @transform_3(%arg0: i32) -> (i32, i32) {
    %c0_i32 = arith.constant 0 : i32
    %c0_i32_0 = arith.constant 0 : i32
    %c0_i32_1 = arith.constant 0 : i32
    return %c0_i32, %c0_i32_0 : i32, i32
  }
  func.func @transform_4(%arg0: i32) -> (i32, i32) {
    %c0_i32 = arith.constant 0 : i32
    %c0_i32_0 = arith.constant 0 : i32
    %c0_i32_1 = arith.constant 0 : i32
    return %c0_i32, %c0_i32_0 : i32, i32
  }
  func.func @transform_5(%arg0: i32) -> (i32, i32) {
    %c0_i32 = arith.constant 0 : i32
    %c0_i32_0 = arith.constant 0 : i32
    %c0_i32_1 = arith.constant 0 : i32
    return %c0_i32, %c0_i32_0 : i32, i32
  }
  func.func @transform_6(%arg0: i32) -> (i32, i32) {
    %c0_i32 = arith.constant 0 : i32
    %c0_i32_0 = arith.constant 0 : i32
    %c0_i32_1 = arith.constant 0 : i32
    return %c0_i32, %c0_i32_0 : i32, i32
  }
  func.func @transform_7(%arg0: i32) -> (i32, i32) {
    %c0_i32 = arith.constant 0 : i32
    %c0_i32_0 = arith.constant 0 : i32
    %c0_i32_1 = arith.constant 0 : i32
    return %c0_i32, %c0_i32_0 : i32, i32
  }
  func.func @transform_8(%arg0: i32) -> (i32, i32) {
    %c0_i32 = arith.constant 0 : i32
    %c0_i32_0 = arith.constant 0 : i32
    %c0_i32_1 = arith.constant 0 : i32
    return %c0_i32, %c0_i32_0 : i32, i32
  }
  func.func @transform_9(%arg0: i32) -> (i32, i32) {
    %c0_i32 = arith.constant 0 : i32
    %c0_i32_0 = arith.constant 0 : i32
    %c0_i32_1 = arith.constant 0 : i32
    return %c0_i32, %c0_i32_0 : i32, i32
  }
  func.func @transform_10(%arg0: i32) -> (i32, i32) {
    %c0_i32 = arith.constant 0 : i32
    %c0_i32_0 = arith.constant 0 : i32
    %c0_i32_1 = arith.constant 0 : i32
    return %c0_i32, %c0_i32_0 : i32, i32
  }
  func.func @transform_11(%arg0: i32) -> (i32, i32) {
    %c0_i32 = arith.constant 0 : i32
    %c0_i32_0 = arith.constant 0 : i32
    %c0_i32_1 = arith.constant 0 : i32
    return %c0_i32, %c0_i32_0 : i32, i32
  }
  func.func @transform_12(%arg0: i32) -> (i32, i32) {
    %c0_i32 = arith.constant 0 : i32
    %c0_i32_0 = arith.constant 0 : i32
    return %arg0, %c0_i32 : i32, i32
  }
}

</mosaic_0001>

<llo_original>
// kernel: tpu_custom_call.1
$region0: #{tpu_custom_call.1}
  #allocation0 [shape = 'u32[]', space=smem, size = 0x4, offset = 0x4, fixed_abs, tag = 'smem constant byte address 0x4 - core index']
  #allocation1 [shape = 'u32[72,128]{1,0:T(1,128)}', space=vmem, size = 0x9000, scoped, tag = 'internal scratch']
  #allocation2 [shape = 'f32[32,256]{1,0:T(8,128)}', space=vmem, size = 0x8000, scoped, tag = 'scratch operand']
  #allocation3 [shape = 'f32[32,256]{1,0:T(8,128)}', space=vmem, size = 0x8000, scoped, tag = 'scratch operand']
  #allocation4 [shape = 'f32[32,256]{1,0:T(8,128)}', space=vmem, size = 0x8000, scoped, tag = 'scratch operand']
  #allocation5 [shape = 'f32[32,128]{1,0:T(8,128)}', space=vmem, size = 0x4000, scoped, tag = 'scratch operand']
  #allocation6 [shape = 'f32[32,256]{1,0:T(8,128)}', space=vmem, size = 0x8000, scoped, tag = 'scratch operand']
  #allocation7 [shape = 'f32[32,256]{1,0:T(8,128)}', space=vmem, size = 0x8000, scoped, tag = 'scratch operand']
  %s0 = inlined_call_operand.vmem [shape: f32[32,128], index: 0, kind: input, shape index: {}]
  %s1 = inlined_call_operand.vmem [shape: f32[3,32,1], index: 1, kind: input, shape index: {}]
  %s2 = inlined_call_operand.vmem [shape: f32[1,128], index: 2, kind: input, shape index: {}]
  %s3 = inlined_call_operand.vmem [shape: f32[1,128], index: 3, kind: input, shape index: {}]
  %s4 = inlined_call_operand.hbm [shape: bf16[128,512], index: 4, kind: input, shape index: {}]
  %s5 = inlined_call_operand.vmem [shape: f32[4,256], index: 5, kind: input, shape index: {}]
  %s6 = inlined_call_operand.vmem [shape: f32[1,256], index: 6, kind: input, shape index: {}]
  %s7 = inlined_call_operand.hbm [shape: bf16[256,384], index: 7, kind: input, shape index: {}]
  %s8 = inlined_call_operand.vmem [shape: f32[1,256], index: 8, kind: input, shape index: {}]
  %s9 = inlined_call_operand.hbm [shape: f32[64,256], index: 9, kind: input, shape index: {}]
  %s10 = inlined_call_operand.vmem [shape: f32[1,256], index: 10, kind: input, shape index: {}]
  %s11 = inlined_call_operand.hbm [shape: bf16[256,128], index: 11, kind: input, shape index: {}]
  %s12 = inlined_call_operand.hbm [shape: f32[32,128], index: 12, kind: output, shape index: {}]
  %s13 = sld [smem:[#allocation0]]
  $region81: #{tpu_custom_call.1} parent=0
    _
  %s15 = ssub.s32 1, %s13
  %s16 = scalar_select 0, %s15, %s13
  $region1: #{tpu_custom_call.1} parent=0
    #allocation8 [shape = 'u8[131072]{0}', space=vmem, size = 0x20000, scoped, tag = 'input window, operand 4, single buffered']
    #allocation9 [shape = 's32[1]{0}', space=sflag, size = 0x4, scoped, tag = 'scoped memory for tpu_custom_call.1']
    #allocation10 [shape = 's32[1]{0}', space=sflag, size = 0x4, scoped, tag = 'scoped memory for tpu_custom_call.1']
    #allocation11 [shape = 'u8[196608]{0}', space=vmem, size = 0x30000, scoped, tag = 'input window, operand 7, single buffered']
    #allocation12 [shape = 's32[1]{0}', space=sflag, size = 0x4, scoped, tag = 'scoped memory for tpu_custom_call.1']
    #allocation13 [shape = 'u8[65536]{0}', space=vmem, size = 0x10000, scoped, tag = 'input window, operand 9, single buffered']
    #allocation14 [shape = 'u8[65536]{0}', space=vmem, size = 0x10000, scoped, tag = 'input window, operand 11, single buffered']
    #allocation15 [shape = 's32[1]{0}', space=sflag, size = 0x4, scoped, tag = 'scoped memory for tpu_custom_call.1']
    #allocation16 [shape = 'u8[16384]{0}', space=vmem, size = 0x4000, scoped, tag = 'output window, operand 0, single buffered']
    %17 = vsyncpa [#allocation9], 0
    %18 = vsyncpa [#allocation12], 0
    %19 = vsyncpa [#allocation15], 0
    %20 = vsyncpa [#allocation10], 0
    // Predicated region
    $region2: #{tpu_custom_call.1} parent=1 // pred_check
      _
    $region3: #{tpu_custom_call.1} parent=1 // pred_check_branch
      %22 = sbr.rel (0) target = $region5
    $region4: #{tpu_custom_call.1} parent=1 // pred_region
      _
    $region5: #{tpu_custom_call.1} parent=1 // pred_fallthru
      _
    // Predicated region
    $region6: #{tpu_custom_call.1} parent=1 // pred_check
      _
    $region7: #{tpu_custom_call.1} parent=1 // pred_check_branch
      %24 = sbr.rel (0) target = $region9
    $region8: #{tpu_custom_call.1} parent=1 // pred_region
      _
    $region9: #{tpu_custom_call.1} parent=1 // pred_fallthru
      _
    // Predicated region
    $region10: #{tpu_custom_call.1} parent=1 // pred_check
      _
    $region11: #{tpu_custom_call.1} parent=1 // pred_check_branch
      %26 = sbr.rel (0) target = $region13
    $region12: #{tpu_custom_call.1} parent=1 // pred_region
      _
    $region13: #{tpu_custom_call.1} parent=1 // pred_fallthru
      _
    // Predicated region
    $region14: #{tpu_custom_call.1} parent=1 // pred_check
      _
    $region15: #{tpu_custom_call.1} parent=1 // pred_check_branch
      %28 = sbr.rel (0) target = $region17
    $region16: #{tpu_custom_call.1} parent=1 // pred_region
      _
    $region17: #{tpu_custom_call.1} parent=1 // pred_fallthru
      _
    // Predicated region
    $region18: #{tpu_custom_call.1} parent=1 // pred_check
      _
    $region19: #{tpu_custom_call.1} parent=1 // pred_check_branch
      %30 = sbr.rel (0) target = $region21
    $region20: #{tpu_custom_call.1} parent=1 // pred_region
      %32 = vsyncadd [#allocation9], 0
      %s33 = sshll.u32 %s4, 4
      %s34 = int_to_ptr.hbm [resolvable:$true] %s33
      %s35 = sshll.u32 [#allocation8], 4
      %s36 = int_to_ptr.vmem [resolvable:$true] %s35
      %41 = dma.hbm_to_vmem [thread:$0]  %s34, 4096, %s36, [#allocation9], 256, 256, 16
    $region21: #{tpu_custom_call.1} parent=1 // pred_fallthru
      _
    // Predicated region
    $region22: #{tpu_custom_call.1} parent=1 // pred_check
      _
    $region23: #{tpu_custom_call.1} parent=1 // pred_check_branch
      %43 = sbr.rel (0) target = $region25
    $region24: #{tpu_custom_call.1} parent=1 // pred_region
      _
    $region25: #{tpu_custom_call.1} parent=1 // pred_fallthru
      _
    // Predicated region
    $region26: #{tpu_custom_call.1} parent=1 // pred_check
      _
    $region27: #{tpu_custom_call.1} parent=1 // pred_check_branch
      %45 = sbr.rel (0) target = $region29
    $region28: #{tpu_custom_call.1} parent=1 // pred_region
      _
    $region29: #{tpu_custom_call.1} parent=1 // pred_fallthru
      _
    // Predicated region
    $region30: #{tpu_custom_call.1} parent=1 // pred_check
      _
    $region31: #{tpu_custom_call.1} parent=1 // pred_check_branch
      %47 = sbr.rel (0) target = $region33
    $region32: #{tpu_custom_call.1} parent=1 // pred_region
      %49 = vsyncadd [#allocation12], 0
      %s50 = sshll.u32 %s7, 4
      %s51 = int_to_ptr.hbm [resolvable:$true] %s50
      %s52 = sshll.u32 [#allocation11], 4
      %s53 = int_to_ptr.vmem [resolvable:$true] %s52
      %58 = dma.hbm_to_vmem [thread:$0]  %s51, 6144, %s53, [#allocation12], 192, 192, 12
    $region33: #{tpu_custom_call.1} parent=1 // pred_fallthru
      _
    // Predicated region
    $region34: #{tpu_custom_call.1} parent=1 // pred_check
      _
    $region35: #{tpu_custom_call.1} parent=1 // pred_check_branch
      %60 = sbr.rel (0) target = $region37
    $region36: #{tpu_custom_call.1} parent=1 // pred_region
      _
    $region37: #{tpu_custom_call.1} parent=1 // pred_fallthru
      _
    // Predicated region
    $region38: #{tpu_custom_call.1} parent=1 // pred_check
      _
    $region39: #{tpu_custom_call.1} parent=1 // pred_check_branch
      %62 = sbr.rel (0) target = $region41
    $region40: #{tpu_custom_call.1} parent=1 // pred_region
      %64 = vsyncadd [#allocation12], 0
      %s65 = sshll.u32 %s9, 4
      %s66 = int_to_ptr.hbm [resolvable:$true] %s65
      %s67 = sshll.u32 [#allocation13], 4
      %s68 = int_to_ptr.vmem [resolvable:$true] %s67
      %73 = dma.hbm_to_vmem [thread:$0]  %s66, 2048, %s68, [#allocation12], 256, 256, 16
    $region41: #{tpu_custom_call.1} parent=1 // pred_fallthru
      _
    // Predicated region
    $region42: #{tpu_custom_call.1} parent=1 // pred_check
      _
    $region43: #{tpu_custom_call.1} parent=1 // pred_check_branch
      %75 = sbr.rel (0) target = $region45
    $region44: #{tpu_custom_call.1} parent=1 // pred_region
      _
    $region45: #{tpu_custom_call.1} parent=1 // pred_fallthru
      _
    // Predicated region
    $region46: #{tpu_custom_call.1} parent=1 // pred_check
      _
    $region47: #{tpu_custom_call.1} parent=1 // pred_check_branch
      %77 = sbr.rel (0) target = $region49
    $region48: #{tpu_custom_call.1} parent=1 // pred_region
      %79 = vsyncadd [#allocation15], 0
      %s80 = sshll.u32 %s11, 4
      %s81 = int_to_ptr.hbm [resolvable:$true] %s80
      %s82 = sshll.u32 [#allocation14], 4
      %s83 = int_to_ptr.vmem [resolvable:$true] %s82
      %88 = dma.hbm_to_vmem [thread:$0]  %s81, 2048, %s83, [#allocation15], 64, 64, 4
    $region49: #{tpu_custom_call.1} parent=1 // pred_fallthru
      _
    // Predicated region
    $region50: #{tpu_custom_call.1} parent=1 // pred_check
      _
    $region51: #{tpu_custom_call.1} parent=1 // pred_check_branch
      %90 = sbr.rel (0) target = $region53
    $region52: #{tpu_custom_call.1} parent=1 // pred_region
      %92 = dma.done [#allocation9], 4096
    $region53: #{tpu_custom_call.1} parent=1 // pred_fallthru
      _
    // Predicated region
    $region54: #{tpu_custom_call.1} parent=1 // pred_check
      _
    $region55: #{tpu_custom_call.1} parent=1 // pred_check_branch
      %94 = sbr.rel (0) target = $region57
    $region56: #{tpu_custom_call.1} parent=1 // pred_region
      %96 = dma.done [#allocation12], 6144
    $region57: #{tpu_custom_call.1} parent=1 // pred_fallthru
      _
    // Predicated region
    $region58: #{tpu_custom_call.1} parent=1 // pred_check
      _
    $region59: #{tpu_custom_call.1} parent=1 // pred_check_branch
      %98 = sbr.rel (0) target = $region61
    $region60: #{tpu_custom_call.1} parent=1 // pred_region
      %100 = dma.done [#allocation12], 2048
    $region61: #{tpu_custom_call.1} parent=1 // pred_fallthru
      _
    // Predicated region
    $region62: #{tpu_custom_call.1} parent=1 // pred_check
      _
    $region63: #{tpu_custom_call.1} parent=1 // pred_check_branch
      %102 = sbr.rel (0) target = $region65
    $region64: #{tpu_custom_call.1} parent=1 // pred_region
      %104 = dma.done [#allocation15], 2048
    $region65: #{tpu_custom_call.1} parent=1 // pred_fallthru
      _
    %v105 = vld [vmem:[%s0] sm:$0xff]
    %v106 = vld [vmem:[%s0 + $0x8] sm:$0xff]
    %v107 = vld [vmem:[%s0 + $0x10] sm:$0xff]
    %v108 = vld [vmem:[%s0 + $0x18] sm:$0xff]
    %109 = vadd.xlane.f32.xlu0 %v105
    %v110 = vpop.xlane.xlu0 %109
    %111 = vadd.xlane.f32.xlu0 %v106
    %v112 = vpop.xlane.xlu0 %111
    %113 = vadd.xlane.f32.xlu0 %v107
    %v114 = vpop.xlane.xlu0 %113
    %115 = vadd.xlane.f32.xlu0 %v108
    %v116 = vpop.xlane.xlu0 %115
    %v117 = vrcp.pop 128.0
    %v118 = vmul.f32 128.0, %v117
    %v119 = vsub.f32 1.0, %v118
    %v120 = vmul.f32 %v117, %v119
    %v121 = vadd.f32 %v117, %v120
    %vm122 = vweird.f32 %v117
    %v123 = vsel %vm122, %v117, %v121
    %v124 = vmul.f32 %v110, %v123
    %v125 = vmul.f32 %v112, %v123
    %v126 = vmul.f32 %v114, %v123
    %v127 = vmul.f32 %v116, %v123
    %v128 = vsub.f32 %v105, %v124
    %v129 = vsub.f32 %v106, %v125
    %v130 = vsub.f32 %v107, %v126
    %v131 = vsub.f32 %v108, %v127
    %v132 = vmul.f32 %v128, %v128
    %v133 = vmul.f32 %v129, %v129
    %v134 = vmul.f32 %v130, %v130
    %v135 = vmul.f32 %v131, %v131
    %136 = vadd.xlane.f32.xlu0 %v132
    %v137 = vpop.xlane.xlu0 %136
    %138 = vadd.xlane.f32.xlu0 %v133
    %v139 = vpop.xlane.xlu0 %138
    %140 = vadd.xlane.f32.xlu0 %v134
    %v141 = vpop.xlane.xlu0 %140
    %142 = vadd.xlane.f32.xlu0 %v135
    %v143 = vpop.xlane.xlu0 %142
    %v144 = vmul.f32 %v137, %v123
    %v145 = vmul.f32 %v139, %v123
    %v146 = vmul.f32 %v141, %v123
    %v147 = vmul.f32 %v143, %v123
    %v148 = vadd.f32 %v144, 1e-05
    %v149 = vadd.f32 %v145, 1e-05
    %v150 = vadd.f32 %v146, 1e-05
    %v151 = vadd.f32 %v147, 1e-05
    %v152 = vrsqrt.pop %v148
    %v153 = vmul.f32 %v152, %v148
    %v154 = vmul.f32 %v153, %v152
    %v155 = vmul.f32 0.5, %v154
    %v156 = vsub.f32 1.5, %v155
    %v157 = vmul.f32 %v152, %v156
    %vm158 = vweird.f32 %v148
    %vm159 = vweird.f32 %v152
    %vm160 = vmor %vm158, %vm159
    %v161 = vsel %vm160, %v152, %v157
    %v162 = vrsqrt.pop %v149
    %v163 = vmul.f32 %v162, %v149
    %v164 = vmul.f32 %v163, %v162
    %v165 = vmul.f32 0.5, %v164
    %v166 = vsub.f32 1.5, %v165
    %v167 = vmul.f32 %v162, %v166
    %vm168 = vweird.f32 %v149
    %vm169 = vweird.f32 %v162
    %vm170 = vmor %vm168, %vm169
    %v171 = vsel %vm170, %v162, %v167
    %v172 = vrsqrt.pop %v150
    %v173 = vmul.f32 %v172, %v150
    %v174 = vmul.f32 %v173, %v172
    %v175 = vmul.f32 0.5, %v174
    %v176 = vsub.f32 1.5, %v175
    %v177 = vmul.f32 %v172, %v176
    %vm178 = vweird.f32 %v150
    %vm179 = vweird.f32 %v172
    %vm180 = vmor %vm178, %vm179
    %v181 = vsel %vm180, %v172, %v177
    %v182 = vrsqrt.pop %v151
    %v183 = vmul.f32 %v182, %v151
    %v184 = vmul.f32 %v183, %v182
    %v185 = vmul.f32 0.5, %v184
    %v186 = vsub.f32 1.5, %v185
    %v187 = vmul.f32 %v182, %v186
    %vm188 = vweird.f32 %v151
    %vm189 = vweird.f32 %v182
    %vm190 = vmor %vm188, %vm189
    %v191 = vsel %vm190, %v182, %v187
    %v192 = vmul.f32 %v128, %v161
    %v193 = vmul.f32 %v129, %v171
    %v194 = vmul.f32 %v130, %v181
    %v195 = vmul.f32 %v131, %v191
    %v196 = vld [vmem:[%s2] sm:$0x1]
    %v198 = vperm.slane %v196, 0
    %v200 = vmul.f32 %v192, %v198
    %v201 = vmul.f32 %v193, %v198
    %v202 = vmul.f32 %v194, %v198
    %v203 = vmul.f32 %v195, %v198
    %v204 = vld [vmem:[%s3] sm:$0x1]
    %v206 = vperm.slane %v204, 0
    %v208 = vadd.f32 %v200, %v206
    %v209 = vadd.f32 %v201, %v206
    %v210 = vadd.f32 %v202, %v206
    %v211 = vadd.f32 %v203, %v206
    %v212 = vpack.c.bf16 %v209, %v208
    %v213 = vpack.c.bf16 %v211, %v210
    %v214 = vld [vmem:[#allocation8] sm:$0xff]
    %v215 = vld [vmem:[#allocation8 + $0x8] sm:$0xff]
    %v216 = vld [vmem:[#allocation8 + $0x10] sm:$0xff]
    %v217 = vld [vmem:[#allocation8 + $0x18] sm:$0xff]
    %v218 = vld [vmem:[#allocation8 + $0x20] sm:$0xff]
    %v219 = vld [vmem:[#allocation8 + $0x28] sm:$0xff]
    %v220 = vld [vmem:[#allocation8 + $0x30] sm:$0xff]
    %v221 = vld [vmem:[#allocation8 + $0x38] sm:$0xff]
    %v222 = vld [vmem:[#allocation8 + $0x40] sm:$0xff]
    %v223 = vld [vmem:[#allocation8 + $0x48] sm:$0xff]
    %v224 = vld [vmem:[#allocation8 + $0x50] sm:$0xff]
    %v225 = vld [vmem:[#allocation8 + $0x58] sm:$0xff]
    %v226 = vld [vmem:[#allocation8 + $0x60] sm:$0xff]
    %v227 = vld [vmem:[#allocation8 + $0x68] sm:$0xff]
    %v228 = vld [vmem:[#allocation8 + $0x70] sm:$0xff]
    %v229 = vld [vmem:[#allocation8 + $0x78] sm:$0xff]
    %v230 = vld [vmem:[#allocation8 + $0x80] sm:$0xff]
    %v231 = vld [vmem:[#allocation8 + $0x88] sm:$0xff]
    %v232 = vld [vmem:[#allocation8 + $0x90] sm:$0xff]
    %v233 = vld [vmem:[#allocation8 + $0x98] sm:$0xff]
    %v234 = vld [vmem:[#allocation8 + $0xa0] sm:$0xff]
    %v235 = vld [vmem:[#allocation8 + $0xa8] sm:$0xff]
    %v236 = vld [vmem:[#allocation8 + $0xb0] sm:$0xff]
    %v237 = vld [vmem:[#allocation8 + $0xb8] sm:$0xff]
    %v238 = vld [vmem:[#allocation8 + $0xc0] sm:$0xff]
    %v239 = vld [vmem:[#allocation8 + $0xc8] sm:$0xff]
    %v240 = vld [vmem:[#allocation8 + $0xd0] sm:$0xff]
    %v241 = vld [vmem:[#allocation8 + $0xd8] sm:$0xff]
    %v242 = vld [vmem:[#allocation8 + $0xe0] sm:$0xff]
    %v243 = vld [vmem:[#allocation8 + $0xe8] sm:$0xff]
    %v244 = vld [vmem:[#allocation8 + $0xf0] sm:$0xff]
    %v245 = vld [vmem:[#allocation8 + $0xf8] sm:$0xff]
    %v278 = vunpack.c.l.b16 %v214
    %v279 = vunpack.c.h.b16 %v214
    %v280 = vunpack.c.l.b16 %v215
    %v281 = vunpack.c.h.b16 %v215
    %v282 = vunpack.c.l.b16 %v216
    %v283 = vunpack.c.h.b16 %v216
    %v284 = vunpack.c.l.b16 %v217
    %v285 = vunpack.c.h.b16 %v217
    %v286 = vunpack.c.l.b16 %v218
    %v287 = vunpack.c.h.b16 %v218
    %v288 = vunpack.c.l.b16 %v219
    %v289 = vunpack.c.h.b16 %v219
    %v290 = vunpack.c.l.b16 %v220
    %v291 = vunpack.c.h.b16 %v220
    %v292 = vunpack.c.l.b16 %v221
    %v293 = vunpack.c.h.b16 %v221
    %v294 = vunpack.c.l.b16 %v222
    %v295 = vunpack.c.h.b16 %v222
    %v296 = vunpack.c.l.b16 %v223
    %v297 = vunpack.c.h.b16 %v223
    %v298 = vunpack.c.l.b16 %v224
    %v299 = vunpack.c.h.b16 %v224
    %v300 = vunpack.c.l.b16 %v225
    %v301 = vunpack.c.h.b16 %v225
    %v302 = vunpack.c.l.b16 %v226
    %v303 = vunpack.c.h.b16 %v226
    %v304 = vunpack.c.l.b16 %v227
    %v305 = vunpack.c.h.b16 %v227
    %v306 = vunpack.c.l.b16 %v228
    %v307 = vunpack.c.h.b16 %v228
    %v308 = vunpack.c.l.b16 %v229
    %v309 = vunpack.c.h.b16 %v229
    %v310 = vunpack.c.l.b16 %v230
    %v311 = vunpack.c.h.b16 %v230
    %v312 = vunpack.c.l.b16 %v231
    %v313 = vunpack.c.h.b16 %v231
    %v314 = vunpack.c.l.b16 %v232
    %v315 = vunpack.c.h.b16 %v232
    %v316 = vunpack.c.l.b16 %v233
    %v317 = vunpack.c.h.b16 %v233
    %v318 = vunpack.c.l.b16 %v234
    %v319 = vunpack.c.h.b16 %v234
    %v320 = vunpack.c.l.b16 %v235
    %v321 = vunpack.c.h.b16 %v235
    %v322 = vunpack.c.l.b16 %v236
    %v323 = vunpack.c.h.b16 %v236
    %v324 = vunpack.c.l.b16 %v237
    %v325 = vunpack.c.h.b16 %v237
    %v326 = vunpack.c.l.b16 %v238
    %v327 = vunpack.c.h.b16 %v238
    %v328 = vunpack.c.l.b16 %v239
    %v329 = vunpack.c.h.b16 %v239
    %v330 = vunpack.c.l.b16 %v240
    %v331 = vunpack.c.h.b16 %v240
    %v332 = vunpack.c.l.b16 %v241
    %v333 = vunpack.c.h.b16 %v241
    %v334 = vunpack.c.l.b16 %v242
    %v335 = vunpack.c.h.b16 %v242
    %v336 = vunpack.c.l.b16 %v243
    %v337 = vunpack.c.h.b16 %v243
    %v338 = vunpack.c.l.b16 %v244
    %v339 = vunpack.c.h.b16 %v244
    %v340 = vunpack.c.l.b16 %v245
    %v341 = vunpack.c.h.b16 %v245
    %v342 = vpack.c.b16 %v282, %v278
    %v343 = vpack.c.b16 %v283, %v279
    %v344 = vpack.c.b16 %v284, %v280
    %v345 = vpack.c.b16 %v285, %v281
    %v346 = vpack.c.b16 %v290, %v286
    %v347 = vpack.c.b16 %v291, %v287
    %v348 = vpack.c.b16 %v292, %v288
    %v349 = vpack.c.b16 %v293, %v289
    %v350 = vpack.c.b16 %v298, %v294
    %v351 = vpack.c.b16 %v299, %v295
    %v352 = vpack.c.b16 %v300, %v296
    %v353 = vpack.c.b16 %v301, %v297
    %v354 = vpack.c.b16 %v306, %v302
    %v355 = vpack.c.b16 %v307, %v303
    %v356 = vpack.c.b16 %v308, %v304
    %v357 = vpack.c.b16 %v309, %v305
    %v358 = vpack.c.b16 %v314, %v310
    %v359 = vpack.c.b16 %v315, %v311
    %v360 = vpack.c.b16 %v316, %v312
    %v361 = vpack.c.b16 %v317, %v313
    %v362 = vpack.c.b16 %v322, %v318
    %v363 = vpack.c.b16 %v323, %v319
    %v364 = vpack.c.b16 %v324, %v320
    %v365 = vpack.c.b16 %v325, %v321
    %v366 = vpack.c.b16 %v330, %v326
    %v367 = vpack.c.b16 %v331, %v327
    %v368 = vpack.c.b16 %v332, %v328
    %v369 = vpack.c.b16 %v333, %v329
    %v370 = vpack.c.b16 %v338, %v334
    %v371 = vpack.c.b16 %v339, %v335
    %v372 = vpack.c.b16 %v340, %v336
    %v373 = vpack.c.b16 %v341, %v337
    %406 = vmatpush.bf16.msra.mxu0 %v370
    %407 = vmatpush.bf16.msra.mxu0 %v366
    %408 = vmatpush.bf16.msra.mxu0 %v362
    %409 = vmatpush.bf16.msra.mxu0 %v358
    %410 = vmatpush.bf16.msra.mxu0 %v354
    %411 = vmatpush.bf16.msra.mxu0 %v350
    %412 = vmatpush.bf16.msra.mxu0 %v346
    %413 = vmatpush.bf16.msra.mxu0 %v342
    %414 = vmatmul.bf16.gmra.mxu0 %v212
    %v415 = vpop.f32.mrf.mxu0
    %v416 = vadd.f32 0.0, %v415
    %v417 = vpop.f32.mrf.mxu0
    %v418 = vadd.f32 0.0, %v417
    %419 = vmatmul.bf16.gmra.mxu0 %v213
    %v420 = vpop.f32.mrf.mxu0
    %v421 = vadd.f32 0.0, %v420
    %v422 = vpop.f32.mrf.mxu0
    %v423 = vadd.f32 0.0, %v422
    %424 = vdwg.mxu0
    %425 = vmatpush.bf16.msra.mxu0 %v371
    %426 = vmatpush.bf16.msra.mxu0 %v367
    %427 = vmatpush.bf16.msra.mxu0 %v363
    %428 = vmatpush.bf16.msra.mxu0 %v359
    %429 = vmatpush.bf16.msra.mxu0 %v355
    %430 = vmatpush.bf16.msra.mxu0 %v351
    %431 = vmatpush.bf16.msra.mxu0 %v347
    %432 = vmatpush.bf16.msra.mxu0 %v343
    %433 = vmatmul.bf16.gmra.mxu0 %v212
    %v434 = vpop.f32.mrf.mxu0
    %v435 = vadd.f32 0.0, %v434
    %v436 = vpop.f32.mrf.mxu0
    %v437 = vadd.f32 0.0, %v436
    %438 = vmatmul.bf16.gmra.mxu0 %v213
    %v439 = vpop.f32.mrf.mxu0
    %v440 = vadd.f32 0.0, %v439
    %v441 = vpop.f32.mrf.mxu0
    %v442 = vadd.f32 0.0, %v441
    %443 = vdwg.mxu0
    %444 = vmatpush.bf16.msra.mxu0 %v372
    %445 = vmatpush.bf16.msra.mxu0 %v368
    %446 = vmatpush.bf16.msra.mxu0 %v364
    %447 = vmatpush.bf16.msra.mxu0 %v360
    %448 = vmatpush.bf16.msra.mxu0 %v356
    %449 = vmatpush.bf16.msra.mxu0 %v352
    %450 = vmatpush.bf16.msra.mxu0 %v348
    %451 = vmatpush.bf16.msra.mxu0 %v344
    %452 = vmatmul.bf16.gmra.mxu0 %v212
    %v453 = vpop.f32.mrf.mxu0
    %v454 = vadd.f32 0.0, %v453
    %v455 = vpop.f32.mrf.mxu0
    %v456 = vadd.f32 0.0, %v455
    %457 = vmatmul.bf16.gmra.mxu0 %v213
    %v458 = vpop.f32.mrf.mxu0
    %v459 = vadd.f32 0.0, %v458
    %v460 = vpop.f32.mrf.mxu0
    %v461 = vadd.f32 0.0, %v460
    %462 = vdwg.mxu0
    %463 = vmatpush.bf16.msra.mxu0 %v373
    %464 = vmatpush.bf16.msra.mxu0 %v369
    %465 = vmatpush.bf16.msra.mxu0 %v365
    %466 = vmatpush.bf16.msra.mxu0 %v361
    %467 = vmatpush.bf16.msra.mxu0 %v357
    %468 = vmatpush.bf16.msra.mxu0 %v353
    %469 = vmatpush.bf16.msra.mxu0 %v349
    %470 = vmatpush.bf16.msra.mxu0 %v345
    %471 = vmatmul.bf16.gmra.mxu0 %v212
    %v472 = vpop.f32.mrf.mxu0
    %v473 = vadd.f32 0.0, %v472
    %v474 = vpop.f32.mrf.mxu0
    %v475 = vadd.f32 0.0, %v474
    %476 = vmatmul.bf16.gmra.mxu0 %v213
    %v477 = vpop.f32.mrf.mxu0
    %v478 = vadd.f32 0.0, %v477
    %v479 = vpop.f32.mrf.mxu0
    %v480 = vadd.f32 0.0, %v479
    %481 = vdwg.mxu0
    %v482 = vxor.u32 %v454, 2147483648
    %v483 = vxor.u32 %v473, 2147483648
    %v484 = vxor.u32 %v456, 2147483648
    %v485 = vxor.u32 %v475, 2147483648
    %v486 = vxor.u32 %v459, 2147483648
    %v487 = vxor.u32 %v478, 2147483648
    %v488 = vxor.u32 %v461, 2147483648
    %v489 = vxor.u32 %v480, 2147483648
    %v490 = vmul.f32 %v482, 1.442695
    %v491 = vpow.pop %v490
    %v492 = vmul.f32 %v483, 1.442695
    %v493 = vpow.pop %v492
    %v494 = vmul.f32 %v484, 1.442695
    %v495 = vpow.pop %v494
    %v496 = vmul.f32 %v485, 1.442695
    %v497 = vpow.pop %v496
    %v498 = vmul.f32 %v486, 1.442695
    %v499 = vpow.pop %v498
    %v500 = vmul.f32 %v487, 1.442695
    %v501 = vpow.pop %v500
    %v502 = vmul.f32 %v488, 1.442695
    %v503 = vpow.pop %v502
    %v504 = vmul.f32 %v489, 1.442695
    %v505 = vpow.pop %v504
    %v506 = vadd.f32 %v491, 1.0
    %v507 = vadd.f32 %v493, 1.0
    %v508 = vadd.f32 %v495, 1.0
    %v509 = vadd.f32 %v497, 1.0
    %v510 = vadd.f32 %v499, 1.0
    %v511 = vadd.f32 %v501, 1.0
    %v512 = vadd.f32 %v503, 1.0
    %v513 = vadd.f32 %v505, 1.0
    %v514 = vrcp.pop %v506
    %v515 = vmul.f32 %v506, %v514
    %v516 = vsub.f32 1.0, %v515
    %v517 = vmul.f32 %v514, %v516
    %v518 = vadd.f32 %v514, %v517
    %vm519 = vweird.f32 %v506
    %vm520 = vweird.f32 %v514
    %vm521 = vmor %vm519, %vm520
    %v522 = vsel %vm521, %v514, %v518
    %v523 = vand.u32 2147483647, %v506
    %vm524 = vcmp.eq.f32.partialorder %v523, 8.507059e+37
    %v525 = vand.u32 %v506, 2147483648
    %v526 = vor.u32 1.1754944e-38, %v525
    %v527 = vsel %vm524, %v526, %v522
    %v528 = vmul.f32 1.0, %v527
    %v529 = vrcp.pop %v507
    %v530 = vmul.f32 %v507, %v529
    %v531 = vsub.f32 1.0, %v530
    %v532 = vmul.f32 %v529, %v531
    %v533 = vadd.f32 %v529, %v532
    %vm534 = vweird.f32 %v507
    %vm535 = vweird.f32 %v529
    %vm536 = vmor %vm534, %vm535
    %v537 = vsel %vm536, %v529, %v533
    %v538 = vand.u32 2147483647, %v507
    %vm539 = vcmp.eq.f32.partialorder %v538, 8.507059e+37
    %v540 = vand.u32 %v507, 2147483648
    %v541 = vor.u32 1.1754944e-38, %v540
    %v542 = vsel %vm539, %v541, %v537
    %v543 = vmul.f32 1.0, %v542
    %v544 = vrcp.pop %v508
    %v545 = vmul.f32 %v508, %v544
    %v546 = vsub.f32 1.0, %v545
    %v547 = vmul.f32 %v544, %v546
    %v548 = vadd.f32 %v544, %v547
    %vm549 = vweird.f32 %v508
    %vm550 = vweird.f32 %v544
    %vm551 = vmor %vm549, %vm550
    %v552 = vsel %vm551, %v544, %v548
    %v553 = vand.u32 2147483647, %v508
    %vm554 = vcmp.eq.f32.partialorder %v553, 8.507059e+37
    %v555 = vand.u32 %v508, 2147483648
    %v556 = vor.u32 1.1754944e-38, %v555
    %v557 = vsel %vm554, %v556, %v552
    %v558 = vmul.f32 1.0, %v557
    %v559 = vrcp.pop %v509
    %v560 = vmul.f32 %v509, %v559
    %v561 = vsub.f32 1.0, %v560
    %v562 = vmul.f32 %v559, %v561
    %v563 = vadd.f32 %v559, %v562
    %vm564 = vweird.f32 %v509
    %vm565 = vweird.f32 %v559
    %vm566 = vmor %vm564, %vm565
    %v567 = vsel %vm566, %v559, %v563
    %v568 = vand.u32 2147483647, %v509
    %vm569 = vcmp.eq.f32.partialorder %v568, 8.507059e+37
    %v570 = vand.u32 %v509, 2147483648
    %v571 = vor.u32 1.1754944e-38, %v570
    %v572 = vsel %vm569, %v571, %v567
    %v573 = vmul.f32 1.0, %v572
    %v574 = vrcp.pop %v510
    %v575 = vmul.f32 %v510, %v574
    %v576 = vsub.f32 1.0, %v575
    %v577 = vmul.f32 %v574, %v576
    %v578 = vadd.f32 %v574, %v577
    %vm579 = vweird.f32 %v510
    %vm580 = vweird.f32 %v574
    %vm581 = vmor %vm579, %vm580
    %v582 = vsel %vm581, %v574, %v578
    %v583 = vand.u32 2147483647, %v510
    %vm584 = vcmp.eq.f32.partialorder %v583, 8.507059e+37
    %v585 = vand.u32 %v510, 2147483648
    %v586 = vor.u32 1.1754944e-38, %v585
    %v587 = vsel %vm584, %v586, %v582
    %v588 = vmul.f32 1.0, %v587
    %v589 = vrcp.pop %v511
    %v590 = vmul.f32 %v511, %v589
    %v591 = vsub.f32 1.0, %v590
    %v592 = vmul.f32 %v589, %v591
    %v593 = vadd.f32 %v589, %v592
    %vm594 = vweird.f32 %v511
    %vm595 = vweird.f32 %v589
    %vm596 = vmor %vm594, %vm595
    %v597 = vsel %vm596, %v589, %v593
    %v598 = vand.u32 2147483647, %v511
    %vm599 = vcmp.eq.f32.partialorder %v598, 8.507059e+37
    %v600 = vand.u32 %v511, 2147483648
    %v601 = vor.u32 1.1754944e-38, %v600
    %v602 = vsel %vm599, %v601, %v597
    %v603 = vmul.f32 1.0, %v602
    %v604 = vrcp.pop %v512
    %v605 = vmul.f32 %v512, %v604
    %v606 = vsub.f32 1.0, %v605
    %v607 = vmul.f32 %v604, %v606
    %v608 = vadd.f32 %v604, %v607
    %vm609 = vweird.f32 %v512
    %vm610 = vweird.f32 %v604
    %vm611 = vmor %vm609, %vm610
    %v612 = vsel %vm611, %v604, %v608
    %v613 = vand.u32 2147483647, %v512
    %vm614 = vcmp.eq.f32.partialorder %v613, 8.507059e+37
    %v615 = vand.u32 %v512, 2147483648
    %v616 = vor.u32 1.1754944e-38, %v615
    %v617 = vsel %vm614, %v616, %v612
    %v618 = vmul.f32 1.0, %v617
    %v619 = vrcp.pop %v513
    %v620 = vmul.f32 %v513, %v619
    %v621 = vsub.f32 1.0, %v620
    %v622 = vmul.f32 %v619, %v621
    %v623 = vadd.f32 %v619, %v622
    %vm624 = vweird.f32 %v513
    %vm625 = vweird.f32 %v619
    %vm626 = vmor %vm624, %vm625
    %v627 = vsel %vm626, %v619, %v623
    %v628 = vand.u32 2147483647, %v513
    %vm629 = vcmp.eq.f32.partialorder %v628, 8.507059e+37
    %v630 = vand.u32 %v513, 2147483648
    %v631 = vor.u32 1.1754944e-38, %v630
    %v632 = vsel %vm629, %v631, %v627
    %v633 = vmul.f32 1.0, %v632
    %v634 = vmul.f32 %v454, %v528
    %v635 = vmul.f32 %v473, %v543
    %v636 = vmul.f32 %v456, %v558
    %v637 = vmul.f32 %v475, %v573
    %v638 = vmul.f32 %v459, %v588
    %v639 = vmul.f32 %v478, %v603
    %v640 = vmul.f32 %v461, %v618
    %v641 = vmul.f32 %v480, %v633
    %642 = vst [vmem:[#allocation6] sm:$0xff] %v634
    %643 = vst [vmem:[#allocation6 + $0x8] sm:$0xff] %v635
    %644 = vst [vmem:[#allocation6 + $0x10] sm:$0xff] %v636
    %645 = vst [vmem:[#allocation6 + $0x18] sm:$0xff] %v637
    %646 = vst [vmem:[#allocation6 + $0x20] sm:$0xff] %v638
    %647 = vst [vmem:[#allocation6 + $0x28] sm:$0xff] %v639
    %648 = vst [vmem:[#allocation6 + $0x30] sm:$0xff] %v640
    %649 = vst [vmem:[#allocation6 + $0x38] sm:$0xff] %v641
    %v650 = vld [vmem:[%s5] sm:$0xff]
    %v652 = vperm.slane %v650, 3
    %v653 = vperm.slane %v650, 7
    %v656 = vperm.slane %v652, 3
    %v657 = vperm.slane %v653, 3
    %v658 = vmul.f32 %v416, %v656
    %v659 = vmul.f32 %v435, %v657
    %v660 = vmul.f32 %v418, %v656
    %v661 = vmul.f32 %v437, %v657
    %v662 = vmul.f32 %v421, %v656
    %v663 = vmul.f32 %v440, %v657
    %v664 = vmul.f32 %v423, %v656
    %v665 = vmul.f32 %v442, %v657
    %v666 = vrot.slane %v416, 5
    %v667 = vrot.slane %v435, 5
    %v668 = vrot.slane %v418, 5
    %v669 = vrot.slane %v437, 5
    %v670 = vrot.slane %v421, 5
    %v671 = vrot.slane %v440, 5
    %v672 = vrot.slane %v423, 5
    %v673 = vrot.slane %v442, 5
    %v674 = vlaneseq
    %v675 = vshrl.u32 %v674, 7
    %vm676 = vcmp.lt.s32.totalorder %v675, 3
    %v677 = vsel %vm676, %v670, %v672
    %v678 = vsel %vm676, %v671, %v673
    %v679 = vsel %vm676, %v668, %v670
    %v680 = vsel %vm676, %v669, %v671
    %v681 = vsel %vm676, %v666, %v668
    %v682 = vsel %vm676, %v667, %v669
    %v683 = vsel %vm676, %v672, %v666
    %v684 = vsel %vm676, %v673, %v667
    %v685 = vperm.slane %v650, 0
    %v686 = vperm.slane %v650, 4
    %v689 = vperm.slane %v685, 0
    %v690 = vperm.slane %v686, 0
    %v691 = vmul.f32 %v683, %v689
    %v692 = vmul.f32 %v684, %v690
    %v693 = vmul.f32 %v681, %v689
    %v694 = vmul.f32 %v682, %v690
    %v695 = vmul.f32 %v679, %v689
    %v696 = vmul.f32 %v680, %v690
    %v697 = vmul.f32 %v677, %v689
    %v698 = vmul.f32 %v678, %v690
    %v699 = vld [vmem:[%s1] sm:$0xff]
    %v700 = vld [vmem:[%s1 + $0x8] sm:$0xff]
    %v701 = vld [vmem:[%s1 + $0x10] sm:$0xff]
    %v702 = vld [vmem:[%s1 + $0x18] sm:$0xff]
    %704 = vset.pattern.permute.xlu0 0
    %705 = vperm.xlu0 %704, %v699
    %v706 = vpop.permute.xlu0 %705
    %709 = vset.pattern.permute.xlu0 0
    %710 = vperm.xlu0 %709, %v700
    %v711 = vpop.permute.xlu0 %710
    %714 = vset.pattern.permute.xlu0 0
    %715 = vperm.xlu0 %714, %v701
    %v716 = vpop.permute.xlu0 %715
    %719 = vset.pattern.permute.xlu0 0
    %720 = vperm.xlu0 %719, %v702
    %v721 = vpop.permute.xlu0 %720
    %v723 = vmul.f32 %v691, %v706
    %v724 = vmul.f32 %v692, %v706
    %v725 = vmul.f32 %v693, %v711
    %v726 = vmul.f32 %v694, %v711
    %v727 = vmul.f32 %v695, %v716
    %v728 = vmul.f32 %v696, %v716
    %v729 = vmul.f32 %v697, %v721
    %v730 = vmul.f32 %v698, %v721
    %v731 = vadd.f32 %v658, %v723
    %v732 = vadd.f32 %v659, %v724
    %v733 = vadd.f32 %v660, %v725
    %v734 = vadd.f32 %v661, %v726
    %v735 = vadd.f32 %v662, %v727
    %v736 = vadd.f32 %v663, %v728
    %v737 = vadd.f32 %v664, %v729
    %v738 = vadd.f32 %v665, %v730
    %v739 = vrot.slane %v416, 6
    %v740 = vrot.slane %v435, 6
    %v741 = vrot.slane %v418, 6
    %v742 = vrot.slane %v437, 6
    %v743 = vrot.slane %v421, 6
    %v744 = vrot.slane %v440, 6
    %v745 = vrot.slane %v423, 6
    %v746 = vrot.slane %v442, 6
    %vm747 = vcmp.lt.s32.totalorder %v675, 2
    %v748 = vsel %vm747, %v743, %v745
    %v749 = vsel %vm747, %v744, %v746
    %v750 = vsel %vm747, %v741, %v743
    %v751 = vsel %vm747, %v742, %v744
    %v752 = vsel %vm747, %v739, %v741
    %v753 = vsel %vm747, %v740, %v742
    %v754 = vsel %vm747, %v745, %v739
    %v755 = vsel %vm747, %v746, %v740
    %v756 = vperm.slane %v650, 1
    %v757 = vperm.slane %v650, 5
    %v760 = vperm.slane %v756, 1
    %v761 = vperm.slane %v757, 1
    %v762 = vmul.f32 %v754, %v760
    %v763 = vmul.f32 %v755, %v761
    %v764 = vmul.f32 %v752, %v760
    %v765 = vmul.f32 %v753, %v761
    %v766 = vmul.f32 %v750, %v760
    %v767 = vmul.f32 %v751, %v761
    %v768 = vmul.f32 %v748, %v760
    %v769 = vmul.f32 %v749, %v761
    %s770 = scalar_lea.vmem %s1, 32
    %v771 = vld [vmem:[%s770] sm:$0xff]
    %v772 = vld [vmem:[%s770 + $0x8] sm:$0xff]
    %v773 = vld [vmem:[%s770 + $0x10] sm:$0xff]
    %v774 = vld [vmem:[%s770 + $0x18] sm:$0xff]
    %776 = vset.pattern.permute.xlu0 0
    %777 = vperm.xlu0 %776, %v771
    %v778 = vpop.permute.xlu0 %777
    %781 = vset.pattern.permute.xlu0 0
    %782 = vperm.xlu0 %781, %v772
    %v783 = vpop.permute.xlu0 %782
    %786 = vset.pattern.permute.xlu0 0
    %787 = vperm.xlu0 %786, %v773
    %v788 = vpop.permute.xlu0 %787
    %791 = vset.pattern.permute.xlu0 0
    %792 = vperm.xlu0 %791, %v774
    %v793 = vpop.permute.xlu0 %792
    %v795 = vmul.f32 %v762, %v778
    %v796 = vmul.f32 %v763, %v778
    %v797 = vmul.f32 %v764, %v783
    %v798 = vmul.f32 %v765, %v783
    %v799 = vmul.f32 %v766, %v788
    %v800 = vmul.f32 %v767, %v788
    %v801 = vmul.f32 %v768, %v793
    %v802 = vmul.f32 %v769, %v793
    %v803 = vadd.f32 %v731, %v795
    %v804 = vadd.f32 %v732, %v796
    %v805 = vadd.f32 %v733, %v797
    %v806 = vadd.f32 %v734, %v798
    %v807 = vadd.f32 %v735, %v799
    %v808 = vadd.f32 %v736, %v800
    %v809 = vadd.f32 %v737, %v801
    %v810 = vadd.f32 %v738, %v802
    %v811 = vrot.slane %v416, 7
    %v812 = vrot.slane %v435, 7
    %v813 = vrot.slane %v418, 7
    %v814 = vrot.slane %v437, 7
    %v815 = vrot.slane %v421, 7
    %v816 = vrot.slane %v440, 7
    %v817 = vrot.slane %v423, 7
    %v818 = vrot.slane %v442, 7
    %vm819 = vcmp.lt.s32.totalorder %v675, 1
    %v820 = vsel %vm819, %v815, %v817
    %v821 = vsel %vm819, %v816, %v818
    %v822 = vsel %vm819, %v813, %v815
    %v823 = vsel %vm819, %v814, %v816
    %v824 = vsel %vm819, %v811, %v813
    %v825 = vsel %vm819, %v812, %v814
    %v826 = vsel %vm819, %v817, %v811
    %v827 = vsel %vm819, %v818, %v812
    %v828 = vperm.slane %v650, 2
    %v829 = vperm.slane %v650, 6
    %v832 = vperm.slane %v828, 2
    %v833 = vperm.slane %v829, 2
    %v834 = vmul.f32 %v826, %v832
    %v835 = vmul.f32 %v827, %v833
    %v836 = vmul.f32 %v824, %v832
    %v837 = vmul.f32 %v825, %v833
    %v838 = vmul.f32 %v822, %v832
    %v839 = vmul.f32 %v823, %v833
    %v840 = vmul.f32 %v820, %v832
    %v841 = vmul.f32 %v821, %v833
    %s842 = scalar_lea.vmem %s1, 64
    %v843 = vld [vmem:[%s842] sm:$0xff]
    %v844 = vld [vmem:[%s842 + $0x8] sm:$0xff]
    %v845 = vld [vmem:[%s842 + $0x10] sm:$0xff]
    %v846 = vld [vmem:[%s842 + $0x18] sm:$0xff]
    %848 = vset.pattern.permute.xlu0 0
    %849 = vperm.xlu0 %848, %v843
    %v850 = vpop.permute.xlu0 %849
    %853 = vset.pattern.permute.xlu0 0
    %854 = vperm.xlu0 %853, %v844
    %v855 = vpop.permute.xlu0 %854
    %858 = vset.pattern.permute.xlu0 0
    %859 = vperm.xlu0 %858, %v845
    %v860 = vpop.permute.xlu0 %859
    %863 = vset.pattern.permute.xlu0 0
    %864 = vperm.xlu0 %863, %v846
    %v865 = vpop.permute.xlu0 %864
    %v867 = vmul.f32 %v834, %v850
    %v868 = vmul.f32 %v835, %v850
    %v869 = vmul.f32 %v836, %v855
    %v870 = vmul.f32 %v837, %v855
    %v871 = vmul.f32 %v838, %v860
    %v872 = vmul.f32 %v839, %v860
    %v873 = vmul.f32 %v840, %v865
    %v874 = vmul.f32 %v841, %v865
    %v875 = vadd.f32 %v803, %v867
    %v876 = vadd.f32 %v804, %v868
    %v877 = vadd.f32 %v805, %v869
    %v878 = vadd.f32 %v806, %v870
    %v879 = vadd.f32 %v807, %v871
    %v880 = vadd.f32 %v808, %v872
    %v881 = vadd.f32 %v809, %v873
    %v882 = vadd.f32 %v810, %v874
    %v883 = vld [vmem:[%s6] sm:$0x3]
    %v885 = vperm.slane %v883, 0
    %v886 = vperm.slane %v883, 1
    %v889 = vadd.f32 %v875, %v885
    %v890 = vadd.f32 %v876, %v886
    %v891 = vadd.f32 %v877, %v885
    %v892 = vadd.f32 %v878, %v886
    %v893 = vadd.f32 %v879, %v885
    %v894 = vadd.f32 %v880, %v886
    %v895 = vadd.f32 %v881, %v885
    %v896 = vadd.f32 %v882, %v886
    %v897 = vxor.u32 %v889, 2147483648
    %v898 = vxor.u32 %v890, 2147483648
    %v899 = vxor.u32 %v891, 2147483648
    %v900 = vxor.u32 %v892, 2147483648
    %v901 = vxor.u32 %v893, 2147483648
    %v902 = vxor.u32 %v894, 2147483648
    %v903 = vxor.u32 %v895, 2147483648
    %v904 = vxor.u32 %v896, 2147483648
    %v905 = vmul.f32 %v897, 1.442695
    %v906 = vpow.pop %v905
    %v907 = vmul.f32 %v898, 1.442695
    %v908 = vpow.pop %v907
    %v909 = vmul.f32 %v899, 1.442695
    %v910 = vpow.pop %v909
    %v911 = vmul.f32 %v900, 1.442695
    %v912 = vpow.pop %v911
    %v913 = vmul.f32 %v901, 1.442695
    %v914 = vpow.pop %v913
    %v915 = vmul.f32 %v902, 1.442695
    %v916 = vpow.pop %v915
    %v917 = vmul.f32 %v903, 1.442695
    %v918 = vpow.pop %v917
    %v919 = vmul.f32 %v904, 1.442695
    %v920 = vpow.pop %v919
    %v921 = vadd.f32 %v906, 1.0
    %v922 = vadd.f32 %v908, 1.0
    %v923 = vadd.f32 %v910, 1.0
    %v924 = vadd.f32 %v912, 1.0
    %v925 = vadd.f32 %v914, 1.0
    %v926 = vadd.f32 %v916, 1.0
    %v927 = vadd.f32 %v918, 1.0
    %v928 = vadd.f32 %v920, 1.0
    %v929 = vrcp.pop %v921
    %v930 = vmul.f32 %v921, %v929
    %v931 = vsub.f32 1.0, %v930
    %v932 = vmul.f32 %v929, %v931
    %v933 = vadd.f32 %v929, %v932
    %vm934 = vweird.f32 %v921
    %vm935 = vweird.f32 %v929
    %vm936 = vmor %vm934, %vm935
    %v937 = vsel %vm936, %v929, %v933
    %v938 = vand.u32 2147483647, %v921
    %vm939 = vcmp.eq.f32.partialorder %v938, 8.507059e+37
    %v940 = vand.u32 %v921, 2147483648
    %v941 = vor.u32 1.1754944e-38, %v940
    %v942 = vsel %vm939, %v941, %v937
    %v943 = vmul.f32 1.0, %v942
    %v944 = vrcp.pop %v922
    %v945 = vmul.f32 %v922, %v944
    %v946 = vsub.f32 1.0, %v945
    %v947 = vmul.f32 %v944, %v946
    %v948 = vadd.f32 %v944, %v947
    %vm949 = vweird.f32 %v922
    %vm950 = vweird.f32 %v944
    %vm951 = vmor %vm949, %vm950
    %v952 = vsel %vm951, %v944, %v948
    %v953 = vand.u32 2147483647, %v922
    %vm954 = vcmp.eq.f32.partialorder %v953, 8.507059e+37
    %v955 = vand.u32 %v922, 2147483648
    %v956 = vor.u32 1.1754944e-38, %v955
    %v957 = vsel %vm954, %v956, %v952
    %v958 = vmul.f32 1.0, %v957
    %v959 = vrcp.pop %v923
    %v960 = vmul.f32 %v923, %v959
    %v961 = vsub.f32 1.0, %v960
    %v962 = vmul.f32 %v959, %v961
    %v963 = vadd.f32 %v959, %v962
    %vm964 = vweird.f32 %v923
    %vm965 = vweird.f32 %v959
    %vm966 = vmor %vm964, %vm965
    %v967 = vsel %vm966, %v959, %v963
    %v968 = vand.u32 2147483647, %v923
    %vm969 = vcmp.eq.f32.partialorder %v968, 8.507059e+37
    %v970 = vand.u32 %v923, 2147483648
    %v971 = vor.u32 1.1754944e-38, %v970
    %v972 = vsel %vm969, %v971, %v967
    %v973 = vmul.f32 1.0, %v972
    %v974 = vrcp.pop %v924
    %v975 = vmul.f32 %v924, %v974
    %v976 = vsub.f32 1.0, %v975
    %v977 = vmul.f32 %v974, %v976
    %v978 = vadd.f32 %v974, %v977
    %vm979 = vweird.f32 %v924
    %vm980 = vweird.f32 %v974
    %vm981 = vmor %vm979, %vm980
    %v982 = vsel %vm981, %v974, %v978
    %v983 = vand.u32 2147483647, %v924
    %vm984 = vcmp.eq.f32.partialorder %v983, 8.507059e+37
    %v985 = vand.u32 %v924, 2147483648
    %v986 = vor.u32 1.1754944e-38, %v985
    %v987 = vsel %vm984, %v986, %v982
    %v988 = vmul.f32 1.0, %v987
    %v989 = vrcp.pop %v925
    %v990 = vmul.f32 %v925, %v989
    %v991 = vsub.f32 1.0, %v990
    %v992 = vmul.f32 %v989, %v991
    %v993 = vadd.f32 %v989, %v992
    %vm994 = vweird.f32 %v925
    %vm995 = vweird.f32 %v989
    %vm996 = vmor %vm994, %vm995
    %v997 = vsel %vm996, %v989, %v993
    %v998 = vand.u32 2147483647, %v925
    %vm999 = vcmp.eq.f32.partialorder %v998, 8.507059e+37
    %v1000 = vand.u32 %v925, 2147483648
    %v1001 = vor.u32 1.1754944e-38, %v1000
    %v1002 = vsel %vm999, %v1001, %v997
    %v1003 = vmul.f32 1.0, %v1002
    %v1004 = vrcp.pop %v926
    %v1005 = vmul.f32 %v926, %v1004
    %v1006 = vsub.f32 1.0, %v1005
    %v1007 = vmul.f32 %v1004, %v1006
    %v1008 = vadd.f32 %v1004, %v1007
    %vm1009 = vweird.f32 %v926
    %vm1010 = vweird.f32 %v1004
    %vm1011 = vmor %vm1009, %vm1010
    %v1012 = vsel %vm1011, %v1004, %v1008
    %v1013 = vand.u32 2147483647, %v926
    %vm1014 = vcmp.eq.f32.partialorder %v1013, 8.507059e+37
    %v1015 = vand.u32 %v926, 2147483648
    %v1016 = vor.u32 1.1754944e-38, %v1015
    %v1017 = vsel %vm1014, %v1016, %v1012
    %v1018 = vmul.f32 1.0, %v1017
    %v1019 = vrcp.pop %v927
    %v1020 = vmul.f32 %v927, %v1019
    %v1021 = vsub.f32 1.0, %v1020
    %v1022 = vmul.f32 %v1019, %v1021
    %v1023 = vadd.f32 %v1019, %v1022
    %vm1024 = vweird.f32 %v927
    %vm1025 = vweird.f32 %v1019
    %vm1026 = vmor %vm1024, %vm1025
    %v1027 = vsel %vm1026, %v1019, %v1023
    %v1028 = vand.u32 2147483647, %v927
    %vm1029 = vcmp.eq.f32.partialorder %v1028, 8.507059e+37
    %v1030 = vand.u32 %v927, 2147483648
    %v1031 = vor.u32 1.1754944e-38, %v1030
    %v1032 = vsel %vm1029, %v1031, %v1027
    %v1033 = vmul.f32 1.0, %v1032
    %v1034 = vrcp.pop %v928
    %v1035 = vmul.f32 %v928, %v1034
    %v1036 = vsub.f32 1.0, %v1035
    %v1037 = vmul.f32 %v1034, %v1036
    %v1038 = vadd.f32 %v1034, %v1037
    %vm1039 = vweird.f32 %v928
    %vm1040 = vweird.f32 %v1034
    %vm1041 = vmor %vm1039, %vm1040
    %v1042 = vsel %vm1041, %v1034, %v1038
    %v1043 = vand.u32 2147483647, %v928
    %vm1044 = vcmp.eq.f32.partialorder %v1043, 8.507059e+37
    %v1045 = vand.u32 %v928, 2147483648
    %v1046 = vor.u32 1.1754944e-38, %v1045
    %v1047 = vsel %vm1044, %v1046, %v1042
    %v1048 = vmul.f32 1.0, %v1047
    %v1049 = vmul.f32 %v889, %v943
    %v1050 = vmul.f32 %v890, %v958
    %v1051 = vmul.f32 %v891, %v973
    %v1052 = vmul.f32 %v892, %v988
    %v1053 = vmul.f32 %v893, %v1003
    %v1054 = vmul.f32 %v894, %v1018
    %v1055 = vmul.f32 %v895, %v1033
    %v1056 = vmul.f32 %v896, %v1048
    %1057 = vst [vmem:[#allocation2] sm:$0xff] %v1049
    %1058 = vst [vmem:[#allocation2 + $0x8] sm:$0xff] %v1050
    %1059 = vst [vmem:[#allocation2 + $0x10] sm:$0xff] %v1051
    %1060 = vst [vmem:[#allocation2 + $0x18] sm:$0xff] %v1052
    %1061 = vst [vmem:[#allocation2 + $0x20] sm:$0xff] %v1053
    %1062 = vst [vmem:[#allocation2 + $0x28] sm:$0xff] %v1054
    %1063 = vst [vmem:[#allocation2 + $0x30] sm:$0xff] %v1055
    %1064 = vst [vmem:[#allocation2 + $0x38] sm:$0xff] %v1056
    %v1065 = vpack.c.bf16 %v1051, %v1049
    %v1066 = vpack.c.bf16 %v1052, %v1050
    %v1067 = vpack.c.bf16 %v1055, %v1053
    %v1068 = vpack.c.bf16 %v1056, %v1054
    %v1069 = vld [vmem:[#allocation11] sm:$0xff]
    %v1070 = vld [vmem:[#allocation11 + $0x8] sm:$0xf]
    %v1071 = vld [vmem:[#allocation11 + $0xc] sm:$0xff]
    %v1072 = vld [vmem:[#allocation11 + $0x14] sm:$0xf]
    %v1073 = vld [vmem:[#allocation11 + $0x18] sm:$0xff]
    %v1074 = vld [vmem:[#allocation11 + $0x20] sm:$0xf]
    %v1075 = vld [vmem:[#allocation11 + $0x24] sm:$0xff]
    %v1076 = vld [vmem:[#allocation11 + $0x2c] sm:$0xf]
    %v1077 = vld [vmem:[#allocation11 + $0x30] sm:$0xff]
    %v1078 = vld [vmem:[#allocation11 + $0x38] sm:$0xf]
    %v1079 = vld [vmem:[#allocation11 + $0x3c] sm:$0xff]
    %v1080 = vld [vmem:[#allocation11 + $0x44] sm:$0xf]
    %v1081 = vld [vmem:[#allocation11 + $0x48] sm:$0xff]
    %v1082 = vld [vmem:[#allocation11 + $0x50] sm:$0xf]
    %v1083 = vld [vmem:[#allocation11 + $0x54] sm:$0xff]
    %v1084 = vld [vmem:[#allocation11 + $0x5c] sm:$0xf]
    %v1085 = vld [vmem:[#allocation11 + $0x60] sm:$0xff]
    %v1086 = vld [vmem:[#allocation11 + $0x68] sm:$0xf]
    %v1087 = vld [vmem:[#allocation11 + $0x6c] sm:$0xff]
    %v1088 = vld [vmem:[#allocation11 + $0x74] sm:$0xf]
    %v1089 = vld [vmem:[#allocation11 + $0x78] sm:$0xff]
    %v1090 = vld [vmem:[#allocation11 + $0x80] sm:$0xf]
    %v1091 = vld [vmem:[#allocation11 + $0x84] sm:$0xff]
    %v1092 = vld [vmem:[#allocation11 + $0x8c] sm:$0xf]
    %v1093 = vld [vmem:[#allocation11 + $0x90] sm:$0xff]
    %v1094 = vld [vmem:[#allocation11 + $0x98] sm:$0xf]
    %v1095 = vld [vmem:[#allocation11 + $0x9c] sm:$0xff]
    %v1096 = vld [vmem:[#allocation11 + $0xa4] sm:$0xf]
    %v1097 = vld [vmem:[#allocation11 + $0xa8] sm:$0xff]
    %v1098 = vld [vmem:[#allocation11 + $0xb0] sm:$0xf]
    %v1099 = vld [vmem:[#allocation11 + $0xb4] sm:$0xff]
    %v1100 = vld [vmem:[#allocation11 + $0xbc] sm:$0xf]
    %v1101 = vld [vmem:[#allocation11 + $0xc0] sm:$0xff]
    %v1102 = vld [vmem:[#allocation11 + $0xc8] sm:$0xf]
    %v1103 = vld [vmem:[#allocation11 + $0xcc] sm:$0xff]
    %v1104 = vld [vmem:[#allocation11 + $0xd4] sm:$0xf]
    %v1105 = vld [vmem:[#allocation11 + $0xd8] sm:$0xff]
    %v1106 = vld [vmem:[#allocation11 + $0xe0] sm:$0xf]
    %v1107 = vld [vmem:[#allocation11 + $0xe4] sm:$0xff]
    %v1108 = vld [vmem:[#allocation11 + $0xec] sm:$0xf]
    %v1109 = vld [vmem:[#allocation11 + $0xf0] sm:$0xff]
    %v1110 = vld [vmem:[#allocation11 + $0xf8] sm:$0xf]
    %v1111 = vld [vmem:[#allocation11 + $0xfc] sm:$0xff]
    %v1112 = vld [vmem:[#allocation11 + $0x104] sm:$0xf]
    %v1113 = vld [vmem:[#allocation11 + $0x108] sm:$0xff]
    %v1114 = vld [vmem:[#allocation11 + $0x110] sm:$0xf]
    %v1115 = vld [vmem:[#allocation11 + $0x114] sm:$0xff]
    %v1116 = vld [vmem:[#allocation11 + $0x11c] sm:$0xf]
    %v1117 = vld [vmem:[#allocation11 + $0x120] sm:$0xff]
    %v1118 = vld [vmem:[#allocation11 + $0x128] sm:$0xf]
    %v1119 = vld [vmem:[#allocation11 + $0x12c] sm:$0xff]
    %v1120 = vld [vmem:[#allocation11 + $0x134] sm:$0xf]
    %v1121 = vld [vmem:[#allocation11 + $0x138] sm:$0xff]
    %v1122 = vld [vmem:[#allocation11 + $0x140] sm:$0xf]
    %v1123 = vld [vmem:[#allocation11 + $0x144] sm:$0xff]
    %v1124 = vld [vmem:[#allocation11 + $0x14c] sm:$0xf]
    %v1125 = vld [vmem:[#allocation11 + $0x150] sm:$0xff]
    %v1126 = vld [vmem:[#allocation11 + $0x158] sm:$0xf]
    %v1127 = vld [vmem:[#allocation11 + $0x15c] sm:$0xff]
    %v1128 = vld [vmem:[#allocation11 + $0x164] sm:$0xf]
    %v1129 = vld [vmem:[#allocation11 + $0x168] sm:$0xff]
    %v1130 = vld [vmem:[#allocation11 + $0x170] sm:$0xf]
    %v1131 = vld [vmem:[#allocation11 + $0x174] sm:$0xff]
    %v1132 = vld [vmem:[#allocation11 + $0x17c] sm:$0xf]
    %v1197 = vunpack.c.l.b16 %v1069
    %v1198 = vunpack.c.h.b16 %v1069
    %v1199 = vunpack.c.l.b16 %v1070
    %v1200 = vunpack.c.l.b16 %v1071
    %v1201 = vunpack.c.h.b16 %v1071
    %v1202 = vunpack.c.l.b16 %v1072
    %v1203 = vunpack.c.l.b16 %v1073
    %v1204 = vunpack.c.h.b16 %v1073
    %v1205 = vunpack.c.l.b16 %v1074
    %v1206 = vunpack.c.l.b16 %v1075
    %v1207 = vunpack.c.h.b16 %v1075
    %v1208 = vunpack.c.l.b16 %v1076
    %v1209 = vunpack.c.l.b16 %v1077
    %v1210 = vunpack.c.h.b16 %v1077
    %v1211 = vunpack.c.l.b16 %v1078
    %v1212 = vunpack.c.l.b16 %v1079
    %v1213 = vunpack.c.h.b16 %v1079
    %v1214 = vunpack.c.l.b16 %v1080
    %v1215 = vunpack.c.l.b16 %v1081
    %v1216 = vunpack.c.h.b16 %v1081
    %v1217 = vunpack.c.l.b16 %v1082
    %v1218 = vunpack.c.l.b16 %v1083
    %v1219 = vunpack.c.h.b16 %v1083
    %v1220 = vunpack.c.l.b16 %v1084
    %v1221 = vunpack.c.l.b16 %v1085
    %v1222 = vunpack.c.h.b16 %v1085
    %v1223 = vunpack.c.l.b16 %v1086
    %v1224 = vunpack.c.l.b16 %v1087
    %v1225 = vunpack.c.h.b16 %v1087
    %v1226 = vunpack.c.l.b16 %v1088
    %v1227 = vunpack.c.l.b16 %v1089
    %v1228 = vunpack.c.h.b16 %v1089
    %v1229 = vunpack.c.l.b16 %v1090
    %v1230 = vunpack.c.l.b16 %v1091
    %v1231 = vunpack.c.h.b16 %v1091
    %v1232 = vunpack.c.l.b16 %v1092
    %v1233 = vunpack.c.l.b16 %v1093
    %v1234 = vunpack.c.h.b16 %v1093
    %v1235 = vunpack.c.l.b16 %v1094
    %v1236 = vunpack.c.l.b16 %v1095
    %v1237 = vunpack.c.h.b16 %v1095
    %v1238 = vunpack.c.l.b16 %v1096
    %v1239 = vunpack.c.l.b16 %v1097
    %v1240 = vunpack.c.h.b16 %v1097
    %v1241 = vunpack.c.l.b16 %v1098
    %v1242 = vunpack.c.l.b16 %v1099
    %v1243 = vunpack.c.h.b16 %v1099
    %v1244 = vunpack.c.l.b16 %v1100
    %v1245 = vunpack.c.l.b16 %v1101
    %v1246 = vunpack.c.h.b16 %v1101
    %v1247 = vunpack.c.l.b16 %v1102
    %v1248 = vunpack.c.l.b16 %v1103
    %v1249 = vunpack.c.h.b16 %v1103
    %v1250 = vunpack.c.l.b16 %v1104
    %v1251 = vunpack.c.l.b16 %v1105
    %v1252 = vunpack.c.h.b16 %v1105
    %v1253 = vunpack.c.l.b16 %v1106
    %v1254 = vunpack.c.l.b16 %v1107
    %v1255 = vunpack.c.h.b16 %v1107
    %v1256 = vunpack.c.l.b16 %v1108
    %v1257 = vunpack.c.l.b16 %v1109
    %v1258 = vunpack.c.h.b16 %v1109
    %v1259 = vunpack.c.l.b16 %v1110
    %v1260 = vunpack.c.l.b16 %v1111
    %v1261 = vunpack.c.h.b16 %v1111
    %v1262 = vunpack.c.l.b16 %v1112
    %v1263 = vunpack.c.l.b16 %v1113
    %v1264 = vunpack.c.h.b16 %v1113
    %v1265 = vunpack.c.l.b16 %v1114
    %v1266 = vunpack.c.l.b16 %v1115
    %v1267 = vunpack.c.h.b16 %v1115
    %v1268 = vunpack.c.l.b16 %v1116
    %v1269 = vunpack.c.l.b16 %v1117
    %v1270 = vunpack.c.h.b16 %v1117
    %v1271 = vunpack.c.l.b16 %v1118
    %v1272 = vunpack.c.l.b16 %v1119
    %v1273 = vunpack.c.h.b16 %v1119
    %v1274 = vunpack.c.l.b16 %v1120
    %v1275 = vunpack.c.l.b16 %v1121
    %v1276 = vunpack.c.h.b16 %v1121
    %v1277 = vunpack.c.l.b16 %v1122
    %v1278 = vunpack.c.l.b16 %v1123
    %v1279 = vunpack.c.h.b16 %v1123
    %v1280 = vunpack.c.l.b16 %v1124
    %v1281 = vunpack.c.l.b16 %v1125
    %v1282 = vunpack.c.h.b16 %v1125
    %v1283 = vunpack.c.l.b16 %v1126
    %v1284 = vunpack.c.l.b16 %v1127
    %v1285 = vunpack.c.h.b16 %v1127
    %v1286 = vunpack.c.l.b16 %v1128
    %v1287 = vunpack.c.l.b16 %v1129
    %v1288 = vunpack.c.h.b16 %v1129
    %v1289 = vunpack.c.l.b16 %v1130
    %v1290 = vunpack.c.l.b16 %v1131
    %v1291 = vunpack.c.h.b16 %v1131
    %v1292 = vunpack.c.l.b16 %v1132
    %v1293 = vpack.c.b16 %v1200, %v1197
    %v1294 = vpack.c.b16 %v1201, %v1198
    %v1295 = vpack.c.b16 %v1202, %v1199
    %v1296 = vpack.c.b16 %v1206, %v1203
    %v1297 = vpack.c.b16 %v1207, %v1204
    %v1298 = vpack.c.b16 %v1208, %v1205
    %v1299 = vpack.c.b16 %v1212, %v1209
    %v1300 = vpack.c.b16 %v1213, %v1210
    %v1301 = vpack.c.b16 %v1214, %v1211
    %v1302 = vpack.c.b16 %v1218, %v1215
    %v1303 = vpack.c.b16 %v1219, %v1216
    %v1304 = vpack.c.b16 %v1220, %v1217
    %v1305 = vpack.c.b16 %v1224, %v1221
    %v1306 = vpack.c.b16 %v1225, %v1222
    %v1307 = vpack.c.b16 %v1226, %v1223
    %v1308 = vpack.c.b16 %v1230, %v1227
    %v1309 = vpack.c.b16 %v1231, %v1228
    %v1310 = vpack.c.b16 %v1232, %v1229
    %v1311 = vpack.c.b16 %v1236, %v1233
    %v1312 = vpack.c.b16 %v1237, %v1234
    %v1313 = vpack.c.b16 %v1238, %v1235
    %v1314 = vpack.c.b16 %v1242, %v1239
    %v1315 = vpack.c.b16 %v1243, %v1240
    %v1316 = vpack.c.b16 %v1244, %v1241
    %v1317 = vpack.c.b16 %v1248, %v1245
    %v1318 = vpack.c.b16 %v1249, %v1246
    %v1319 = vpack.c.b16 %v1250, %v1247
    %v1320 = vpack.c.b16 %v1254, %v1251
    %v1321 = vpack.c.b16 %v1255, %v1252
    %v1322 = vpack.c.b16 %v1256, %v1253
    %v1323 = vpack.c.b16 %v1260, %v1257
    %v1324 = vpack.c.b16 %v1261, %v1258
    %v1325 = vpack.c.b16 %v1262, %v1259
    %v1326 = vpack.c.b16 %v1266, %v1263
    %v1327 = vpack.c.b16 %v1267, %v1264
    %v1328 = vpack.c.b16 %v1268, %v1265
    %v1329 = vpack.c.b16 %v1272, %v1269
    %v1330 = vpack.c.b16 %v1273, %v1270
    %v1331 = vpack.c.b16 %v1274, %v1271
    %v1332 = vpack.c.b16 %v1278, %v1275
    %v1333 = vpack.c.b16 %v1279, %v1276
    %v1334 = vpack.c.b16 %v1280, %v1277
    %v1335 = vpack.c.b16 %v1284, %v1281
    %v1336 = vpack.c.b16 %v1285, %v1282
    %v1337 = vpack.c.b16 %v1286, %v1283
    %v1338 = vpack.c.b16 %v1290, %v1287
    %v1339 = vpack.c.b16 %v1291, %v1288
    %v1340 = vpack.c.b16 %v1292, %v1289
    %1389 = vmatpush.bf16.msra.mxu0 %v1314
    %1390 = vmatpush.bf16.msra.mxu0 %v1311
    %1391 = vmatpush.bf16.msra.mxu0 %v1308
    %1392 = vmatpush.bf16.msra.mxu0 %v1305
    %1393 = vmatpush.bf16.msra.mxu0 %v1302
    %1394 = vmatpush.bf16.msra.mxu0 %v1299
    %1395 = vmatpush.bf16.msra.mxu0 %v1296
    %1396 = vmatpush.bf16.msra.mxu0 %v1293
    %1397 = vmatmul.bf16.gmra.mxu0 %v1065
    %v1398 = vpop.f32.mrf.mxu0
    %v1399 = vadd.f32 0.0, %v1398
    %v1400 = vpop.f32.mrf.mxu0
    %v1401 = vadd.f32 0.0, %v1400
    %1402 = vmatmul.bf16.gmra.mxu0 %v1067
    %v1403 = vpop.f32.mrf.mxu0
    %v1404 = vadd.f32 0.0, %v1403
    %v1405 = vpop.f32.mrf.mxu0
    %v1406 = vadd.f32 0.0, %v1405
    %1407 = vdwg.mxu0
    %1408 = vmatpush.bf16.msra.mxu0 %v1338
    %1409 = vmatpush.bf16.msra.mxu0 %v1335
    %1410 = vmatpush.bf16.msra.mxu0 %v1332
    %1411 = vmatpush.bf16.msra.mxu0 %v1329
    %1412 = vmatpush.bf16.msra.mxu0 %v1326
    %1413 = vmatpush.bf16.msra.mxu0 %v1323
    %1414 = vmatpush.bf16.msra.mxu0 %v1320
    %1415 = vmatpush.bf16.msra.mxu0 %v1317
    %1416 = vmatmul.bf16.gmra.mxu0 %v1066
    %v1417 = vpop.f32.mrf.mxu0
    %v1418 = vadd.f32 %v1399, %v1417
    %v1419 = vpop.f32.mrf.mxu0
    %v1420 = vadd.f32 %v1401, %v1419
    %1421 = vmatmul.bf16.gmra.mxu0 %v1068
    %v1422 = vpop.f32.mrf.mxu0
    %v1423 = vadd.f32 %v1404, %v1422
    %v1424 = vpop.f32.mrf.mxu0
    %v1425 = vadd.f32 %v1406, %v1424
    %1426 = vdwg.mxu0
    %1427 = vmatpush.bf16.msra.mxu0 %v1315
    %1428 = vmatpush.bf16.msra.mxu0 %v1312
    %1429 = vmatpush.bf16.msra.mxu0 %v1309
    %1430 = vmatpush.bf16.msra.mxu0 %v1306
    %1431 = vmatpush.bf16.msra.mxu0 %v1303
    %1432 = vmatpush.bf16.msra.mxu0 %v1300
    %1433 = vmatpush.bf16.msra.mxu0 %v1297
    %1434 = vmatpush.bf16.msra.mxu0 %v1294
    %1435 = vmatmul.bf16.gmra.mxu0 %v1065
    %v1436 = vpop.f32.mrf.mxu0
    %v1437 = vadd.f32 0.0, %v1436
    %v1438 = vpop.f32.mrf.mxu0
    %v1439 = vadd.f32 0.0, %v1438
    %1440 = vmatmul.bf16.gmra.mxu0 %v1067
    %v1441 = vpop.f32.mrf.mxu0
    %v1442 = vadd.f32 0.0, %v1441
    %v1443 = vpop.f32.mrf.mxu0
    %v1444 = vadd.f32 0.0, %v1443
    %1445 = vdwg.mxu0
    %1446 = vmatpush.bf16.msra.mxu0 %v1339
    %1447 = vmatpush.bf16.msra.mxu0 %v1336
    %1448 = vmatpush.bf16.msra.mxu0 %v1333
    %1449 = vmatpush.bf16.msra.mxu0 %v1330
    %1450 = vmatpush.bf16.msra.mxu0 %v1327
    %1451 = vmatpush.bf16.msra.mxu0 %v1324
    %1452 = vmatpush.bf16.msra.mxu0 %v1321
    %1453 = vmatpush.bf16.msra.mxu0 %v1318
    %1454 = vmatmul.bf16.gmra.mxu0 %v1066
    %v1455 = vpop.f32.mrf.mxu0
    %v1456 = vadd.f32 %v1437, %v1455
    %v1457 = vpop.f32.mrf.mxu0
    %v1458 = vadd.f32 %v1439, %v1457
    %1459 = vmatmul.bf16.gmra.mxu0 %v1068
    %v1460 = vpop.f32.mrf.mxu0
    %v1461 = vadd.f32 %v1442, %v1460
    %v1462 = vpop.f32.mrf.mxu0
    %v1463 = vadd.f32 %v1444, %v1462
    %1464 = vdwg.mxu0
    %1465 = vmatpush.bf16.msra.mxu0 %v1316
    %1466 = vmatpush.bf16.msra.mxu0 %v1313
    %1467 = vmatpush.bf16.msra.mxu0 %v1310
    %1468 = vmatpush.bf16.msra.mxu0 %v1307
    %1469 = vmatpush.bf16.msra.mxu0 %v1304
    %1470 = vmatpush.bf16.msra.mxu0 %v1301
    %1471 = vmatpush.bf16.msra.mxu0 %v1298
    %1472 = vmatpush.bf16.msra.mxu0 %v1295
    %1473 = vmatmul.bf16.gmra.mxu0 %v1065
    %v1474 = vpop.f32.mrf.mxu0
    %v1475 = vadd.f32 0.0, %v1474
    %v1476 = vpop.f32.mrf.mxu0
    %v1477 = vadd.f32 0.0, %v1476
    %1478 = vmatmul.bf16.gmra.mxu0 %v1067
    %v1479 = vpop.f32.mrf.mxu0
    %v1480 = vadd.f32 0.0, %v1479
    %v1481 = vpop.f32.mrf.mxu0
    %v1482 = vadd.f32 0.0, %v1481
    %1483 = vdwg.mxu0
    %1484 = vmatpush.bf16.msra.mxu0 %v1340
    %1485 = vmatpush.bf16.msra.mxu0 %v1337
    %1486 = vmatpush.bf16.msra.mxu0 %v1334
    %1487 = vmatpush.bf16.msra.mxu0 %v1331
    %1488 = vmatpush.bf16.msra.mxu0 %v1328
    %1489 = vmatpush.bf16.msra.mxu0 %v1325
    %1490 = vmatpush.bf16.msra.mxu0 %v1322
    %1491 = vmatpush.bf16.msra.mxu0 %v1319
    %1492 = vmatmul.bf16.gmra.mxu0 %v1066
    %v1493 = vpop.f32.mrf.mxu0
    %v1494 = vadd.f32 %v1475, %v1493
    %v1495 = vpop.f32.mrf.mxu0
    %v1496 = vadd.f32 %v1477, %v1495
    %1497 = vmatmul.bf16.gmra.mxu0 %v1068
    %v1498 = vpop.f32.mrf.mxu0
    %v1499 = vadd.f32 %v1480, %v1498
    %v1500 = vpop.f32.mrf.mxu0
    %v1501 = vadd.f32 %v1482, %v1500
    %1502 = vdwg.mxu0
    %v1503 = vld [vmem:[%s8] sm:$0x3]
    %v1505 = vperm.slane %v1503, 0
    %v1506 = vperm.slane %v1503, 1
    %v1509 = vadd.f32 %v1418, %v1505
    %v1510 = vadd.f32 %v1456, %v1506
    %v1511 = vadd.f32 %v1420, %v1505
    %v1512 = vadd.f32 %v1458, %v1506
    %v1513 = vadd.f32 %v1423, %v1505
    %v1514 = vadd.f32 %v1461, %v1506
    %v1515 = vadd.f32 %v1425, %v1505
    %v1516 = vadd.f32 %v1463, %v1506
    %v1517 = vmax.f32 %v1509, 0.0
    %v1518 = vmax.f32 %v1510, 0.0
    %v1519 = vmax.f32 %v1511, 0.0
    %v1520 = vmax.f32 %v1512, 0.0
    %v1521 = vmax.f32 %v1513, 0.0
    %v1522 = vmax.f32 %v1514, 0.0
    %v1523 = vmax.f32 %v1515, 0.0
    %v1524 = vmax.f32 %v1516, 0.0
    %v1525 = vand.u32 2147483647, %v1509
    %v1526 = vand.u32 2147483647, %v1510
    %v1527 = vand.u32 2147483647, %v1511
    %v1528 = vand.u32 2147483647, %v1512
    %v1529 = vand.u32 2147483647, %v1513
    %v1530 = vand.u32 2147483647, %v1514
    %v1531 = vand.u32 2147483647, %v1515
    %v1532 = vand.u32 2147483647, %v1516
    %v1533 = vsub.f32 0.0, %v1525
    %v1534 = vsub.f32 0.0, %v1526
    %v1535 = vsub.f32 0.0, %v1527
    %v1536 = vsub.f32 0.0, %v1528
    %v1537 = vsub.f32 0.0, %v1529
    %v1538 = vsub.f32 0.0, %v1530
    %v1539 = vsub.f32 0.0, %v1531
    %v1540 = vsub.f32 0.0, %v1532
    %v1541 = vmul.f32 %v1533, 1.442695
    %v1542 = vpow.pop %v1541
    %v1543 = vmul.f32 %v1534, 1.442695
    %v1544 = vpow.pop %v1543
    %v1545 = vmul.f32 %v1535, 1.442695
    %v1546 = vpow.pop %v1545
    %v1547 = vmul.f32 %v1536, 1.442695
    %v1548 = vpow.pop %v1547
    %v1549 = vmul.f32 %v1537, 1.442695
    %v1550 = vpow.pop %v1549
    %v1551 = vmul.f32 %v1538, 1.442695
    %v1552 = vpow.pop %v1551
    %v1553 = vmul.f32 %v1539, 1.442695
    %v1554 = vpow.pop %v1553
    %v1555 = vmul.f32 %v1540, 1.442695
    %v1556 = vpow.pop %v1555
    %v1557 = vadd.f32 %v1542, 1.0
    %v1558 = vlog2.pop %v1557
    %v1559 = vmul.f32 %v1558, 0.6931472
    %v1560 = vmul.f32 -0.5, %v1542
    %v1561 = vadd.f32 %v1560, 1.0
    %v1562 = vmul.f32 %v1561, %v1542
    %v1563 = vand.u32 2147483647, %v1542
    %vm1564 = vcmp.lt.f32.partialorder %v1563, 0.0004427343
    %v1565 = vsel %vm1564, %v1562, %v1559
    %v1566 = vadd.f32 %v1544, 1.0
    %v1567 = vlog2.pop %v1566
    %v1568 = vmul.f32 %v1567, 0.6931472
    %v1569 = vmul.f32 -0.5, %v1544
    %v1570 = vadd.f32 %v1569, 1.0
    %v1571 = vmul.f32 %v1570, %v1544
    %v1572 = vand.u32 2147483647, %v1544
    %vm1573 = vcmp.lt.f32.partialorder %v1572, 0.0004427343
    %v1574 = vsel %vm1573, %v1571, %v1568
    %v1575 = vadd.f32 %v1546, 1.0
    %v1576 = vlog2.pop %v1575
    %v1577 = vmul.f32 %v1576, 0.6931472
    %v1578 = vmul.f32 -0.5, %v1546
    %v1579 = vadd.f32 %v1578, 1.0
    %v1580 = vmul.f32 %v1579, %v1546
    %v1581 = vand.u32 2147483647, %v1546
    %vm1582 = vcmp.lt.f32.partialorder %v1581, 0.0004427343
    %v1583 = vsel %vm1582, %v1580, %v1577
    %v1584 = vadd.f32 %v1548, 1.0
    %v1585 = vlog2.pop %v1584
    %v1586 = vmul.f32 %v1585, 0.6931472
    %v1587 = vmul.f32 -0.5, %v1548
    %v1588 = vadd.f32 %v1587, 1.0
    %v1589 = vmul.f32 %v1588, %v1548
    %v1590 = vand.u32 2147483647, %v1548
    %vm1591 = vcmp.lt.f32.partialorder %v1590, 0.0004427343
    %v1592 = vsel %vm1591, %v1589, %v1586
    %v1593 = vadd.f32 %v1550, 1.0
    %v1594 = vlog2.pop %v1593
    %v1595 = vmul.f32 %v1594, 0.6931472
    %v1596 = vmul.f32 -0.5, %v1550
    %v1597 = vadd.f32 %v1596, 1.0
    %v1598 = vmul.f32 %v1597, %v1550
    %v1599 = vand.u32 2147483647, %v1550
    %vm1600 = vcmp.lt.f32.partialorder %v1599, 0.0004427343
    %v1601 = vsel %vm1600, %v1598, %v1595
    %v1602 = vadd.f32 %v1552, 1.0
    %v1603 = vlog2.pop %v1602
    %v1604 = vmul.f32 %v1603, 0.6931472
    %v1605 = vmul.f32 -0.5, %v1552
    %v1606 = vadd.f32 %v1605, 1.0
    %v1607 = vmul.f32 %v1606, %v1552
    %v1608 = vand.u32 2147483647, %v1552
    %vm1609 = vcmp.lt.f32.partialorder %v1608, 0.0004427343
    %v1610 = vsel %vm1609, %v1607, %v1604
    %v1611 = vadd.f32 %v1554, 1.0
    %v1612 = vlog2.pop %v1611
    %v1613 = vmul.f32 %v1612, 0.6931472
    %v1614 = vmul.f32 -0.5, %v1554
    %v1615 = vadd.f32 %v1614, 1.0
    %v1616 = vmul.f32 %v1615, %v1554
    %v1617 = vand.u32 2147483647, %v1554
    %vm1618 = vcmp.lt.f32.partialorder %v1617, 0.0004427343
    %v1619 = vsel %vm1618, %v1616, %v1613
    %v1620 = vadd.f32 %v1556, 1.0
    %v1621 = vlog2.pop %v1620
    %v1622 = vmul.f32 %v1621, 0.6931472
    %v1623 = vmul.f32 -0.5, %v1556
    %v1624 = vadd.f32 %v1623, 1.0
    %v1625 = vmul.f32 %v1624, %v1556
    %v1626 = vand.u32 2147483647, %v1556
    %vm1627 = vcmp.lt.f32.partialorder %v1626, 0.0004427343
    %v1628 = vsel %vm1627, %v1625, %v1622
    %v1629 = vadd.f32 %v1517, %v1565
    %v1630 = vadd.f32 %v1518, %v1574
    %v1631 = vadd.f32 %v1519, %v1583
    %v1632 = vadd.f32 %v1520, %v1592
    %v1633 = vadd.f32 %v1521, %v1601
    %v1634 = vadd.f32 %v1522, %v1610
    %v1635 = vadd.f32 %v1523, %v1619
    %v1636 = vadd.f32 %v1524, %v1628
    %1637 = vst [vmem:[#allocation3] sm:$0xff] %v1629
    %1638 = vst [vmem:[#allocation3 + $0x8] sm:$0xff] %v1630
    %1639 = vst [vmem:[#allocation3 + $0x10] sm:$0xff] %v1631
    %1640 = vst [vmem:[#allocation3 + $0x18] sm:$0xff] %v1632
    %1641 = vst [vmem:[#allocation3 + $0x20] sm:$0xff] %v1633
    %1642 = vst [vmem:[#allocation3 + $0x28] sm:$0xff] %v1634
    %1643 = vst [vmem:[#allocation3 + $0x30] sm:$0xff] %v1635
    %1644 = vst [vmem:[#allocation3 + $0x38] sm:$0xff] %v1636
    %v1645 = vmul.f32 %v1629, %v1049
    %v1646 = vmul.f32 %v1630, %v1050
    %v1647 = vmul.f32 %v1631, %v1051
    %v1648 = vmul.f32 %v1632, %v1052
    %v1649 = vmul.f32 %v1633, %v1053
    %v1650 = vmul.f32 %v1634, %v1054
    %v1651 = vmul.f32 %v1635, %v1055
    %v1652 = vmul.f32 %v1636, %v1056
    %1653 = vst [vmem:[#allocation4] sm:$0xff] %v1645
    %1654 = vst [vmem:[#allocation4 + $0x8] sm:$0xff] %v1646
    %1655 = vst [vmem:[#allocation4 + $0x10] sm:$0xff] %v1647
    %1656 = vst [vmem:[#allocation4 + $0x18] sm:$0xff] %v1648
    %1657 = vst [vmem:[#allocation4 + $0x20] sm:$0xff] %v1649
    %1658 = vst [vmem:[#allocation4 + $0x28] sm:$0xff] %v1650
    %1659 = vst [vmem:[#allocation4 + $0x30] sm:$0xff] %v1651
    %1660 = vst [vmem:[#allocation4 + $0x38] sm:$0xff] %v1652
    %1661 = vst [vmem:[#allocation5] sm:$0xff] %v1494
    %1662 = vst [vmem:[#allocation5 + $0x8] sm:$0xff] %v1496
    %1663 = vst [vmem:[#allocation5 + $0x10] sm:$0xff] %v1499
    %1664 = vst [vmem:[#allocation5 + $0x18] sm:$0xff] %v1501
    loop: start=0, step=1, limit=2
    $region66: #{tpu_custom_call.1} parent=1 // loop_pre_header
      _
    $region67: #{tpu_custom_call.1} parent=1 // loop_header
      %s1666 = sphi 0, %s1670
      %p1667 = scmp.ge.s32.totalorder %s1666, 2
      %v1671 = vphi 0.0, %v3886
      %v1672 = vphi 0.0, %v3887
      %v1673 = vphi 0.0, %v3888
      %v1674 = vphi 0.0, %v3889
      %v1675 = vphi 0.0, %v3890
      %v1676 = vphi 0.0, %v3891
      %v1677 = vphi 0.0, %v3892
      %v1678 = vphi 0.0, %v3893
      %v1679 = vphi 0.0, %v3894
      %v1680 = vphi 0.0, %v3895
      %v1681 = vphi 0.0, %v3896
      %v1682 = vphi 0.0, %v3897
      %v1683 = vphi 0.0, %v3898
      %v1684 = vphi 0.0, %v3899
      %v1685 = vphi 0.0, %v3900
      %v1686 = vphi 0.0, %v3901
      %v1687 = vphi 0.0, %v6112
      %v1688 = vphi 0.0, %v6113
      %v1689 = vphi 0.0, %v6114
      %v1690 = vphi 0.0, %v6115
      %v1691 = vphi 0.0, %v6116
      %v1692 = vphi 0.0, %v6117
      %v1693 = vphi 0.0, %v6118
      %v1694 = vphi 0.0, %v6119
      %v1695 = vphi 0.0, %v6120
      %v1696 = vphi 0.0, %v6121
      %v1697 = vphi 0.0, %v6122
      %v1698 = vphi 0.0, %v6123
      %v1699 = vphi 0.0, %v6124
      %v1700 = vphi 0.0, %v6125
      %v1701 = vphi 0.0, %v6126
      %v1702 = vphi 0.0, %v6127
    $region68: #{tpu_custom_call.1} parent=1 // loop_header_branch
      %1669 = sbr.rel (%p1667) target = $region72
    $region69: #{tpu_custom_call.1} parent=1 // loop_body
      %v1703 = vld [vmem:[#allocation13] sm:$0xff]
      %v1704 = vld [vmem:[#allocation13 + $0x8] sm:$0xff]
      %v1705 = vld [vmem:[#allocation13 + $0x10] sm:$0xff]
      %v1706 = vld [vmem:[#allocation13 + $0x18] sm:$0xff]
      %v1707 = vld [vmem:[#allocation13 + $0x20] sm:$0xff]
      %v1708 = vld [vmem:[#allocation13 + $0x28] sm:$0xff]
      %v1709 = vld [vmem:[#allocation13 + $0x30] sm:$0xff]
      %v1710 = vld [vmem:[#allocation13 + $0x38] sm:$0xff]
      %v1711 = vld [vmem:[#allocation13 + $0x40] sm:$0xff]
      %v1712 = vld [vmem:[#allocation13 + $0x48] sm:$0xff]
      %v1713 = vld [vmem:[#allocation13 + $0x50] sm:$0xff]
      %v1714 = vld [vmem:[#allocation13 + $0x58] sm:$0xff]
      %v1715 = vld [vmem:[#allocation13 + $0x60] sm:$0xff]
      %v1716 = vld [vmem:[#allocation13 + $0x68] sm:$0xff]
      %v1717 = vld [vmem:[#allocation13 + $0x70] sm:$0xff]
      %v1718 = vld [vmem:[#allocation13 + $0x78] sm:$0xff]
      %s1719 = smul.u32 %s1666, 8
      %s1720 = sshra.s32 %s1719, 3
      %s1721 = sand.u32 %s1719, 7
      %s1722 = smul.u32 %s1720, 2
      %s1723 = smul.addr %s1722, 8
      %s1724 = scalar_lea.vmem [#allocation3], %s1723
      %v1725 = vld [vmem:[%s1724] sm:$0xff]
      %v1726 = vld [vmem:[%s1724 + $0x8] sm:$0xff]
      %s1727 = smul.addr %s1722, 8
      %s1728 = scalar_lea.vmem [#allocation4], %s1727
      %v1729 = vld [vmem:[%s1728] sm:$0xff]
      %v1730 = vld [vmem:[%s1728 + $0x8] sm:$0xff]
      %s1731 = scalar_lea.vmem [#allocation5], %s1719
      %v1732 = vld [vmem:[%s1731] sm:$0xff]
      %v1733 = vperm.slane %v1725, 0
      %v1734 = vperm.slane %v1726, 0
      %v1735 = vmul.f32 %v1733, %v1703
      %v1736 = vmul.f32 %v1734, %v1704
      %v1737 = vmul.f32 %v1733, %v1705
      %v1738 = vmul.f32 %v1734, %v1706
      %v1739 = vmul.f32 %v1733, %v1707
      %v1740 = vmul.f32 %v1734, %v1708
      %v1741 = vmul.f32 %v1733, %v1709
      %v1742 = vmul.f32 %v1734, %v1710
      %v1743 = vmul.f32 %v1733, %v1711
      %v1744 = vmul.f32 %v1734, %v1712
      %v1745 = vmul.f32 %v1733, %v1713
      %v1746 = vmul.f32 %v1734, %v1714
      %v1747 = vmul.f32 %v1733, %v1715
      %v1748 = vmul.f32 %v1734, %v1716
      %v1749 = vmul.f32 %v1733, %v1717
      %v1750 = vmul.f32 %v1734, %v1718
      %v1751 = vmul.f32 %v1735, 1.442695
      %v1752 = vpow.pop %v1751
      %v1753 = vmul.f32 %v1736, 1.442695
      %v1754 = vpow.pop %v1753
      %v1755 = vmul.f32 %v1737, 1.442695
      %v1756 = vpow.pop %v1755
      %v1757 = vmul.f32 %v1738, 1.442695
      %v1758 = vpow.pop %v1757
      %v1759 = vmul.f32 %v1739, 1.442695
      %v1760 = vpow.pop %v1759
      %v1761 = vmul.f32 %v1740, 1.442695
      %v1762 = vpow.pop %v1761
      %v1763 = vmul.f32 %v1741, 1.442695
      %v1764 = vpow.pop %v1763
      %v1765 = vmul.f32 %v1742, 1.442695
      %v1766 = vpow.pop %v1765
      %v1767 = vmul.f32 %v1743, 1.442695
      %v1768 = vpow.pop %v1767
      %v1769 = vmul.f32 %v1744, 1.442695
      %v1770 = vpow.pop %v1769
      %v1771 = vmul.f32 %v1745, 1.442695
      %v1772 = vpow.pop %v1771
      %v1773 = vmul.f32 %v1746, 1.442695
      %v1774 = vpow.pop %v1773
      %v1775 = vmul.f32 %v1747, 1.442695
      %v1776 = vpow.pop %v1775
      %v1777 = vmul.f32 %v1748, 1.442695
      %v1778 = vpow.pop %v1777
      %v1779 = vmul.f32 %v1749, 1.442695
      %v1780 = vpow.pop %v1779
      %v1781 = vmul.f32 %v1750, 1.442695
      %v1782 = vpow.pop %v1781
      %1783 = vxpose.xlu0.b32.start [1/16] %v1732, 128
      %1784 = vxpose.xlu0.b32.cont [2/16] 0.0, 128
      %1785 = vxpose.xlu0.b32.cont [3/16] 0.0, 128
      %1786 = vxpose.xlu0.b32.cont [4/16] 0.0, 128
      %1787 = vxpose.xlu0.b32.cont [5/16] 0.0, 128
      %1788 = vxpose.xlu0.b32.cont [6/16] 0.0, 128
      %1789 = vxpose.xlu0.b32.cont [7/16] 0.0, 128
      %1790 = vxpose.xlu0.b32.cont [8/16] 0.0, 128
      %1791 = vxpose.xlu0.b32.cont [9/16] 0.0, 128
      %1792 = vxpose.xlu0.b32.cont [10/16] 0.0, 128
      %1793 = vxpose.xlu0.b32.cont [11/16] 0.0, 128
      %1794 = vxpose.xlu0.b32.cont [12/16] 0.0, 128
      %1795 = vxpose.xlu0.b32.cont [13/16] 0.0, 128
      %1796 = vxpose.xlu0.b32.cont [14/16] 0.0, 128
      %1797 = vxpose.xlu0.b32.cont [15/16] 0.0, 128
      %1798 = vxpose.xlu0.b32.end [16/16] 0.0, 128
      %v1799 = vpop.trf.xlu0
      %v1800 = vpop.trf.xlu0
      %v1801 = vpop.trf.xlu0
      %v1802 = vpop.trf.xlu0
      %v1803 = vpop.trf.xlu0
      %v1804 = vpop.trf.xlu0
      %v1805 = vpop.trf.xlu0
      %v1806 = vpop.trf.xlu0
      %v1807 = vpop.trf.xlu0
      %v1808 = vpop.trf.xlu0
      %v1809 = vpop.trf.xlu0
      %v1810 = vpop.trf.xlu0
      %v1811 = vpop.trf.xlu0
      %v1812 = vpop.trf.xlu0
      %v1813 = vpop.trf.xlu0
      %v1814 = vpop.trf.xlu0
      %vm1815 = vcmask 7168
      %v1817 = vsel %vm1815, %v1799, 0
      %v1820 = vsel %vm1815, %v1800, 0
      %v1823 = vsel %vm1815, %v1801, 0
      %v1826 = vsel %vm1815, %v1802, 0
      %v1829 = vsel %vm1815, %v1803, 0
      %v1832 = vsel %vm1815, %v1804, 0
      %v1835 = vsel %vm1815, %v1805, 0
      %v1838 = vsel %vm1815, %v1806, 0
      %vm1840 = vcmask 1040384
      %v1842 = vsel %vm1840, %v1729, 0
      %v1845 = vsel %vm1840, %v1730, 0
      %1847 = vmatpush.msra.mxu0 0.0
      %1848 = vmatpush.msra.mxu0 0.0
      %1849 = vmatpush.msra.mxu0 0.0
      %1850 = vmatpush.msra.mxu0 0.0
      %1851 = vmatpush.msra.mxu0 0.0
      %1852 = vmatpush.msra.mxu0 0.0
      %1853 = vmatpush.msra.mxu0 0.0
      %1854 = vmatpush.msra.mxu0 0.0
      %1855 = vmatpush.msra.mxu0 0.0
      %1856 = vmatpush.msra.mxu0 0.0
      %1857 = vmatpush.msra.mxu0 0.0
      %1858 = vmatpush.msra.mxu0 0.0
      %1859 = vmatpush.msra.mxu0 0.0
      %1860 = vmatpush.msra.mxu0 0.0
      %1861 = vmatpush.msra.mxu0 0.0
      %1862 = vmatpush.msra.mxu0 %v1842
      %1863 = vmatmul.f32.gmra.mxu0 %v1817
      %v1864 = vpop.f32.mrf.mxu0
      %v1865 = vadd.f32 0.0, %v1864
      %1866 = vmatmul.f32.gmra.mxu0 %v1820
      %v1867 = vpop.f32.mrf.mxu0
      %v1868 = vadd.f32 0.0, %v1867
      %1869 = vmatmul.f32.gmra.mxu0 %v1823
      %v1870 = vpop.f32.mrf.mxu0
      %v1871 = vadd.f32 0.0, %v1870
      %1872 = vmatmul.f32.gmra.mxu0 %v1826
      %v1873 = vpop.f32.mrf.mxu0
      %v1874 = vadd.f32 0.0, %v1873
      %1875 = vmatmul.f32.gmra.mxu0 %v1829
      %v1876 = vpop.f32.mrf.mxu0
      %v1877 = vadd.f32 0.0, %v1876
      %1878 = vmatmul.f32.gmra.mxu0 %v1832
      %v1879 = vpop.f32.mrf.mxu0
      %v1880 = vadd.f32 0.0, %v1879
      %1881 = vmatmul.f32.gmra.mxu0 %v1835
      %v1882 = vpop.f32.mrf.mxu0
      %v1883 = vadd.f32 0.0, %v1882
      %1884 = vmatmul.f32.gmra.mxu0 %v1838
      %v1885 = vpop.f32.mrf.mxu0
      %v1886 = vadd.f32 0.0, %v1885
      %1887 = vdwg.mxu0
      %1888 = vmatpush.msra.mxu0 0.0
      %1889 = vmatpush.msra.mxu0 0.0
      %1890 = vmatpush.msra.mxu0 0.0
      %1891 = vmatpush.msra.mxu0 0.0
      %1892 = vmatpush.msra.mxu0 0.0
      %1893 = vmatpush.msra.mxu0 0.0
      %1894 = vmatpush.msra.mxu0 0.0
      %1895 = vmatpush.msra.mxu0 0.0
      %1896 = vmatpush.msra.mxu0 0.0
      %1897 = vmatpush.msra.mxu0 0.0
      %1898 = vmatpush.msra.mxu0 0.0
      %1899 = vmatpush.msra.mxu0 0.0
      %1900 = vmatpush.msra.mxu0 0.0
      %1901 = vmatpush.msra.mxu0 0.0
      %1902 = vmatpush.msra.mxu0 0.0
      %1903 = vmatpush.msra.mxu0 %v1845
      %1904 = vmatmul.f32.gmra.mxu0 %v1817
      %v1905 = vpop.f32.mrf.mxu0
      %v1906 = vadd.f32 0.0, %v1905
      %1907 = vmatmul.f32.gmra.mxu0 %v1820
      %v1908 = vpop.f32.mrf.mxu0
      %v1909 = vadd.f32 0.0, %v1908
      %1910 = vmatmul.f32.gmra.mxu0 %v1823
      %v1911 = vpop.f32.mrf.mxu0
      %v1912 = vadd.f32 0.0, %v1911
      %1913 = vmatmul.f32.gmra.mxu0 %v1826
      %v1914 = vpop.f32.mrf.mxu0
      %v1915 = vadd.f32 0.0, %v1914
      %1916 = vmatmul.f32.gmra.mxu0 %v1829
      %v1917 = vpop.f32.mrf.mxu0
      %v1918 = vadd.f32 0.0, %v1917
      %1919 = vmatmul.f32.gmra.mxu0 %v1832
      %v1920 = vpop.f32.mrf.mxu0
      %v1921 = vadd.f32 0.0, %v1920
      %1922 = vmatmul.f32.gmra.mxu0 %v1835
      %v1923 = vpop.f32.mrf.mxu0
      %v1924 = vadd.f32 0.0, %v1923
      %1925 = vmatmul.f32.gmra.mxu0 %v1838
      %v1926 = vpop.f32.mrf.mxu0
      %v1927 = vadd.f32 0.0, %v1926
      %1928 = vdwg.mxu0
      %v1929 = vmul.f32 %v1752, %v1671
      %v1930 = vmul.f32 %v1754, %v1672
      %v1931 = vmul.f32 %v1756, %v1673
      %v1932 = vmul.f32 %v1758, %v1674
      %v1933 = vmul.f32 %v1760, %v1675
      %v1934 = vmul.f32 %v1762, %v1676
      %v1935 = vmul.f32 %v1764, %v1677
      %v1936 = vmul.f32 %v1766, %v1678
      %v1937 = vmul.f32 %v1768, %v1679
      %v1938 = vmul.f32 %v1770, %v1680
      %v1939 = vmul.f32 %v1772, %v1681
      %v1940 = vmul.f32 %v1774, %v1682
      %v1941 = vmul.f32 %v1776, %v1683
      %v1942 = vmul.f32 %v1778, %v1684
      %v1943 = vmul.f32 %v1780, %v1685
      %v1944 = vmul.f32 %v1782, %v1686
      %v1945 = vadd.f32 %v1929, %v1865
      %v1946 = vadd.f32 %v1930, %v1906
      %v1947 = vadd.f32 %v1931, %v1868
      %v1948 = vadd.f32 %v1932, %v1909
      %v1949 = vadd.f32 %v1933, %v1871
      %v1950 = vadd.f32 %v1934, %v1912
      %v1951 = vadd.f32 %v1935, %v1874
      %v1952 = vadd.f32 %v1936, %v1915
      %v1953 = vadd.f32 %v1937, %v1877
      %v1954 = vadd.f32 %v1938, %v1918
      %v1955 = vadd.f32 %v1939, %v1880
      %v1956 = vadd.f32 %v1940, %v1921
      %v1957 = vadd.f32 %v1941, %v1883
      %v1958 = vadd.f32 %v1942, %v1924
      %v1959 = vadd.f32 %v1943, %v1886
      %v1960 = vadd.f32 %v1944, %v1927
      %1962 = vrot.lane.b32.xlu0 %v1732, 64
      %v1963 = vpop.permute.xlu0 %1962
      %vm1964 = vcmask 523264
      %v1965 = vsel %vm1964, %v1963, 0
      %1967 = vmatpush.msra.mxu0 0.0
      %1968 = vmatpush.msra.mxu0 0.0
      %1969 = vmatpush.msra.mxu0 0.0
      %1970 = vmatpush.msra.mxu0 0.0
      %1971 = vmatpush.msra.mxu0 0.0
      %1972 = vmatpush.msra.mxu0 0.0
      %1973 = vmatpush.msra.mxu0 0.0
      %1974 = vmatpush.msra.mxu0 0.0
      %1975 = vmatpush.msra.mxu0 %v1959
      %1976 = vmatpush.msra.mxu0 %v1957
      %1977 = vmatpush.msra.mxu0 %v1955
      %1978 = vmatpush.msra.mxu0 %v1953
      %1979 = vmatpush.msra.mxu0 %v1951
      %1980 = vmatpush.msra.mxu0 %v1949
      %1981 = vmatpush.msra.mxu0 %v1947
      %1982 = vmatpush.msra.mxu0 %v1945
      %1983 = vmatmul.f32.gmra.mxu0 %v1965
      %v1984 = vpop.f32.mrf.mxu0
      %v1985 = vadd.f32 0.0, %v1984
      %1986 = vdwg.mxu0
      %1987 = vmatpush.msra.mxu0 0.0
      %1988 = vmatpush.msra.mxu0 0.0
      %1989 = vmatpush.msra.mxu0 0.0
      %1990 = vmatpush.msra.mxu0 0.0
      %1991 = vmatpush.msra.mxu0 0.0
      %1992 = vmatpush.msra.mxu0 0.0
      %1993 = vmatpush.msra.mxu0 0.0
      %1994 = vmatpush.msra.mxu0 0.0
      %1995 = vmatpush.msra.mxu0 %v1960
      %1996 = vmatpush.msra.mxu0 %v1958
      %1997 = vmatpush.msra.mxu0 %v1956
      %1998 = vmatpush.msra.mxu0 %v1954
      %1999 = vmatpush.msra.mxu0 %v1952
      %2000 = vmatpush.msra.mxu0 %v1950
      %2001 = vmatpush.msra.mxu0 %v1948
      %2002 = vmatpush.msra.mxu0 %v1946
      %2003 = vmatmul.f32.gmra.mxu0 %v1965
      %v2004 = vpop.f32.mrf.mxu0
      %v2005 = vadd.f32 0.0, %v2004
      %2006 = vdwg.mxu0
      %vm2007 = vcmp.eq.s32.totalorder %v675, 0
      %v2008 = vperm.slane %v1985, 0
      %v2009 = vperm.slane %v2005, 0
      %v2010 = vsel %vm2007, %v2008, 0.0
      %v2011 = vsel %vm2007, %v2009, 0.0
      %v2012 = vperm.slane %v1725, 1
      %v2013 = vperm.slane %v1726, 1
      %v2014 = vmul.f32 %v2012, %v1703
      %v2015 = vmul.f32 %v2013, %v1704
      %v2016 = vmul.f32 %v2012, %v1705
      %v2017 = vmul.f32 %v2013, %v1706
      %v2018 = vmul.f32 %v2012, %v1707
      %v2019 = vmul.f32 %v2013, %v1708
      %v2020 = vmul.f32 %v2012, %v1709
      %v2021 = vmul.f32 %v2013, %v1710
      %v2022 = vmul.f32 %v2012, %v1711
      %v2023 = vmul.f32 %v2013, %v1712
      %v2024 = vmul.f32 %v2012, %v1713
      %v2025 = vmul.f32 %v2013, %v1714
      %v2026 = vmul.f32 %v2012, %v1715
      %v2027 = vmul.f32 %v2013, %v1716
      %v2028 = vmul.f32 %v2012, %v1717
      %v2029 = vmul.f32 %v2013, %v1718
      %v2030 = vmul.f32 %v2014, 1.442695
      %v2031 = vpow.pop %v2030
      %v2032 = vmul.f32 %v2015, 1.442695
      %v2033 = vpow.pop %v2032
      %v2034 = vmul.f32 %v2016, 1.442695
      %v2035 = vpow.pop %v2034
      %v2036 = vmul.f32 %v2017, 1.442695
      %v2037 = vpow.pop %v2036
      %v2038 = vmul.f32 %v2018, 1.442695
      %v2039 = vpow.pop %v2038
      %v2040 = vmul.f32 %v2019, 1.442695
      %v2041 = vpow.pop %v2040
      %v2042 = vmul.f32 %v2020, 1.442695
      %v2043 = vpow.pop %v2042
      %v2044 = vmul.f32 %v2021, 1.442695
      %v2045 = vpow.pop %v2044
      %v2046 = vmul.f32 %v2022, 1.442695
      %v2047 = vpow.pop %v2046
      %v2048 = vmul.f32 %v2023, 1.442695
      %v2049 = vpow.pop %v2048
      %v2050 = vmul.f32 %v2024, 1.442695
      %v2051 = vpow.pop %v2050
      %v2052 = vmul.f32 %v2025, 1.442695
      %v2053 = vpow.pop %v2052
      %v2054 = vmul.f32 %v2026, 1.442695
      %v2055 = vpow.pop %v2054
      %v2056 = vmul.f32 %v2027, 1.442695
      %v2057 = vpow.pop %v2056
      %v2058 = vmul.f32 %v2028, 1.442695
      %v2059 = vpow.pop %v2058
      %v2060 = vmul.f32 %v2029, 1.442695
      %v2061 = vpow.pop %v2060
      %v2062 = vrot.slane %v1732, 1
      %2064 = vxpose.xlu0.b32.start [1/16] %v2062, 128
      %2065 = vxpose.xlu0.b32.cont [2/16] 0.0, 128
      %2066 = vxpose.xlu0.b32.cont [3/16] 0.0, 128
      %2067 = vxpose.xlu0.b32.cont [4/16] 0.0, 128
      %2068 = vxpose.xlu0.b32.cont [5/16] 0.0, 128
      %2069 = vxpose.xlu0.b32.cont [6/16] 0.0, 128
      %2070 = vxpose.xlu0.b32.cont [7/16] 0.0, 128
      %2071 = vxpose.xlu0.b32.cont [8/16] 0.0, 128
      %2072 = vxpose.xlu0.b32.cont [9/16] 0.0, 128
      %2073 = vxpose.xlu0.b32.cont [10/16] 0.0, 128
      %2074 = vxpose.xlu0.b32.cont [11/16] 0.0, 128
      %2075 = vxpose.xlu0.b32.cont [12/16] 0.0, 128
      %2076 = vxpose.xlu0.b32.cont [13/16] 0.0, 128
      %2077 = vxpose.xlu0.b32.cont [14/16] 0.0, 128
      %2078 = vxpose.xlu0.b32.cont [15/16] 0.0, 128
      %2079 = vxpose.xlu0.b32.end [16/16] 0.0, 128
      %v2080 = vpop.trf.xlu0
      %v2081 = vpop.trf.xlu0
      %v2082 = vpop.trf.xlu0
      %v2083 = vpop.trf.xlu0
      %v2084 = vpop.trf.xlu0
      %v2085 = vpop.trf.xlu0
      %v2086 = vpop.trf.xlu0
      %v2087 = vpop.trf.xlu0
      %v2088 = vpop.trf.xlu0
      %v2089 = vpop.trf.xlu0
      %v2090 = vpop.trf.xlu0
      %v2091 = vpop.trf.xlu0
      %v2092 = vpop.trf.xlu0
      %v2093 = vpop.trf.xlu0
      %v2094 = vpop.trf.xlu0
      %v2095 = vpop.trf.xlu0
      %v2096 = vrot.slane %v1729, 1
      %v2097 = vrot.slane %v1730, 1
      %v2099 = vsel %vm1815, %v2080, 0
      %v2102 = vsel %vm1815, %v2081, 0
      %v2105 = vsel %vm1815, %v2082, 0
      %v2108 = vsel %vm1815, %v2083, 0
      %v2111 = vsel %vm1815, %v2084, 0
      %v2114 = vsel %vm1815, %v2085, 0
      %v2117 = vsel %vm1815, %v2086, 0
      %v2120 = vsel %vm1815, %v2087, 0
      %v2122 = vsel %vm1840, %v2096, 0
      %v2124 = vsel %vm1840, %v2097, 0
      %2126 = vmatpush.msra.mxu0 0.0
      %2127 = vmatpush.msra.mxu0 0.0
      %2128 = vmatpush.msra.mxu0 0.0
      %2129 = vmatpush.msra.mxu0 0.0
      %2130 = vmatpush.msra.mxu0 0.0
      %2131 = vmatpush.msra.mxu0 0.0
      %2132 = vmatpush.msra.mxu0 0.0
      %2133 = vmatpush.msra.mxu0 0.0
      %2134 = vmatpush.msra.mxu0 0.0
      %2135 = vmatpush.msra.mxu0 0.0
      %2136 = vmatpush.msra.mxu0 0.0
      %2137 = vmatpush.msra.mxu0 0.0
      %2138 = vmatpush.msra.mxu0 0.0
      %2139 = vmatpush.msra.mxu0 0.0
      %2140 = vmatpush.msra.mxu0 0.0
      %2141 = vmatpush.msra.mxu0 %v2122
      %2142 = vmatmul.f32.gmra.mxu0 %v2099
      %v2143 = vpop.f32.mrf.mxu0
      %v2144 = vadd.f32 0.0, %v2143
      %2145 = vmatmul.f32.gmra.mxu0 %v2102
      %v2146 = vpop.f32.mrf.mxu0
      %v2147 = vadd.f32 0.0, %v2146
      %2148 = vmatmul.f32.gmra.mxu0 %v2105
      %v2149 = vpop.f32.mrf.mxu0
      %v2150 = vadd.f32 0.0, %v2149
      %2151 = vmatmul.f32.gmra.mxu0 %v2108
      %v2152 = vpop.f32.mrf.mxu0
      %v2153 = vadd.f32 0.0, %v2152
      %2154 = vmatmul.f32.gmra.mxu0 %v2111
      %v2155 = vpop.f32.mrf.mxu0
      %v2156 = vadd.f32 0.0, %v2155
      %2157 = vmatmul.f32.gmra.mxu0 %v2114
      %v2158 = vpop.f32.mrf.mxu0
      %v2159 = vadd.f32 0.0, %v2158
      %2160 = vmatmul.f32.gmra.mxu0 %v2117
      %v2161 = vpop.f32.mrf.mxu0
      %v2162 = vadd.f32 0.0, %v2161
      %2163 = vmatmul.f32.gmra.mxu0 %v2120
      %v2164 = vpop.f32.mrf.mxu0
      %v2165 = vadd.f32 0.0, %v2164
      %2166 = vdwg.mxu0
      %2167 = vmatpush.msra.mxu0 0.0
      %2168 = vmatpush.msra.mxu0 0.0
      %2169 = vmatpush.msra.mxu0 0.0
      %2170 = vmatpush.msra.mxu0 0.0
      %2171 = vmatpush.msra.mxu0 0.0
      %2172 = vmatpush.msra.mxu0 0.0
      %2173 = vmatpush.msra.mxu0 0.0
      %2174 = vmatpush.msra.mxu0 0.0
      %2175 = vmatpush.msra.mxu0 0.0
      %2176 = vmatpush.msra.mxu0 0.0
      %2177 = vmatpush.msra.mxu0 0.0
      %2178 = vmatpush.msra.mxu0 0.0
      %2179 = vmatpush.msra.mxu0 0.0
      %2180 = vmatpush.msra.mxu0 0.0
      %2181 = vmatpush.msra.mxu0 0.0
      %2182 = vmatpush.msra.mxu0 %v2124
      %2183 = vmatmul.f32.gmra.mxu0 %v2099
      %v2184 = vpop.f32.mrf.mxu0
      %v2185 = vadd.f32 0.0, %v2184
      %2186 = vmatmul.f32.gmra.mxu0 %v2102
      %v2187 = vpop.f32.mrf.mxu0
      %v2188 = vadd.f32 0.0, %v2187
      %2189 = vmatmul.f32.gmra.mxu0 %v2105
      %v2190 = vpop.f32.mrf.mxu0
      %v2191 = vadd.f32 0.0, %v2190
      %2192 = vmatmul.f32.gmra.mxu0 %v2108
      %v2193 = vpop.f32.mrf.mxu0
      %v2194 = vadd.f32 0.0, %v2193
      %2195 = vmatmul.f32.gmra.mxu0 %v2111
      %v2196 = vpop.f32.mrf.mxu0
      %v2197 = vadd.f32 0.0, %v2196
      %2198 = vmatmul.f32.gmra.mxu0 %v2114
      %v2199 = vpop.f32.mrf.mxu0
      %v2200 = vadd.f32 0.0, %v2199
      %2201 = vmatmul.f32.gmra.mxu0 %v2117
      %v2202 = vpop.f32.mrf.mxu0
      %v2203 = vadd.f32 0.0, %v2202
      %2204 = vmatmul.f32.gmra.mxu0 %v2120
      %v2205 = vpop.f32.mrf.mxu0
      %v2206 = vadd.f32 0.0, %v2205
      %2207 = vdwg.mxu0
      %v2208 = vmul.f32 %v2031, %v1945
      %v2209 = vmul.f32 %v2033, %v1946
      %v2210 = vmul.f32 %v2035, %v1947
      %v2211 = vmul.f32 %v2037, %v1948
      %v2212 = vmul.f32 %v2039, %v1949
      %v2213 = vmul.f32 %v2041, %v1950
      %v2214 = vmul.f32 %v2043, %v1951
      %v2215 = vmul.f32 %v2045, %v1952
      %v2216 = vmul.f32 %v2047, %v1953
      %v2217 = vmul.f32 %v2049, %v1954
      %v2218 = vmul.f32 %v2051, %v1955
      %v2219 = vmul.f32 %v2053, %v1956
      %v2220 = vmul.f32 %v2055, %v1957
      %v2221 = vmul.f32 %v2057, %v1958
      %v2222 = vmul.f32 %v2059, %v1959
      %v2223 = vmul.f32 %v2061, %v1960
      %v2224 = vadd.f32 %v2208, %v2144
      %v2225 = vadd.f32 %v2209, %v2185
      %v2226 = vadd.f32 %v2210, %v2147
      %v2227 = vadd.f32 %v2211, %v2188
      %v2228 = vadd.f32 %v2212, %v2150
      %v2229 = vadd.f32 %v2213, %v2191
      %v2230 = vadd.f32 %v2214, %v2153
      %v2231 = vadd.f32 %v2215, %v2194
      %v2232 = vadd.f32 %v2216, %v2156
      %v2233 = vadd.f32 %v2217, %v2197
      %v2234 = vadd.f32 %v2218, %v2159
      %v2235 = vadd.f32 %v2219, %v2200
      %v2236 = vadd.f32 %v2220, %v2162
      %v2237 = vadd.f32 %v2221, %v2203
      %v2238 = vadd.f32 %v2222, %v2165
      %v2239 = vadd.f32 %v2223, %v2206
      %2240 = vrot.lane.b32.xlu0 %v2062, 64
      %v2241 = vpop.permute.xlu0 %2240
      %v2242 = vsel %vm1964, %v2241, 0
      %2244 = vmatpush.msra.mxu0 0.0
      %2245 = vmatpush.msra.mxu0 0.0
      %2246 = vmatpush.msra.mxu0 0.0
      %2247 = vmatpush.msra.mxu0 0.0
      %2248 = vmatpush.msra.mxu0 0.0
      %2249 = vmatpush.msra.mxu0 0.0
      %2250 = vmatpush.msra.mxu0 0.0
      %2251 = vmatpush.msra.mxu0 0.0
      %2252 = vmatpush.msra.mxu0 %v2238
      %2253 = vmatpush.msra.mxu0 %v2236
      %2254 = vmatpush.msra.mxu0 %v2234
      %2255 = vmatpush.msra.mxu0 %v2232
      %2256 = vmatpush.msra.mxu0 %v2230
      %2257 = vmatpush.msra.mxu0 %v2228
      %2258 = vmatpush.msra.mxu0 %v2226
      %2259 = vmatpush.msra.mxu0 %v2224
      %2260 = vmatmul.f32.gmra.mxu0 %v2242
      %v2261 = vpop.f32.mrf.mxu0
      %v2262 = vadd.f32 0.0, %v2261
      %2263 = vdwg.mxu0
      %2264 = vmatpush.msra.mxu0 0.0
      %2265 = vmatpush.msra.mxu0 0.0
      %2266 = vmatpush.msra.mxu0 0.0
      %2267 = vmatpush.msra.mxu0 0.0
      %2268 = vmatpush.msra.mxu0 0.0
      %2269 = vmatpush.msra.mxu0 0.0
      %2270 = vmatpush.msra.mxu0 0.0
      %2271 = vmatpush.msra.mxu0 0.0
      %2272 = vmatpush.msra.mxu0 %v2239
      %2273 = vmatpush.msra.mxu0 %v2237
      %2274 = vmatpush.msra.mxu0 %v2235
      %2275 = vmatpush.msra.mxu0 %v2233
      %2276 = vmatpush.msra.mxu0 %v2231
      %2277 = vmatpush.msra.mxu0 %v2229
      %2278 = vmatpush.msra.mxu0 %v2227
      %2279 = vmatpush.msra.mxu0 %v2225
      %2280 = vmatmul.f32.gmra.mxu0 %v2242
      %v2281 = vpop.f32.mrf.mxu0
      %v2282 = vadd.f32 0.0, %v2281
      %2283 = vdwg.mxu0
      %vm2284 = vcmp.eq.s32.totalorder %v675, 1
      %v2285 = vperm.slane %v2262, 0
      %v2286 = vperm.slane %v2282, 0
      %v2287 = vsel %vm2284, %v2285, %v2010
      %v2288 = vsel %vm2284, %v2286, %v2011
      %v2289 = vperm.slane %v1725, 2
      %v2290 = vperm.slane %v1726, 2
      %v2291 = vmul.f32 %v2289, %v1703
      %v2292 = vmul.f32 %v2290, %v1704
      %v2293 = vmul.f32 %v2289, %v1705
      %v2294 = vmul.f32 %v2290, %v1706
      %v2295 = vmul.f32 %v2289, %v1707
      %v2296 = vmul.f32 %v2290, %v1708
      %v2297 = vmul.f32 %v2289, %v1709
      %v2298 = vmul.f32 %v2290, %v1710
      %v2299 = vmul.f32 %v2289, %v1711
      %v2300 = vmul.f32 %v2290, %v1712
      %v2301 = vmul.f32 %v2289, %v1713
      %v2302 = vmul.f32 %v2290, %v1714
      %v2303 = vmul.f32 %v2289, %v1715
      %v2304 = vmul.f32 %v2290, %v1716
      %v2305 = vmul.f32 %v2289, %v1717
      %v2306 = vmul.f32 %v2290, %v1718
      %v2307 = vmul.f32 %v2291, 1.442695
      %v2308 = vpow.pop %v2307
      %v2309 = vmul.f32 %v2292, 1.442695
      %v2310 = vpow.pop %v2309
      %v2311 = vmul.f32 %v2293, 1.442695
      %v2312 = vpow.pop %v2311
      %v2313 = vmul.f32 %v2294, 1.442695
      %v2314 = vpow.pop %v2313
      %v2315 = vmul.f32 %v2295, 1.442695
      %v2316 = vpow.pop %v2315
      %v2317 = vmul.f32 %v2296, 1.442695
      %v2318 = vpow.pop %v2317
      %v2319 = vmul.f32 %v2297, 1.442695
      %v2320 = vpow.pop %v2319
      %v2321 = vmul.f32 %v2298, 1.442695
      %v2322 = vpow.pop %v2321
      %v2323 = vmul.f32 %v2299, 1.442695
      %v2324 = vpow.pop %v2323
      %v2325 = vmul.f32 %v2300, 1.442695
      %v2326 = vpow.pop %v2325
      %v2327 = vmul.f32 %v2301, 1.442695
      %v2328 = vpow.pop %v2327
      %v2329 = vmul.f32 %v2302, 1.442695
      %v2330 = vpow.pop %v2329
      %v2331 = vmul.f32 %v2303, 1.442695
      %v2332 = vpow.pop %v2331
      %v2333 = vmul.f32 %v2304, 1.442695
      %v2334 = vpow.pop %v2333
      %v2335 = vmul.f32 %v2305, 1.442695
      %v2336 = vpow.pop %v2335
      %v2337 = vmul.f32 %v2306, 1.442695
      %v2338 = vpow.pop %v2337
      %v2339 = vrot.slane %v1732, 2
      %2341 = vxpose.xlu0.b32.start [1/16] %v2339, 128
      %2342 = vxpose.xlu0.b32.cont [2/16] 0.0, 128
      %2343 = vxpose.xlu0.b32.cont [3/16] 0.0, 128
      %2344 = vxpose.xlu0.b32.cont [4/16] 0.0, 128
      %2345 = vxpose.xlu0.b32.cont [5/16] 0.0, 128
      %2346 = vxpose.xlu0.b32.cont [6/16] 0.0, 128
      %2347 = vxpose.xlu0.b32.cont [7/16] 0.0, 128
      %2348 = vxpose.xlu0.b32.cont [8/16] 0.0, 128
      %2349 = vxpose.xlu0.b32.cont [9/16] 0.0, 128
      %2350 = vxpose.xlu0.b32.cont [10/16] 0.0, 128
      %2351 = vxpose.xlu0.b32.cont [11/16] 0.0, 128
      %2352 = vxpose.xlu0.b32.cont [12/16] 0.0, 128
      %2353 = vxpose.xlu0.b32.cont [13/16] 0.0, 128
      %2354 = vxpose.xlu0.b32.cont [14/16] 0.0, 128
      %2355 = vxpose.xlu0.b32.cont [15/16] 0.0, 128
      %2356 = vxpose.xlu0.b32.end [16/16] 0.0, 128
      %v2357 = vpop.trf.xlu0
      %v2358 = vpop.trf.xlu0
      %v2359 = vpop.trf.xlu0
      %v2360 = vpop.trf.xlu0
      %v2361 = vpop.trf.xlu0
      %v2362 = vpop.trf.xlu0
      %v2363 = vpop.trf.xlu0
      %v2364 = vpop.trf.xlu0
      %v2365 = vpop.trf.xlu0
      %v2366 = vpop.trf.xlu0
      %v2367 = vpop.trf.xlu0
      %v2368 = vpop.trf.xlu0
      %v2369 = vpop.trf.xlu0
      %v2370 = vpop.trf.xlu0
      %v2371 = vpop.trf.xlu0
      %v2372 = vpop.trf.xlu0
      %v2373 = vrot.slane %v1729, 2
      %v2374 = vrot.slane %v1730, 2
      %v2376 = vsel %vm1815, %v2357, 0
      %v2379 = vsel %vm1815, %v2358, 0
      %v2382 = vsel %vm1815, %v2359, 0
      %v2385 = vsel %vm1815, %v2360, 0
      %v2388 = vsel %vm1815, %v2361, 0
      %v2391 = vsel %vm1815, %v2362, 0
      %v2394 = vsel %vm1815, %v2363, 0
      %v2397 = vsel %vm1815, %v2364, 0
      %v2399 = vsel %vm1840, %v2373, 0
      %v2401 = vsel %vm1840, %v2374, 0
      %2403 = vmatpush.msra.mxu0 0.0
      %2404 = vmatpush.msra.mxu0 0.0
      %2405 = vmatpush.msra.mxu0 0.0
      %2406 = vmatpush.msra.mxu0 0.0
      %2407 = vmatpush.msra.mxu0 0.0
      %2408 = vmatpush.msra.mxu0 0.0
      %2409 = vmatpush.msra.mxu0 0.0
      %2410 = vmatpush.msra.mxu0 0.0
      %2411 = vmatpush.msra.mxu0 0.0
      %2412 = vmatpush.msra.mxu0 0.0
      %2413 = vmatpush.msra.mxu0 0.0
      %2414 = vmatpush.msra.mxu0 0.0
      %2415 = vmatpush.msra.mxu0 0.0
      %2416 = vmatpush.msra.mxu0 0.0
      %2417 = vmatpush.msra.mxu0 0.0
      %2418 = vmatpush.msra.mxu0 %v2399
      %2419 = vmatmul.f32.gmra.mxu0 %v2376
      %v2420 = vpop.f32.mrf.mxu0
      %v2421 = vadd.f32 0.0, %v2420
      %2422 = vmatmul.f32.gmra.mxu0 %v2379
      %v2423 = vpop.f32.mrf.mxu0
      %v2424 = vadd.f32 0.0, %v2423
      %2425 = vmatmul.f32.gmra.mxu0 %v2382
      %v2426 = vpop.f32.mrf.mxu0
      %v2427 = vadd.f32 0.0, %v2426
      %2428 = vmatmul.f32.gmra.mxu0 %v2385
      %v2429 = vpop.f32.mrf.mxu0
      %v2430 = vadd.f32 0.0, %v2429
      %2431 = vmatmul.f32.gmra.mxu0 %v2388
      %v2432 = vpop.f32.mrf.mxu0
      %v2433 = vadd.f32 0.0, %v2432
      %2434 = vmatmul.f32.gmra.mxu0 %v2391
      %v2435 = vpop.f32.mrf.mxu0
      %v2436 = vadd.f32 0.0, %v2435
      %2437 = vmatmul.f32.gmra.mxu0 %v2394
      %v2438 = vpop.f32.mrf.mxu0
      %v2439 = vadd.f32 0.0, %v2438
      %2440 = vmatmul.f32.gmra.mxu0 %v2397
      %v2441 = vpop.f32.mrf.mxu0
      %v2442 = vadd.f32 0.0, %v2441
      %2443 = vdwg.mxu0
      %2444 = vmatpush.msra.mxu0 0.0
      %2445 = vmatpush.msra.mxu0 0.0
      %2446 = vmatpush.msra.mxu0 0.0
      %2447 = vmatpush.msra.mxu0 0.0
      %2448 = vmatpush.msra.mxu0 0.0
      %2449 = vmatpush.msra.mxu0 0.0
      %2450 = vmatpush.msra.mxu0 0.0
      %2451 = vmatpush.msra.mxu0 0.0
      %2452 = vmatpush.msra.mxu0 0.0
      %2453 = vmatpush.msra.mxu0 0.0
      %2454 = vmatpush.msra.mxu0 0.0
      %2455 = vmatpush.msra.mxu0 0.0
      %2456 = vmatpush.msra.mxu0 0.0
      %2457 = vmatpush.msra.mxu0 0.0
      %2458 = vmatpush.msra.mxu0 0.0
      %2459 = vmatpush.msra.mxu0 %v2401
      %2460 = vmatmul.f32.gmra.mxu0 %v2376
      %v2461 = vpop.f32.mrf.mxu0
      %v2462 = vadd.f32 0.0, %v2461
      %2463 = vmatmul.f32.gmra.mxu0 %v2379
      %v2464 = vpop.f32.mrf.mxu0
      %v2465 = vadd.f32 0.0, %v2464
      %2466 = vmatmul.f32.gmra.mxu0 %v2382
      %v2467 = vpop.f32.mrf.mxu0
      %v2468 = vadd.f32 0.0, %v2467
      %2469 = vmatmul.f32.gmra.mxu0 %v2385
      %v2470 = vpop.f32.mrf.mxu0
      %v2471 = vadd.f32 0.0, %v2470
      %2472 = vmatmul.f32.gmra.mxu0 %v2388
      %v2473 = vpop.f32.mrf.mxu0
      %v2474 = vadd.f32 0.0, %v2473
      %2475 = vmatmul.f32.gmra.mxu0 %v2391
      %v2476 = vpop.f32.mrf.mxu0
      %v2477 = vadd.f32 0.0, %v2476
      %2478 = vmatmul.f32.gmra.mxu0 %v2394
      %v2479 = vpop.f32.mrf.mxu0
      %v2480 = vadd.f32 0.0, %v2479
      %2481 = vmatmul.f32.gmra.mxu0 %v2397
      %v2482 = vpop.f32.mrf.mxu0
      %v2483 = vadd.f32 0.0, %v2482
      %2484 = vdwg.mxu0
      %v2485 = vmul.f32 %v2308, %v2224
      %v2486 = vmul.f32 %v2310, %v2225
      %v2487 = vmul.f32 %v2312, %v2226
      %v2488 = vmul.f32 %v2314, %v2227
      %v2489 = vmul.f32 %v2316, %v2228
      %v2490 = vmul.f32 %v2318, %v2229
      %v2491 = vmul.f32 %v2320, %v2230
      %v2492 = vmul.f32 %v2322, %v2231
      %v2493 = vmul.f32 %v2324, %v2232
      %v2494 = vmul.f32 %v2326, %v2233
      %v2495 = vmul.f32 %v2328, %v2234
      %v2496 = vmul.f32 %v2330, %v2235
      %v2497 = vmul.f32 %v2332, %v2236
      %v2498 = vmul.f32 %v2334, %v2237
      %v2499 = vmul.f32 %v2336, %v2238
      %v2500 = vmul.f32 %v2338, %v2239
      %v2501 = vadd.f32 %v2485, %v2421
      %v2502 = vadd.f32 %v2486, %v2462
      %v2503 = vadd.f32 %v2487, %v2424
      %v2504 = vadd.f32 %v2488, %v2465
      %v2505 = vadd.f32 %v2489, %v2427
      %v2506 = vadd.f32 %v2490, %v2468
      %v2507 = vadd.f32 %v2491, %v2430
      %v2508 = vadd.f32 %v2492, %v2471
      %v2509 = vadd.f32 %v2493, %v2433
      %v2510 = vadd.f32 %v2494, %v2474
      %v2511 = vadd.f32 %v2495, %v2436
      %v2512 = vadd.f32 %v2496, %v2477
      %v2513 = vadd.f32 %v2497, %v2439
      %v2514 = vadd.f32 %v2498, %v2480
      %v2515 = vadd.f32 %v2499, %v2442
      %v2516 = vadd.f32 %v2500, %v2483
      %2517 = vrot.lane.b32.xlu0 %v2339, 64
      %v2518 = vpop.permute.xlu0 %2517
      %v2519 = vsel %vm1964, %v2518, 0
      %2521 = vmatpush.msra.mxu0 0.0
      %2522 = vmatpush.msra.mxu0 0.0
      %2523 = vmatpush.msra.mxu0 0.0
      %2524 = vmatpush.msra.mxu0 0.0
      %2525 = vmatpush.msra.mxu0 0.0
      %2526 = vmatpush.msra.mxu0 0.0
      %2527 = vmatpush.msra.mxu0 0.0
      %2528 = vmatpush.msra.mxu0 0.0
      %2529 = vmatpush.msra.mxu0 %v2515
      %2530 = vmatpush.msra.mxu0 %v2513
      %2531 = vmatpush.msra.mxu0 %v2511
      %2532 = vmatpush.msra.mxu0 %v2509
      %2533 = vmatpush.msra.mxu0 %v2507
      %2534 = vmatpush.msra.mxu0 %v2505
      %2535 = vmatpush.msra.mxu0 %v2503
      %2536 = vmatpush.msra.mxu0 %v2501
      %2537 = vmatmul.f32.gmra.mxu0 %v2519
      %v2538 = vpop.f32.mrf.mxu0
      %v2539 = vadd.f32 0.0, %v2538
      %2540 = vdwg.mxu0
      %2541 = vmatpush.msra.mxu0 0.0
      %2542 = vmatpush.msra.mxu0 0.0
      %2543 = vmatpush.msra.mxu0 0.0
      %2544 = vmatpush.msra.mxu0 0.0
      %2545 = vmatpush.msra.mxu0 0.0
      %2546 = vmatpush.msra.mxu0 0.0
      %2547 = vmatpush.msra.mxu0 0.0
      %2548 = vmatpush.msra.mxu0 0.0
      %2549 = vmatpush.msra.mxu0 %v2516
      %2550 = vmatpush.msra.mxu0 %v2514
      %2551 = vmatpush.msra.mxu0 %v2512
      %2552 = vmatpush.msra.mxu0 %v2510
      %2553 = vmatpush.msra.mxu0 %v2508
      %2554 = vmatpush.msra.mxu0 %v2506
      %2555 = vmatpush.msra.mxu0 %v2504
      %2556 = vmatpush.msra.mxu0 %v2502
      %2557 = vmatmul.f32.gmra.mxu0 %v2519
      %v2558 = vpop.f32.mrf.mxu0
      %v2559 = vadd.f32 0.0, %v2558
      %2560 = vdwg.mxu0
      %vm2561 = vcmp.eq.s32.totalorder %v675, 2
      %v2562 = vperm.slane %v2539, 0
      %v2563 = vperm.slane %v2559, 0
      %v2564 = vsel %vm2561, %v2562, %v2287
      %v2565 = vsel %vm2561, %v2563, %v2288
      %v2566 = vperm.slane %v1725, 3
      %v2567 = vperm.slane %v1726, 3
      %v2568 = vmul.f32 %v2566, %v1703
      %v2569 = vmul.f32 %v2567, %v1704
      %v2570 = vmul.f32 %v2566, %v1705
      %v2571 = vmul.f32 %v2567, %v1706
      %v2572 = vmul.f32 %v2566, %v1707
      %v2573 = vmul.f32 %v2567, %v1708
      %v2574 = vmul.f32 %v2566, %v1709
      %v2575 = vmul.f32 %v2567, %v1710
      %v2576 = vmul.f32 %v2566, %v1711
      %v2577 = vmul.f32 %v2567, %v1712
      %v2578 = vmul.f32 %v2566, %v1713
      %v2579 = vmul.f32 %v2567, %v1714
      %v2580 = vmul.f32 %v2566, %v1715
      %v2581 = vmul.f32 %v2567, %v1716
      %v2582 = vmul.f32 %v2566, %v1717
      %v2583 = vmul.f32 %v2567, %v1718
      %v2584 = vmul.f32 %v2568, 1.442695
      %v2585 = vpow.pop %v2584
      %v2586 = vmul.f32 %v2569, 1.442695
      %v2587 = vpow.pop %v2586
      %v2588 = vmul.f32 %v2570, 1.442695
      %v2589 = vpow.pop %v2588
      %v2590 = vmul.f32 %v2571, 1.442695
      %v2591 = vpow.pop %v2590
      %v2592 = vmul.f32 %v2572, 1.442695
      %v2593 = vpow.pop %v2592
      %v2594 = vmul.f32 %v2573, 1.442695
      %v2595 = vpow.pop %v2594
      %v2596 = vmul.f32 %v2574, 1.442695
      %v2597 = vpow.pop %v2596
      %v2598 = vmul.f32 %v2575, 1.442695
      %v2599 = vpow.pop %v2598
      %v2600 = vmul.f32 %v2576, 1.442695
      %v2601 = vpow.pop %v2600
      %v2602 = vmul.f32 %v2577, 1.442695
      %v2603 = vpow.pop %v2602
      %v2604 = vmul.f32 %v2578, 1.442695
      %v2605 = vpow.pop %v2604
      %v2606 = vmul.f32 %v2579, 1.442695
      %v2607 = vpow.pop %v2606
      %v2608 = vmul.f32 %v2580, 1.442695
      %v2609 = vpow.pop %v2608
      %v2610 = vmul.f32 %v2581, 1.442695
      %v2611 = vpow.pop %v2610
      %v2612 = vmul.f32 %v2582, 1.442695
      %v2613 = vpow.pop %v2612
      %v2614 = vmul.f32 %v2583, 1.442695
      %v2615 = vpow.pop %v2614
      %v2616 = vrot.slane %v1732, 3
      %2618 = vxpose.xlu0.b32.start [1/16] %v2616, 128
      %2619 = vxpose.xlu0.b32.cont [2/16] 0.0, 128
      %2620 = vxpose.xlu0.b32.cont [3/16] 0.0, 128
      %2621 = vxpose.xlu0.b32.cont [4/16] 0.0, 128
      %2622 = vxpose.xlu0.b32.cont [5/16] 0.0, 128
      %2623 = vxpose.xlu0.b32.cont [6/16] 0.0, 128
      %2624 = vxpose.xlu0.b32.cont [7/16] 0.0, 128
      %2625 = vxpose.xlu0.b32.cont [8/16] 0.0, 128
      %2626 = vxpose.xlu0.b32.cont [9/16] 0.0, 128
      %2627 = vxpose.xlu0.b32.cont [10/16] 0.0, 128
      %2628 = vxpose.xlu0.b32.cont [11/16] 0.0, 128
      %2629 = vxpose.xlu0.b32.cont [12/16] 0.0, 128
      %2630 = vxpose.xlu0.b32.cont [13/16] 0.0, 128
      %2631 = vxpose.xlu0.b32.cont [14/16] 0.0, 128
      %2632 = vxpose.xlu0.b32.cont [15/16] 0.0, 128
      %2633 = vxpose.xlu0.b32.end [16/16] 0.0, 128
      %v2634 = vpop.trf.xlu0
      %v2635 = vpop.trf.xlu0
      %v2636 = vpop.trf.xlu0
      %v2637 = vpop.trf.xlu0
      %v2638 = vpop.trf.xlu0
      %v2639 = vpop.trf.xlu0
      %v2640 = vpop.trf.xlu0
      %v2641 = vpop.trf.xlu0
      %v2642 = vpop.trf.xlu0
      %v2643 = vpop.trf.xlu0
      %v2644 = vpop.trf.xlu0
      %v2645 = vpop.trf.xlu0
      %v2646 = vpop.trf.xlu0
      %v2647 = vpop.trf.xlu0
      %v2648 = vpop.trf.xlu0
      %v2649 = vpop.trf.xlu0
      %v2650 = vrot.slane %v1729, 3
      %v2651 = vrot.slane %v1730, 3
      %v2653 = vsel %vm1815, %v2634, 0
      %v2656 = vsel %vm1815, %v2635, 0
      %v2659 = vsel %vm1815, %v2636, 0
      %v2662 = vsel %vm1815, %v2637, 0
      %v2665 = vsel %vm1815, %v2638, 0
      %v2668 = vsel %vm1815, %v2639, 0
      %v2671 = vsel %vm1815, %v2640, 0
      %v2674 = vsel %vm1815, %v2641, 0
      %v2676 = vsel %vm1840, %v2650, 0
      %v2678 = vsel %vm1840, %v2651, 0
      %2680 = vmatpush.msra.mxu0 0.0
      %2681 = vmatpush.msra.mxu0 0.0
      %2682 = vmatpush.msra.mxu0 0.0
      %2683 = vmatpush.msra.mxu0 0.0
      %2684 = vmatpush.msra.mxu0 0.0
      %2685 = vmatpush.msra.mxu0 0.0
      %2686 = vmatpush.msra.mxu0 0.0
      %2687 = vmatpush.msra.mxu0 0.0
      %2688 = vmatpush.msra.mxu0 0.0
      %2689 = vmatpush.msra.mxu0 0.0
      %2690 = vmatpush.msra.mxu0 0.0
      %2691 = vmatpush.msra.mxu0 0.0
      %2692 = vmatpush.msra.mxu0 0.0
      %2693 = vmatpush.msra.mxu0 0.0
      %2694 = vmatpush.msra.mxu0 0.0
      %2695 = vmatpush.msra.mxu0 %v2676
      %2696 = vmatmul.f32.gmra.mxu0 %v2653
      %v2697 = vpop.f32.mrf.mxu0
      %v2698 = vadd.f32 0.0, %v2697
      %2699 = vmatmul.f32.gmra.mxu0 %v2656
      %v2700 = vpop.f32.mrf.mxu0
      %v2701 = vadd.f32 0.0, %v2700
      %2702 = vmatmul.f32.gmra.mxu0 %v2659
      %v2703 = vpop.f32.mrf.mxu0
      %v2704 = vadd.f32 0.0, %v2703
      %2705 = vmatmul.f32.gmra.mxu0 %v2662
      %v2706 = vpop.f32.mrf.mxu0
      %v2707 = vadd.f32 0.0, %v2706
      %2708 = vmatmul.f32.gmra.mxu0 %v2665
      %v2709 = vpop.f32.mrf.mxu0
      %v2710 = vadd.f32 0.0, %v2709
      %2711 = vmatmul.f32.gmra.mxu0 %v2668
      %v2712 = vpop.f32.mrf.mxu0
      %v2713 = vadd.f32 0.0, %v2712
      %2714 = vmatmul.f32.gmra.mxu0 %v2671
      %v2715 = vpop.f32.mrf.mxu0
      %v2716 = vadd.f32 0.0, %v2715
      %2717 = vmatmul.f32.gmra.mxu0 %v2674
      %v2718 = vpop.f32.mrf.mxu0
      %v2719 = vadd.f32 0.0, %v2718
      %2720 = vdwg.mxu0
      %2721 = vmatpush.msra.mxu0 0.0
      %2722 = vmatpush.msra.mxu0 0.0
      %2723 = vmatpush.msra.mxu0 0.0
      %2724 = vmatpush.msra.mxu0 0.0
      %2725 = vmatpush.msra.mxu0 0.0
      %2726 = vmatpush.msra.mxu0 0.0
      %2727 = vmatpush.msra.mxu0 0.0
      %2728 = vmatpush.msra.mxu0 0.0
      %2729 = vmatpush.msra.mxu0 0.0
      %2730 = vmatpush.msra.mxu0 0.0
      %2731 = vmatpush.msra.mxu0 0.0
      %2732 = vmatpush.msra.mxu0 0.0
      %2733 = vmatpush.msra.mxu0 0.0
      %2734 = vmatpush.msra.mxu0 0.0
      %2735 = vmatpush.msra.mxu0 0.0
      %2736 = vmatpush.msra.mxu0 %v2678
      %2737 = vmatmul.f32.gmra.mxu0 %v2653
      %v2738 = vpop.f32.mrf.mxu0
      %v2739 = vadd.f32 0.0, %v2738
      %2740 = vmatmul.f32.gmra.mxu0 %v2656
      %v2741 = vpop.f32.mrf.mxu0
      %v2742 = vadd.f32 0.0, %v2741
      %2743 = vmatmul.f32.gmra.mxu0 %v2659
      %v2744 = vpop.f32.mrf.mxu0
      %v2745 = vadd.f32 0.0, %v2744
      %2746 = vmatmul.f32.gmra.mxu0 %v2662
      %v2747 = vpop.f32.mrf.mxu0
      %v2748 = vadd.f32 0.0, %v2747
      %2749 = vmatmul.f32.gmra.mxu0 %v2665
      %v2750 = vpop.f32.mrf.mxu0
      %v2751 = vadd.f32 0.0, %v2750
      %2752 = vmatmul.f32.gmra.mxu0 %v2668
      %v2753 = vpop.f32.mrf.mxu0
      %v2754 = vadd.f32 0.0, %v2753
      %2755 = vmatmul.f32.gmra.mxu0 %v2671
      %v2756 = vpop.f32.mrf.mxu0
      %v2757 = vadd.f32 0.0, %v2756
      %2758 = vmatmul.f32.gmra.mxu0 %v2674
      %v2759 = vpop.f32.mrf.mxu0
      %v2760 = vadd.f32 0.0, %v2759
      %2761 = vdwg.mxu0
      %v2762 = vmul.f32 %v2585, %v2501
      %v2763 = vmul.f32 %v2587, %v2502
      %v2764 = vmul.f32 %v2589, %v2503
      %v2765 = vmul.f32 %v2591, %v2504
      %v2766 = vmul.f32 %v2593, %v2505
      %v2767 = vmul.f32 %v2595, %v2506
      %v2768 = vmul.f32 %v2597, %v2507
      %v2769 = vmul.f32 %v2599, %v2508
      %v2770 = vmul.f32 %v2601, %v2509
      %v2771 = vmul.f32 %v2603, %v2510
      %v2772 = vmul.f32 %v2605, %v2511
      %v2773 = vmul.f32 %v2607, %v2512
      %v2774 = vmul.f32 %v2609, %v2513
      %v2775 = vmul.f32 %v2611, %v2514
      %v2776 = vmul.f32 %v2613, %v2515
      %v2777 = vmul.f32 %v2615, %v2516
      %v2778 = vadd.f32 %v2762, %v2698
      %v2779 = vadd.f32 %v2763, %v2739
      %v2780 = vadd.f32 %v2764, %v2701
      %v2781 = vadd.f32 %v2765, %v2742
      %v2782 = vadd.f32 %v2766, %v2704
      %v2783 = vadd.f32 %v2767, %v2745
      %v2784 = vadd.f32 %v2768, %v2707
      %v2785 = vadd.f32 %v2769, %v2748
      %v2786 = vadd.f32 %v2770, %v2710
      %v2787 = vadd.f32 %v2771, %v2751
      %v2788 = vadd.f32 %v2772, %v2713
      %v2789 = vadd.f32 %v2773, %v2754
      %v2790 = vadd.f32 %v2774, %v2716
      %v2791 = vadd.f32 %v2775, %v2757
      %v2792 = vadd.f32 %v2776, %v2719
      %v2793 = vadd.f32 %v2777, %v2760
      %2794 = vrot.lane.b32.xlu0 %v2616, 64
      %v2795 = vpop.permute.xlu0 %2794
      %v2796 = vsel %vm1964, %v2795, 0
      %2798 = vmatpush.msra.mxu0 0.0
      %2799 = vmatpush.msra.mxu0 0.0
      %2800 = vmatpush.msra.mxu0 0.0
      %2801 = vmatpush.msra.mxu0 0.0
      %2802 = vmatpush.msra.mxu0 0.0
      %2803 = vmatpush.msra.mxu0 0.0
      %2804 = vmatpush.msra.mxu0 0.0
      %2805 = vmatpush.msra.mxu0 0.0
      %2806 = vmatpush.msra.mxu0 %v2792
      %2807 = vmatpush.msra.mxu0 %v2790
      %2808 = vmatpush.msra.mxu0 %v2788
      %2809 = vmatpush.msra.mxu0 %v2786
      %2810 = vmatpush.msra.mxu0 %v2784
      %2811 = vmatpush.msra.mxu0 %v2782
      %2812 = vmatpush.msra.mxu0 %v2780
      %2813 = vmatpush.msra.mxu0 %v2778
      %2814 = vmatmul.f32.gmra.mxu0 %v2796
      %v2815 = vpop.f32.mrf.mxu0
      %v2816 = vadd.f32 0.0, %v2815
      %2817 = vdwg.mxu0
      %2818 = vmatpush.msra.mxu0 0.0
      %2819 = vmatpush.msra.mxu0 0.0
      %2820 = vmatpush.msra.mxu0 0.0
      %2821 = vmatpush.msra.mxu0 0.0
      %2822 = vmatpush.msra.mxu0 0.0
      %2823 = vmatpush.msra.mxu0 0.0
      %2824 = vmatpush.msra.mxu0 0.0
      %2825 = vmatpush.msra.mxu0 0.0
      %2826 = vmatpush.msra.mxu0 %v2793
      %2827 = vmatpush.msra.mxu0 %v2791
      %2828 = vmatpush.msra.mxu0 %v2789
      %2829 = vmatpush.msra.mxu0 %v2787
      %2830 = vmatpush.msra.mxu0 %v2785
      %2831 = vmatpush.msra.mxu0 %v2783
      %2832 = vmatpush.msra.mxu0 %v2781
      %2833 = vmatpush.msra.mxu0 %v2779
      %2834 = vmatmul.f32.gmra.mxu0 %v2796
      %v2835 = vpop.f32.mrf.mxu0
      %v2836 = vadd.f32 0.0, %v2835
      %2837 = vdwg.mxu0
      %vm2838 = vcmp.eq.s32.totalorder %v675, 3
      %v2839 = vperm.slane %v2816, 0
      %v2840 = vperm.slane %v2836, 0
      %v2841 = vsel %vm2838, %v2839, %v2564
      %v2842 = vsel %vm2838, %v2840, %v2565
      %v2843 = vperm.slane %v1725, 4
      %v2844 = vperm.slane %v1726, 4
      %v2845 = vmul.f32 %v2843, %v1703
      %v2846 = vmul.f32 %v2844, %v1704
      %v2847 = vmul.f32 %v2843, %v1705
      %v2848 = vmul.f32 %v2844, %v1706
      %v2849 = vmul.f32 %v2843, %v1707
      %v2850 = vmul.f32 %v2844, %v1708
      %v2851 = vmul.f32 %v2843, %v1709
      %v2852 = vmul.f32 %v2844, %v1710
      %v2853 = vmul.f32 %v2843, %v1711
      %v2854 = vmul.f32 %v2844, %v1712
      %v2855 = vmul.f32 %v2843, %v1713
      %v2856 = vmul.f32 %v2844, %v1714
      %v2857 = vmul.f32 %v2843, %v1715
      %v2858 = vmul.f32 %v2844, %v1716
      %v2859 = vmul.f32 %v2843, %v1717
      %v2860 = vmul.f32 %v2844, %v1718
      %v2861 = vmul.f32 %v2845, 1.442695
      %v2862 = vpow.pop %v2861
      %v2863 = vmul.f32 %v2846, 1.442695
      %v2864 = vpow.pop %v2863
      %v2865 = vmul.f32 %v2847, 1.442695
      %v2866 = vpow.pop %v2865
      %v2867 = vmul.f32 %v2848, 1.442695
      %v2868 = vpow.pop %v2867
      %v2869 = vmul.f32 %v2849, 1.442695
      %v2870 = vpow.pop %v2869
      %v2871 = vmul.f32 %v2850, 1.442695
      %v2872 = vpow.pop %v2871
      %v2873 = vmul.f32 %v2851, 1.442695
      %v2874 = vpow.pop %v2873
      %v2875 = vmul.f32 %v2852, 1.442695
      %v2876 = vpow.pop %v2875
      %v2877 = vmul.f32 %v2853, 1.442695
      %v2878 = vpow.pop %v2877
      %v2879 = vmul.f32 %v2854, 1.442695
      %v2880 = vpow.pop %v2879
      %v2881 = vmul.f32 %v2855, 1.442695
      %v2882 = vpow.pop %v2881
      %v2883 = vmul.f32 %v2856, 1.442695
      %v2884 = vpow.pop %v2883
      %v2885 = vmul.f32 %v2857, 1.442695
      %v2886 = vpow.pop %v2885
      %v2887 = vmul.f32 %v2858, 1.442695
      %v2888 = vpow.pop %v2887
      %v2889 = vmul.f32 %v2859, 1.442695
      %v2890 = vpow.pop %v2889
      %v2891 = vmul.f32 %v2860, 1.442695
      %v2892 = vpow.pop %v2891
      %v2893 = vrot.slane %v1732, 4
      %2895 = vxpose.xlu0.b32.start [1/16] %v2893, 128
      %2896 = vxpose.xlu0.b32.cont [2/16] 0.0, 128
      %2897 = vxpose.xlu0.b32.cont [3/16] 0.0, 128
      %2898 = vxpose.xlu0.b32.cont [4/16] 0.0, 128
      %2899 = vxpose.xlu0.b32.cont [5/16] 0.0, 128
      %2900 = vxpose.xlu0.b32.cont [6/16] 0.0, 128
      %2901 = vxpose.xlu0.b32.cont [7/16] 0.0, 128
      %2902 = vxpose.xlu0.b32.cont [8/16] 0.0, 128
      %2903 = vxpose.xlu0.b32.cont [9/16] 0.0, 128
      %2904 = vxpose.xlu0.b32.cont [10/16] 0.0, 128
      %2905 = vxpose.xlu0.b32.cont [11/16] 0.0, 128
      %2906 = vxpose.xlu0.b32.cont [12/16] 0.0, 128
      %2907 = vxpose.xlu0.b32.cont [13/16] 0.0, 128
      %2908 = vxpose.xlu0.b32.cont [14/16] 0.0, 128
      %2909 = vxpose.xlu0.b32.cont [15/16] 0.0, 128
      %2910 = vxpose.xlu0.b32.end [16/16] 0.0, 128
      %v2911 = vpop.trf.xlu0
      %v2912 = vpop.trf.xlu0
      %v2913 = vpop.trf.xlu0
      %v2914 = vpop.trf.xlu0
      %v2915 = vpop.trf.xlu0
      %v2916 = vpop.trf.xlu0
      %v2917 = vpop.trf.xlu0
      %v2918 = vpop.trf.xlu0
      %v2919 = vpop.trf.xlu0
      %v2920 = vpop.trf.xlu0
      %v2921 = vpop.trf.xlu0
      %v2922 = vpop.trf.xlu0
      %v2923 = vpop.trf.xlu0
      %v2924 = vpop.trf.xlu0
      %v2925 = vpop.trf.xlu0
      %v2926 = vpop.trf.xlu0
      %v2927 = vrot.slane %v1729, 4
      %v2928 = vrot.slane %v1730, 4
      %v2930 = vsel %vm1815, %v2911, 0
      %v2933 = vsel %vm1815, %v2912, 0
      %v2936 = vsel %vm1815, %v2913, 0
      %v2939 = vsel %vm1815, %v2914, 0
      %v2942 = vsel %vm1815, %v2915, 0
      %v2945 = vsel %vm1815, %v2916, 0
      %v2948 = vsel %vm1815, %v2917, 0
      %v2951 = vsel %vm1815, %v2918, 0
      %v2953 = vsel %vm1840, %v2927, 0
      %v2955 = vsel %vm1840, %v2928, 0
      %2957 = vmatpush.msra.mxu0 0.0
      %2958 = vmatpush.msra.mxu0 0.0
      %2959 = vmatpush.msra.mxu0 0.0
      %2960 = vmatpush.msra.mxu0 0.0
      %2961 = vmatpush.msra.mxu0 0.0
      %2962 = vmatpush.msra.mxu0 0.0
      %2963 = vmatpush.msra.mxu0 0.0
      %2964 = vmatpush.msra.mxu0 0.0
      %2965 = vmatpush.msra.mxu0 0.0
      %2966 = vmatpush.msra.mxu0 0.0
      %2967 = vmatpush.msra.mxu0 0.0
      %2968 = vmatpush.msra.mxu0 0.0
      %2969 = vmatpush.msra.mxu0 0.0
      %2970 = vmatpush.msra.mxu0 0.0
      %2971 = vmatpush.msra.mxu0 0.0
      %2972 = vmatpush.msra.mxu0 %v2953
      %2973 = vmatmul.f32.gmra.mxu0 %v2930
      %v2974 = vpop.f32.mrf.mxu0
      %v2975 = vadd.f32 0.0, %v2974
      %2976 = vmatmul.f32.gmra.mxu0 %v2933
      %v2977 = vpop.f32.mrf.mxu0
      %v2978 = vadd.f32 0.0, %v2977
      %2979 = vmatmul.f32.gmra.mxu0 %v2936
      %v2980 = vpop.f32.mrf.mxu0
      %v2981 = vadd.f32 0.0, %v2980
      %2982 = vmatmul.f32.gmra.mxu0 %v2939
      %v2983 = vpop.f32.mrf.mxu0
      %v2984 = vadd.f32 0.0, %v2983
      %2985 = vmatmul.f32.gmra.mxu0 %v2942
      %v2986 = vpop.f32.mrf.mxu0
      %v2987 = vadd.f32 0.0, %v2986
      %2988 = vmatmul.f32.gmra.mxu0 %v2945
      %v2989 = vpop.f32.mrf.mxu0
      %v2990 = vadd.f32 0.0, %v2989
      %2991 = vmatmul.f32.gmra.mxu0 %v2948
      %v2992 = vpop.f32.mrf.mxu0
      %v2993 = vadd.f32 0.0, %v2992
      %2994 = vmatmul.f32.gmra.mxu0 %v2951
      %v2995 = vpop.f32.mrf.mxu0
      %v2996 = vadd.f32 0.0, %v2995
      %2997 = vdwg.mxu0
      %2998 = vmatpush.msra.mxu0 0.0
      %2999 = vmatpush.msra.mxu0 0.0
      %3000 = vmatpush.msra.mxu0 0.0
      %3001 = vmatpush.msra.mxu0 0.0
      %3002 = vmatpush.msra.mxu0 0.0
      %3003 = vmatpush.msra.mxu0 0.0
      %3004 = vmatpush.msra.mxu0 0.0
      %3005 = vmatpush.msra.mxu0 0.0
      %3006 = vmatpush.msra.mxu0 0.0
      %3007 = vmatpush.msra.mxu0 0.0
      %3008 = vmatpush.msra.mxu0 0.0
      %3009 = vmatpush.msra.mxu0 0.0
      %3010 = vmatpush.msra.mxu0 0.0
      %3011 = vmatpush.msra.mxu0 0.0
      %3012 = vmatpush.msra.mxu0 0.0
      %3013 = vmatpush.msra.mxu0 %v2955
      %3014 = vmatmul.f32.gmra.mxu0 %v2930
      %v3015 = vpop.f32.mrf.mxu0
      %v3016 = vadd.f32 0.0, %v3015
      %3017 = vmatmul.f32.gmra.mxu0 %v2933
      %v3018 = vpop.f32.mrf.mxu0
      %v3019 = vadd.f32 0.0, %v3018
      %3020 = vmatmul.f32.gmra.mxu0 %v2936
      %v3021 = vpop.f32.mrf.mxu0
      %v3022 = vadd.f32 0.0, %v3021
      %3023 = vmatmul.f32.gmra.mxu0 %v2939
      %v3024 = vpop.f32.mrf.mxu0
      %v3025 = vadd.f32 0.0, %v3024
      %3026 = vmatmul.f32.gmra.mxu0 %v2942
      %v3027 = vpop.f32.mrf.mxu0
      %v3028 = vadd.f32 0.0, %v3027
      %3029 = vmatmul.f32.gmra.mxu0 %v2945
      %v3030 = vpop.f32.mrf.mxu0
      %v3031 = vadd.f32 0.0, %v3030
      %3032 = vmatmul.f32.gmra.mxu0 %v2948
      %v3033 = vpop.f32.mrf.mxu0
      %v3034 = vadd.f32 0.0, %v3033
      %3035 = vmatmul.f32.gmra.mxu0 %v2951
      %v3036 = vpop.f32.mrf.mxu0
      %v3037 = vadd.f32 0.0, %v3036
      %3038 = vdwg.mxu0
      %v3039 = vmul.f32 %v2862, %v2778
      %v3040 = vmul.f32 %v2864, %v2779
      %v3041 = vmul.f32 %v2866, %v2780
      %v3042 = vmul.f32 %v2868, %v2781
      %v3043 = vmul.f32 %v2870, %v2782
      %v3044 = vmul.f32 %v2872, %v2783
      %v3045 = vmul.f32 %v2874, %v2784
      %v3046 = vmul.f32 %v2876, %v2785
      %v3047 = vmul.f32 %v2878, %v2786
      %v3048 = vmul.f32 %v2880, %v2787
      %v3049 = vmul.f32 %v2882, %v2788
      %v3050 = vmul.f32 %v2884, %v2789
      %v3051 = vmul.f32 %v2886, %v2790
      %v3052 = vmul.f32 %v2888, %v2791
      %v3053 = vmul.f32 %v2890, %v2792
      %v3054 = vmul.f32 %v2892, %v2793
      %v3055 = vadd.f32 %v3039, %v2975
      %v3056 = vadd.f32 %v3040, %v3016
      %v3057 = vadd.f32 %v3041, %v2978
      %v3058 = vadd.f32 %v3042, %v3019
      %v3059 = vadd.f32 %v3043, %v2981
      %v3060 = vadd.f32 %v3044, %v3022
      %v3061 = vadd.f32 %v3045, %v2984
      %v3062 = vadd.f32 %v3046, %v3025
      %v3063 = vadd.f32 %v3047, %v2987
      %v3064 = vadd.f32 %v3048, %v3028
      %v3065 = vadd.f32 %v3049, %v2990
      %v3066 = vadd.f32 %v3050, %v3031
      %v3067 = vadd.f32 %v3051, %v2993
      %v3068 = vadd.f32 %v3052, %v3034
      %v3069 = vadd.f32 %v3053, %v2996
      %v3070 = vadd.f32 %v3054, %v3037
      %3071 = vrot.lane.b32.xlu0 %v2893, 64
      %v3072 = vpop.permute.xlu0 %3071
      %v3073 = vsel %vm1964, %v3072, 0
      %3075 = vmatpush.msra.mxu0 0.0
      %3076 = vmatpush.msra.mxu0 0.0
      %3077 = vmatpush.msra.mxu0 0.0
      %3078 = vmatpush.msra.mxu0 0.0
      %3079 = vmatpush.msra.mxu0 0.0
      %3080 = vmatpush.msra.mxu0 0.0
      %3081 = vmatpush.msra.mxu0 0.0
      %3082 = vmatpush.msra.mxu0 0.0
      %3083 = vmatpush.msra.mxu0 %v3069
      %3084 = vmatpush.msra.mxu0 %v3067
      %3085 = vmatpush.msra.mxu0 %v3065
      %3086 = vmatpush.msra.mxu0 %v3063
      %3087 = vmatpush.msra.mxu0 %v3061
      %3088 = vmatpush.msra.mxu0 %v3059
      %3089 = vmatpush.msra.mxu0 %v3057
      %3090 = vmatpush.msra.mxu0 %v3055
      %3091 = vmatmul.f32.gmra.mxu0 %v3073
      %v3092 = vpop.f32.mrf.mxu0
      %v3093 = vadd.f32 0.0, %v3092
      %3094 = vdwg.mxu0
      %3095 = vmatpush.msra.mxu0 0.0
      %3096 = vmatpush.msra.mxu0 0.0
      %3097 = vmatpush.msra.mxu0 0.0
      %3098 = vmatpush.msra.mxu0 0.0
      %3099 = vmatpush.msra.mxu0 0.0
      %3100 = vmatpush.msra.mxu0 0.0
      %3101 = vmatpush.msra.mxu0 0.0
      %3102 = vmatpush.msra.mxu0 0.0
      %3103 = vmatpush.msra.mxu0 %v3070
      %3104 = vmatpush.msra.mxu0 %v3068
      %3105 = vmatpush.msra.mxu0 %v3066
      %3106 = vmatpush.msra.mxu0 %v3064
      %3107 = vmatpush.msra.mxu0 %v3062
      %3108 = vmatpush.msra.mxu0 %v3060
      %3109 = vmatpush.msra.mxu0 %v3058
      %3110 = vmatpush.msra.mxu0 %v3056
      %3111 = vmatmul.f32.gmra.mxu0 %v3073
      %v3112 = vpop.f32.mrf.mxu0
      %v3113 = vadd.f32 0.0, %v3112
      %3114 = vdwg.mxu0
      %vm3115 = vcmp.eq.s32.totalorder %v675, 4
      %v3116 = vperm.slane %v3093, 0
      %v3117 = vperm.slane %v3113, 0
      %v3118 = vsel %vm3115, %v3116, %v2841
      %v3119 = vsel %vm3115, %v3117, %v2842
      %v3120 = vperm.slane %v1725, 5
      %v3121 = vperm.slane %v1726, 5
      %v3122 = vmul.f32 %v3120, %v1703
      %v3123 = vmul.f32 %v3121, %v1704
      %v3124 = vmul.f32 %v3120, %v1705
      %v3125 = vmul.f32 %v3121, %v1706
      %v3126 = vmul.f32 %v3120, %v1707
      %v3127 = vmul.f32 %v3121, %v1708
      %v3128 = vmul.f32 %v3120, %v1709
      %v3129 = vmul.f32 %v3121, %v1710
      %v3130 = vmul.f32 %v3120, %v1711
      %v3131 = vmul.f32 %v3121, %v1712
      %v3132 = vmul.f32 %v3120, %v1713
      %v3133 = vmul.f32 %v3121, %v1714
      %v3134 = vmul.f32 %v3120, %v1715
      %v3135 = vmul.f32 %v3121, %v1716
      %v3136 = vmul.f32 %v3120, %v1717
      %v3137 = vmul.f32 %v3121, %v1718
      %v3138 = vmul.f32 %v3122, 1.442695
      %v3139 = vpow.pop %v3138
      %v3140 = vmul.f32 %v3123, 1.442695
      %v3141 = vpow.pop %v3140
      %v3142 = vmul.f32 %v3124, 1.442695
      %v3143 = vpow.pop %v3142
      %v3144 = vmul.f32 %v3125, 1.442695
      %v3145 = vpow.pop %v3144
      %v3146 = vmul.f32 %v3126, 1.442695
      %v3147 = vpow.pop %v3146
      %v3148 = vmul.f32 %v3127, 1.442695
      %v3149 = vpow.pop %v3148
      %v3150 = vmul.f32 %v3128, 1.442695
      %v3151 = vpow.pop %v3150
      %v3152 = vmul.f32 %v3129, 1.442695
      %v3153 = vpow.pop %v3152
      %v3154 = vmul.f32 %v3130, 1.442695
      %v3155 = vpow.pop %v3154
      %v3156 = vmul.f32 %v3131, 1.442695
      %v3157 = vpow.pop %v3156
      %v3158 = vmul.f32 %v3132, 1.442695
      %v3159 = vpow.pop %v3158
      %v3160 = vmul.f32 %v3133, 1.442695
      %v3161 = vpow.pop %v3160
      %v3162 = vmul.f32 %v3134, 1.442695
      %v3163 = vpow.pop %v3162
      %v3164 = vmul.f32 %v3135, 1.442695
      %v3165 = vpow.pop %v3164
      %v3166 = vmul.f32 %v3136, 1.442695
      %v3167 = vpow.pop %v3166
      %v3168 = vmul.f32 %v3137, 1.442695
      %v3169 = vpow.pop %v3168
      %v3170 = vrot.slane %v1732, 5
      %3172 = vxpose.xlu0.b32.start [1/16] %v3170, 128
      %3173 = vxpose.xlu0.b32.cont [2/16] 0.0, 128
      %3174 = vxpose.xlu0.b32.cont [3/16] 0.0, 128
      %3175 = vxpose.xlu0.b32.cont [4/16] 0.0, 128
      %3176 = vxpose.xlu0.b32.cont [5/16] 0.0, 128
      %3177 = vxpose.xlu0.b32.cont [6/16] 0.0, 128
      %3178 = vxpose.xlu0.b32.cont [7/16] 0.0, 128
      %3179 = vxpose.xlu0.b32.cont [8/16] 0.0, 128
      %3180 = vxpose.xlu0.b32.cont [9/16] 0.0, 128
      %3181 = vxpose.xlu0.b32.cont [10/16] 0.0, 128
      %3182 = vxpose.xlu0.b32.cont [11/16] 0.0, 128
      %3183 = vxpose.xlu0.b32.cont [12/16] 0.0, 128
      %3184 = vxpose.xlu0.b32.cont [13/16] 0.0, 128
      %3185 = vxpose.xlu0.b32.cont [14/16] 0.0, 128
      %3186 = vxpose.xlu0.b32.cont [15/16] 0.0, 128
      %3187 = vxpose.xlu0.b32.end [16/16] 0.0, 128
      %v3188 = vpop.trf.xlu0
      %v3189 = vpop.trf.xlu0
      %v3190 = vpop.trf.xlu0
      %v3191 = vpop.trf.xlu0
      %v3192 = vpop.trf.xlu0
      %v3193 = vpop.trf.xlu0
      %v3194 = vpop.trf.xlu0
      %v3195 = vpop.trf.xlu0
      %v3196 = vpop.trf.xlu0
      %v3197 = vpop.trf.xlu0
      %v3198 = vpop.trf.xlu0
      %v3199 = vpop.trf.xlu0
      %v3200 = vpop.trf.xlu0
      %v3201 = vpop.trf.xlu0
      %v3202 = vpop.trf.xlu0
      %v3203 = vpop.trf.xlu0
      %v3204 = vrot.slane %v1729, 5
      %v3205 = vrot.slane %v1730, 5
      %v3207 = vsel %vm1815, %v3188, 0
      %v3210 = vsel %vm1815, %v3189, 0
      %v3213 = vsel %vm1815, %v3190, 0
      %v3216 = vsel %vm1815, %v3191, 0
      %v3219 = vsel %vm1815, %v3192, 0
      %v3222 = vsel %vm1815, %v3193, 0
      %v3225 = vsel %vm1815, %v3194, 0
      %v3228 = vsel %vm1815, %v3195, 0
      %v3230 = vsel %vm1840, %v3204, 0
      %v3232 = vsel %vm1840, %v3205, 0
      %3234 = vmatpush.msra.mxu0 0.0
      %3235 = vmatpush.msra.mxu0 0.0
      %3236 = vmatpush.msra.mxu0 0.0
      %3237 = vmatpush.msra.mxu0 0.0
      %3238 = vmatpush.msra.mxu0 0.0
      %3239 = vmatpush.msra.mxu0 0.0
      %3240 = vmatpush.msra.mxu0 0.0
      %3241 = vmatpush.msra.mxu0 0.0
      %3242 = vmatpush.msra.mxu0 0.0
      %3243 = vmatpush.msra.mxu0 0.0
      %3244 = vmatpush.msra.mxu0 0.0
      %3245 = vmatpush.msra.mxu0 0.0
      %3246 = vmatpush.msra.mxu0 0.0
      %3247 = vmatpush.msra.mxu0 0.0
      %3248 = vmatpush.msra.mxu0 0.0
      %3249 = vmatpush.msra.mxu0 %v3230
      %3250 = vmatmul.f32.gmra.mxu0 %v3207
      %v3251 = vpop.f32.mrf.mxu0
      %v3252 = vadd.f32 0.0, %v3251
      %3253 = vmatmul.f32.gmra.mxu0 %v3210
      %v3254 = vpop.f32.mrf.mxu0
      %v3255 = vadd.f32 0.0, %v3254
      %3256 = vmatmul.f32.gmra.mxu0 %v3213
      %v3257 = vpop.f32.mrf.mxu0
      %v3258 = vadd.f32 0.0, %v3257
      %3259 = vmatmul.f32.gmra.mxu0 %v3216
      %v3260 = vpop.f32.mrf.mxu0
      %v3261 = vadd.f32 0.0, %v3260
      %3262 = vmatmul.f32.gmra.mxu0 %v3219
      %v3263 = vpop.f32.mrf.mxu0
      %v3264 = vadd.f32 0.0, %v3263
      %3265 = vmatmul.f32.gmra.mxu0 %v3222
      %v3266 = vpop.f32.mrf.mxu0
      %v3267 = vadd.f32 0.0, %v3266
      %3268 = vmatmul.f32.gmra.mxu0 %v3225
      %v3269 = vpop.f32.mrf.mxu0
      %v3270 = vadd.f32 0.0, %v3269
      %3271 = vmatmul.f32.gmra.mxu0 %v3228
      %v3272 = vpop.f32.mrf.mxu0
      %v3273 = vadd.f32 0.0, %v3272
      %3274 = vdwg.mxu0
      %3275 = vmatpush.msra.mxu0 0.0
      %3276 = vmatpush.msra.mxu0 0.0
      %3277 = vmatpush.msra.mxu0 0.0
      %3278 = vmatpush.msra.mxu0 0.0
      %3279 = vmatpush.msra.mxu0 0.0
      %3280 = vmatpush.msra.mxu0 0.0
      %3281 = vmatpush.msra.mxu0 0.0
      %3282 = vmatpush.msra.mxu0 0.0
      %3283 = vmatpush.msra.mxu0 0.0
      %3284 = vmatpush.msra.mxu0 0.0
      %3285 = vmatpush.msra.mxu0 0.0
      %3286 = vmatpush.msra.mxu0 0.0
      %3287 = vmatpush.msra.mxu0 0.0
      %3288 = vmatpush.msra.mxu0 0.0
      %3289 = vmatpush.msra.mxu0 0.0
      %3290 = vmatpush.msra.mxu0 %v3232
      %3291 = vmatmul.f32.gmra.mxu0 %v3207
      %v3292 = vpop.f32.mrf.mxu0
      %v3293 = vadd.f32 0.0, %v3292
      %3294 = vmatmul.f32.gmra.mxu0 %v3210
      %v3295 = vpop.f32.mrf.mxu0
      %v3296 = vadd.f32 0.0, %v3295
      %3297 = vmatmul.f32.gmra.mxu0 %v3213
      %v3298 = vpop.f32.mrf.mxu0
      %v3299 = vadd.f32 0.0, %v3298
      %3300 = vmatmul.f32.gmra.mxu0 %v3216
      %v3301 = vpop.f32.mrf.mxu0
      %v3302 = vadd.f32 0.0, %v3301
      %3303 = vmatmul.f32.gmra.mxu0 %v3219
      %v3304 = vpop.f32.mrf.mxu0
      %v3305 = vadd.f32 0.0, %v3304
      %3306 = vmatmul.f32.gmra.mxu0 %v3222
      %v3307 = vpop.f32.mrf.mxu0
      %v3308 = vadd.f32 0.0, %v3307
      %3309 = vmatmul.f32.gmra.mxu0 %v3225
      %v3310 = vpop.f32.mrf.mxu0
      %v3311 = vadd.f32 0.0, %v3310
      %3312 = vmatmul.f32.gmra.mxu0 %v3228
      %v3313 = vpop.f32.mrf.mxu0
      %v3314 = vadd.f32 0.0, %v3313
      %3315 = vdwg.mxu0
      %v3316 = vmul.f32 %v3139, %v3055
      %v3317 = vmul.f32 %v3141, %v3056
      %v3318 = vmul.f32 %v3143, %v3057
      %v3319 = vmul.f32 %v3145, %v3058
      %v3320 = vmul.f32 %v3147, %v3059
      %v3321 = vmul.f32 %v3149, %v3060
      %v3322 = vmul.f32 %v3151, %v3061
      %v3323 = vmul.f32 %v3153, %v3062
      %v3324 = vmul.f32 %v3155, %v3063
      %v3325 = vmul.f32 %v3157, %v3064
      %v3326 = vmul.f32 %v3159, %v3065
      %v3327 = vmul.f32 %v3161, %v3066
      %v3328 = vmul.f32 %v3163, %v3067
      %v3329 = vmul.f32 %v3165, %v3068
      %v3330 = vmul.f32 %v3167, %v3069
      %v3331 = vmul.f32 %v3169, %v3070
      %v3332 = vadd.f32 %v3316, %v3252
      %v3333 = vadd.f32 %v3317, %v3293
      %v3334 = vadd.f32 %v3318, %v3255
      %v3335 = vadd.f32 %v3319, %v3296
      %v3336 = vadd.f32 %v3320, %v3258
      %v3337 = vadd.f32 %v3321, %v3299
      %v3338 = vadd.f32 %v3322, %v3261
      %v3339 = vadd.f32 %v3323, %v3302
      %v3340 = vadd.f32 %v3324, %v3264
      %v3341 = vadd.f32 %v3325, %v3305
      %v3342 = vadd.f32 %v3326, %v3267
      %v3343 = vadd.f32 %v3327, %v3308
      %v3344 = vadd.f32 %v3328, %v3270
      %v3345 = vadd.f32 %v3329, %v3311
      %v3346 = vadd.f32 %v3330, %v3273
      %v3347 = vadd.f32 %v3331, %v3314
      %3348 = vrot.lane.b32.xlu0 %v3170, 64
      %v3349 = vpop.permute.xlu0 %3348
      %v3350 = vsel %vm1964, %v3349, 0
      %3352 = vmatpush.msra.mxu0 0.0
      %3353 = vmatpush.msra.mxu0 0.0
      %3354 = vmatpush.msra.mxu0 0.0
      %3355 = vmatpush.msra.mxu0 0.0
      %3356 = vmatpush.msra.mxu0 0.0
      %3357 = vmatpush.msra.mxu0 0.0
      %3358 = vmatpush.msra.mxu0 0.0
      %3359 = vmatpush.msra.mxu0 0.0
      %3360 = vmatpush.msra.mxu0 %v3346
      %3361 = vmatpush.msra.mxu0 %v3344
      %3362 = vmatpush.msra.mxu0 %v3342
      %3363 = vmatpush.msra.mxu0 %v3340
      %3364 = vmatpush.msra.mxu0 %v3338
      %3365 = vmatpush.msra.mxu0 %v3336
      %3366 = vmatpush.msra.mxu0 %v3334
      %3367 = vmatpush.msra.mxu0 %v3332
      %3368 = vmatmul.f32.gmra.mxu0 %v3350
      %v3369 = vpop.f32.mrf.mxu0
      %v3370 = vadd.f32 0.0, %v3369
      %3371 = vdwg.mxu0
      %3372 = vmatpush.msra.mxu0 0.0
      %3373 = vmatpush.msra.mxu0 0.0
      %3374 = vmatpush.msra.mxu0 0.0
      %3375 = vmatpush.msra.mxu0 0.0
      %3376 = vmatpush.msra.mxu0 0.0
      %3377 = vmatpush.msra.mxu0 0.0
      %3378 = vmatpush.msra.mxu0 0.0
      %3379 = vmatpush.msra.mxu0 0.0
      %3380 = vmatpush.msra.mxu0 %v3347
      %3381 = vmatpush.msra.mxu0 %v3345
      %3382 = vmatpush.msra.mxu0 %v3343
      %3383 = vmatpush.msra.mxu0 %v3341
      %3384 = vmatpush.msra.mxu0 %v3339
      %3385 = vmatpush.msra.mxu0 %v3337
      %3386 = vmatpush.msra.mxu0 %v3335
      %3387 = vmatpush.msra.mxu0 %v3333
      %3388 = vmatmul.f32.gmra.mxu0 %v3350
      %v3389 = vpop.f32.mrf.mxu0
      %v3390 = vadd.f32 0.0, %v3389
      %3391 = vdwg.mxu0
      %vm3392 = vcmp.eq.s32.totalorder %v675, 5
      %v3393 = vperm.slane %v3370, 0
      %v3394 = vperm.slane %v3390, 0
      %v3395 = vsel %vm3392, %v3393, %v3118
      %v3396 = vsel %vm3392, %v3394, %v3119
      %v3397 = vperm.slane %v1725, 6
      %v3398 = vperm.slane %v1726, 6
      %v3399 = vmul.f32 %v3397, %v1703
      %v3400 = vmul.f32 %v3398, %v1704
      %v3401 = vmul.f32 %v3397, %v1705
      %v3402 = vmul.f32 %v3398, %v1706
      %v3403 = vmul.f32 %v3397, %v1707
      %v3404 = vmul.f32 %v3398, %v1708
      %v3405 = vmul.f32 %v3397, %v1709
      %v3406 = vmul.f32 %v3398, %v1710
      %v3407 = vmul.f32 %v3397, %v1711
      %v3408 = vmul.f32 %v3398, %v1712
      %v3409 = vmul.f32 %v3397, %v1713
      %v3410 = vmul.f32 %v3398, %v1714
      %v3411 = vmul.f32 %v3397, %v1715
      %v3412 = vmul.f32 %v3398, %v1716
      %v3413 = vmul.f32 %v3397, %v1717
      %v3414 = vmul.f32 %v3398, %v1718
      %v3415 = vmul.f32 %v3399, 1.442695
      %v3416 = vpow.pop %v3415
      %v3417 = vmul.f32 %v3400, 1.442695
      %v3418 = vpow.pop %v3417
      %v3419 = vmul.f32 %v3401, 1.442695
      %v3420 = vpow.pop %v3419
      %v3421 = vmul.f32 %v3402, 1.442695
      %v3422 = vpow.pop %v3421
      %v3423 = vmul.f32 %v3403, 1.442695
      %v3424 = vpow.pop %v3423
      %v3425 = vmul.f32 %v3404, 1.442695
      %v3426 = vpow.pop %v3425
      %v3427 = vmul.f32 %v3405, 1.442695
      %v3428 = vpow.pop %v3427
      %v3429 = vmul.f32 %v3406, 1.442695
      %v3430 = vpow.pop %v3429
      %v3431 = vmul.f32 %v3407, 1.442695
      %v3432 = vpow.pop %v3431
      %v3433 = vmul.f32 %v3408, 1.442695
      %v3434 = vpow.pop %v3433
      %v3435 = vmul.f32 %v3409, 1.442695
      %v3436 = vpow.pop %v3435
      %v3437 = vmul.f32 %v3410, 1.442695
      %v3438 = vpow.pop %v3437
      %v3439 = vmul.f32 %v3411, 1.442695
      %v3440 = vpow.pop %v3439
      %v3441 = vmul.f32 %v3412, 1.442695
      %v3442 = vpow.pop %v3441
      %v3443 = vmul.f32 %v3413, 1.442695
      %v3444 = vpow.pop %v3443
      %v3445 = vmul.f32 %v3414, 1.442695
      %v3446 = vpow.pop %v3445
      %v3447 = vrot.slane %v1732, 6
      %3449 = vxpose.xlu0.b32.start [1/16] %v3447, 128
      %3450 = vxpose.xlu0.b32.cont [2/16] 0.0, 128
      %3451 = vxpose.xlu0.b32.cont [3/16] 0.0, 128
      %3452 = vxpose.xlu0.b32.cont [4/16] 0.0, 128
      %3453 = vxpose.xlu0.b32.cont [5/16] 0.0, 128
      %3454 = vxpose.xlu0.b32.cont [6/16] 0.0, 128
      %3455 = vxpose.xlu0.b32.cont [7/16] 0.0, 128
      %3456 = vxpose.xlu0.b32.cont [8/16] 0.0, 128
      %3457 = vxpose.xlu0.b32.cont [9/16] 0.0, 128
      %3458 = vxpose.xlu0.b32.cont [10/16] 0.0, 128
      %3459 = vxpose.xlu0.b32.cont [11/16] 0.0, 128
      %3460 = vxpose.xlu0.b32.cont [12/16] 0.0, 128
      %3461 = vxpose.xlu0.b32.cont [13/16] 0.0, 128
      %3462 = vxpose.xlu0.b32.cont [14/16] 0.0, 128
      %3463 = vxpose.xlu0.b32.cont [15/16] 0.0, 128
      %3464 = vxpose.xlu0.b32.end [16/16] 0.0, 128
      %v3465 = vpop.trf.xlu0
      %v3466 = vpop.trf.xlu0
      %v3467 = vpop.trf.xlu0
      %v3468 = vpop.trf.xlu0
      %v3469 = vpop.trf.xlu0
      %v3470 = vpop.trf.xlu0
      %v3471 = vpop.trf.xlu0
      %v3472 = vpop.trf.xlu0
      %v3473 = vpop.trf.xlu0
      %v3474 = vpop.trf.xlu0
      %v3475 = vpop.trf.xlu0
      %v3476 = vpop.trf.xlu0
      %v3477 = vpop.trf.xlu0
      %v3478 = vpop.trf.xlu0
      %v3479 = vpop.trf.xlu0
      %v3480 = vpop.trf.xlu0
      %v3481 = vrot.slane %v1729, 6
      %v3482 = vrot.slane %v1730, 6
      %v3484 = vsel %vm1815, %v3465, 0
      %v3487 = vsel %vm1815, %v3466, 0
      %v3490 = vsel %vm1815, %v3467, 0
      %v3493 = vsel %vm1815, %v3468, 0
      %v3496 = vsel %vm1815, %v3469, 0
      %v3499 = vsel %vm1815, %v3470, 0
      %v3502 = vsel %vm1815, %v3471, 0
      %v3505 = vsel %vm1815, %v3472, 0
      %v3507 = vsel %vm1840, %v3481, 0
      %v3509 = vsel %vm1840, %v3482, 0
      %3511 = vmatpush.msra.mxu0 0.0
      %3512 = vmatpush.msra.mxu0 0.0
      %3513 = vmatpush.msra.mxu0 0.0
      %3514 = vmatpush.msra.mxu0 0.0
      %3515 = vmatpush.msra.mxu0 0.0
      %3516 = vmatpush.msra.mxu0 0.0
      %3517 = vmatpush.msra.mxu0 0.0
      %3518 = vmatpush.msra.mxu0 0.0
      %3519 = vmatpush.msra.mxu0 0.0
      %3520 = vmatpush.msra.mxu0 0.0
      %3521 = vmatpush.msra.mxu0 0.0
      %3522 = vmatpush.msra.mxu0 0.0
      %3523 = vmatpush.msra.mxu0 0.0
      %3524 = vmatpush.msra.mxu0 0.0
      %3525 = vmatpush.msra.mxu0 0.0
      %3526 = vmatpush.msra.mxu0 %v3507
      %3527 = vmatmul.f32.gmra.mxu0 %v3484
      %v3528 = vpop.f32.mrf.mxu0
      %v3529 = vadd.f32 0.0, %v3528
      %3530 = vmatmul.f32.gmra.mxu0 %v3487
      %v3531 = vpop.f32.mrf.mxu0
      %v3532 = vadd.f32 0.0, %v3531
      %3533 = vmatmul.f32.gmra.mxu0 %v3490
      %v3534 = vpop.f32.mrf.mxu0
      %v3535 = vadd.f32 0.0, %v3534
      %3536 = vmatmul.f32.gmra.mxu0 %v3493
      %v3537 = vpop.f32.mrf.mxu0
      %v3538 = vadd.f32 0.0, %v3537
      %3539 = vmatmul.f32.gmra.mxu0 %v3496
      %v3540 = vpop.f32.mrf.mxu0
      %v3541 = vadd.f32 0.0, %v3540
      %3542 = vmatmul.f32.gmra.mxu0 %v3499
      %v3543 = vpop.f32.mrf.mxu0
      %v3544 = vadd.f32 0.0, %v3543
      %3545 = vmatmul.f32.gmra.mxu0 %v3502
      %v3546 = vpop.f32.mrf.mxu0
      %v3547 = vadd.f32 0.0, %v3546
      %3548 = vmatmul.f32.gmra.mxu0 %v3505
      %v3549 = vpop.f32.mrf.mxu0
      %v3550 = vadd.f32 0.0, %v3549
      %3551 = vdwg.mxu0
      %3552 = vmatpush.msra.mxu0 0.0
      %3553 = vmatpush.msra.mxu0 0.0
      %3554 = vmatpush.msra.mxu0 0.0
      %3555 = vmatpush.msra.mxu0 0.0
      %3556 = vmatpush.msra.mxu0 0.0
      %3557 = vmatpush.msra.mxu0 0.0
      %3558 = vmatpush.msra.mxu0 0.0
      %3559 = vmatpush.msra.mxu0 0.0
      %3560 = vmatpush.msra.mxu0 0.0
      %3561 = vmatpush.msra.mxu0 0.0
      %3562 = vmatpush.msra.mxu0 0.0
      %3563 = vmatpush.msra.mxu0 0.0
      %3564 = vmatpush.msra.mxu0 0.0
      %3565 = vmatpush.msra.mxu0 0.0
      %3566 = vmatpush.msra.mxu0 0.0
      %3567 = vmatpush.msra.mxu0 %v3509
      %3568 = vmatmul.f32.gmra.mxu0 %v3484
      %v3569 = vpop.f32.mrf.mxu0
      %v3570 = vadd.f32 0.0, %v3569
      %3571 = vmatmul.f32.gmra.mxu0 %v3487
      %v3572 = vpop.f32.mrf.mxu0
      %v3573 = vadd.f32 0.0, %v3572
      %3574 = vmatmul.f32.gmra.mxu0 %v3490
      %v3575 = vpop.f32.mrf.mxu0
      %v3576 = vadd.f32 0.0, %v3575
      %3577 = vmatmul.f32.gmra.mxu0 %v3493
      %v3578 = vpop.f32.mrf.mxu0
      %v3579 = vadd.f32 0.0, %v3578
      %3580 = vmatmul.f32.gmra.mxu0 %v3496
      %v3581 = vpop.f32.mrf.mxu0
      %v3582 = vadd.f32 0.0, %v3581
      %3583 = vmatmul.f32.gmra.mxu0 %v3499
      %v3584 = vpop.f32.mrf.mxu0
      %v3585 = vadd.f32 0.0, %v3584
      %3586 = vmatmul.f32.gmra.mxu0 %v3502
      %v3587 = vpop.f32.mrf.mxu0
      %v3588 = vadd.f32 0.0, %v3587
      %3589 = vmatmul.f32.gmra.mxu0 %v3505
      %v3590 = vpop.f32.mrf.mxu0
      %v3591 = vadd.f32 0.0, %v3590
      %3592 = vdwg.mxu0
      %v3593 = vmul.f32 %v3416, %v3332
      %v3594 = vmul.f32 %v3418, %v3333
      %v3595 = vmul.f32 %v3420, %v3334
      %v3596 = vmul.f32 %v3422, %v3335
      %v3597 = vmul.f32 %v3424, %v3336
      %v3598 = vmul.f32 %v3426, %v3337
      %v3599 = vmul.f32 %v3428, %v3338
      %v3600 = vmul.f32 %v3430, %v3339
      %v3601 = vmul.f32 %v3432, %v3340
      %v3602 = vmul.f32 %v3434, %v3341
      %v3603 = vmul.f32 %v3436, %v3342
      %v3604 = vmul.f32 %v3438, %v3343
      %v3605 = vmul.f32 %v3440, %v3344
      %v3606 = vmul.f32 %v3442, %v3345
      %v3607 = vmul.f32 %v3444, %v3346
      %v3608 = vmul.f32 %v3446, %v3347
      %v3609 = vadd.f32 %v3593, %v3529
      %v3610 = vadd.f32 %v3594, %v3570
      %v3611 = vadd.f32 %v3595, %v3532
      %v3612 = vadd.f32 %v3596, %v3573
      %v3613 = vadd.f32 %v3597, %v3535
      %v3614 = vadd.f32 %v3598, %v3576
      %v3615 = vadd.f32 %v3599, %v3538
      %v3616 = vadd.f32 %v3600, %v3579
      %v3617 = vadd.f32 %v3601, %v3541
      %v3618 = vadd.f32 %v3602, %v3582
      %v3619 = vadd.f32 %v3603, %v3544
      %v3620 = vadd.f32 %v3604, %v3585
      %v3621 = vadd.f32 %v3605, %v3547
      %v3622 = vadd.f32 %v3606, %v3588
      %v3623 = vadd.f32 %v3607, %v3550
      %v3624 = vadd.f32 %v3608, %v3591
      %3625 = vrot.lane.b32.xlu0 %v3447, 64
      %v3626 = vpop.permute.xlu0 %3625
      %v3627 = vsel %vm1964, %v3626, 0
      %3629 = vmatpush.msra.mxu0 0.0
      %3630 = vmatpush.msra.mxu0 0.0
      %3631 = vmatpush.msra.mxu0 0.0
      %3632 = vmatpush.msra.mxu0 0.0
      %3633 = vmatpush.msra.mxu0 0.0
      %3634 = vmatpush.msra.mxu0 0.0
      %3635 = vmatpush.msra.mxu0 0.0
      %3636 = vmatpush.msra.mxu0 0.0
      %3637 = vmatpush.msra.mxu0 %v3623
      %3638 = vmatpush.msra.mxu0 %v3621
      %3639 = vmatpush.msra.mxu0 %v3619
      %3640 = vmatpush.msra.mxu0 %v3617
      %3641 = vmatpush.msra.mxu0 %v3615
      %3642 = vmatpush.msra.mxu0 %v3613
      %3643 = vmatpush.msra.mxu0 %v3611
      %3644 = vmatpush.msra.mxu0 %v3609
      %3645 = vmatmul.f32.gmra.mxu0 %v3627
      %v3646 = vpop.f32.mrf.mxu0
      %v3647 = vadd.f32 0.0, %v3646
      %3648 = vdwg.mxu0
      %3649 = vmatpush.msra.mxu0 0.0
      %3650 = vmatpush.msra.mxu0 0.0
      %3651 = vmatpush.msra.mxu0 0.0
      %3652 = vmatpush.msra.mxu0 0.0
      %3653 = vmatpush.msra.mxu0 0.0
      %3654 = vmatpush.msra.mxu0 0.0
      %3655 = vmatpush.msra.mxu0 0.0
      %3656 = vmatpush.msra.mxu0 0.0
      %3657 = vmatpush.msra.mxu0 %v3624
      %3658 = vmatpush.msra.mxu0 %v3622
      %3659 = vmatpush.msra.mxu0 %v3620
      %3660 = vmatpush.msra.mxu0 %v3618
      %3661 = vmatpush.msra.mxu0 %v3616
      %3662 = vmatpush.msra.mxu0 %v3614
      %3663 = vmatpush.msra.mxu0 %v3612
      %3664 = vmatpush.msra.mxu0 %v3610
      %3665 = vmatmul.f32.gmra.mxu0 %v3627
      %v3666 = vpop.f32.mrf.mxu0
      %v3667 = vadd.f32 0.0, %v3666
      %3668 = vdwg.mxu0
      %vm3669 = vcmp.eq.s32.totalorder %v675, 6
      %v3670 = vperm.slane %v3647, 0
      %v3671 = vperm.slane %v3667, 0
      %v3672 = vsel %vm3669, %v3670, %v3395
      %v3673 = vsel %vm3669, %v3671, %v3396
      %v3674 = vperm.slane %v1725, 7
      %v3675 = vperm.slane %v1726, 7
      %v3676 = vmul.f32 %v3674, %v1703
      %v3677 = vmul.f32 %v3675, %v1704
      %v3678 = vmul.f32 %v3674, %v1705
      %v3679 = vmul.f32 %v3675, %v1706
      %v3680 = vmul.f32 %v3674, %v1707
      %v3681 = vmul.f32 %v3675, %v1708
      %v3682 = vmul.f32 %v3674, %v1709
      %v3683 = vmul.f32 %v3675, %v1710
      %v3684 = vmul.f32 %v3674, %v1711
      %v3685 = vmul.f32 %v3675, %v1712
      %v3686 = vmul.f32 %v3674, %v1713
      %v3687 = vmul.f32 %v3675, %v1714
      %v3688 = vmul.f32 %v3674, %v1715
      %v3689 = vmul.f32 %v3675, %v1716
      %v3690 = vmul.f32 %v3674, %v1717
      %v3691 = vmul.f32 %v3675, %v1718
      %v3692 = vmul.f32 %v3676, 1.442695
      %v3693 = vpow.pop %v3692
      %v3694 = vmul.f32 %v3677, 1.442695
      %v3695 = vpow.pop %v3694
      %v3696 = vmul.f32 %v3678, 1.442695
      %v3697 = vpow.pop %v3696
      %v3698 = vmul.f32 %v3679, 1.442695
      %v3699 = vpow.pop %v3698
      %v3700 = vmul.f32 %v3680, 1.442695
      %v3701 = vpow.pop %v3700
      %v3702 = vmul.f32 %v3681, 1.442695
      %v3703 = vpow.pop %v3702
      %v3704 = vmul.f32 %v3682, 1.442695
      %v3705 = vpow.pop %v3704
      %v3706 = vmul.f32 %v3683, 1.442695
      %v3707 = vpow.pop %v3706
      %v3708 = vmul.f32 %v3684, 1.442695
      %v3709 = vpow.pop %v3708
      %v3710 = vmul.f32 %v3685, 1.442695
      %v3711 = vpow.pop %v3710
      %v3712 = vmul.f32 %v3686, 1.442695
      %v3713 = vpow.pop %v3712
      %v3714 = vmul.f32 %v3687, 1.442695
      %v3715 = vpow.pop %v3714
      %v3716 = vmul.f32 %v3688, 1.442695
      %v3717 = vpow.pop %v3716
      %v3718 = vmul.f32 %v3689, 1.442695
      %v3719 = vpow.pop %v3718
      %v3720 = vmul.f32 %v3690, 1.442695
      %v3721 = vpow.pop %v3720
      %v3722 = vmul.f32 %v3691, 1.442695
      %v3723 = vpow.pop %v3722
      %v3724 = vrot.slane %v1732, 7
      %3726 = vxpose.xlu0.b32.start [1/16] %v3724, 128
      %3727 = vxpose.xlu0.b32.cont [2/16] 0.0, 128
      %3728 = vxpose.xlu0.b32.cont [3/16] 0.0, 128
      %3729 = vxpose.xlu0.b32.cont [4/16] 0.0, 128
      %3730 = vxpose.xlu0.b32.cont [5/16] 0.0, 128
      %3731 = vxpose.xlu0.b32.cont [6/16] 0.0, 128
      %3732 = vxpose.xlu0.b32.cont [7/16] 0.0, 128
      %3733 = vxpose.xlu0.b32.cont [8/16] 0.0, 128
      %3734 = vxpose.xlu0.b32.cont [9/16] 0.0, 128
      %3735 = vxpose.xlu0.b32.cont [10/16] 0.0, 128
      %3736 = vxpose.xlu0.b32.cont [11/16] 0.0, 128
      %3737 = vxpose.xlu0.b32.cont [12/16] 0.0, 128
      %3738 = vxpose.xlu0.b32.cont [13/16] 0.0, 128
      %3739 = vxpose.xlu0.b32.cont [14/16] 0.0, 128
      %3740 = vxpose.xlu0.b32.cont [15/16] 0.0, 128
      %3741 = vxpose.xlu0.b32.end [16/16] 0.0, 128
      %v3742 = vpop.trf.xlu0
      %v3743 = vpop.trf.xlu0
      %v3744 = vpop.trf.xlu0
      %v3745 = vpop.trf.xlu0
      %v3746 = vpop.trf.xlu0
      %v3747 = vpop.trf.xlu0
      %v3748 = vpop.trf.xlu0
      %v3749 = vpop.trf.xlu0
      %v3750 = vpop.trf.xlu0
      %v3751 = vpop.trf.xlu0
      %v3752 = vpop.trf.xlu0
      %v3753 = vpop.trf.xlu0
      %v3754 = vpop.trf.xlu0
      %v3755 = vpop.trf.xlu0
      %v3756 = vpop.trf.xlu0
      %v3757 = vpop.trf.xlu0
      %v3758 = vrot.slane %v1729, 7
      %v3759 = vrot.slane %v1730, 7
      %v3761 = vsel %vm1815, %v3742, 0
      %v3764 = vsel %vm1815, %v3743, 0
      %v3767 = vsel %vm1815, %v3744, 0
      %v3770 = vsel %vm1815, %v3745, 0
      %v3773 = vsel %vm1815, %v3746, 0
      %v3776 = vsel %vm1815, %v3747, 0
      %v3779 = vsel %vm1815, %v3748, 0
      %v3782 = vsel %vm1815, %v3749, 0
      %v3784 = vsel %vm1840, %v3758, 0
      %v3786 = vsel %vm1840, %v3759, 0
      %3788 = vmatpush.msra.mxu0 0.0
      %3789 = vmatpush.msra.mxu0 0.0
      %3790 = vmatpush.msra.mxu0 0.0
      %3791 = vmatpush.msra.mxu0 0.0
      %3792 = vmatpush.msra.mxu0 0.0
      %3793 = vmatpush.msra.mxu0 0.0
      %3794 = vmatpush.msra.mxu0 0.0
      %3795 = vmatpush.msra.mxu0 0.0
      %3796 = vmatpush.msra.mxu0 0.0
      %3797 = vmatpush.msra.mxu0 0.0
      %3798 = vmatpush.msra.mxu0 0.0
      %3799 = vmatpush.msra.mxu0 0.0
      %3800 = vmatpush.msra.mxu0 0.0
      %3801 = vmatpush.msra.mxu0 0.0
      %3802 = vmatpush.msra.mxu0 0.0
      %3803 = vmatpush.msra.mxu0 %v3784
      %3804 = vmatmul.f32.gmra.mxu0 %v3761
      %v3805 = vpop.f32.mrf.mxu0
      %v3806 = vadd.f32 0.0, %v3805
      %3807 = vmatmul.f32.gmra.mxu0 %v3764
      %v3808 = vpop.f32.mrf.mxu0
      %v3809 = vadd.f32 0.0, %v3808
      %3810 = vmatmul.f32.gmra.mxu0 %v3767
      %v3811 = vpop.f32.mrf.mxu0
      %v3812 = vadd.f32 0.0, %v3811
      %3813 = vmatmul.f32.gmra.mxu0 %v3770
      %v3814 = vpop.f32.mrf.mxu0
      %v3815 = vadd.f32 0.0, %v3814
      %3816 = vmatmul.f32.gmra.mxu0 %v3773
      %v3817 = vpop.f32.mrf.mxu0
      %v3818 = vadd.f32 0.0, %v3817
      %3819 = vmatmul.f32.gmra.mxu0 %v3776
      %v3820 = vpop.f32.mrf.mxu0
      %v3821 = vadd.f32 0.0, %v3820
      %3822 = vmatmul.f32.gmra.mxu0 %v3779
      %v3823 = vpop.f32.mrf.mxu0
      %v3824 = vadd.f32 0.0, %v3823
      %3825 = vmatmul.f32.gmra.mxu0 %v3782
      %v3826 = vpop.f32.mrf.mxu0
      %v3827 = vadd.f32 0.0, %v3826
      %3828 = vdwg.mxu0
      %3829 = vmatpush.msra.mxu0 0.0
      %3830 = vmatpush.msra.mxu0 0.0
      %3831 = vmatpush.msra.mxu0 0.0
      %3832 = vmatpush.msra.mxu0 0.0
      %3833 = vmatpush.msra.mxu0 0.0
      %3834 = vmatpush.msra.mxu0 0.0
      %3835 = vmatpush.msra.mxu0 0.0
      %3836 = vmatpush.msra.mxu0 0.0
      %3837 = vmatpush.msra.mxu0 0.0
      %3838 = vmatpush.msra.mxu0 0.0
      %3839 = vmatpush.msra.mxu0 0.0
      %3840 = vmatpush.msra.mxu0 0.0
      %3841 = vmatpush.msra.mxu0 0.0
      %3842 = vmatpush.msra.mxu0 0.0
      %3843 = vmatpush.msra.mxu0 0.0
      %3844 = vmatpush.msra.mxu0 %v3786
      %3845 = vmatmul.f32.gmra.mxu0 %v3761
      %v3846 = vpop.f32.mrf.mxu0
      %v3847 = vadd.f32 0.0, %v3846
      %3848 = vmatmul.f32.gmra.mxu0 %v3764
      %v3849 = vpop.f32.mrf.mxu0
      %v3850 = vadd.f32 0.0, %v3849
      %3851 = vmatmul.f32.gmra.mxu0 %v3767
      %v3852 = vpop.f32.mrf.mxu0
      %v3853 = vadd.f32 0.0, %v3852
      %3854 = vmatmul.f32.gmra.mxu0 %v3770
      %v3855 = vpop.f32.mrf.mxu0
      %v3856 = vadd.f32 0.0, %v3855
      %3857 = vmatmul.f32.gmra.mxu0 %v3773
      %v3858 = vpop.f32.mrf.mxu0
      %v3859 = vadd.f32 0.0, %v3858
      %3860 = vmatmul.f32.gmra.mxu0 %v3776
      %v3861 = vpop.f32.mrf.mxu0
      %v3862 = vadd.f32 0.0, %v3861
      %3863 = vmatmul.f32.gmra.mxu0 %v3779
      %v3864 = vpop.f32.mrf.mxu0
      %v3865 = vadd.f32 0.0, %v3864
      %3866 = vmatmul.f32.gmra.mxu0 %v3782
      %v3867 = vpop.f32.mrf.mxu0
      %v3868 = vadd.f32 0.0, %v3867
      %3869 = vdwg.mxu0
      %v3870 = vmul.f32 %v3693, %v3609
      %v3871 = vmul.f32 %v3695, %v3610
      %v3872 = vmul.f32 %v3697, %v3611
      %v3873 = vmul.f32 %v3699, %v3612
      %v3874 = vmul.f32 %v3701, %v3613
      %v3875 = vmul.f32 %v3703, %v3614
      %v3876 = vmul.f32 %v3705, %v3615
      %v3877 = vmul.f32 %v3707, %v3616
      %v3878 = vmul.f32 %v3709, %v3617
      %v3879 = vmul.f32 %v3711, %v3618
      %v3880 = vmul.f32 %v3713, %v3619
      %v3881 = vmul.f32 %v3715, %v3620
      %v3882 = vmul.f32 %v3717, %v3621
      %v3883 = vmul.f32 %v3719, %v3622
      %v3884 = vmul.f32 %v3721, %v3623
      %v3885 = vmul.f32 %v3723, %v3624
      %v3886 = vadd.f32 %v3870, %v3806
      %v3887 = vadd.f32 %v3871, %v3847
      %v3888 = vadd.f32 %v3872, %v3809
      %v3889 = vadd.f32 %v3873, %v3850
      %v3890 = vadd.f32 %v3874, %v3812
      %v3891 = vadd.f32 %v3875, %v3853
      %v3892 = vadd.f32 %v3876, %v3815
      %v3893 = vadd.f32 %v3877, %v3856
      %v3894 = vadd.f32 %v3878, %v3818
      %v3895 = vadd.f32 %v3879, %v3859
      %v3896 = vadd.f32 %v3880, %v3821
      %v3897 = vadd.f32 %v3881, %v3862
      %v3898 = vadd.f32 %v3882, %v3824
      %v3899 = vadd.f32 %v3883, %v3865
      %v3900 = vadd.f32 %v3884, %v3827
      %v3901 = vadd.f32 %v3885, %v3868
      %3902 = vrot.lane.b32.xlu0 %v3724, 64
      %v3903 = vpop.permute.xlu0 %3902
      %v3904 = vsel %vm1964, %v3903, 0
      %3906 = vmatpush.msra.mxu0 0.0
      %3907 = vmatpush.msra.mxu0 0.0
      %3908 = vmatpush.msra.mxu0 0.0
      %3909 = vmatpush.msra.mxu0 0.0
      %3910 = vmatpush.msra.mxu0 0.0
      %3911 = vmatpush.msra.mxu0 0.0
      %3912 = vmatpush.msra.mxu0 0.0
      %3913 = vmatpush.msra.mxu0 0.0
      %3914 = vmatpush.msra.mxu0 %v3900
      %3915 = vmatpush.msra.mxu0 %v3898
      %3916 = vmatpush.msra.mxu0 %v3896
      %3917 = vmatpush.msra.mxu0 %v3894
      %3918 = vmatpush.msra.mxu0 %v3892
      %3919 = vmatpush.msra.mxu0 %v3890
      %3920 = vmatpush.msra.mxu0 %v3888
      %3921 = vmatpush.msra.mxu0 %v3886
      %3922 = vmatmul.f32.gmra.mxu0 %v3904
      %v3923 = vpop.f32.mrf.mxu0
      %v3924 = vadd.f32 0.0, %v3923
      %3925 = vdwg.mxu0
      %3926 = vmatpush.msra.mxu0 0.0
      %3927 = vmatpush.msra.mxu0 0.0
      %3928 = vmatpush.msra.mxu0 0.0
      %3929 = vmatpush.msra.mxu0 0.0
      %3930 = vmatpush.msra.mxu0 0.0
      %3931 = vmatpush.msra.mxu0 0.0
      %3932 = vmatpush.msra.mxu0 0.0
      %3933 = vmatpush.msra.mxu0 0.0
      %3934 = vmatpush.msra.mxu0 %v3901
      %3935 = vmatpush.msra.mxu0 %v3899
      %3936 = vmatpush.msra.mxu0 %v3897
      %3937 = vmatpush.msra.mxu0 %v3895
      %3938 = vmatpush.msra.mxu0 %v3893
      %3939 = vmatpush.msra.mxu0 %v3891
      %3940 = vmatpush.msra.mxu0 %v3889
      %3941 = vmatpush.msra.mxu0 %v3887
      %3942 = vmatmul.f32.gmra.mxu0 %v3904
      %v3943 = vpop.f32.mrf.mxu0
      %v3944 = vadd.f32 0.0, %v3943
      %3945 = vdwg.mxu0
      %vm3946 = vcmp.eq.s32.totalorder %v675, 7
      %v3947 = vperm.slane %v3924, 0
      %v3948 = vperm.slane %v3944, 0
      %v3949 = vsel %vm3946, %v3947, %v3672
      %v3950 = vsel %vm3946, %v3948, %v3673
      %s3951 = smul.addr %s1722, 8
      %s3952 = scalar_lea.vmem [#allocation7], %s3951
      %3953 = vst [vmem:[%s3952] sm:$0xff] %v3949
      %3954 = vst [vmem:[%s3952 + $0x8] sm:$0xff] %v3950
      %s3955 = sadd.s32 %s1719, 16
      %s3956 = sshra.s32 %s3955, 3
      %s3957 = sand.u32 %s3955, 7
      %s3958 = smul.u32 %s3956, 2
      %s3959 = smul.addr %s3958, 8
      %s3960 = scalar_lea.vmem [#allocation3], %s3959
      %v3961 = vld [vmem:[%s3960] sm:$0xff]
      %v3962 = vld [vmem:[%s3960 + $0x8] sm:$0xff]
      %s3963 = smul.addr %s3958, 8
      %s3964 = scalar_lea.vmem [#allocation4], %s3963
      %v3965 = vld [vmem:[%s3964] sm:$0xff]
      %v3966 = vld [vmem:[%s3964 + $0x8] sm:$0xff]
      %s3967 = scalar_lea.vmem [#allocation5], %s3955
      %v3968 = vld [vmem:[%s3967] sm:$0xff]
      %v3969 = vperm.slane %v3961, 0
      %v3970 = vperm.slane %v3962, 0
      %v3971 = vmul.f32 %v3969, %v1703
      %v3972 = vmul.f32 %v3970, %v1704
      %v3973 = vmul.f32 %v3969, %v1705
      %v3974 = vmul.f32 %v3970, %v1706
      %v3975 = vmul.f32 %v3969, %v1707
      %v3976 = vmul.f32 %v3970, %v1708
      %v3977 = vmul.f32 %v3969, %v1709
      %v3978 = vmul.f32 %v3970, %v1710
      %v3979 = vmul.f32 %v3969, %v1711
      %v3980 = vmul.f32 %v3970, %v1712
      %v3981 = vmul.f32 %v3969, %v1713
      %v3982 = vmul.f32 %v3970, %v1714
      %v3983 = vmul.f32 %v3969, %v1715
      %v3984 = vmul.f32 %v3970, %v1716
      %v3985 = vmul.f32 %v3969, %v1717
      %v3986 = vmul.f32 %v3970, %v1718
      %v3987 = vmul.f32 %v3971, 1.442695
      %v3988 = vpow.pop %v3987
      %v3989 = vmul.f32 %v3972, 1.442695
      %v3990 = vpow.pop %v3989
      %v3991 = vmul.f32 %v3973, 1.442695
      %v3992 = vpow.pop %v3991
      %v3993 = vmul.f32 %v3974, 1.442695
      %v3994 = vpow.pop %v3993
      %v3995 = vmul.f32 %v3975, 1.442695
      %v3996 = vpow.pop %v3995
      %v3997 = vmul.f32 %v3976, 1.442695
      %v3998 = vpow.pop %v3997
      %v3999 = vmul.f32 %v3977, 1.442695
      %v4000 = vpow.pop %v3999
      %v4001 = vmul.f32 %v3978, 1.442695
      %v4002 = vpow.pop %v4001
      %v4003 = vmul.f32 %v3979, 1.442695
      %v4004 = vpow.pop %v4003
      %v4005 = vmul.f32 %v3980, 1.442695
      %v4006 = vpow.pop %v4005
      %v4007 = vmul.f32 %v3981, 1.442695
      %v4008 = vpow.pop %v4007
      %v4009 = vmul.f32 %v3982, 1.442695
      %v4010 = vpow.pop %v4009
      %v4011 = vmul.f32 %v3983, 1.442695
      %v4012 = vpow.pop %v4011
      %v4013 = vmul.f32 %v3984, 1.442695
      %v4014 = vpow.pop %v4013
      %v4015 = vmul.f32 %v3985, 1.442695
      %v4016 = vpow.pop %v4015
      %v4017 = vmul.f32 %v3986, 1.442695
      %v4018 = vpow.pop %v4017
      %4019 = vxpose.xlu0.b32.start [1/16] %v3968, 128
      %4020 = vxpose.xlu0.b32.cont [2/16] 0.0, 128
      %4021 = vxpose.xlu0.b32.cont [3/16] 0.0, 128
      %4022 = vxpose.xlu0.b32.cont [4/16] 0.0, 128
      %4023 = vxpose.xlu0.b32.cont [5/16] 0.0, 128
      %4024 = vxpose.xlu0.b32.cont [6/16] 0.0, 128
      %4025 = vxpose.xlu0.b32.cont [7/16] 0.0, 128
      %4026 = vxpose.xlu0.b32.cont [8/16] 0.0, 128
      %4027 = vxpose.xlu0.b32.cont [9/16] 0.0, 128
      %4028 = vxpose.xlu0.b32.cont [10/16] 0.0, 128
      %4029 = vxpose.xlu0.b32.cont [11/16] 0.0, 128
      %4030 = vxpose.xlu0.b32.cont [12/16] 0.0, 128
      %4031 = vxpose.xlu0.b32.cont [13/16] 0.0, 128
      %4032 = vxpose.xlu0.b32.cont [14/16] 0.0, 128
      %4033 = vxpose.xlu0.b32.cont [15/16] 0.0, 128
      %4034 = vxpose.xlu0.b32.end [16/16] 0.0, 128
      %v4035 = vpop.trf.xlu0
      %v4036 = vpop.trf.xlu0
      %v4037 = vpop.trf.xlu0
      %v4038 = vpop.trf.xlu0
      %v4039 = vpop.trf.xlu0
      %v4040 = vpop.trf.xlu0
      %v4041 = vpop.trf.xlu0
      %v4042 = vpop.trf.xlu0
      %v4043 = vpop.trf.xlu0
      %v4044 = vpop.trf.xlu0
      %v4045 = vpop.trf.xlu0
      %v4046 = vpop.trf.xlu0
      %v4047 = vpop.trf.xlu0
      %v4048 = vpop.trf.xlu0
      %v4049 = vpop.trf.xlu0
      %v4050 = vpop.trf.xlu0
      %v4052 = vsel %vm1815, %v4035, 0
      %v4055 = vsel %vm1815, %v4036, 0
      %v4058 = vsel %vm1815, %v4037, 0
      %v4061 = vsel %vm1815, %v4038, 0
      %v4064 = vsel %vm1815, %v4039, 0
      %v4067 = vsel %vm1815, %v4040, 0
      %v4070 = vsel %vm1815, %v4041, 0
      %v4073 = vsel %vm1815, %v4042, 0
      %v4076 = vsel %vm1840, %v3965, 0
      %v4079 = vsel %vm1840, %v3966, 0
      %4081 = vmatpush.msra.mxu0 0.0
      %4082 = vmatpush.msra.mxu0 0.0
      %4083 = vmatpush.msra.mxu0 0.0
      %4084 = vmatpush.msra.mxu0 0.0
      %4085 = vmatpush.msra.mxu0 0.0
      %4086 = vmatpush.msra.mxu0 0.0
      %4087 = vmatpush.msra.mxu0 0.0
      %4088 = vmatpush.msra.mxu0 0.0
      %4089 = vmatpush.msra.mxu0 0.0
      %4090 = vmatpush.msra.mxu0 0.0
      %4091 = vmatpush.msra.mxu0 0.0
      %4092 = vmatpush.msra.mxu0 0.0
      %4093 = vmatpush.msra.mxu0 0.0
      %4094 = vmatpush.msra.mxu0 0.0
      %4095 = vmatpush.msra.mxu0 0.0
      %4096 = vmatpush.msra.mxu0 %v4076
      %4097 = vmatmul.f32.gmra.mxu0 %v4052
      %v4098 = vpop.f32.mrf.mxu0
      %v4099 = vadd.f32 0.0, %v4098
      %4100 = vmatmul.f32.gmra.mxu0 %v4055
      %v4101 = vpop.f32.mrf.mxu0
      %v4102 = vadd.f32 0.0, %v4101
      %4103 = vmatmul.f32.gmra.mxu0 %v4058
      %v4104 = vpop.f32.mrf.mxu0
      %v4105 = vadd.f32 0.0, %v4104
      %4106 = vmatmul.f32.gmra.mxu0 %v4061
      %v4107 = vpop.f32.mrf.mxu0
      %v4108 = vadd.f32 0.0, %v4107
      %4109 = vmatmul.f32.gmra.mxu0 %v4064
      %v4110 = vpop.f32.mrf.mxu0
      %v4111 = vadd.f32 0.0, %v4110
      %4112 = vmatmul.f32.gmra.mxu0 %v4067
      %v4113 = vpop.f32.mrf.mxu0
      %v4114 = vadd.f32 0.0, %v4113
      %4115 = vmatmul.f32.gmra.mxu0 %v4070
      %v4116 = vpop.f32.mrf.mxu0
      %v4117 = vadd.f32 0.0, %v4116
      %4118 = vmatmul.f32.gmra.mxu0 %v4073
      %v4119 = vpop.f32.mrf.mxu0
      %v4120 = vadd.f32 0.0, %v4119
      %4121 = vdwg.mxu0
      %4122 = vmatpush.msra.mxu0 0.0
      %4123 = vmatpush.msra.mxu0 0.0
      %4124 = vmatpush.msra.mxu0 0.0
      %4125 = vmatpush.msra.mxu0 0.0
      %4126 = vmatpush.msra.mxu0 0.0
      %4127 = vmatpush.msra.mxu0 0.0
      %4128 = vmatpush.msra.mxu0 0.0
      %4129 = vmatpush.msra.mxu0 0.0
      %4130 = vmatpush.msra.mxu0 0.0
      %4131 = vmatpush.msra.mxu0 0.0
      %4132 = vmatpush.msra.mxu0 0.0
      %4133 = vmatpush.msra.mxu0 0.0
      %4134 = vmatpush.msra.mxu0 0.0
      %4135 = vmatpush.msra.mxu0 0.0
      %4136 = vmatpush.msra.mxu0 0.0
      %4137 = vmatpush.msra.mxu0 %v4079
      %4138 = vmatmul.f32.gmra.mxu0 %v4052
      %v4139 = vpop.f32.mrf.mxu0
      %v4140 = vadd.f32 0.0, %v4139
      %4141 = vmatmul.f32.gmra.mxu0 %v4055
      %v4142 = vpop.f32.mrf.mxu0
      %v4143 = vadd.f32 0.0, %v4142
      %4144 = vmatmul.f32.gmra.mxu0 %v4058
      %v4145 = vpop.f32.mrf.mxu0
      %v4146 = vadd.f32 0.0, %v4145
      %4147 = vmatmul.f32.gmra.mxu0 %v4061
      %v4148 = vpop.f32.mrf.mxu0
      %v4149 = vadd.f32 0.0, %v4148
      %4150 = vmatmul.f32.gmra.mxu0 %v4064
      %v4151 = vpop.f32.mrf.mxu0
      %v4152 = vadd.f32 0.0, %v4151
      %4153 = vmatmul.f32.gmra.mxu0 %v4067
      %v4154 = vpop.f32.mrf.mxu0
      %v4155 = vadd.f32 0.0, %v4154
      %4156 = vmatmul.f32.gmra.mxu0 %v4070
      %v4157 = vpop.f32.mrf.mxu0
      %v4158 = vadd.f32 0.0, %v4157
      %4159 = vmatmul.f32.gmra.mxu0 %v4073
      %v4160 = vpop.f32.mrf.mxu0
      %v4161 = vadd.f32 0.0, %v4160
      %4162 = vdwg.mxu0
      %v4163 = vmul.f32 %v3988, %v1687
      %v4164 = vmul.f32 %v3990, %v1688
      %v4165 = vmul.f32 %v3992, %v1689
      %v4166 = vmul.f32 %v3994, %v1690
      %v4167 = vmul.f32 %v3996, %v1691
      %v4168 = vmul.f32 %v3998, %v1692
      %v4169 = vmul.f32 %v4000, %v1693
      %v4170 = vmul.f32 %v4002, %v1694
      %v4171 = vmul.f32 %v4004, %v1695
      %v4172 = vmul.f32 %v4006, %v1696
      %v4173 = vmul.f32 %v4008, %v1697
      %v4174 = vmul.f32 %v4010, %v1698
      %v4175 = vmul.f32 %v4012, %v1699
      %v4176 = vmul.f32 %v4014, %v1700
      %v4177 = vmul.f32 %v4016, %v1701
      %v4178 = vmul.f32 %v4018, %v1702
      %v4179 = vadd.f32 %v4163, %v4099
      %v4180 = vadd.f32 %v4164, %v4140
      %v4181 = vadd.f32 %v4165, %v4102
      %v4182 = vadd.f32 %v4166, %v4143
      %v4183 = vadd.f32 %v4167, %v4105
      %v4184 = vadd.f32 %v4168, %v4146
      %v4185 = vadd.f32 %v4169, %v4108
      %v4186 = vadd.f32 %v4170, %v4149
      %v4187 = vadd.f32 %v4171, %v4111
      %v4188 = vadd.f32 %v4172, %v4152
      %v4189 = vadd.f32 %v4173, %v4114
      %v4190 = vadd.f32 %v4174, %v4155
      %v4191 = vadd.f32 %v4175, %v4117
      %v4192 = vadd.f32 %v4176, %v4158
      %v4193 = vadd.f32 %v4177, %v4120
      %v4194 = vadd.f32 %v4178, %v4161
      %4196 = vrot.lane.b32.xlu0 %v3968, 64
      %v4197 = vpop.permute.xlu0 %4196
      %v4198 = vsel %vm1964, %v4197, 0
      %4200 = vmatpush.msra.mxu0 0.0
      %4201 = vmatpush.msra.mxu0 0.0
      %4202 = vmatpush.msra.mxu0 0.0
      %4203 = vmatpush.msra.mxu0 0.0
      %4204 = vmatpush.msra.mxu0 0.0
      %4205 = vmatpush.msra.mxu0 0.0
      %4206 = vmatpush.msra.mxu0 0.0
      %4207 = vmatpush.msra.mxu0 0.0
      %4208 = vmatpush.msra.mxu0 %v4193
      %4209 = vmatpush.msra.mxu0 %v4191
      %4210 = vmatpush.msra.mxu0 %v4189
      %4211 = vmatpush.msra.mxu0 %v4187
      %4212 = vmatpush.msra.mxu0 %v4185
      %4213 = vmatpush.msra.mxu0 %v4183
      %4214 = vmatpush.msra.mxu0 %v4181
      %4215 = vmatpush.msra.mxu0 %v4179
      %4216 = vmatmul.f32.gmra.mxu0 %v4198
      %v4217 = vpop.f32.mrf.mxu0
      %v4218 = vadd.f32 0.0, %v4217
      %4219 = vdwg.mxu0
      %4220 = vmatpush.msra.mxu0 0.0
      %4221 = vmatpush.msra.mxu0 0.0
      %4222 = vmatpush.msra.mxu0 0.0
      %4223 = vmatpush.msra.mxu0 0.0
      %4224 = vmatpush.msra.mxu0 0.0
      %4225 = vmatpush.msra.mxu0 0.0
      %4226 = vmatpush.msra.mxu0 0.0
      %4227 = vmatpush.msra.mxu0 0.0
      %4228 = vmatpush.msra.mxu0 %v4194
      %4229 = vmatpush.msra.mxu0 %v4192
      %4230 = vmatpush.msra.mxu0 %v4190
      %4231 = vmatpush.msra.mxu0 %v4188
      %4232 = vmatpush.msra.mxu0 %v4186
      %4233 = vmatpush.msra.mxu0 %v4184
      %4234 = vmatpush.msra.mxu0 %v4182
      %4235 = vmatpush.msra.mxu0 %v4180
      %4236 = vmatmul.f32.gmra.mxu0 %v4198
      %v4237 = vpop.f32.mrf.mxu0
      %v4238 = vadd.f32 0.0, %v4237
      %4239 = vdwg.mxu0
      %v4240 = vperm.slane %v4218, 0
      %v4241 = vperm.slane %v4238, 0
      %v4242 = vsel %vm2007, %v4240, 0.0
      %v4243 = vsel %vm2007, %v4241, 0.0
      %v4244 = vperm.slane %v3961, 1
      %v4245 = vperm.slane %v3962, 1
      %v4246 = vmul.f32 %v4244, %v1703
      %v4247 = vmul.f32 %v4245, %v1704
      %v4248 = vmul.f32 %v4244, %v1705
      %v4249 = vmul.f32 %v4245, %v1706
      %v4250 = vmul.f32 %v4244, %v1707
      %v4251 = vmul.f32 %v4245, %v1708
      %v4252 = vmul.f32 %v4244, %v1709
      %v4253 = vmul.f32 %v4245, %v1710
      %v4254 = vmul.f32 %v4244, %v1711
      %v4255 = vmul.f32 %v4245, %v1712
      %v4256 = vmul.f32 %v4244, %v1713
      %v4257 = vmul.f32 %v4245, %v1714
      %v4258 = vmul.f32 %v4244, %v1715
      %v4259 = vmul.f32 %v4245, %v1716
      %v4260 = vmul.f32 %v4244, %v1717
      %v4261 = vmul.f32 %v4245, %v1718
      %v4262 = vmul.f32 %v4246, 1.442695
      %v4263 = vpow.pop %v4262
      %v4264 = vmul.f32 %v4247, 1.442695
      %v4265 = vpow.pop %v4264
      %v4266 = vmul.f32 %v4248, 1.442695
      %v4267 = vpow.pop %v4266
      %v4268 = vmul.f32 %v4249, 1.442695
      %v4269 = vpow.pop %v4268
      %v4270 = vmul.f32 %v4250, 1.442695
      %v4271 = vpow.pop %v4270
      %v4272 = vmul.f32 %v4251, 1.442695
      %v4273 = vpow.pop %v4272
      %v4274 = vmul.f32 %v4252, 1.442695
      %v4275 = vpow.pop %v4274
      %v4276 = vmul.f32 %v4253, 1.442695
      %v4277 = vpow.pop %v4276
      %v4278 = vmul.f32 %v4254, 1.442695
      %v4279 = vpow.pop %v4278
      %v4280 = vmul.f32 %v4255, 1.442695
      %v4281 = vpow.pop %v4280
      %v4282 = vmul.f32 %v4256, 1.442695
      %v4283 = vpow.pop %v4282
      %v4284 = vmul.f32 %v4257, 1.442695
      %v4285 = vpow.pop %v4284
      %v4286 = vmul.f32 %v4258, 1.442695
      %v4287 = vpow.pop %v4286
      %v4288 = vmul.f32 %v4259, 1.442695
      %v4289 = vpow.pop %v4288
      %v4290 = vmul.f32 %v4260, 1.442695
      %v4291 = vpow.pop %v4290
      %v4292 = vmul.f32 %v4261, 1.442695
      %v4293 = vpow.pop %v4292
      %v4294 = vrot.slane %v3968, 1
      %4296 = vxpose.xlu0.b32.start [1/16] %v4294, 128
      %4297 = vxpose.xlu0.b32.cont [2/16] 0.0, 128
      %4298 = vxpose.xlu0.b32.cont [3/16] 0.0, 128
      %4299 = vxpose.xlu0.b32.cont [4/16] 0.0, 128
      %4300 = vxpose.xlu0.b32.cont [5/16] 0.0, 128
      %4301 = vxpose.xlu0.b32.cont [6/16] 0.0, 128
      %4302 = vxpose.xlu0.b32.cont [7/16] 0.0, 128
      %4303 = vxpose.xlu0.b32.cont [8/16] 0.0, 128
      %4304 = vxpose.xlu0.b32.cont [9/16] 0.0, 128
      %4305 = vxpose.xlu0.b32.cont [10/16] 0.0, 128
      %4306 = vxpose.xlu0.b32.cont [11/16] 0.0, 128
      %4307 = vxpose.xlu0.b32.cont [12/16] 0.0, 128
      %4308 = vxpose.xlu0.b32.cont [13/16] 0.0, 128
      %4309 = vxpose.xlu0.b32.cont [14/16] 0.0, 128
      %4310 = vxpose.xlu0.b32.cont [15/16] 0.0, 128
      %4311 = vxpose.xlu0.b32.end [16/16] 0.0, 128
      %v4312 = vpop.trf.xlu0
      %v4313 = vpop.trf.xlu0
      %v4314 = vpop.trf.xlu0
      %v4315 = vpop.trf.xlu0
      %v4316 = vpop.trf.xlu0
      %v4317 = vpop.trf.xlu0
      %v4318 = vpop.trf.xlu0
      %v4319 = vpop.trf.xlu0
      %v4320 = vpop.trf.xlu0
      %v4321 = vpop.trf.xlu0
      %v4322 = vpop.trf.xlu0
      %v4323 = vpop.trf.xlu0
      %v4324 = vpop.trf.xlu0
      %v4325 = vpop.trf.xlu0
      %v4326 = vpop.trf.xlu0
      %v4327 = vpop.trf.xlu0
      %v4328 = vrot.slane %v3965, 1
      %v4329 = vrot.slane %v3966, 1
      %v4331 = vsel %vm1815, %v4312, 0
      %v4334 = vsel %vm1815, %v4313, 0
      %v4337 = vsel %vm1815, %v4314, 0
      %v4340 = vsel %vm1815, %v4315, 0
      %v4343 = vsel %vm1815, %v4316, 0
      %v4346 = vsel %vm1815, %v4317, 0
      %v4349 = vsel %vm1815, %v4318, 0
      %v4352 = vsel %vm1815, %v4319, 0
      %v4354 = vsel %vm1840, %v4328, 0
      %v4356 = vsel %vm1840, %v4329, 0
      %4358 = vmatpush.msra.mxu0 0.0
      %4359 = vmatpush.msra.mxu0 0.0
      %4360 = vmatpush.msra.mxu0 0.0
      %4361 = vmatpush.msra.mxu0 0.0
      %4362 = vmatpush.msra.mxu0 0.0
      %4363 = vmatpush.msra.mxu0 0.0
      %4364 = vmatpush.msra.mxu0 0.0
      %4365 = vmatpush.msra.mxu0 0.0
      %4366 = vmatpush.msra.mxu0 0.0
      %4367 = vmatpush.msra.mxu0 0.0
      %4368 = vmatpush.msra.mxu0 0.0
      %4369 = vmatpush.msra.mxu0 0.0
      %4370 = vmatpush.msra.mxu0 0.0
      %4371 = vmatpush.msra.mxu0 0.0
      %4372 = vmatpush.msra.mxu0 0.0
      %4373 = vmatpush.msra.mxu0 %v4354
      %4374 = vmatmul.f32.gmra.mxu0 %v4331
      %v4375 = vpop.f32.mrf.mxu0
      %v4376 = vadd.f32 0.0, %v4375
      %4377 = vmatmul.f32.gmra.mxu0 %v4334
      %v4378 = vpop.f32.mrf.mxu0
      %v4379 = vadd.f32 0.0, %v4378
      %4380 = vmatmul.f32.gmra.mxu0 %v4337
      %v4381 = vpop.f32.mrf.mxu0
      %v4382 = vadd.f32 0.0, %v4381
      %4383 = vmatmul.f32.gmra.mxu0 %v4340
      %v4384 = vpop.f32.mrf.mxu0
      %v4385 = vadd.f32 0.0, %v4384
      %4386 = vmatmul.f32.gmra.mxu0 %v4343
      %v4387 = vpop.f32.mrf.mxu0
      %v4388 = vadd.f32 0.0, %v4387
      %4389 = vmatmul.f32.gmra.mxu0 %v4346
      %v4390 = vpop.f32.mrf.mxu0
      %v4391 = vadd.f32 0.0, %v4390
      %4392 = vmatmul.f32.gmra.mxu0 %v4349
      %v4393 = vpop.f32.mrf.mxu0
      %v4394 = vadd.f32 0.0, %v4393
      %4395 = vmatmul.f32.gmra.mxu0 %v4352
      %v4396 = vpop.f32.mrf.mxu0
      %v4397 = vadd.f32 0.0, %v4396
      %4398 = vdwg.mxu0
      %4399 = vmatpush.msra.mxu0 0.0
      %4400 = vmatpush.msra.mxu0 0.0
      %4401 = vmatpush.msra.mxu0 0.0
      %4402 = vmatpush.msra.mxu0 0.0
      %4403 = vmatpush.msra.mxu0 0.0
      %4404 = vmatpush.msra.mxu0 0.0
      %4405 = vmatpush.msra.mxu0 0.0
      %4406 = vmatpush.msra.mxu0 0.0
      %4407 = vmatpush.msra.mxu0 0.0
      %4408 = vmatpush.msra.mxu0 0.0
      %4409 = vmatpush.msra.mxu0 0.0
      %4410 = vmatpush.msra.mxu0 0.0
      %4411 = vmatpush.msra.mxu0 0.0
      %4412 = vmatpush.msra.mxu0 0.0
      %4413 = vmatpush.msra.mxu0 0.0
      %4414 = vmatpush.msra.mxu0 %v4356
      %4415 = vmatmul.f32.gmra.mxu0 %v4331
      %v4416 = vpop.f32.mrf.mxu0
      %v4417 = vadd.f32 0.0, %v4416
      %4418 = vmatmul.f32.gmra.mxu0 %v4334
      %v4419 = vpop.f32.mrf.mxu0
      %v4420 = vadd.f32 0.0, %v4419
      %4421 = vmatmul.f32.gmra.mxu0 %v4337
      %v4422 = vpop.f32.mrf.mxu0
      %v4423 = vadd.f32 0.0, %v4422
      %4424 = vmatmul.f32.gmra.mxu0 %v4340
      %v4425 = vpop.f32.mrf.mxu0
      %v4426 = vadd.f32 0.0, %v4425
      %4427 = vmatmul.f32.gmra.mxu0 %v4343
      %v4428 = vpop.f32.mrf.mxu0
      %v4429 = vadd.f32 0.0, %v4428
      %4430 = vmatmul.f32.gmra.mxu0 %v4346
      %v4431 = vpop.f32.mrf.mxu0
      %v4432 = vadd.f32 0.0, %v4431
      %4433 = vmatmul.f32.gmra.mxu0 %v4349
      %v4434 = vpop.f32.mrf.mxu0
      %v4435 = vadd.f32 0.0, %v4434
      %4436 = vmatmul.f32.gmra.mxu0 %v4352
      %v4437 = vpop.f32.mrf.mxu0
      %v4438 = vadd.f32 0.0, %v4437
      %4439 = vdwg.mxu0
      %v4440 = vmul.f32 %v4263, %v4179
      %v4441 = vmul.f32 %v4265, %v4180
      %v4442 = vmul.f32 %v4267, %v4181
      %v4443 = vmul.f32 %v4269, %v4182
      %v4444 = vmul.f32 %v4271, %v4183
      %v4445 = vmul.f32 %v4273, %v4184
      %v4446 = vmul.f32 %v4275, %v4185
      %v4447 = vmul.f32 %v4277, %v4186
      %v4448 = vmul.f32 %v4279, %v4187
      %v4449 = vmul.f32 %v4281, %v4188
      %v4450 = vmul.f32 %v4283, %v4189
      %v4451 = vmul.f32 %v4285, %v4190
      %v4452 = vmul.f32 %v4287, %v4191
      %v4453 = vmul.f32 %v4289, %v4192
      %v4454 = vmul.f32 %v4291, %v4193
      %v4455 = vmul.f32 %v4293, %v4194
      %v4456 = vadd.f32 %v4440, %v4376
      %v4457 = vadd.f32 %v4441, %v4417
      %v4458 = vadd.f32 %v4442, %v4379
      %v4459 = vadd.f32 %v4443, %v4420
      %v4460 = vadd.f32 %v4444, %v4382
      %v4461 = vadd.f32 %v4445, %v4423
      %v4462 = vadd.f32 %v4446, %v4385
      %v4463 = vadd.f32 %v4447, %v4426
      %v4464 = vadd.f32 %v4448, %v4388
      %v4465 = vadd.f32 %v4449, %v4429
      %v4466 = vadd.f32 %v4450, %v4391
      %v4467 = vadd.f32 %v4451, %v4432
      %v4468 = vadd.f32 %v4452, %v4394
      %v4469 = vadd.f32 %v4453, %v4435
      %v4470 = vadd.f32 %v4454, %v4397
      %v4471 = vadd.f32 %v4455, %v4438
      %4472 = vrot.lane.b32.xlu0 %v4294, 64
      %v4473 = vpop.permute.xlu0 %4472
      %v4474 = vsel %vm1964, %v4473, 0
      %4476 = vmatpush.msra.mxu0 0.0
      %4477 = vmatpush.msra.mxu0 0.0
      %4478 = vmatpush.msra.mxu0 0.0
      %4479 = vmatpush.msra.mxu0 0.0
      %4480 = vmatpush.msra.mxu0 0.0
      %4481 = vmatpush.msra.mxu0 0.0
      %4482 = vmatpush.msra.mxu0 0.0
      %4483 = vmatpush.msra.mxu0 0.0
      %4484 = vmatpush.msra.mxu0 %v4470
      %4485 = vmatpush.msra.mxu0 %v4468
      %4486 = vmatpush.msra.mxu0 %v4466
      %4487 = vmatpush.msra.mxu0 %v4464
      %4488 = vmatpush.msra.mxu0 %v4462
      %4489 = vmatpush.msra.mxu0 %v4460
      %4490 = vmatpush.msra.mxu0 %v4458
      %4491 = vmatpush.msra.mxu0 %v4456
      %4492 = vmatmul.f32.gmra.mxu0 %v4474
      %v4493 = vpop.f32.mrf.mxu0
      %v4494 = vadd.f32 0.0, %v4493
      %4495 = vdwg.mxu0
      %4496 = vmatpush.msra.mxu0 0.0
      %4497 = vmatpush.msra.mxu0 0.0
      %4498 = vmatpush.msra.mxu0 0.0
      %4499 = vmatpush.msra.mxu0 0.0
      %4500 = vmatpush.msra.mxu0 0.0
      %4501 = vmatpush.msra.mxu0 0.0
      %4502 = vmatpush.msra.mxu0 0.0
      %4503 = vmatpush.msra.mxu0 0.0
      %4504 = vmatpush.msra.mxu0 %v4471
      %4505 = vmatpush.msra.mxu0 %v4469
      %4506 = vmatpush.msra.mxu0 %v4467
      %4507 = vmatpush.msra.mxu0 %v4465
      %4508 = vmatpush.msra.mxu0 %v4463
      %4509 = vmatpush.msra.mxu0 %v4461
      %4510 = vmatpush.msra.mxu0 %v4459
      %4511 = vmatpush.msra.mxu0 %v4457
      %4512 = vmatmul.f32.gmra.mxu0 %v4474
      %v4513 = vpop.f32.mrf.mxu0
      %v4514 = vadd.f32 0.0, %v4513
      %4515 = vdwg.mxu0
      %v4516 = vperm.slane %v4494, 0
      %v4517 = vperm.slane %v4514, 0
      %v4518 = vsel %vm2284, %v4516, %v4242
      %v4519 = vsel %vm2284, %v4517, %v4243
      %v4520 = vperm.slane %v3961, 2
      %v4521 = vperm.slane %v3962, 2
      %v4522 = vmul.f32 %v4520, %v1703
      %v4523 = vmul.f32 %v4521, %v1704
      %v4524 = vmul.f32 %v4520, %v1705
      %v4525 = vmul.f32 %v4521, %v1706
      %v4526 = vmul.f32 %v4520, %v1707
      %v4527 = vmul.f32 %v4521, %v1708
      %v4528 = vmul.f32 %v4520, %v1709
      %v4529 = vmul.f32 %v4521, %v1710
      %v4530 = vmul.f32 %v4520, %v1711
      %v4531 = vmul.f32 %v4521, %v1712
      %v4532 = vmul.f32 %v4520, %v1713
      %v4533 = vmul.f32 %v4521, %v1714
      %v4534 = vmul.f32 %v4520, %v1715
      %v4535 = vmul.f32 %v4521, %v1716
      %v4536 = vmul.f32 %v4520, %v1717
      %v4537 = vmul.f32 %v4521, %v1718
      %v4538 = vmul.f32 %v4522, 1.442695
      %v4539 = vpow.pop %v4538
      %v4540 = vmul.f32 %v4523, 1.442695
      %v4541 = vpow.pop %v4540
      %v4542 = vmul.f32 %v4524, 1.442695
      %v4543 = vpow.pop %v4542
      %v4544 = vmul.f32 %v4525, 1.442695
      %v4545 = vpow.pop %v4544
      %v4546 = vmul.f32 %v4526, 1.442695
      %v4547 = vpow.pop %v4546
      %v4548 = vmul.f32 %v4527, 1.442695
      %v4549 = vpow.pop %v4548
      %v4550 = vmul.f32 %v4528, 1.442695
      %v4551 = vpow.pop %v4550
      %v4552 = vmul.f32 %v4529, 1.442695
      %v4553 = vpow.pop %v4552
      %v4554 = vmul.f32 %v4530, 1.442695
      %v4555 = vpow.pop %v4554
      %v4556 = vmul.f32 %v4531, 1.442695
      %v4557 = vpow.pop %v4556
      %v4558 = vmul.f32 %v4532, 1.442695
      %v4559 = vpow.pop %v4558
      %v4560 = vmul.f32 %v4533, 1.442695
      %v4561 = vpow.pop %v4560
      %v4562 = vmul.f32 %v4534, 1.442695
      %v4563 = vpow.pop %v4562
      %v4564 = vmul.f32 %v4535, 1.442695
      %v4565 = vpow.pop %v4564
      %v4566 = vmul.f32 %v4536, 1.442695
      %v4567 = vpow.pop %v4566
      %v4568 = vmul.f32 %v4537, 1.442695
      %v4569 = vpow.pop %v4568
      %v4570 = vrot.slane %v3968, 2
      %4572 = vxpose.xlu0.b32.start [1/16] %v4570, 128
      %4573 = vxpose.xlu0.b32.cont [2/16] 0.0, 128
      %4574 = vxpose.xlu0.b32.cont [3/16] 0.0, 128
      %4575 = vxpose.xlu0.b32.cont [4/16] 0.0, 128
      %4576 = vxpose.xlu0.b32.cont [5/16] 0.0, 128
      %4577 = vxpose.xlu0.b32.cont [6/16] 0.0, 128
      %4578 = vxpose.xlu0.b32.cont [7/16] 0.0, 128
      %4579 = vxpose.xlu0.b32.cont [8/16] 0.0, 128
      %4580 = vxpose.xlu0.b32.cont [9/16] 0.0, 128
      %4581 = vxpose.xlu0.b32.cont [10/16] 0.0, 128
      %4582 = vxpose.xlu0.b32.cont [11/16] 0.0, 128
      %4583 = vxpose.xlu0.b32.cont [12/16] 0.0, 128
      %4584 = vxpose.xlu0.b32.cont [13/16] 0.0, 128
      %4585 = vxpose.xlu0.b32.cont [14/16] 0.0, 128
      %4586 = vxpose.xlu0.b32.cont [15/16] 0.0, 128
      %4587 = vxpose.xlu0.b32.end [16/16] 0.0, 128
      %v4588 = vpop.trf.xlu0
      %v4589 = vpop.trf.xlu0
      %v4590 = vpop.trf.xlu0
      %v4591 = vpop.trf.xlu0
      %v4592 = vpop.trf.xlu0
      %v4593 = vpop.trf.xlu0
      %v4594 = vpop.trf.xlu0
      %v4595 = vpop.trf.xlu0
      %v4596 = vpop.trf.xlu0
      %v4597 = vpop.trf.xlu0
      %v4598 = vpop.trf.xlu0
      %v4599 = vpop.trf.xlu0
      %v4600 = vpop.trf.xlu0
      %v4601 = vpop.trf.xlu0
      %v4602 = vpop.trf.xlu0
      %v4603 = vpop.trf.xlu0
      %v4604 = vrot.slane %v3965, 2
      %v4605 = vrot.slane %v3966, 2
      %v4607 = vsel %vm1815, %v4588, 0
      %v4610 = vsel %vm1815, %v4589, 0
      %v4613 = vsel %vm1815, %v4590, 0
      %v4616 = vsel %vm1815, %v4591, 0
      %v4619 = vsel %vm1815, %v4592, 0
      %v4622 = vsel %vm1815, %v4593, 0
      %v4625 = vsel %vm1815, %v4594, 0
      %v4628 = vsel %vm1815, %v4595, 0
      %v4630 = vsel %vm1840, %v4604, 0
      %v4632 = vsel %vm1840, %v4605, 0
      %4634 = vmatpush.msra.mxu0 0.0
      %4635 = vmatpush.msra.mxu0 0.0
      %4636 = vmatpush.msra.mxu0 0.0
      %4637 = vmatpush.msra.mxu0 0.0
      %4638 = vmatpush.msra.mxu0 0.0
      %4639 = vmatpush.msra.mxu0 0.0
      %4640 = vmatpush.msra.mxu0 0.0
      %4641 = vmatpush.msra.mxu0 0.0
      %4642 = vmatpush.msra.mxu0 0.0
      %4643 = vmatpush.msra.mxu0 0.0
      %4644 = vmatpush.msra.mxu0 0.0
      %4645 = vmatpush.msra.mxu0 0.0
      %4646 = vmatpush.msra.mxu0 0.0
      %4647 = vmatpush.msra.mxu0 0.0
      %4648 = vmatpush.msra.mxu0 0.0
      %4649 = vmatpush.msra.mxu0 %v4630
      %4650 = vmatmul.f32.gmra.mxu0 %v4607
      %v4651 = vpop.f32.mrf.mxu0
      %v4652 = vadd.f32 0.0, %v4651
      %4653 = vmatmul.f32.gmra.mxu0 %v4610
      %v4654 = vpop.f32.mrf.mxu0
      %v4655 = vadd.f32 0.0, %v4654
      %4656 = vmatmul.f32.gmra.mxu0 %v4613
      %v4657 = vpop.f32.mrf.mxu0
      %v4658 = vadd.f32 0.0, %v4657
      %4659 = vmatmul.f32.gmra.mxu0 %v4616
      %v4660 = vpop.f32.mrf.mxu0
      %v4661 = vadd.f32 0.0, %v4660
      %4662 = vmatmul.f32.gmra.mxu0 %v4619
      %v4663 = vpop.f32.mrf.mxu0
      %v4664 = vadd.f32 0.0, %v4663
      %4665 = vmatmul.f32.gmra.mxu0 %v4622
      %v4666 = vpop.f32.mrf.mxu0
      %v4667 = vadd.f32 0.0, %v4666
      %4668 = vmatmul.f32.gmra.mxu0 %v4625
      %v4669 = vpop.f32.mrf.mxu0
      %v4670 = vadd.f32 0.0, %v4669
      %4671 = vmatmul.f32.gmra.mxu0 %v4628
      %v4672 = vpop.f32.mrf.mxu0
      %v4673 = vadd.f32 0.0, %v4672
      %4674 = vdwg.mxu0
      %4675 = vmatpush.msra.mxu0 0.0
      %4676 = vmatpush.msra.mxu0 0.0
      %4677 = vmatpush.msra.mxu0 0.0
      %4678 = vmatpush.msra.mxu0 0.0
      %4679 = vmatpush.msra.mxu0 0.0
      %4680 = vmatpush.msra.mxu0 0.0
      %4681 = vmatpush.msra.mxu0 0.0
      %4682 = vmatpush.msra.mxu0 0.0
      %4683 = vmatpush.msra.mxu0 0.0
      %4684 = vmatpush.msra.mxu0 0.0
      %4685 = vmatpush.msra.mxu0 0.0
      %4686 = vmatpush.msra.mxu0 0.0
      %4687 = vmatpush.msra.mxu0 0.0
      %4688 = vmatpush.msra.mxu0 0.0
      %4689 = vmatpush.msra.mxu0 0.0
      %4690 = vmatpush.msra.mxu0 %v4632
      %4691 = vmatmul.f32.gmra.mxu0 %v4607
      %v4692 = vpop.f32.mrf.mxu0
      %v4693 = vadd.f32 0.0, %v4692
      %4694 = vmatmul.f32.gmra.mxu0 %v4610
      %v4695 = vpop.f32.mrf.mxu0
      %v4696 = vadd.f32 0.0, %v4695
      %4697 = vmatmul.f32.gmra.mxu0 %v4613
      %v4698 = vpop.f32.mrf.mxu0
      %v4699 = vadd.f32 0.0, %v4698
      %4700 = vmatmul.f32.gmra.mxu0 %v4616
      %v4701 = vpop.f32.mrf.mxu0
      %v4702 = vadd.f32 0.0, %v4701
      %4703 = vmatmul.f32.gmra.mxu0 %v4619
      %v4704 = vpop.f32.mrf.mxu0
      %v4705 = vadd.f32 0.0, %v4704
      %4706 = vmatmul.f32.gmra.mxu0 %v4622
      %v4707 = vpop.f32.mrf.mxu0
      %v4708 = vadd.f32 0.0, %v4707
      %4709 = vmatmul.f32.gmra.mxu0 %v4625
      %v4710 = vpop.f32.mrf.mxu0
      %v4711 = vadd.f32 0.0, %v4710
      %4712 = vmatmul.f32.gmra.mxu0 %v4628
      %v4713 = vpop.f32.mrf.mxu0
      %v4714 = vadd.f32 0.0, %v4713
      %4715 = vdwg.mxu0
      %v4716 = vmul.f32 %v4539, %v4456
      %v4717 = vmul.f32 %v4541, %v4457
      %v4718 = vmul.f32 %v4543, %v4458
      %v4719 = vmul.f32 %v4545, %v4459
      %v4720 = vmul.f32 %v4547, %v4460
      %v4721 = vmul.f32 %v4549, %v4461
      %v4722 = vmul.f32 %v4551, %v4462
      %v4723 = vmul.f32 %v4553, %v4463
      %v4724 = vmul.f32 %v4555, %v4464
      %v4725 = vmul.f32 %v4557, %v4465
      %v4726 = vmul.f32 %v4559, %v4466
      %v4727 = vmul.f32 %v4561, %v4467
      %v4728 = vmul.f32 %v4563, %v4468
      %v4729 = vmul.f32 %v4565, %v4469
      %v4730 = vmul.f32 %v4567, %v4470
      %v4731 = vmul.f32 %v4569, %v4471
      %v4732 = vadd.f32 %v4716, %v4652
      %v4733 = vadd.f32 %v4717, %v4693
      %v4734 = vadd.f32 %v4718, %v4655
      %v4735 = vadd.f32 %v4719, %v4696
      %v4736 = vadd.f32 %v4720, %v4658
      %v4737 = vadd.f32 %v4721, %v4699
      %v4738 = vadd.f32 %v4722, %v4661
      %v4739 = vadd.f32 %v4723, %v4702
      %v4740 = vadd.f32 %v4724, %v4664
      %v4741 = vadd.f32 %v4725, %v4705
      %v4742 = vadd.f32 %v4726, %v4667
      %v4743 = vadd.f32 %v4727, %v4708
      %v4744 = vadd.f32 %v4728, %v4670
      %v4745 = vadd.f32 %v4729, %v4711
      %v4746 = vadd.f32 %v4730, %v4673
      %v4747 = vadd.f32 %v4731, %v4714
      %4748 = vrot.lane.b32.xlu0 %v4570, 64
      %v4749 = vpop.permute.xlu0 %4748
      %v4750 = vsel %vm1964, %v4749, 0
      %4752 = vmatpush.msra.mxu0 0.0
      %4753 = vmatpush.msra.mxu0 0.0
      %4754 = vmatpush.msra.mxu0 0.0
      %4755 = vmatpush.msra.mxu0 0.0
      %4756 = vmatpush.msra.mxu0 0.0
      %4757 = vmatpush.msra.mxu0 0.0
      %4758 = vmatpush.msra.mxu0 0.0
      %4759 = vmatpush.msra.mxu0 0.0
      %4760 = vmatpush.msra.mxu0 %v4746
      %4761 = vmatpush.msra.mxu0 %v4744
      %4762 = vmatpush.msra.mxu0 %v4742
      %4763 = vmatpush.msra.mxu0 %v4740
      %4764 = vmatpush.msra.mxu0 %v4738
      %4765 = vmatpush.msra.mxu0 %v4736
      %4766 = vmatpush.msra.mxu0 %v4734
      %4767 = vmatpush.msra.mxu0 %v4732
      %4768 = vmatmul.f32.gmra.mxu0 %v4750
      %v4769 = vpop.f32.mrf.mxu0
      %v4770 = vadd.f32 0.0, %v4769
      %4771 = vdwg.mxu0
      %4772 = vmatpush.msra.mxu0 0.0
      %4773 = vmatpush.msra.mxu0 0.0
      %4774 = vmatpush.msra.mxu0 0.0
      %4775 = vmatpush.msra.mxu0 0.0
      %4776 = vmatpush.msra.mxu0 0.0
      %4777 = vmatpush.msra.mxu0 0.0
      %4778 = vmatpush.msra.mxu0 0.0
      %4779 = vmatpush.msra.mxu0 0.0
      %4780 = vmatpush.msra.mxu0 %v4747
      %4781 = vmatpush.msra.mxu0 %v4745
      %4782 = vmatpush.msra.mxu0 %v4743
      %4783 = vmatpush.msra.mxu0 %v4741
      %4784 = vmatpush.msra.mxu0 %v4739
      %4785 = vmatpush.msra.mxu0 %v4737
      %4786 = vmatpush.msra.mxu0 %v4735
      %4787 = vmatpush.msra.mxu0 %v4733
      %4788 = vmatmul.f32.gmra.mxu0 %v4750
      %v4789 = vpop.f32.mrf.mxu0
      %v4790 = vadd.f32 0.0, %v4789
      %4791 = vdwg.mxu0
      %v4792 = vperm.slane %v4770, 0
      %v4793 = vperm.slane %v4790, 0
      %v4794 = vsel %vm2561, %v4792, %v4518
      %v4795 = vsel %vm2561, %v4793, %v4519
      %v4796 = vperm.slane %v3961, 3
      %v4797 = vperm.slane %v3962, 3
      %v4798 = vmul.f32 %v4796, %v1703
      %v4799 = vmul.f32 %v4797, %v1704
      %v4800 = vmul.f32 %v4796, %v1705
      %v4801 = vmul.f32 %v4797, %v1706
      %v4802 = vmul.f32 %v4796, %v1707
      %v4803 = vmul.f32 %v4797, %v1708
      %v4804 = vmul.f32 %v4796, %v1709
      %v4805 = vmul.f32 %v4797, %v1710
      %v4806 = vmul.f32 %v4796, %v1711
      %v4807 = vmul.f32 %v4797, %v1712
      %v4808 = vmul.f32 %v4796, %v1713
      %v4809 = vmul.f32 %v4797, %v1714
      %v4810 = vmul.f32 %v4796, %v1715
      %v4811 = vmul.f32 %v4797, %v1716
      %v4812 = vmul.f32 %v4796, %v1717
      %v4813 = vmul.f32 %v4797, %v1718
      %v4814 = vmul.f32 %v4798, 1.442695
      %v4815 = vpow.pop %v4814
      %v4816 = vmul.f32 %v4799, 1.442695
      %v4817 = vpow.pop %v4816
      %v4818 = vmul.f32 %v4800, 1.442695
      %v4819 = vpow.pop %v4818
      %v4820 = vmul.f32 %v4801, 1.442695
      %v4821 = vpow.pop %v4820
      %v4822 = vmul.f32 %v4802, 1.442695
      %v4823 = vpow.pop %v4822
      %v4824 = vmul.f32 %v4803, 1.442695
      %v4825 = vpow.pop %v4824
      %v4826 = vmul.f32 %v4804, 1.442695
      %v4827 = vpow.pop %v4826
      %v4828 = vmul.f32 %v4805, 1.442695
      %v4829 = vpow.pop %v4828
      %v4830 = vmul.f32 %v4806, 1.442695
      %v4831 = vpow.pop %v4830
      %v4832 = vmul.f32 %v4807, 1.442695
      %v4833 = vpow.pop %v4832
      %v4834 = vmul.f32 %v4808, 1.442695
      %v4835 = vpow.pop %v4834
      %v4836 = vmul.f32 %v4809, 1.442695
      %v4837 = vpow.pop %v4836
      %v4838 = vmul.f32 %v4810, 1.442695
      %v4839 = vpow.pop %v4838
      %v4840 = vmul.f32 %v4811, 1.442695
      %v4841 = vpow.pop %v4840
      %v4842 = vmul.f32 %v4812, 1.442695
      %v4843 = vpow.pop %v4842
      %v4844 = vmul.f32 %v4813, 1.442695
      %v4845 = vpow.pop %v4844
      %v4846 = vrot.slane %v3968, 3
      %4848 = vxpose.xlu0.b32.start [1/16] %v4846, 128
      %4849 = vxpose.xlu0.b32.cont [2/16] 0.0, 128
      %4850 = vxpose.xlu0.b32.cont [3/16] 0.0, 128
      %4851 = vxpose.xlu0.b32.cont [4/16] 0.0, 128
      %4852 = vxpose.xlu0.b32.cont [5/16] 0.0, 128
      %4853 = vxpose.xlu0.b32.cont [6/16] 0.0, 128
      %4854 = vxpose.xlu0.b32.cont [7/16] 0.0, 128
      %4855 = vxpose.xlu0.b32.cont [8/16] 0.0, 128
      %4856 = vxpose.xlu0.b32.cont [9/16] 0.0, 128
      %4857 = vxpose.xlu0.b32.cont [10/16] 0.0, 128
      %4858 = vxpose.xlu0.b32.cont [11/16] 0.0, 128
      %4859 = vxpose.xlu0.b32.cont [12/16] 0.0, 128
      %4860 = vxpose.xlu0.b32.cont [13/16] 0.0, 128
      %4861 = vxpose.xlu0.b32.cont [14/16] 0.0, 128
      %4862 = vxpose.xlu0.b32.cont [15/16] 0.0, 128
      %4863 = vxpose.xlu0.b32.end [16/16] 0.0, 128
      %v4864 = vpop.trf.xlu0
      %v4865 = vpop.trf.xlu0
      %v4866 = vpop.trf.xlu0
      %v4867 = vpop.trf.xlu0
      %v4868 = vpop.trf.xlu0
      %v4869 = vpop.trf.xlu0
      %v4870 = vpop.trf.xlu0
      %v4871 = vpop.trf.xlu0
      %v4872 = vpop.trf.xlu0
      %v4873 = vpop.trf.xlu0
      %v4874 = vpop.trf.xlu0
      %v4875 = vpop.trf.xlu0
      %v4876 = vpop.trf.xlu0
      %v4877 = vpop.trf.xlu0
      %v4878 = vpop.trf.xlu0
      %v4879 = vpop.trf.xlu0
      %v4880 = vrot.slane %v3965, 3
      %v4881 = vrot.slane %v3966, 3
      %v4883 = vsel %vm1815, %v4864, 0
      %v4886 = vsel %vm1815, %v4865, 0
      %v4889 = vsel %vm1815, %v4866, 0
      %v4892 = vsel %vm1815, %v4867, 0
      %v4895 = vsel %vm1815, %v4868, 0
      %v4898 = vsel %vm1815, %v4869, 0
      %v4901 = vsel %vm1815, %v4870, 0
      %v4904 = vsel %vm1815, %v4871, 0
      %v4906 = vsel %vm1840, %v4880, 0
      %v4908 = vsel %vm1840, %v4881, 0
      %4910 = vmatpush.msra.mxu0 0.0
      %4911 = vmatpush.msra.mxu0 0.0
      %4912 = vmatpush.msra.mxu0 0.0
      %4913 = vmatpush.msra.mxu0 0.0
      %4914 = vmatpush.msra.mxu0 0.0
      %4915 = vmatpush.msra.mxu0 0.0
      %4916 = vmatpush.msra.mxu0 0.0
      %4917 = vmatpush.msra.mxu0 0.0
      %4918 = vmatpush.msra.mxu0 0.0
      %4919 = vmatpush.msra.mxu0 0.0
      %4920 = vmatpush.msra.mxu0 0.0
      %4921 = vmatpush.msra.mxu0 0.0
      %4922 = vmatpush.msra.mxu0 0.0
      %4923 = vmatpush.msra.mxu0 0.0
      %4924 = vmatpush.msra.mxu0 0.0
      %4925 = vmatpush.msra.mxu0 %v4906
      %4926 = vmatmul.f32.gmra.mxu0 %v4883
      %v4927 = vpop.f32.mrf.mxu0
      %v4928 = vadd.f32 0.0, %v4927
      %4929 = vmatmul.f32.gmra.mxu0 %v4886
      %v4930 = vpop.f32.mrf.mxu0
      %v4931 = vadd.f32 0.0, %v4930
      %4932 = vmatmul.f32.gmra.mxu0 %v4889
      %v4933 = vpop.f32.mrf.mxu0
      %v4934 = vadd.f32 0.0, %v4933
      %4935 = vmatmul.f32.gmra.mxu0 %v4892
      %v4936 = vpop.f32.mrf.mxu0
      %v4937 = vadd.f32 0.0, %v4936
      %4938 = vmatmul.f32.gmra.mxu0 %v4895
      %v4939 = vpop.f32.mrf.mxu0
      %v4940 = vadd.f32 0.0, %v4939
      %4941 = vmatmul.f32.gmra.mxu0 %v4898
      %v4942 = vpop.f32.mrf.mxu0
      %v4943 = vadd.f32 0.0, %v4942
      %4944 = vmatmul.f32.gmra.mxu0 %v4901
      %v4945 = vpop.f32.mrf.mxu0
      %v4946 = vadd.f32 0.0, %v4945
      %4947 = vmatmul.f32.gmra.mxu0 %v4904
      %v4948 = vpop.f32.mrf.mxu0
      %v4949 = vadd.f32 0.0, %v4948
      %4950 = vdwg.mxu0
      %4951 = vmatpush.msra.mxu0 0.0
      %4952 = vmatpush.msra.mxu0 0.0
      %4953 = vmatpush.msra.mxu0 0.0
      %4954 = vmatpush.msra.mxu0 0.0
      %4955 = vmatpush.msra.mxu0 0.0
      %4956 = vmatpush.msra.mxu0 0.0
      %4957 = vmatpush.msra.mxu0 0.0
      %4958 = vmatpush.msra.mxu0 0.0
      %4959 = vmatpush.msra.mxu0 0.0
      %4960 = vmatpush.msra.mxu0 0.0
      %4961 = vmatpush.msra.mxu0 0.0
      %4962 = vmatpush.msra.mxu0 0.0
      %4963 = vmatpush.msra.mxu0 0.0
      %4964 = vmatpush.msra.mxu0 0.0
      %4965 = vmatpush.msra.mxu0 0.0
      %4966 = vmatpush.msra.mxu0 %v4908
      %4967 = vmatmul.f32.gmra.mxu0 %v4883
      %v4968 = vpop.f32.mrf.mxu0
      %v4969 = vadd.f32 0.0, %v4968
      %4970 = vmatmul.f32.gmra.mxu0 %v4886
      %v4971 = vpop.f32.mrf.mxu0
      %v4972 = vadd.f32 0.0, %v4971
      %4973 = vmatmul.f32.gmra.mxu0 %v4889
      %v4974 = vpop.f32.mrf.mxu0
      %v4975 = vadd.f32 0.0, %v4974
      %4976 = vmatmul.f32.gmra.mxu0 %v4892
      %v4977 = vpop.f32.mrf.mxu0
      %v4978 = vadd.f32 0.0, %v4977
      %4979 = vmatmul.f32.gmra.mxu0 %v4895
      %v4980 = vpop.f32.mrf.mxu0
      %v4981 = vadd.f32 0.0, %v4980
      %4982 = vmatmul.f32.gmra.mxu0 %v4898
      %v4983 = vpop.f32.mrf.mxu0
      %v4984 = vadd.f32 0.0, %v4983
      %4985 = vmatmul.f32.gmra.mxu0 %v4901
      %v4986 = vpop.f32.mrf.mxu0
      %v4987 = vadd.f32 0.0, %v4986
      %4988 = vmatmul.f32.gmra.mxu0 %v4904
      %v4989 = vpop.f32.mrf.mxu0
      %v4990 = vadd.f32 0.0, %v4989
      %4991 = vdwg.mxu0
      %v4992 = vmul.f32 %v4815, %v4732
      %v4993 = vmul.f32 %v4817, %v4733
      %v4994 = vmul.f32 %v4819, %v4734
      %v4995 = vmul.f32 %v4821, %v4735
      %v4996 = vmul.f32 %v4823, %v4736
      %v4997 = vmul.f32 %v4825, %v4737
      %v4998 = vmul.f32 %v4827, %v4738
      %v4999 = vmul.f32 %v4829, %v4739
      %v5000 = vmul.f32 %v4831, %v4740
      %v5001 = vmul.f32 %v4833, %v4741
      %v5002 = vmul.f32 %v4835, %v4742
      %v5003 = vmul.f32 %v4837, %v4743
      %v5004 = vmul.f32 %v4839, %v4744
      %v5005 = vmul.f32 %v4841, %v4745
      %v5006 = vmul.f32 %v4843, %v4746
      %v5007 = vmul.f32 %v4845, %v4747
      %v5008 = vadd.f32 %v4992, %v4928
      %v5009 = vadd.f32 %v4993, %v4969
      %v5010 = vadd.f32 %v4994, %v4931
      %v5011 = vadd.f32 %v4995, %v4972
      %v5012 = vadd.f32 %v4996, %v4934
      %v5013 = vadd.f32 %v4997, %v4975
      %v5014 = vadd.f32 %v4998, %v4937
      %v5015 = vadd.f32 %v4999, %v4978
      %v5016 = vadd.f32 %v5000, %v4940
      %v5017 = vadd.f32 %v5001, %v4981
      %v5018 = vadd.f32 %v5002, %v4943
      %v5019 = vadd.f32 %v5003, %v4984
      %v5020 = vadd.f32 %v5004, %v4946
      %v5021 = vadd.f32 %v5005, %v4987
      %v5022 = vadd.f32 %v5006, %v4949
      %v5023 = vadd.f32 %v5007, %v4990
      %5024 = vrot.lane.b32.xlu0 %v4846, 64
      %v5025 = vpop.permute.xlu0 %5024
      %v5026 = vsel %vm1964, %v5025, 0
      %5028 = vmatpush.msra.mxu0 0.0
      %5029 = vmatpush.msra.mxu0 0.0
      %5030 = vmatpush.msra.mxu0 0.0
      %5031 = vmatpush.msra.mxu0 0.0
      %5032 = vmatpush.msra.mxu0 0.0
      %5033 = vmatpush.msra.mxu0 0.0
      %5034 = vmatpush.msra.mxu0 0.0
      %5035 = vmatpush.msra.mxu0 0.0
      %5036 = vmatpush.msra.mxu0 %v5022
      %5037 = vmatpush.msra.mxu0 %v5020
      %5038 = vmatpush.msra.mxu0 %v5018
      %5039 = vmatpush.msra.mxu0 %v5016
      %5040 = vmatpush.msra.mxu0 %v5014
      %5041 = vmatpush.msra.mxu0 %v5012
      %5042 = vmatpush.msra.mxu0 %v5010
      %5043 = vmatpush.msra.mxu0 %v5008
      %5044 = vmatmul.f32.gmra.mxu0 %v5026
      %v5045 = vpop.f32.mrf.mxu0
      %v5046 = vadd.f32 0.0, %v5045
      %5047 = vdwg.mxu0
      %5048 = vmatpush.msra.mxu0 0.0
      %5049 = vmatpush.msra.mxu0 0.0
      %5050 = vmatpush.msra.mxu0 0.0
      %5051 = vmatpush.msra.mxu0 0.0
      %5052 = vmatpush.msra.mxu0 0.0
      %5053 = vmatpush.msra.mxu0 0.0
      %5054 = vmatpush.msra.mxu0 0.0
      %5055 = vmatpush.msra.mxu0 0.0
      %5056 = vmatpush.msra.mxu0 %v5023
      %5057 = vmatpush.msra.mxu0 %v5021
      %5058 = vmatpush.msra.mxu0 %v5019
      %5059 = vmatpush.msra.mxu0 %v5017
      %5060 = vmatpush.msra.mxu0 %v5015
      %5061 = vmatpush.msra.mxu0 %v5013
      %5062 = vmatpush.msra.mxu0 %v5011
      %5063 = vmatpush.msra.mxu0 %v5009
      %5064 = vmatmul.f32.gmra.mxu0 %v5026
      %v5065 = vpop.f32.mrf.mxu0
      %v5066 = vadd.f32 0.0, %v5065
      %5067 = vdwg.mxu0
      %v5068 = vperm.slane %v5046, 0
      %v5069 = vperm.slane %v5066, 0
      %v5070 = vsel %vm2838, %v5068, %v4794
      %v5071 = vsel %vm2838, %v5069, %v4795
      %v5072 = vperm.slane %v3961, 4
      %v5073 = vperm.slane %v3962, 4
      %v5074 = vmul.f32 %v5072, %v1703
      %v5075 = vmul.f32 %v5073, %v1704
      %v5076 = vmul.f32 %v5072, %v1705
      %v5077 = vmul.f32 %v5073, %v1706
      %v5078 = vmul.f32 %v5072, %v1707
      %v5079 = vmul.f32 %v5073, %v1708
      %v5080 = vmul.f32 %v5072, %v1709
      %v5081 = vmul.f32 %v5073, %v1710
      %v5082 = vmul.f32 %v5072, %v1711
      %v5083 = vmul.f32 %v5073, %v1712
      %v5084 = vmul.f32 %v5072, %v1713
      %v5085 = vmul.f32 %v5073, %v1714
      %v5086 = vmul.f32 %v5072, %v1715
      %v5087 = vmul.f32 %v5073, %v1716
      %v5088 = vmul.f32 %v5072, %v1717
      %v5089 = vmul.f32 %v5073, %v1718
      %v5090 = vmul.f32 %v5074, 1.442695
      %v5091 = vpow.pop %v5090
      %v5092 = vmul.f32 %v5075, 1.442695
      %v5093 = vpow.pop %v5092
      %v5094 = vmul.f32 %v5076, 1.442695
      %v5095 = vpow.pop %v5094
      %v5096 = vmul.f32 %v5077, 1.442695
      %v5097 = vpow.pop %v5096
      %v5098 = vmul.f32 %v5078, 1.442695
      %v5099 = vpow.pop %v5098
      %v5100 = vmul.f32 %v5079, 1.442695
      %v5101 = vpow.pop %v5100
      %v5102 = vmul.f32 %v5080, 1.442695
      %v5103 = vpow.pop %v5102
      %v5104 = vmul.f32 %v5081, 1.442695
      %v5105 = vpow.pop %v5104
      %v5106 = vmul.f32 %v5082, 1.442695
      %v5107 = vpow.pop %v5106
      %v5108 = vmul.f32 %v5083, 1.442695
      %v5109 = vpow.pop %v5108
      %v5110 = vmul.f32 %v5084, 1.442695
      %v5111 = vpow.pop %v5110
      %v5112 = vmul.f32 %v5085, 1.442695
      %v5113 = vpow.pop %v5112
      %v5114 = vmul.f32 %v5086, 1.442695
      %v5115 = vpow.pop %v5114
      %v5116 = vmul.f32 %v5087, 1.442695
      %v5117 = vpow.pop %v5116
      %v5118 = vmul.f32 %v5088, 1.442695
      %v5119 = vpow.pop %v5118
      %v5120 = vmul.f32 %v5089, 1.442695
      %v5121 = vpow.pop %v5120
      %v5122 = vrot.slane %v3968, 4
      %5124 = vxpose.xlu0.b32.start [1/16] %v5122, 128
      %5125 = vxpose.xlu0.b32.cont [2/16] 0.0, 128
      %5126 = vxpose.xlu0.b32.cont [3/16] 0.0, 128
      %5127 = vxpose.xlu0.b32.cont [4/16] 0.0, 128
      %5128 = vxpose.xlu0.b32.cont [5/16] 0.0, 128
      %5129 = vxpose.xlu0.b32.cont [6/16] 0.0, 128
      %5130 = vxpose.xlu0.b32.cont [7/16] 0.0, 128
      %5131 = vxpose.xlu0.b32.cont [8/16] 0.0, 128
      %5132 = vxpose.xlu0.b32.cont [9/16] 0.0, 128
      %5133 = vxpose.xlu0.b32.cont [10/16] 0.0, 128
      %5134 = vxpose.xlu0.b32.cont [11/16] 0.0, 128
      %5135 = vxpose.xlu0.b32.cont [12/16] 0.0, 128
      %5136 = vxpose.xlu0.b32.cont [13/16] 0.0, 128
      %5137 = vxpose.xlu0.b32.cont [14/16] 0.0, 128
      %5138 = vxpose.xlu0.b32.cont [15/16] 0.0, 128
      %5139 = vxpose.xlu0.b32.end [16/16] 0.0, 128
      %v5140 = vpop.trf.xlu0
      %v5141 = vpop.trf.xlu0
      %v5142 = vpop.trf.xlu0
      %v5143 = vpop.trf.xlu0
      %v5144 = vpop.trf.xlu0
      %v5145 = vpop.trf.xlu0
      %v5146 = vpop.trf.xlu0
      %v5147 = vpop.trf.xlu0
      %v5148 = vpop.trf.xlu0
      %v5149 = vpop.trf.xlu0
      %v5150 = vpop.trf.xlu0
      %v5151 = vpop.trf.xlu0
      %v5152 = vpop.trf.xlu0
      %v5153 = vpop.trf.xlu0
      %v5154 = vpop.trf.xlu0
      %v5155 = vpop.trf.xlu0
      %v5156 = vrot.slane %v3965, 4
      %v5157 = vrot.slane %v3966, 4
      %v5159 = vsel %vm1815, %v5140, 0
      %v5162 = vsel %vm1815, %v5141, 0
      %v5165 = vsel %vm1815, %v5142, 0
      %v5168 = vsel %vm1815, %v5143, 0
      %v5171 = vsel %vm1815, %v5144, 0
      %v5174 = vsel %vm1815, %v5145, 0
      %v5177 = vsel %vm1815, %v5146, 0
      %v5180 = vsel %vm1815, %v5147, 0
      %v5182 = vsel %vm1840, %v5156, 0
      %v5184 = vsel %vm1840, %v5157, 0
      %5186 = vmatpush.msra.mxu0 0.0
      %5187 = vmatpush.msra.mxu0 0.0
      %5188 = vmatpush.msra.mxu0 0.0
      %5189 = vmatpush.msra.mxu0 0.0
      %5190 = vmatpush.msra.mxu0 0.0
      %5191 = vmatpush.msra.mxu0 0.0
      %5192 = vmatpush.msra.mxu0 0.0
      %5193 = vmatpush.msra.mxu0 0.0
      %5194 = vmatpush.msra.mxu0 0.0
      %5195 = vmatpush.msra.mxu0 0.0
      %5196 = vmatpush.msra.mxu0 0.0
      %5197 = vmatpush.msra.mxu0 0.0
      %5198 = vmatpush.msra.mxu0 0.0
      %5199 = vmatpush.msra.mxu0 0.0
      %5200 = vmatpush.msra.mxu0 0.0
      %5201 = vmatpush.msra.mxu0 %v5182
      %5202 = vmatmul.f32.gmra.mxu0 %v5159
      %v5203 = vpop.f32.mrf.mxu0
      %v5204 = vadd.f32 0.0, %v5203
      %5205 = vmatmul.f32.gmra.mxu0 %v5162
      %v5206 = vpop.f32.mrf.mxu0
      %v5207 = vadd.f32 0.0, %v5206
      %5208 = vmatmul.f32.gmra.mxu0 %v5165
      %v5209 = vpop.f32.mrf.mxu0
      %v5210 = vadd.f32 0.0, %v5209
      %5211 = vmatmul.f32.gmra.mxu0 %v5168
      %v5212 = vpop.f32.mrf.mxu0
      %v5213 = vadd.f32 0.0, %v5212
      %5214 = vmatmul.f32.gmra.mxu0 %v5171
      %v5215 = vpop.f32.mrf.mxu0
      %v5216 = vadd.f32 0.0, %v5215
      %5217 = vmatmul.f32.gmra.mxu0 %v5174
      %v5218 = vpop.f32.mrf.mxu0
      %v5219 = vadd.f32 0.0, %v5218
      %5220 = vmatmul.f32.gmra.mxu0 %v5177
      %v5221 = vpop.f32.mrf.mxu0
      %v5222 = vadd.f32 0.0, %v5221
      %5223 = vmatmul.f32.gmra.mxu0 %v5180
      %v5224 = vpop.f32.mrf.mxu0
      %v5225 = vadd.f32 0.0, %v5224
      %5226 = vdwg.mxu0
      %5227 = vmatpush.msra.mxu0 0.0
      %5228 = vmatpush.msra.mxu0 0.0
      %5229 = vmatpush.msra.mxu0 0.0
      %5230 = vmatpush.msra.mxu0 0.0
      %5231 = vmatpush.msra.mxu0 0.0
      %5232 = vmatpush.msra.mxu0 0.0
      %5233 = vmatpush.msra.mxu0 0.0
      %5234 = vmatpush.msra.mxu0 0.0
      %5235 = vmatpush.msra.mxu0 0.0
      %5236 = vmatpush.msra.mxu0 0.0
      %5237 = vmatpush.msra.mxu0 0.0
      %5238 = vmatpush.msra.mxu0 0.0
      %5239 = vmatpush.msra.mxu0 0.0
      %5240 = vmatpush.msra.mxu0 0.0
      %5241 = vmatpush.msra.mxu0 0.0
      %5242 = vmatpush.msra.mxu0 %v5184
      %5243 = vmatmul.f32.gmra.mxu0 %v5159
      %v5244 = vpop.f32.mrf.mxu0
      %v5245 = vadd.f32 0.0, %v5244
      %5246 = vmatmul.f32.gmra.mxu0 %v5162
      %v5247 = vpop.f32.mrf.mxu0
      %v5248 = vadd.f32 0.0, %v5247
      %5249 = vmatmul.f32.gmra.mxu0 %v5165
      %v5250 = vpop.f32.mrf.mxu0
      %v5251 = vadd.f32 0.0, %v5250
      %5252 = vmatmul.f32.gmra.mxu0 %v5168
      %v5253 = vpop.f32.mrf.mxu0
      %v5254 = vadd.f32 0.0, %v5253
      %5255 = vmatmul.f32.gmra.mxu0 %v5171
      %v5256 = vpop.f32.mrf.mxu0
      %v5257 = vadd.f32 0.0, %v5256
      %5258 = vmatmul.f32.gmra.mxu0 %v5174
      %v5259 = vpop.f32.mrf.mxu0
      %v5260 = vadd.f32 0.0, %v5259
      %5261 = vmatmul.f32.gmra.mxu0 %v5177
      %v5262 = vpop.f32.mrf.mxu0
      %v5263 = vadd.f32 0.0, %v5262
      %5264 = vmatmul.f32.gmra.mxu0 %v5180
      %v5265 = vpop.f32.mrf.mxu0
      %v5266 = vadd.f32 0.0, %v5265
      %5267 = vdwg.mxu0
      %v5268 = vmul.f32 %v5091, %v5008
      %v5269 = vmul.f32 %v5093, %v5009
      %v5270 = vmul.f32 %v5095, %v5010
      %v5271 = vmul.f32 %v5097, %v5011
      %v5272 = vmul.f32 %v5099, %v5012
      %v5273 = vmul.f32 %v5101, %v5013
      %v5274 = vmul.f32 %v5103, %v5014
      %v5275 = vmul.f32 %v5105, %v5015
      %v5276 = vmul.f32 %v5107, %v5016
      %v5277 = vmul.f32 %v5109, %v5017
      %v5278 = vmul.f32 %v5111, %v5018
      %v5279 = vmul.f32 %v5113, %v5019
      %v5280 = vmul.f32 %v5115, %v5020
      %v5281 = vmul.f32 %v5117, %v5021
      %v5282 = vmul.f32 %v5119, %v5022
      %v5283 = vmul.f32 %v5121, %v5023
      %v5284 = vadd.f32 %v5268, %v5204
      %v5285 = vadd.f32 %v5269, %v5245
      %v5286 = vadd.f32 %v5270, %v5207
      %v5287 = vadd.f32 %v5271, %v5248
      %v5288 = vadd.f32 %v5272, %v5210
      %v5289 = vadd.f32 %v5273, %v5251
      %v5290 = vadd.f32 %v5274, %v5213
      %v5291 = vadd.f32 %v5275, %v5254
      %v5292 = vadd.f32 %v5276, %v5216
      %v5293 = vadd.f32 %v5277, %v5257
      %v5294 = vadd.f32 %v5278, %v5219
      %v5295 = vadd.f32 %v5279, %v5260
      %v5296 = vadd.f32 %v5280, %v5222
      %v5297 = vadd.f32 %v5281, %v5263
      %v5298 = vadd.f32 %v5282, %v5225
      %v5299 = vadd.f32 %v5283, %v5266
      %5300 = vrot.lane.b32.xlu0 %v5122, 64
      %v5301 = vpop.permute.xlu0 %5300
      %v5302 = vsel %vm1964, %v5301, 0
      %5304 = vmatpush.msra.mxu0 0.0
      %5305 = vmatpush.msra.mxu0 0.0
      %5306 = vmatpush.msra.mxu0 0.0
      %5307 = vmatpush.msra.mxu0 0.0
      %5308 = vmatpush.msra.mxu0 0.0
      %5309 = vmatpush.msra.mxu0 0.0
      %5310 = vmatpush.msra.mxu0 0.0
      %5311 = vmatpush.msra.mxu0 0.0
      %5312 = vmatpush.msra.mxu0 %v5298
      %5313 = vmatpush.msra.mxu0 %v5296
      %5314 = vmatpush.msra.mxu0 %v5294
      %5315 = vmatpush.msra.mxu0 %v5292
      %5316 = vmatpush.msra.mxu0 %v5290
      %5317 = vmatpush.msra.mxu0 %v5288
      %5318 = vmatpush.msra.mxu0 %v5286
      %5319 = vmatpush.msra.mxu0 %v5284
      %5320 = vmatmul.f32.gmra.mxu0 %v5302
      %v5321 = vpop.f32.mrf.mxu0
      %v5322 = vadd.f32 0.0, %v5321
      %5323 = vdwg.mxu0
      %5324 = vmatpush.msra.mxu0 0.0
      %5325 = vmatpush.msra.mxu0 0.0
      %5326 = vmatpush.msra.mxu0 0.0
      %5327 = vmatpush.msra.mxu0 0.0
      %5328 = vmatpush.msra.mxu0 0.0
      %5329 = vmatpush.msra.mxu0 0.0
      %5330 = vmatpush.msra.mxu0 0.0
      %5331 = vmatpush.msra.mxu0 0.0
      %5332 = vmatpush.msra.mxu0 %v5299
      %5333 = vmatpush.msra.mxu0 %v5297
      %5334 = vmatpush.msra.mxu0 %v5295
      %5335 = vmatpush.msra.mxu0 %v5293
      %5336 = vmatpush.msra.mxu0 %v5291
      %5337 = vmatpush.msra.mxu0 %v5289
      %5338 = vmatpush.msra.mxu0 %v5287
      %5339 = vmatpush.msra.mxu0 %v5285
      %5340 = vmatmul.f32.gmra.mxu0 %v5302
      %v5341 = vpop.f32.mrf.mxu0
      %v5342 = vadd.f32 0.0, %v5341
      %5343 = vdwg.mxu0
      %v5344 = vperm.slane %v5322, 0
      %v5345 = vperm.slane %v5342, 0
      %v5346 = vsel %vm3115, %v5344, %v5070
      %v5347 = vsel %vm3115, %v5345, %v5071
      %v5348 = vperm.slane %v3961, 5
      %v5349 = vperm.slane %v3962, 5
      %v5350 = vmul.f32 %v5348, %v1703
      %v5351 = vmul.f32 %v5349, %v1704
      %v5352 = vmul.f32 %v5348, %v1705
      %v5353 = vmul.f32 %v5349, %v1706
      %v5354 = vmul.f32 %v5348, %v1707
      %v5355 = vmul.f32 %v5349, %v1708
      %v5356 = vmul.f32 %v5348, %v1709
      %v5357 = vmul.f32 %v5349, %v1710
      %v5358 = vmul.f32 %v5348, %v1711
      %v5359 = vmul.f32 %v5349, %v1712
      %v5360 = vmul.f32 %v5348, %v1713
      %v5361 = vmul.f32 %v5349, %v1714
      %v5362 = vmul.f32 %v5348, %v1715
      %v5363 = vmul.f32 %v5349, %v1716
      %v5364 = vmul.f32 %v5348, %v1717
      %v5365 = vmul.f32 %v5349, %v1718
      %v5366 = vmul.f32 %v5350, 1.442695
      %v5367 = vpow.pop %v5366
      %v5368 = vmul.f32 %v5351, 1.442695
      %v5369 = vpow.pop %v5368
      %v5370 = vmul.f32 %v5352, 1.442695
      %v5371 = vpow.pop %v5370
      %v5372 = vmul.f32 %v5353, 1.442695
      %v5373 = vpow.pop %v5372
      %v5374 = vmul.f32 %v5354, 1.442695
      %v5375 = vpow.pop %v5374
      %v5376 = vmul.f32 %v5355, 1.442695
      %v5377 = vpow.pop %v5376
      %v5378 = vmul.f32 %v5356, 1.442695
      %v5379 = vpow.pop %v5378
      %v5380 = vmul.f32 %v5357, 1.442695
      %v5381 = vpow.pop %v5380
      %v5382 = vmul.f32 %v5358, 1.442695
      %v5383 = vpow.pop %v5382
      %v5384 = vmul.f32 %v5359, 1.442695
      %v5385 = vpow.pop %v5384
      %v5386 = vmul.f32 %v5360, 1.442695
      %v5387 = vpow.pop %v5386
      %v5388 = vmul.f32 %v5361, 1.442695
      %v5389 = vpow.pop %v5388
      %v5390 = vmul.f32 %v5362, 1.442695
      %v5391 = vpow.pop %v5390
      %v5392 = vmul.f32 %v5363, 1.442695
      %v5393 = vpow.pop %v5392
      %v5394 = vmul.f32 %v5364, 1.442695
      %v5395 = vpow.pop %v5394
      %v5396 = vmul.f32 %v5365, 1.442695
      %v5397 = vpow.pop %v5396
      %v5398 = vrot.slane %v3968, 5
      %5400 = vxpose.xlu0.b32.start [1/16] %v5398, 128
      %5401 = vxpose.xlu0.b32.cont [2/16] 0.0, 128
      %5402 = vxpose.xlu0.b32.cont [3/16] 0.0, 128
      %5403 = vxpose.xlu0.b32.cont [4/16] 0.0, 128
      %5404 = vxpose.xlu0.b32.cont [5/16] 0.0, 128
      %5405 = vxpose.xlu0.b32.cont [6/16] 0.0, 128
      %5406 = vxpose.xlu0.b32.cont [7/16] 0.0, 128
      %5407 = vxpose.xlu0.b32.cont [8/16] 0.0, 128
      %5408 = vxpose.xlu0.b32.cont [9/16] 0.0, 128
      %5409 = vxpose.xlu0.b32.cont [10/16] 0.0, 128
      %5410 = vxpose.xlu0.b32.cont [11/16] 0.0, 128
      %5411 = vxpose.xlu0.b32.cont [12/16] 0.0, 128
      %5412 = vxpose.xlu0.b32.cont [13/16] 0.0, 128
      %5413 = vxpose.xlu0.b32.cont [14/16] 0.0, 128
      %5414 = vxpose.xlu0.b32.cont [15/16] 0.0, 128
      %5415 = vxpose.xlu0.b32.end [16/16] 0.0, 128
      %v5416 = vpop.trf.xlu0
      %v5417 = vpop.trf.xlu0
      %v5418 = vpop.trf.xlu0
      %v5419 = vpop.trf.xlu0
      %v5420 = vpop.trf.xlu0
      %v5421 = vpop.trf.xlu0
      %v5422 = vpop.trf.xlu0
      %v5423 = vpop.trf.xlu0
      %v5424 = vpop.trf.xlu0
      %v5425 = vpop.trf.xlu0
      %v5426 = vpop.trf.xlu0
      %v5427 = vpop.trf.xlu0
      %v5428 = vpop.trf.xlu0
      %v5429 = vpop.trf.xlu0
      %v5430 = vpop.trf.xlu0
      %v5431 = vpop.trf.xlu0
      %v5432 = vrot.slane %v3965, 5
      %v5433 = vrot.slane %v3966, 5
      %v5435 = vsel %vm1815, %v5416, 0
      %v5438 = vsel %vm1815, %v5417, 0
      %v5441 = vsel %vm1815, %v5418, 0
      %v5444 = vsel %vm1815, %v5419, 0
      %v5447 = vsel %vm1815, %v5420, 0
      %v5450 = vsel %vm1815, %v5421, 0
      %v5453 = vsel %vm1815, %v5422, 0
      %v5456 = vsel %vm1815, %v5423, 0
      %v5458 = vsel %vm1840, %v5432, 0
      %v5460 = vsel %vm1840, %v5433, 0
      %5462 = vmatpush.msra.mxu0 0.0
      %5463 = vmatpush.msra.mxu0 0.0
      %5464 = vmatpush.msra.mxu0 0.0
      %5465 = vmatpush.msra.mxu0 0.0
      %5466 = vmatpush.msra.mxu0 0.0
      %5467 = vmatpush.msra.mxu0 0.0
      %5468 = vmatpush.msra.mxu0 0.0
      %5469 = vmatpush.msra.mxu0 0.0
      %5470 = vmatpush.msra.mxu0 0.0
      %5471 = vmatpush.msra.mxu0 0.0
      %5472 = vmatpush.msra.mxu0 0.0
      %5473 = vmatpush.msra.mxu0 0.0
      %5474 = vmatpush.msra.mxu0 0.0
      %5475 = vmatpush.msra.mxu0 0.0
      %5476 = vmatpush.msra.mxu0 0.0
      %5477 = vmatpush.msra.mxu0 %v5458
      %5478 = vmatmul.f32.gmra.mxu0 %v5435
      %v5479 = vpop.f32.mrf.mxu0
      %v5480 = vadd.f32 0.0, %v5479
      %5481 = vmatmul.f32.gmra.mxu0 %v5438
      %v5482 = vpop.f32.mrf.mxu0
      %v5483 = vadd.f32 0.0, %v5482
      %5484 = vmatmul.f32.gmra.mxu0 %v5441
      %v5485 = vpop.f32.mrf.mxu0
      %v5486 = vadd.f32 0.0, %v5485
      %5487 = vmatmul.f32.gmra.mxu0 %v5444
      %v5488 = vpop.f32.mrf.mxu0
      %v5489 = vadd.f32 0.0, %v5488
      %5490 = vmatmul.f32.gmra.mxu0 %v5447
      %v5491 = vpop.f32.mrf.mxu0
      %v5492 = vadd.f32 0.0, %v5491
      %5493 = vmatmul.f32.gmra.mxu0 %v5450
      %v5494 = vpop.f32.mrf.mxu0
      %v5495 = vadd.f32 0.0, %v5494
      %5496 = vmatmul.f32.gmra.mxu0 %v5453
      %v5497 = vpop.f32.mrf.mxu0
      %v5498 = vadd.f32 0.0, %v5497
      %5499 = vmatmul.f32.gmra.mxu0 %v5456
      %v5500 = vpop.f32.mrf.mxu0
      %v5501 = vadd.f32 0.0, %v5500
      %5502 = vdwg.mxu0
      %5503 = vmatpush.msra.mxu0 0.0
      %5504 = vmatpush.msra.mxu0 0.0
      %5505 = vmatpush.msra.mxu0 0.0
      %5506 = vmatpush.msra.mxu0 0.0
      %5507 = vmatpush.msra.mxu0 0.0
      %5508 = vmatpush.msra.mxu0 0.0
      %5509 = vmatpush.msra.mxu0 0.0
      %5510 = vmatpush.msra.mxu0 0.0
      %5511 = vmatpush.msra.mxu0 0.0
      %5512 = vmatpush.msra.mxu0 0.0
      %5513 = vmatpush.msra.mxu0 0.0
      %5514 = vmatpush.msra.mxu0 0.0
      %5515 = vmatpush.msra.mxu0 0.0
      %5516 = vmatpush.msra.mxu0 0.0
      %5517 = vmatpush.msra.mxu0 0.0
      %5518 = vmatpush.msra.mxu0 %v5460
      %5519 = vmatmul.f32.gmra.mxu0 %v5435
      %v5520 = vpop.f32.mrf.mxu0
      %v5521 = vadd.f32 0.0, %v5520
      %5522 = vmatmul.f32.gmra.mxu0 %v5438
      %v5523 = vpop.f32.mrf.mxu0
      %v5524 = vadd.f32 0.0, %v5523
      %5525 = vmatmul.f32.gmra.mxu0 %v5441
      %v5526 = vpop.f32.mrf.mxu0
      %v5527 = vadd.f32 0.0, %v5526
      %5528 = vmatmul.f32.gmra.mxu0 %v5444
      %v5529 = vpop.f32.mrf.mxu0
      %v5530 = vadd.f32 0.0, %v5529
      %5531 = vmatmul.f32.gmra.mxu0 %v5447
      %v5532 = vpop.f32.mrf.mxu0
      %v5533 = vadd.f32 0.0, %v5532
      %5534 = vmatmul.f32.gmra.mxu0 %v5450
      %v5535 = vpop.f32.mrf.mxu0
      %v5536 = vadd.f32 0.0, %v5535
      %5537 = vmatmul.f32.gmra.mxu0 %v5453
      %v5538 = vpop.f32.mrf.mxu0
      %v5539 = vadd.f32 0.0, %v5538
      %5540 = vmatmul.f32.gmra.mxu0 %v5456
      %v5541 = vpop.f32.mrf.mxu0
      %v5542 = vadd.f32 0.0, %v5541
      %5543 = vdwg.mxu0
      %v5544 = vmul.f32 %v5367, %v5284
      %v5545 = vmul.f32 %v5369, %v5285
      %v5546 = vmul.f32 %v5371, %v5286
      %v5547 = vmul.f32 %v5373, %v5287
      %v5548 = vmul.f32 %v5375, %v5288
      %v5549 = vmul.f32 %v5377, %v5289
      %v5550 = vmul.f32 %v5379, %v5290
      %v5551 = vmul.f32 %v5381, %v5291
      %v5552 = vmul.f32 %v5383, %v5292
      %v5553 = vmul.f32 %v5385, %v5293
      %v5554 = vmul.f32 %v5387, %v5294
      %v5555 = vmul.f32 %v5389, %v5295
      %v5556 = vmul.f32 %v5391, %v5296
      %v5557 = vmul.f32 %v5393, %v5297
      %v5558 = vmul.f32 %v5395, %v5298
      %v5559 = vmul.f32 %v5397, %v5299
      %v5560 = vadd.f32 %v5544, %v5480
      %v5561 = vadd.f32 %v5545, %v5521
      %v5562 = vadd.f32 %v5546, %v5483
      %v5563 = vadd.f32 %v5547, %v5524
      %v5564 = vadd.f32 %v5548, %v5486
      %v5565 = vadd.f32 %v5549, %v5527
      %v5566 = vadd.f32 %v5550, %v5489
      %v5567 = vadd.f32 %v5551, %v5530
      %v5568 = vadd.f32 %v5552, %v5492
      %v5569 = vadd.f32 %v5553, %v5533
      %v5570 = vadd.f32 %v5554, %v5495
      %v5571 = vadd.f32 %v5555, %v5536
      %v5572 = vadd.f32 %v5556, %v5498
      %v5573 = vadd.f32 %v5557, %v5539
      %v5574 = vadd.f32 %v5558, %v5501
      %v5575 = vadd.f32 %v5559, %v5542
      %5576 = vrot.lane.b32.xlu0 %v5398, 64
      %v5577 = vpop.permute.xlu0 %5576
      %v5578 = vsel %vm1964, %v5577, 0
      %5580 = vmatpush.msra.mxu0 0.0
      %5581 = vmatpush.msra.mxu0 0.0
      %5582 = vmatpush.msra.mxu0 0.0
      %5583 = vmatpush.msra.mxu0 0.0
      %5584 = vmatpush.msra.mxu0 0.0
      %5585 = vmatpush.msra.mxu0 0.0
      %5586 = vmatpush.msra.mxu0 0.0
      %5587 = vmatpush.msra.mxu0 0.0
      %5588 = vmatpush.msra.mxu0 %v5574
      %5589 = vmatpush.msra.mxu0 %v5572
      %5590 = vmatpush.msra.mxu0 %v5570
      %5591 = vmatpush.msra.mxu0 %v5568
      %5592 = vmatpush.msra.mxu0 %v5566
      %5593 = vmatpush.msra.mxu0 %v5564
      %5594 = vmatpush.msra.mxu0 %v5562
      %5595 = vmatpush.msra.mxu0 %v5560
      %5596 = vmatmul.f32.gmra.mxu0 %v5578
      %v5597 = vpop.f32.mrf.mxu0
      %v5598 = vadd.f32 0.0, %v5597
      %5599 = vdwg.mxu0
      %5600 = vmatpush.msra.mxu0 0.0
      %5601 = vmatpush.msra.mxu0 0.0
      %5602 = vmatpush.msra.mxu0 0.0
      %5603 = vmatpush.msra.mxu0 0.0
      %5604 = vmatpush.msra.mxu0 0.0
      %5605 = vmatpush.msra.mxu0 0.0
      %5606 = vmatpush.msra.mxu0 0.0
      %5607 = vmatpush.msra.mxu0 0.0
      %5608 = vmatpush.msra.mxu0 %v5575
      %5609 = vmatpush.msra.mxu0 %v5573
      %5610 = vmatpush.msra.mxu0 %v5571
      %5611 = vmatpush.msra.mxu0 %v5569
      %5612 = vmatpush.msra.mxu0 %v5567
      %5613 = vmatpush.msra.mxu0 %v5565
      %5614 = vmatpush.msra.mxu0 %v5563
      %5615 = vmatpush.msra.mxu0 %v5561
      %5616 = vmatmul.f32.gmra.mxu0 %v5578
      %v5617 = vpop.f32.mrf.mxu0
      %v5618 = vadd.f32 0.0, %v5617
      %5619 = vdwg.mxu0
      %v5620 = vperm.slane %v5598, 0
      %v5621 = vperm.slane %v5618, 0
      %v5622 = vsel %vm3392, %v5620, %v5346
      %v5623 = vsel %vm3392, %v5621, %v5347
      %v5624 = vperm.slane %v3961, 6
      %v5625 = vperm.slane %v3962, 6
      %v5626 = vmul.f32 %v5624, %v1703
      %v5627 = vmul.f32 %v5625, %v1704
      %v5628 = vmul.f32 %v5624, %v1705
      %v5629 = vmul.f32 %v5625, %v1706
      %v5630 = vmul.f32 %v5624, %v1707
      %v5631 = vmul.f32 %v5625, %v1708
      %v5632 = vmul.f32 %v5624, %v1709
      %v5633 = vmul.f32 %v5625, %v1710
      %v5634 = vmul.f32 %v5624, %v1711
      %v5635 = vmul.f32 %v5625, %v1712
      %v5636 = vmul.f32 %v5624, %v1713
      %v5637 = vmul.f32 %v5625, %v1714
      %v5638 = vmul.f32 %v5624, %v1715
      %v5639 = vmul.f32 %v5625, %v1716
      %v5640 = vmul.f32 %v5624, %v1717
      %v5641 = vmul.f32 %v5625, %v1718
      %v5642 = vmul.f32 %v5626, 1.442695
      %v5643 = vpow.pop %v5642
      %v5644 = vmul.f32 %v5627, 1.442695
      %v5645 = vpow.pop %v5644
      %v5646 = vmul.f32 %v5628, 1.442695
      %v5647 = vpow.pop %v5646
      %v5648 = vmul.f32 %v5629, 1.442695
      %v5649 = vpow.pop %v5648
      %v5650 = vmul.f32 %v5630, 1.442695
      %v5651 = vpow.pop %v5650
      %v5652 = vmul.f32 %v5631, 1.442695
      %v5653 = vpow.pop %v5652
      %v5654 = vmul.f32 %v5632, 1.442695
      %v5655 = vpow.pop %v5654
      %v5656 = vmul.f32 %v5633, 1.442695
      %v5657 = vpow.pop %v5656
      %v5658 = vmul.f32 %v5634, 1.442695
      %v5659 = vpow.pop %v5658
      %v5660 = vmul.f32 %v5635, 1.442695
      %v5661 = vpow.pop %v5660
      %v5662 = vmul.f32 %v5636, 1.442695
      %v5663 = vpow.pop %v5662
      %v5664 = vmul.f32 %v5637, 1.442695
      %v5665 = vpow.pop %v5664
      %v5666 = vmul.f32 %v5638, 1.442695
      %v5667 = vpow.pop %v5666
      %v5668 = vmul.f32 %v5639, 1.442695
      %v5669 = vpow.pop %v5668
      %v5670 = vmul.f32 %v5640, 1.442695
      %v5671 = vpow.pop %v5670
      %v5672 = vmul.f32 %v5641, 1.442695
      %v5673 = vpow.pop %v5672
      %v5674 = vrot.slane %v3968, 6
      %5676 = vxpose.xlu0.b32.start [1/16] %v5674, 128
      %5677 = vxpose.xlu0.b32.cont [2/16] 0.0, 128
      %5678 = vxpose.xlu0.b32.cont [3/16] 0.0, 128
      %5679 = vxpose.xlu0.b32.cont [4/16] 0.0, 128
      %5680 = vxpose.xlu0.b32.cont [5/16] 0.0, 128
      %5681 = vxpose.xlu0.b32.cont [6/16] 0.0, 128
      %5682 = vxpose.xlu0.b32.cont [7/16] 0.0, 128
      %5683 = vxpose.xlu0.b32.cont [8/16] 0.0, 128
      %5684 = vxpose.xlu0.b32.cont [9/16] 0.0, 128
      %5685 = vxpose.xlu0.b32.cont [10/16] 0.0, 128
      %5686 = vxpose.xlu0.b32.cont [11/16] 0.0, 128
      %5687 = vxpose.xlu0.b32.cont [12/16] 0.0, 128
      %5688 = vxpose.xlu0.b32.cont [13/16] 0.0, 128
      %5689 = vxpose.xlu0.b32.cont [14/16] 0.0, 128
      %5690 = vxpose.xlu0.b32.cont [15/16] 0.0, 128
      %5691 = vxpose.xlu0.b32.end [16/16] 0.0, 128
      %v5692 = vpop.trf.xlu0
      %v5693 = vpop.trf.xlu0
      %v5694 = vpop.trf.xlu0
      %v5695 = vpop.trf.xlu0
      %v5696 = vpop.trf.xlu0
      %v5697 = vpop.trf.xlu0
      %v5698 = vpop.trf.xlu0
      %v5699 = vpop.trf.xlu0
      %v5700 = vpop.trf.xlu0
      %v5701 = vpop.trf.xlu0
      %v5702 = vpop.trf.xlu0
      %v5703 = vpop.trf.xlu0
      %v5704 = vpop.trf.xlu0
      %v5705 = vpop.trf.xlu0
      %v5706 = vpop.trf.xlu0
      %v5707 = vpop.trf.xlu0
      %v5708 = vrot.slane %v3965, 6
      %v5709 = vrot.slane %v3966, 6
      %v5711 = vsel %vm1815, %v5692, 0
      %v5714 = vsel %vm1815, %v5693, 0
      %v5717 = vsel %vm1815, %v5694, 0
      %v5720 = vsel %vm1815, %v5695, 0
      %v5723 = vsel %vm1815, %v5696, 0
      %v5726 = vsel %vm1815, %v5697, 0
      %v5729 = vsel %vm1815, %v5698, 0
      %v5732 = vsel %vm1815, %v5699, 0
      %v5734 = vsel %vm1840, %v5708, 0
      %v5736 = vsel %vm1840, %v5709, 0
      %5738 = vmatpush.msra.mxu0 0.0
      %5739 = vmatpush.msra.mxu0 0.0
      %5740 = vmatpush.msra.mxu0 0.0
      %5741 = vmatpush.msra.mxu0 0.0
      %5742 = vmatpush.msra.mxu0 0.0
      %5743 = vmatpush.msra.mxu0 0.0
      %5744 = vmatpush.msra.mxu0 0.0
      %5745 = vmatpush.msra.mxu0 0.0
      %5746 = vmatpush.msra.mxu0 0.0
      %5747 = vmatpush.msra.mxu0 0.0
      %5748 = vmatpush.msra.mxu0 0.0
      %5749 = vmatpush.msra.mxu0 0.0
      %5750 = vmatpush.msra.mxu0 0.0
      %5751 = vmatpush.msra.mxu0 0.0
      %5752 = vmatpush.msra.mxu0 0.0
      %5753 = vmatpush.msra.mxu0 %v5734
      %5754 = vmatmul.f32.gmra.mxu0 %v5711
      %v5755 = vpop.f32.mrf.mxu0
      %v5756 = vadd.f32 0.0, %v5755
      %5757 = vmatmul.f32.gmra.mxu0 %v5714
      %v5758 = vpop.f32.mrf.mxu0
      %v5759 = vadd.f32 0.0, %v5758
      %5760 = vmatmul.f32.gmra.mxu0 %v5717
      %v5761 = vpop.f32.mrf.mxu0
      %v5762 = vadd.f32 0.0, %v5761
      %5763 = vmatmul.f32.gmra.mxu0 %v5720
      %v5764 = vpop.f32.mrf.mxu0
      %v5765 = vadd.f32 0.0, %v5764
      %5766 = vmatmul.f32.gmra.mxu0 %v5723
      %v5767 = vpop.f32.mrf.mxu0
      %v5768 = vadd.f32 0.0, %v5767
      %5769 = vmatmul.f32.gmra.mxu0 %v5726
      %v5770 = vpop.f32.mrf.mxu0
      %v5771 = vadd.f32 0.0, %v5770
      %5772 = vmatmul.f32.gmra.mxu0 %v5729
      %v5773 = vpop.f32.mrf.mxu0
      %v5774 = vadd.f32 0.0, %v5773
      %5775 = vmatmul.f32.gmra.mxu0 %v5732
      %v5776 = vpop.f32.mrf.mxu0
      %v5777 = vadd.f32 0.0, %v5776
      %5778 = vdwg.mxu0
      %5779 = vmatpush.msra.mxu0 0.0
      %5780 = vmatpush.msra.mxu0 0.0
      %5781 = vmatpush.msra.mxu0 0.0
      %5782 = vmatpush.msra.mxu0 0.0
      %5783 = vmatpush.msra.mxu0 0.0
      %5784 = vmatpush.msra.mxu0 0.0
      %5785 = vmatpush.msra.mxu0 0.0
      %5786 = vmatpush.msra.mxu0 0.0
      %5787 = vmatpush.msra.mxu0 0.0
      %5788 = vmatpush.msra.mxu0 0.0
      %5789 = vmatpush.msra.mxu0 0.0
      %5790 = vmatpush.msra.mxu0 0.0
      %5791 = vmatpush.msra.mxu0 0.0
      %5792 = vmatpush.msra.mxu0 0.0
      %5793 = vmatpush.msra.mxu0 0.0
      %5794 = vmatpush.msra.mxu0 %v5736
      %5795 = vmatmul.f32.gmra.mxu0 %v5711
      %v5796 = vpop.f32.mrf.mxu0
      %v5797 = vadd.f32 0.0, %v5796
      %5798 = vmatmul.f32.gmra.mxu0 %v5714
      %v5799 = vpop.f32.mrf.mxu0
      %v5800 = vadd.f32 0.0, %v5799
      %5801 = vmatmul.f32.gmra.mxu0 %v5717
      %v5802 = vpop.f32.mrf.mxu0
      %v5803 = vadd.f32 0.0, %v5802
      %5804 = vmatmul.f32.gmra.mxu0 %v5720
      %v5805 = vpop.f32.mrf.mxu0
      %v5806 = vadd.f32 0.0, %v5805
      %5807 = vmatmul.f32.gmra.mxu0 %v5723
      %v5808 = vpop.f32.mrf.mxu0
      %v5809 = vadd.f32 0.0, %v5808
      %5810 = vmatmul.f32.gmra.mxu0 %v5726
      %v5811 = vpop.f32.mrf.mxu0
      %v5812 = vadd.f32 0.0, %v5811
      %5813 = vmatmul.f32.gmra.mxu0 %v5729
      %v5814 = vpop.f32.mrf.mxu0
      %v5815 = vadd.f32 0.0, %v5814
      %5816 = vmatmul.f32.gmra.mxu0 %v5732
      %v5817 = vpop.f32.mrf.mxu0
      %v5818 = vadd.f32 0.0, %v5817
      %5819 = vdwg.mxu0
      %v5820 = vmul.f32 %v5643, %v5560
      %v5821 = vmul.f32 %v5645, %v5561
      %v5822 = vmul.f32 %v5647, %v5562
      %v5823 = vmul.f32 %v5649, %v5563
      %v5824 = vmul.f32 %v5651, %v5564
      %v5825 = vmul.f32 %v5653, %v5565
      %v5826 = vmul.f32 %v5655, %v5566
      %v5827 = vmul.f32 %v5657, %v5567
      %v5828 = vmul.f32 %v5659, %v5568
      %v5829 = vmul.f32 %v5661, %v5569
      %v5830 = vmul.f32 %v5663, %v5570
      %v5831 = vmul.f32 %v5665, %v5571
      %v5832 = vmul.f32 %v5667, %v5572
      %v5833 = vmul.f32 %v5669, %v5573
      %v5834 = vmul.f32 %v5671, %v5574
      %v5835 = vmul.f32 %v5673, %v5575
      %v5836 = vadd.f32 %v5820, %v5756
      %v5837 = vadd.f32 %v5821, %v5797
      %v5838 = vadd.f32 %v5822, %v5759
      %v5839 = vadd.f32 %v5823, %v5800
      %v5840 = vadd.f32 %v5824, %v5762
      %v5841 = vadd.f32 %v5825, %v5803
      %v5842 = vadd.f32 %v5826, %v5765
      %v5843 = vadd.f32 %v5827, %v5806
      %v5844 = vadd.f32 %v5828, %v5768
      %v5845 = vadd.f32 %v5829, %v5809
      %v5846 = vadd.f32 %v5830, %v5771
      %v5847 = vadd.f32 %v5831, %v5812
      %v5848 = vadd.f32 %v5832, %v5774
      %v5849 = vadd.f32 %v5833, %v5815
      %v5850 = vadd.f32 %v5834, %v5777
      %v5851 = vadd.f32 %v5835, %v5818
      %5852 = vrot.lane.b32.xlu0 %v5674, 64
      %v5853 = vpop.permute.xlu0 %5852
      %v5854 = vsel %vm1964, %v5853, 0
      %5856 = vmatpush.msra.mxu0 0.0
      %5857 = vmatpush.msra.mxu0 0.0
      %5858 = vmatpush.msra.mxu0 0.0
      %5859 = vmatpush.msra.mxu0 0.0
      %5860 = vmatpush.msra.mxu0 0.0
      %5861 = vmatpush.msra.mxu0 0.0
      %5862 = vmatpush.msra.mxu0 0.0
      %5863 = vmatpush.msra.mxu0 0.0
      %5864 = vmatpush.msra.mxu0 %v5850
      %5865 = vmatpush.msra.mxu0 %v5848
      %5866 = vmatpush.msra.mxu0 %v5846
      %5867 = vmatpush.msra.mxu0 %v5844
      %5868 = vmatpush.msra.mxu0 %v5842
      %5869 = vmatpush.msra.mxu0 %v5840
      %5870 = vmatpush.msra.mxu0 %v5838
      %5871 = vmatpush.msra.mxu0 %v5836
      %5872 = vmatmul.f32.gmra.mxu0 %v5854
      %v5873 = vpop.f32.mrf.mxu0
      %v5874 = vadd.f32 0.0, %v5873
      %5875 = vdwg.mxu0
      %5876 = vmatpush.msra.mxu0 0.0
      %5877 = vmatpush.msra.mxu0 0.0
      %5878 = vmatpush.msra.mxu0 0.0
      %5879 = vmatpush.msra.mxu0 0.0
      %5880 = vmatpush.msra.mxu0 0.0
      %5881 = vmatpush.msra.mxu0 0.0
      %5882 = vmatpush.msra.mxu0 0.0
      %5883 = vmatpush.msra.mxu0 0.0
      %5884 = vmatpush.msra.mxu0 %v5851
      %5885 = vmatpush.msra.mxu0 %v5849
      %5886 = vmatpush.msra.mxu0 %v5847
      %5887 = vmatpush.msra.mxu0 %v5845
      %5888 = vmatpush.msra.mxu0 %v5843
      %5889 = vmatpush.msra.mxu0 %v5841
      %5890 = vmatpush.msra.mxu0 %v5839
      %5891 = vmatpush.msra.mxu0 %v5837
      %5892 = vmatmul.f32.gmra.mxu0 %v5854
      %v5893 = vpop.f32.mrf.mxu0
      %v5894 = vadd.f32 0.0, %v5893
      %5895 = vdwg.mxu0
      %v5896 = vperm.slane %v5874, 0
      %v5897 = vperm.slane %v5894, 0
      %v5898 = vsel %vm3669, %v5896, %v5622
      %v5899 = vsel %vm3669, %v5897, %v5623
      %v5900 = vperm.slane %v3961, 7
      %v5901 = vperm.slane %v3962, 7
      %v5902 = vmul.f32 %v5900, %v1703
      %v5903 = vmul.f32 %v5901, %v1704
      %v5904 = vmul.f32 %v5900, %v1705
      %v5905 = vmul.f32 %v5901, %v1706
      %v5906 = vmul.f32 %v5900, %v1707
      %v5907 = vmul.f32 %v5901, %v1708
      %v5908 = vmul.f32 %v5900, %v1709
      %v5909 = vmul.f32 %v5901, %v1710
      %v5910 = vmul.f32 %v5900, %v1711
      %v5911 = vmul.f32 %v5901, %v1712
      %v5912 = vmul.f32 %v5900, %v1713
      %v5913 = vmul.f32 %v5901, %v1714
      %v5914 = vmul.f32 %v5900, %v1715
      %v5915 = vmul.f32 %v5901, %v1716
      %v5916 = vmul.f32 %v5900, %v1717
      %v5917 = vmul.f32 %v5901, %v1718
      %v5918 = vmul.f32 %v5902, 1.442695
      %v5919 = vpow.pop %v5918
      %v5920 = vmul.f32 %v5903, 1.442695
      %v5921 = vpow.pop %v5920
      %v5922 = vmul.f32 %v5904, 1.442695
      %v5923 = vpow.pop %v5922
      %v5924 = vmul.f32 %v5905, 1.442695
      %v5925 = vpow.pop %v5924
      %v5926 = vmul.f32 %v5906, 1.442695
      %v5927 = vpow.pop %v5926
      %v5928 = vmul.f32 %v5907, 1.442695
      %v5929 = vpow.pop %v5928
      %v5930 = vmul.f32 %v5908, 1.442695
      %v5931 = vpow.pop %v5930
      %v5932 = vmul.f32 %v5909, 1.442695
      %v5933 = vpow.pop %v5932
      %v5934 = vmul.f32 %v5910, 1.442695
      %v5935 = vpow.pop %v5934
      %v5936 = vmul.f32 %v5911, 1.442695
      %v5937 = vpow.pop %v5936
      %v5938 = vmul.f32 %v5912, 1.442695
      %v5939 = vpow.pop %v5938
      %v5940 = vmul.f32 %v5913, 1.442695
      %v5941 = vpow.pop %v5940
      %v5942 = vmul.f32 %v5914, 1.442695
      %v5943 = vpow.pop %v5942
      %v5944 = vmul.f32 %v5915, 1.442695
      %v5945 = vpow.pop %v5944
      %v5946 = vmul.f32 %v5916, 1.442695
      %v5947 = vpow.pop %v5946
      %v5948 = vmul.f32 %v5917, 1.442695
      %v5949 = vpow.pop %v5948
      %v5950 = vrot.slane %v3968, 7
      %5952 = vxpose.xlu0.b32.start [1/16] %v5950, 128
      %5953 = vxpose.xlu0.b32.cont [2/16] 0.0, 128
      %5954 = vxpose.xlu0.b32.cont [3/16] 0.0, 128
      %5955 = vxpose.xlu0.b32.cont [4/16] 0.0, 128
      %5956 = vxpose.xlu0.b32.cont [5/16] 0.0, 128
      %5957 = vxpose.xlu0.b32.cont [6/16] 0.0, 128
      %5958 = vxpose.xlu0.b32.cont [7/16] 0.0, 128
      %5959 = vxpose.xlu0.b32.cont [8/16] 0.0, 128
      %5960 = vxpose.xlu0.b32.cont [9/16] 0.0, 128
      %5961 = vxpose.xlu0.b32.cont [10/16] 0.0, 128
      %5962 = vxpose.xlu0.b32.cont [11/16] 0.0, 128
      %5963 = vxpose.xlu0.b32.cont [12/16] 0.0, 128
      %5964 = vxpose.xlu0.b32.cont [13/16] 0.0, 128
      %5965 = vxpose.xlu0.b32.cont [14/16] 0.0, 128
      %5966 = vxpose.xlu0.b32.cont [15/16] 0.0, 128
      %5967 = vxpose.xlu0.b32.end [16/16] 0.0, 128
      %v5968 = vpop.trf.xlu0
      %v5969 = vpop.trf.xlu0
      %v5970 = vpop.trf.xlu0
      %v5971 = vpop.trf.xlu0
      %v5972 = vpop.trf.xlu0
      %v5973 = vpop.trf.xlu0
      %v5974 = vpop.trf.xlu0
      %v5975 = vpop.trf.xlu0
      %v5976 = vpop.trf.xlu0
      %v5977 = vpop.trf.xlu0
      %v5978 = vpop.trf.xlu0
      %v5979 = vpop.trf.xlu0
      %v5980 = vpop.trf.xlu0
      %v5981 = vpop.trf.xlu0
      %v5982 = vpop.trf.xlu0
      %v5983 = vpop.trf.xlu0
      %v5984 = vrot.slane %v3965, 7
      %v5985 = vrot.slane %v3966, 7
      %v5987 = vsel %vm1815, %v5968, 0
      %v5990 = vsel %vm1815, %v5969, 0
      %v5993 = vsel %vm1815, %v5970, 0
      %v5996 = vsel %vm1815, %v5971, 0
      %v5999 = vsel %vm1815, %v5972, 0
      %v6002 = vsel %vm1815, %v5973, 0
      %v6005 = vsel %vm1815, %v5974, 0
      %v6008 = vsel %vm1815, %v5975, 0
      %v6010 = vsel %vm1840, %v5984, 0
      %v6012 = vsel %vm1840, %v5985, 0
      %6014 = vmatpush.msra.mxu0 0.0
      %6015 = vmatpush.msra.mxu0 0.0
      %6016 = vmatpush.msra.mxu0 0.0
      %6017 = vmatpush.msra.mxu0 0.0
      %6018 = vmatpush.msra.mxu0 0.0
      %6019 = vmatpush.msra.mxu0 0.0
      %6020 = vmatpush.msra.mxu0 0.0
      %6021 = vmatpush.msra.mxu0 0.0
      %6022 = vmatpush.msra.mxu0 0.0
      %6023 = vmatpush.msra.mxu0 0.0
      %6024 = vmatpush.msra.mxu0 0.0
      %6025 = vmatpush.msra.mxu0 0.0
      %6026 = vmatpush.msra.mxu0 0.0
      %6027 = vmatpush.msra.mxu0 0.0
      %6028 = vmatpush.msra.mxu0 0.0
      %6029 = vmatpush.msra.mxu0 %v6010
      %6030 = vmatmul.f32.gmra.mxu0 %v5987
      %v6031 = vpop.f32.mrf.mxu0
      %v6032 = vadd.f32 0.0, %v6031
      %6033 = vmatmul.f32.gmra.mxu0 %v5990
      %v6034 = vpop.f32.mrf.mxu0
      %v6035 = vadd.f32 0.0, %v6034
      %6036 = vmatmul.f32.gmra.mxu0 %v5993
      %v6037 = vpop.f32.mrf.mxu0
      %v6038 = vadd.f32 0.0, %v6037
      %6039 = vmatmul.f32.gmra.mxu0 %v5996
      %v6040 = vpop.f32.mrf.mxu0
      %v6041 = vadd.f32 0.0, %v6040
      %6042 = vmatmul.f32.gmra.mxu0 %v5999
      %v6043 = vpop.f32.mrf.mxu0
      %v6044 = vadd.f32 0.0, %v6043
      %6045 = vmatmul.f32.gmra.mxu0 %v6002
      %v6046 = vpop.f32.mrf.mxu0
      %v6047 = vadd.f32 0.0, %v6046
      %6048 = vmatmul.f32.gmra.mxu0 %v6005
      %v6049 = vpop.f32.mrf.mxu0
      %v6050 = vadd.f32 0.0, %v6049
      %6051 = vmatmul.f32.gmra.mxu0 %v6008
      %v6052 = vpop.f32.mrf.mxu0
      %v6053 = vadd.f32 0.0, %v6052
      %6054 = vdwg.mxu0
      %6055 = vmatpush.msra.mxu0 0.0
      %6056 = vmatpush.msra.mxu0 0.0
      %6057 = vmatpush.msra.mxu0 0.0
      %6058 = vmatpush.msra.mxu0 0.0
      %6059 = vmatpush.msra.mxu0 0.0
      %6060 = vmatpush.msra.mxu0 0.0
      %6061 = vmatpush.msra.mxu0 0.0
      %6062 = vmatpush.msra.mxu0 0.0
      %6063 = vmatpush.msra.mxu0 0.0
      %6064 = vmatpush.msra.mxu0 0.0
      %6065 = vmatpush.msra.mxu0 0.0
      %6066 = vmatpush.msra.mxu0 0.0
      %6067 = vmatpush.msra.mxu0 0.0
      %6068 = vmatpush.msra.mxu0 0.0
      %6069 = vmatpush.msra.mxu0 0.0
      %6070 = vmatpush.msra.mxu0 %v6012
      %6071 = vmatmul.f32.gmra.mxu0 %v5987
      %v6072 = vpop.f32.mrf.mxu0
      %v6073 = vadd.f32 0.0, %v6072
      %6074 = vmatmul.f32.gmra.mxu0 %v5990
      %v6075 = vpop.f32.mrf.mxu0
      %v6076 = vadd.f32 0.0, %v6075
      %6077 = vmatmul.f32.gmra.mxu0 %v5993
      %v6078 = vpop.f32.mrf.mxu0
      %v6079 = vadd.f32 0.0, %v6078
      %6080 = vmatmul.f32.gmra.mxu0 %v5996
      %v6081 = vpop.f32.mrf.mxu0
      %v6082 = vadd.f32 0.0, %v6081
      %6083 = vmatmul.f32.gmra.mxu0 %v5999
      %v6084 = vpop.f32.mrf.mxu0
      %v6085 = vadd.f32 0.0, %v6084
      %6086 = vmatmul.f32.gmra.mxu0 %v6002
      %v6087 = vpop.f32.mrf.mxu0
      %v6088 = vadd.f32 0.0, %v6087
      %6089 = vmatmul.f32.gmra.mxu0 %v6005
      %v6090 = vpop.f32.mrf.mxu0
      %v6091 = vadd.f32 0.0, %v6090
      %6092 = vmatmul.f32.gmra.mxu0 %v6008
      %v6093 = vpop.f32.mrf.mxu0
      %v6094 = vadd.f32 0.0, %v6093
      %6095 = vdwg.mxu0
      %v6096 = vmul.f32 %v5919, %v5836
      %v6097 = vmul.f32 %v5921, %v5837
      %v6098 = vmul.f32 %v5923, %v5838
      %v6099 = vmul.f32 %v5925, %v5839
      %v6100 = vmul.f32 %v5927, %v5840
      %v6101 = vmul.f32 %v5929, %v5841
      %v6102 = vmul.f32 %v5931, %v5842
      %v6103 = vmul.f32 %v5933, %v5843
      %v6104 = vmul.f32 %v5935, %v5844
      %v6105 = vmul.f32 %v5937, %v5845
      %v6106 = vmul.f32 %v5939, %v5846
      %v6107 = vmul.f32 %v5941, %v5847
      %v6108 = vmul.f32 %v5943, %v5848
      %v6109 = vmul.f32 %v5945, %v5849
      %v6110 = vmul.f32 %v5947, %v5850
      %v6111 = vmul.f32 %v5949, %v5851
      %v6112 = vadd.f32 %v6096, %v6032
      %v6113 = vadd.f32 %v6097, %v6073
      %v6114 = vadd.f32 %v6098, %v6035
      %v6115 = vadd.f32 %v6099, %v6076
      %v6116 = vadd.f32 %v6100, %v6038
      %v6117 = vadd.f32 %v6101, %v6079
      %v6118 = vadd.f32 %v6102, %v6041
      %v6119 = vadd.f32 %v6103, %v6082
      %v6120 = vadd.f32 %v6104, %v6044
      %v6121 = vadd.f32 %v6105, %v6085
      %v6122 = vadd.f32 %v6106, %v6047
      %v6123 = vadd.f32 %v6107, %v6088
      %v6124 = vadd.f32 %v6108, %v6050
      %v6125 = vadd.f32 %v6109, %v6091
      %v6126 = vadd.f32 %v6110, %v6053
      %v6127 = vadd.f32 %v6111, %v6094
      %6128 = vrot.lane.b32.xlu0 %v5950, 64
      %v6129 = vpop.permute.xlu0 %6128
      %v6130 = vsel %vm1964, %v6129, 0
      %6132 = vmatpush.msra.mxu0 0.0
      %6133 = vmatpush.msra.mxu0 0.0
      %6134 = vmatpush.msra.mxu0 0.0
      %6135 = vmatpush.msra.mxu0 0.0
      %6136 = vmatpush.msra.mxu0 0.0
      %6137 = vmatpush.msra.mxu0 0.0
      %6138 = vmatpush.msra.mxu0 0.0
      %6139 = vmatpush.msra.mxu0 0.0
      %6140 = vmatpush.msra.mxu0 %v6126
      %6141 = vmatpush.msra.mxu0 %v6124
      %6142 = vmatpush.msra.mxu0 %v6122
      %6143 = vmatpush.msra.mxu0 %v6120
      %6144 = vmatpush.msra.mxu0 %v6118
      %6145 = vmatpush.msra.mxu0 %v6116
      %6146 = vmatpush.msra.mxu0 %v6114
      %6147 = vmatpush.msra.mxu0 %v6112
      %6148 = vmatmul.f32.gmra.mxu0 %v6130
      %v6149 = vpop.f32.mrf.mxu0
      %v6150 = vadd.f32 0.0, %v6149
      %6151 = vdwg.mxu0
      %6152 = vmatpush.msra.mxu0 0.0
      %6153 = vmatpush.msra.mxu0 0.0
      %6154 = vmatpush.msra.mxu0 0.0
      %6155 = vmatpush.msra.mxu0 0.0
      %6156 = vmatpush.msra.mxu0 0.0
      %6157 = vmatpush.msra.mxu0 0.0
      %6158 = vmatpush.msra.mxu0 0.0
      %6159 = vmatpush.msra.mxu0 0.0
      %6160 = vmatpush.msra.mxu0 %v6127
      %6161 = vmatpush.msra.mxu0 %v6125
      %6162 = vmatpush.msra.mxu0 %v6123
      %6163 = vmatpush.msra.mxu0 %v6121
      %6164 = vmatpush.msra.mxu0 %v6119
      %6165 = vmatpush.msra.mxu0 %v6117
      %6166 = vmatpush.msra.mxu0 %v6115
      %6167 = vmatpush.msra.mxu0 %v6113
      %6168 = vmatmul.f32.gmra.mxu0 %v6130
      %v6169 = vpop.f32.mrf.mxu0
      %v6170 = vadd.f32 0.0, %v6169
      %6171 = vdwg.mxu0
      %v6172 = vperm.slane %v6150, 0
      %v6173 = vperm.slane %v6170, 0
      %v6174 = vsel %vm3946, %v6172, %v5898
      %v6175 = vsel %vm3946, %v6173, %v5899
      %s6176 = smul.addr %s3958, 8
      %s6177 = scalar_lea.vmem [#allocation7], %s6176
      %6178 = vst [vmem:[%s6177] sm:$0xff] %v6174
      %6179 = vst [vmem:[%s6177 + $0x8] sm:$0xff] %v6175
    $region70: #{tpu_custom_call.1} parent=1 // loop_footer
      %s1670 = sadd.s32 1, %s1666
    $region71: #{tpu_custom_call.1} parent=1 // loop_footer_branch
      %1665 = sbr.rel target = $region67
    $region72: #{tpu_custom_call.1} parent=1 // loop_exit
      _
    %v6180 = vld [vmem:[#allocation7] sm:$0xff]
    %v6181 = vld [vmem:[#allocation7 + $0x8] sm:$0xff]
    %v6182 = vld [vmem:[#allocation7 + $0x10] sm:$0xff]
    %v6183 = vld [vmem:[#allocation7 + $0x18] sm:$0xff]
    %v6184 = vld [vmem:[#allocation7 + $0x20] sm:$0xff]
    %v6185 = vld [vmem:[#allocation7 + $0x28] sm:$0xff]
    %v6186 = vld [vmem:[#allocation7 + $0x30] sm:$0xff]
    %v6187 = vld [vmem:[#allocation7 + $0x38] sm:$0xff]
    %v6188 = vld [vmem:[#allocation2] sm:$0xff]
    %v6189 = vld [vmem:[#allocation2 + $0x8] sm:$0xff]
    %v6190 = vld [vmem:[#allocation2 + $0x10] sm:$0xff]
    %v6191 = vld [vmem:[#allocation2 + $0x18] sm:$0xff]
    %v6192 = vld [vmem:[#allocation2 + $0x20] sm:$0xff]
    %v6193 = vld [vmem:[#allocation2 + $0x28] sm:$0xff]
    %v6194 = vld [vmem:[#allocation2 + $0x30] sm:$0xff]
    %v6195 = vld [vmem:[#allocation2 + $0x38] sm:$0xff]
    %v6196 = vld [vmem:[%s10] sm:$0x3]
    %v6198 = vperm.slane %v6196, 0
    %v6199 = vperm.slane %v6196, 1
    %v6202 = vmul.f32 %v6188, %v6198
    %v6203 = vmul.f32 %v6189, %v6199
    %v6204 = vmul.f32 %v6190, %v6198
    %v6205 = vmul.f32 %v6191, %v6199
    %v6206 = vmul.f32 %v6192, %v6198
    %v6207 = vmul.f32 %v6193, %v6199
    %v6208 = vmul.f32 %v6194, %v6198
    %v6209 = vmul.f32 %v6195, %v6199
    %v6210 = vadd.f32 %v6180, %v6202
    %v6211 = vadd.f32 %v6181, %v6203
    %v6212 = vadd.f32 %v6182, %v6204
    %v6213 = vadd.f32 %v6183, %v6205
    %v6214 = vadd.f32 %v6184, %v6206
    %v6215 = vadd.f32 %v6185, %v6207
    %v6216 = vadd.f32 %v6186, %v6208
    %v6217 = vadd.f32 %v6187, %v6209
    %v6218 = vld [vmem:[#allocation6] sm:$0xff]
    %v6219 = vld [vmem:[#allocation6 + $0x8] sm:$0xff]
    %v6220 = vld [vmem:[#allocation6 + $0x10] sm:$0xff]
    %v6221 = vld [vmem:[#allocation6 + $0x18] sm:$0xff]
    %v6222 = vld [vmem:[#allocation6 + $0x20] sm:$0xff]
    %v6223 = vld [vmem:[#allocation6 + $0x28] sm:$0xff]
    %v6224 = vld [vmem:[#allocation6 + $0x30] sm:$0xff]
    %v6225 = vld [vmem:[#allocation6 + $0x38] sm:$0xff]
    %v6226 = vmul.f32 %v6210, %v6218
    %v6227 = vmul.f32 %v6211, %v6219
    %v6228 = vmul.f32 %v6212, %v6220
    %v6229 = vmul.f32 %v6213, %v6221
    %v6230 = vmul.f32 %v6214, %v6222
    %v6231 = vmul.f32 %v6215, %v6223
    %v6232 = vmul.f32 %v6216, %v6224
    %v6233 = vmul.f32 %v6217, %v6225
    %v6234 = vpack.c.bf16 %v6228, %v6226
    %v6235 = vpack.c.bf16 %v6229, %v6227
    %v6236 = vpack.c.bf16 %v6232, %v6230
    %v6237 = vpack.c.bf16 %v6233, %v6231
    %v6238 = vld [vmem:[#allocation14] sm:$0xf]
    %v6239 = vld [vmem:[#allocation14 + $0x4] sm:$0xf]
    %v6240 = vld [vmem:[#allocation14 + $0x8] sm:$0xf]
    %v6241 = vld [vmem:[#allocation14 + $0xc] sm:$0xf]
    %v6242 = vld [vmem:[#allocation14 + $0x10] sm:$0xf]
    %v6243 = vld [vmem:[#allocation14 + $0x14] sm:$0xf]
    %v6244 = vld [vmem:[#allocation14 + $0x18] sm:$0xf]
    %v6245 = vld [vmem:[#allocation14 + $0x1c] sm:$0xf]
    %v6246 = vld [vmem:[#allocation14 + $0x20] sm:$0xf]
    %v6247 = vld [vmem:[#allocation14 + $0x24] sm:$0xf]
    %v6248 = vld [vmem:[#allocation14 + $0x28] sm:$0xf]
    %v6249 = vld [vmem:[#allocation14 + $0x2c] sm:$0xf]
    %v6250 = vld [vmem:[#allocation14 + $0x30] sm:$0xf]
    %v6251 = vld [vmem:[#allocation14 + $0x34] sm:$0xf]
    %v6252 = vld [vmem:[#allocation14 + $0x38] sm:$0xf]
    %v6253 = vld [vmem:[#allocation14 + $0x3c] sm:$0xf]
    %v6254 = vld [vmem:[#allocation14 + $0x40] sm:$0xf]
    %v6255 = vld [vmem:[#allocation14 + $0x44] sm:$0xf]
    %v6256 = vld [vmem:[#allocation14 + $0x48] sm:$0xf]
    %v6257 = vld [vmem:[#allocation14 + $0x4c] sm:$0xf]
    %v6258 = vld [vmem:[#allocation14 + $0x50] sm:$0xf]
    %v6259 = vld [vmem:[#allocation14 + $0x54] sm:$0xf]
    %v6260 = vld [vmem:[#allocation14 + $0x58] sm:$0xf]
    %v6261 = vld [vmem:[#allocation14 + $0x5c] sm:$0xf]
    %v6262 = vld [vmem:[#allocation14 + $0x60] sm:$0xf]
    %v6263 = vld [vmem:[#allocation14 + $0x64] sm:$0xf]
    %v6264 = vld [vmem:[#allocation14 + $0x68] sm:$0xf]
    %v6265 = vld [vmem:[#allocation14 + $0x6c] sm:$0xf]
    %v6266 = vld [vmem:[#allocation14 + $0x70] sm:$0xf]
    %v6267 = vld [vmem:[#allocation14 + $0x74] sm:$0xf]
    %v6268 = vld [vmem:[#allocation14 + $0x78] sm:$0xf]
    %v6269 = vld [vmem:[#allocation14 + $0x7c] sm:$0xf]
    %v6302 = vunpack.c.l.b16 %v6238
    %v6303 = vunpack.c.l.b16 %v6239
    %v6304 = vunpack.c.l.b16 %v6240
    %v6305 = vunpack.c.l.b16 %v6241
    %v6306 = vunpack.c.l.b16 %v6242
    %v6307 = vunpack.c.l.b16 %v6243
    %v6308 = vunpack.c.l.b16 %v6244
    %v6309 = vunpack.c.l.b16 %v6245
    %v6310 = vunpack.c.l.b16 %v6246
    %v6311 = vunpack.c.l.b16 %v6247
    %v6312 = vunpack.c.l.b16 %v6248
    %v6313 = vunpack.c.l.b16 %v6249
    %v6314 = vunpack.c.l.b16 %v6250
    %v6315 = vunpack.c.l.b16 %v6251
    %v6316 = vunpack.c.l.b16 %v6252
    %v6317 = vunpack.c.l.b16 %v6253
    %v6318 = vunpack.c.l.b16 %v6254
    %v6319 = vunpack.c.l.b16 %v6255
    %v6320 = vunpack.c.l.b16 %v6256
    %v6321 = vunpack.c.l.b16 %v6257
    %v6322 = vunpack.c.l.b16 %v6258
    %v6323 = vunpack.c.l.b16 %v6259
    %v6324 = vunpack.c.l.b16 %v6260
    %v6325 = vunpack.c.l.b16 %v6261
    %v6326 = vunpack.c.l.b16 %v6262
    %v6327 = vunpack.c.l.b16 %v6263
    %v6328 = vunpack.c.l.b16 %v6264
    %v6329 = vunpack.c.l.b16 %v6265
    %v6330 = vunpack.c.l.b16 %v6266
    %v6331 = vunpack.c.l.b16 %v6267
    %v6332 = vunpack.c.l.b16 %v6268
    %v6333 = vunpack.c.l.b16 %v6269
    %v6334 = vpack.c.b16 %v6303, %v6302
    %v6335 = vpack.c.b16 %v6305, %v6304
    %v6336 = vpack.c.b16 %v6307, %v6306
    %v6337 = vpack.c.b16 %v6309, %v6308
    %v6338 = vpack.c.b16 %v6311, %v6310
    %v6339 = vpack.c.b16 %v6313, %v6312
    %v6340 = vpack.c.b16 %v6315, %v6314
    %v6341 = vpack.c.b16 %v6317, %v6316
    %v6342 = vpack.c.b16 %v6319, %v6318
    %v6343 = vpack.c.b16 %v6321, %v6320
    %v6344 = vpack.c.b16 %v6323, %v6322
    %v6345 = vpack.c.b16 %v6325, %v6324
    %v6346 = vpack.c.b16 %v6327, %v6326
    %v6347 = vpack.c.b16 %v6329, %v6328
    %v6348 = vpack.c.b16 %v6331, %v6330
    %v6349 = vpack.c.b16 %v6333, %v6332
    %6366 = vmatpush.bf16.msra.mxu0 %v6341
    %6367 = vmatpush.bf16.msra.mxu0 %v6340
    %6368 = vmatpush.bf16.msra.mxu0 %v6339
    %6369 = vmatpush.bf16.msra.mxu0 %v6338
    %6370 = vmatpush.bf16.msra.mxu0 %v6337
    %6371 = vmatpush.bf16.msra.mxu0 %v6336
    %6372 = vmatpush.bf16.msra.mxu0 %v6335
    %6373 = vmatpush.bf16.msra.mxu0 %v6334
    %6374 = vmatmul.bf16.gmra.mxu0 %v6234
    %v6375 = vpop.f32.mrf.mxu0
    %v6376 = vadd.f32 0.0, %v6375
    %v6377 = vpop.f32.mrf.mxu0
    %v6378 = vadd.f32 0.0, %v6377
    %6379 = vmatmul.bf16.gmra.mxu0 %v6236
    %v6380 = vpop.f32.mrf.mxu0
    %v6381 = vadd.f32 0.0, %v6380
    %v6382 = vpop.f32.mrf.mxu0
    %v6383 = vadd.f32 0.0, %v6382
    %6384 = vdwg.mxu0
    %6385 = vmatpush.bf16.msra.mxu0 %v6349
    %6386 = vmatpush.bf16.msra.mxu0 %v6348
    %6387 = vmatpush.bf16.msra.mxu0 %v6347
    %6388 = vmatpush.bf16.msra.mxu0 %v6346
    %6389 = vmatpush.bf16.msra.mxu0 %v6345
    %6390 = vmatpush.bf16.msra.mxu0 %v6344
    %6391 = vmatpush.bf16.msra.mxu0 %v6343
    %6392 = vmatpush.bf16.msra.mxu0 %v6342
    %6393 = vmatmul.bf16.gmra.mxu0 %v6235
    %v6394 = vpop.f32.mrf.mxu0
    %v6395 = vadd.f32 %v6376, %v6394
    %v6396 = vpop.f32.mrf.mxu0
    %v6397 = vadd.f32 %v6378, %v6396
    %6398 = vmatmul.bf16.gmra.mxu0 %v6237
    %v6399 = vpop.f32.mrf.mxu0
    %v6400 = vadd.f32 %v6381, %v6399
    %v6401 = vpop.f32.mrf.mxu0
    %v6402 = vadd.f32 %v6383, %v6401
    %6403 = vdwg.mxu0
    %6404 = vst [vmem:[#allocation16] sm:$0xff] %v6395
    %6405 = vst [vmem:[#allocation16 + $0x8] sm:$0xff] %v6397
    %6406 = vst [vmem:[#allocation16 + $0x10] sm:$0xff] %v6400
    %6407 = vst [vmem:[#allocation16 + $0x18] sm:$0xff] %v6402
    // Predicated region
    $region73: #{tpu_custom_call.1} parent=1 // pred_check
      _
    $region74: #{tpu_custom_call.1} parent=1 // pred_check_branch
      %6409 = sbr.rel (0) target = $region76
    $region75: #{tpu_custom_call.1} parent=1 // pred_region
      %6411 = vsyncadd [#allocation10], 0
      %s6412 = sshll.u32 [#allocation16], 4
      %s6413 = int_to_ptr.vmem [resolvable:$true] %s6412
      %s6414 = sshll.u32 %s12, 4
      %s6415 = int_to_ptr.hbm [resolvable:$true] %s6414
      %6420 = dma.vmem_to_hbm [thread:$0]  %s6413, 512, %s6415, [#allocation10], 128, 128, 8
    $region76: #{tpu_custom_call.1} parent=1 // pred_fallthru
      _
    // Predicated region
    $region77: #{tpu_custom_call.1} parent=1 // pred_check
      _
    $region78: #{tpu_custom_call.1} parent=1 // pred_check_branch
      %6422 = sbr.rel (0) target = $region80
    $region79: #{tpu_custom_call.1} parent=1 // pred_region
      %6424 = dma.done [#allocation10], 512
    $region80: #{tpu_custom_call.1} parent=1 // pred_fallthru
      _
    %6425 = vsyncpa [#allocation9], 1
    %6426 = vsyncpa [#allocation12], 1
    %6427 = vsyncpa [#allocation15], 1
    %6428 = vsyncpa [#allocation10], 1

</llo_original>
